<compile_context>
chip_gen: v6e
topology: v6e:2x2x1
jax: 0.10.0
libtpu: 0.0.40
codegen_flags: <defaults>
</compile_context>

<pallas_src>
import jax
import jax.numpy as jnp
from jax.experimental import pallas as pl
from jax.experimental.pallas import tpu as pltpu

BN_EPS = 1e-5
LANE = 128


def _round_up(x, m):
    return ((x + m - 1) // m) * m


def _pad_to(a, shape):
    pads = [(0, t - s) for s, t in zip(a.shape, shape)]
    return jnp.pad(a, pads)


def _bn_affine(g, b, m, v, c_pad):
    s = g / jnp.sqrt(v + BN_EPS)
    bias = b - m * s
    s = _pad_to(s.astype(jnp.float32), (c_pad,)).reshape(1, c_pad)
    bias = _pad_to(bias.astype(jnp.float32), (c_pad,)).reshape(1, c_pad)
    return s, bias


def _const_spec(arr):
    nd = arr.ndim
    return pl.BlockSpec(arr.shape, lambda n, _nd=nd: (0,) * _nd)


def _make_kernel(H, W, cin_p, p_p, cout_p, has_downsample):
    Hp, Wp = H + 2, W + 2
    HW = H * W
    inv_hw = 1.0 / float(HW)

    def kernel(xpad_ref, mask_ref, w1_ref, s1_ref, b1_ref,
               w2_ref, s2_ref, b2_ref,
               w3_ref, s3_ref, b3_ref,
               fc1_ref, fc2_ref, *rest):
        if has_downsample:
            wd_ref, sd_ref, bd_ref, out_ref = rest
        else:
            (out_ref,) = rest

        x4 = xpad_ref[...]                                  # (1, Hp, Wp, cin_p) f32
        x2 = x4.reshape(Hp * Wp, cin_p)

        # ---- conv1 (1x1) + bn1 + relu over the spatially padded tile ----
        h1 = jnp.dot(x2.astype(jnp.bfloat16), w1_ref[...],
                     preferred_element_type=jnp.float32)
        h1 = jnp.maximum(h1 * s1_ref[...] + b1_ref[...], 0.0)
        # zero the pad ring so conv2 sees true zero padding (no scratch round-trip)
        h1 = h1 * mask_ref[...]
        h1_3 = h1.reshape(Hp, Wp, p_p)

        # ---- conv2 (3x3, stride 1, pad 1): 9 shifted-window MXU matmuls ----
        acc = jnp.zeros((HW, p_p), jnp.float32)
        for dy in range(3):
            for dx in range(3):
                patch = h1_3[dy:dy + H, dx:dx + W, :].reshape(HW, p_p)
                acc = acc + jnp.dot(patch.astype(jnp.bfloat16),
                                    w2_ref[dy, dx],
                                    preferred_element_type=jnp.float32)
        h2 = jnp.maximum(acc * s2_ref[...] + b2_ref[...], 0.0)

        # ---- conv3 (1x1, expansion x4) + bn3 ----
        y = jnp.dot(h2.astype(jnp.bfloat16), w3_ref[...],
                    preferred_element_type=jnp.float32)
        y = y * s3_ref[...] + b3_ref[...]                    # (HW, cout_p)

        # ---- SE branch: global avg pool -> FC -> ReLU -> FC -> sigmoid ----
        pooled = jnp.sum(y, axis=0, keepdims=True) * inv_hw  # (1, cout_p)
        z = jnp.dot(pooled.astype(jnp.bfloat16), fc1_ref[...],
                    preferred_element_type=jnp.float32)
        z = jnp.maximum(z, 0.0)
        g = jnp.dot(z.astype(jnp.bfloat16), fc2_ref[...],
                    preferred_element_type=jnp.float32)
        gate = 1.0 / (1.0 + jnp.exp(-g))                     # (1, cout_p)

        # ---- residual path ----
        x3 = x4.reshape(Hp, Wp, cin_p)
        xin = x3[1:1 + H, 1:1 + W, :].reshape(HW, cin_p)
        if has_downsample:
            res = jnp.dot(xin.astype(jnp.bfloat16), wd_ref[...],
                          preferred_element_type=jnp.float32)
            res = res * sd_ref[...] + bd_ref[...]
        else:
            res = xin                                        # identity (cin_p == cout_p)

        out = jnp.maximum(y * gate + res, 0.0)
        out_ref[...] = out.reshape(1, H, W, cout_p).astype(out_ref.dtype)

    return kernel


def se_bottleneck_forward(x_nchw, params, inplanes, planes, stride=1, reduction=16):
    expansion = 4
    cout = planes * expansion
    has_downsample = 'down_w' in params
    assert stride == 1, "TODO(synk): stride > 1 not implemented in the Pallas kernel"
    if not has_downsample:
        assert inplanes == cout, "identity residual requires inplanes == planes * 4"

    N, C, H, W = x_nchw.shape
    assert C == inplanes
    Hp, Wp = H + 2, W + 2

    cin_p = _round_up(inplanes, LANE)
    p_p = _round_up(planes, LANE)
    cout_p = _round_up(cout, LANE)
    hidden = max(cout // reduction, 1)
    r_p = _round_up(hidden, LANE)

    # NCHW -> NHWC (channels last = lanes), zero-pad channels to lane width and
    # spatial by 1 (for conv2's padding=1).
    x = jnp.transpose(x_nchw, (0, 2, 3, 1)).astype(jnp.float32)
    xpad = jnp.pad(x, ((0, 0), (1, 1), (1, 1), (0, cin_p - inplanes)))

    # interior mask (1 inside the image, 0 on the pad ring), flattened spatially
    ry = jnp.arange(Hp)
    cx = jnp.arange(Wp)
    m2 = ((ry >= 1) & (ry <= H))[:, None] & ((cx >= 1) & (cx <= W))[None, :]
    mask = m2.astype(jnp.float32).reshape(Hp * Wp, 1)

    # conv/FC weights -> channels-last matmul form, zero-padded, bf16 (f32 accum in-kernel)
    w1 = _pad_to(params['conv1_w'][:, :, 0, 0].T, (cin_p, p_p)).astype(jnp.bfloat16)
    w2 = _pad_to(jnp.transpose(params['conv2_w'], (2, 3, 1, 0)),
                 (3, 3, p_p, p_p)).astype(jnp.bfloat16)
    w3 = _pad_to(params['conv3_w'][:, :, 0, 0].T, (p_p, cout_p)).astype(jnp.bfloat16)
    fc1 = _pad_to(params['fc1_w'].T, (cout_p, r_p)).astype(jnp.bfloat16)
    fc2 = _pad_to(params['fc2_w'].T, (r_p, cout_p)).astype(jnp.bfloat16)

    s1, b1 = _bn_affine(params['bn1_g'], params['bn1_b'], params['bn1_m'], params['bn1_v'], p_p)
    s2, b2 = _bn_affine(params['bn2_g'], params['bn2_b'], params['bn2_m'], params['bn2_v'], p_p)
    s3, b3 = _bn_affine(params['bn3_g'], params['bn3_b'], params['bn3_m'], params['bn3_v'], cout_p)

    args = [xpad, mask, w1, s1, b1, w2, s2, b2, w3, s3, b3, fc1, fc2]
    if has_downsample:
        wd = _pad_to(params['down_w'][:, :, 0, 0].T, (cin_p, cout_p)).astype(jnp.bfloat16)
        sd, bd = _bn_affine(params['dbn_g'], params['dbn_b'],
                            params['dbn_m'], params['dbn_v'], cout_p)
        args += [wd, sd, bd]

    in_specs = [pl.BlockSpec((1, Hp, Wp, cin_p), lambda n: (n, 0, 0, 0))]
    in_specs += [_const_spec(a) for a in args[1:]]
    out_specs = pl.BlockSpec((1, H, W, cout_p), lambda n: (n, 0, 0, 0))

    kernel = _make_kernel(H, W, cin_p, p_p, cout_p, has_downsample)
    out = pl.pallas_call(
        kernel,
        out_shape=jax.ShapeDtypeStruct((N, H, W, cout_p), jnp.float32),
        grid=(N,),
        in_specs=in_specs,
        out_specs=out_specs,
        compiler_params=pltpu.CompilerParams(
            dimension_semantics=("parallel",)),
    )(*args)

    # drop channel padding, NHWC -> NCHW to match the PyTorch module's convention
    return jnp.transpose(out[..., :cout], (0, 3, 1, 2))


def se_bottleneck_reference(x, params, inplanes, planes, stride=1, reduction=16):
    """Pure-JAX reference (XLA convs), NCHW, inference-mode BN."""
    dn = ('NCHW', 'OIHW', 'NCHW')
    hp = jax.lax.Precision.HIGHEST

    def conv(inp, w, s, pad):
        return jax.lax.conv_general_dilated(
            inp, w, (s, s), [(pad, pad), (pad, pad)],
            dimension_numbers=dn, precision=hp)

    def bn(inp, g, b, m, v):
        sc = g / jnp.sqrt(v + BN_EPS)
        return inp * sc[None, :, None, None] + (b - m * sc)[None, :, None, None]

    out = jnp.maximum(bn(conv(x, params['conv1_w'], 1, 0),
                         params['bn1_g'], params['bn1_b'],
                         params['bn1_m'], params['bn1_v']), 0.0)
    out = jnp.maximum(bn(conv(out, params['conv2_w'], stride, 1),
                         params['bn2_g'], params['bn2_b'],
                         params['bn2_m'], params['bn2_v']), 0.0)
    out = bn(conv(out, params['conv3_w'], 1, 0),
             params['bn3_g'], params['bn3_b'],
             params['bn3_m'], params['bn3_v'])

    pooled = jnp.mean(out, axis=(2, 3))                       # (B, C)
    z = jnp.maximum(pooled @ params['fc1_w'].T, 0.0)
    gate = jax.nn.sigmoid(z @ params['fc2_w'].T)
    out = out * gate[:, :, None, None]

    if 'down_w' in params:
        residual = bn(conv(x, params['down_w'], stride, 0),
                      params['dbn_g'], params['dbn_b'],
                      params['dbn_m'], params['dbn_v'])
    else:
        residual = x
    return jnp.maximum(out + residual, 0.0)


def init_params(key, inplanes, planes, with_downsample, reduction=16):
    cout = planes * 4
    hidden = max(cout // reduction, 1)
    ks = jax.random.split(key, 32)
    it = iter(range(32))

    def nk():
        return ks[next(it)]

    def bn_par(prefix, c, p):
        p[prefix + '_g'] = jax.random.uniform(nk(), (c,), jnp.float32, 0.5, 1.5)
        p[prefix + '_b'] = 0.1 * jax.random.normal(nk(), (c,), jnp.float32)
        p[prefix + '_m'] = 0.1 * jax.random.normal(nk(), (c,), jnp.float32)
        p[prefix + '_v'] = jax.random.uniform(nk(), (c,), jnp.float32, 0.5, 1.5)

    p = {}
    p['conv1_w'] = 0.2 * jax.random.normal(nk(), (planes, inplanes, 1, 1), jnp.float32)
    bn_par('bn1', planes, p)
    p['conv2_w'] = 0.1 * jax.random.normal(nk(), (planes, planes, 3, 3), jnp.float32)
    bn_par('bn2', planes, p)
    p['conv3_w'] = 0.2 * jax.random.normal(nk(), (cout, planes, 1, 1), jnp.float32)
    bn_par('bn3', cout, p)
    p['fc1_w'] = 0.5 * jax.random.normal(nk(), (hidden, cout), jnp.float32)
    p['fc2_w'] = 0.5 * jax.random.normal(nk(), (cout, hidden), jnp.float32)
    if with_downsample:
        p['down_w'] = 0.2 * jax.random.normal(nk(), (cout, inplanes, 1, 1), jnp.float32)
        bn_par('dbn', cout, p)
    return p


if __name__ == "__main__":
    key = jax.random.PRNGKey(0)
    k1, k2, k3, k4 = jax.random.split(key, 4)
    N, H, W = 2, 16, 16

    # Case 1: identity residual (inplanes == planes * 4, stride=1, downsample=None).
    inplanes, planes = 16, 4
    x = jax.random.normal(k1, (N, inplanes, H, W), jnp.float32)
    params = init_params(k2, inplanes, planes, with_downsample=False)
    out = jax.block_until_ready(se_bottleneck_forward(x, params, inplanes, planes))
    ref = se_bottleneck_reference(x, params, inplanes, planes)
    assert out.shape == ref.shape, (out.shape, ref.shape)
    err = float(jnp.max(jnp.abs(out - ref)))
    assert err < 3e-2, f"identity case mismatch vs reference: max_err={err}"

    # Case 2: 1x1-conv + BN downsample on the residual (inplanes != planes * 4).
    inplanes2, planes2 = 8, 4
    x2 = jax.random.normal(k3, (N, inplanes2, H, W), jnp.float32)
    params2 = init_params(k4, inplanes2, planes2, with_downsample=True)
    out2 = jax.block_until_ready(se_bottleneck_forward(x2, params2, inplanes2, planes2))
    ref2 = se_bottleneck_reference(x2, params2, inplanes2, planes2)
    assert out2.shape == ref2.shape, (out2.shape, ref2.shape)
    err2 = float(jnp.max(jnp.abs(out2 - ref2)))
    assert err2 < 3e-2, f"downsample case mismatch vs reference: max_err={err2}"

    print("KERNEL_OK")
</pallas_src>

<mosaic_0001>
module attributes {stable_mosaic.version = 11 : i64} {
  func.func @kernel(%arg0: i32, %arg1: memref<1x18x18x128xf32, #tpu.memory_space<vmem>>, %arg2: memref<324x1xf32, #tpu.memory_space<vmem>>, %arg3: memref<128x128xbf16, #tpu.memory_space<vmem>>, %arg4: memref<1x128xf32, #tpu.memory_space<vmem>>, %arg5: memref<1x128xf32, #tpu.memory_space<vmem>>, %arg6: memref<3x3x128x128xbf16, #tpu.memory_space<vmem>>, %arg7: memref<1x128xf32, #tpu.memory_space<vmem>>, %arg8: memref<1x128xf32, #tpu.memory_space<vmem>>, %arg9: memref<128x128xbf16, #tpu.memory_space<vmem>>, %arg10: memref<1x128xf32, #tpu.memory_space<vmem>>, %arg11: memref<1x128xf32, #tpu.memory_space<vmem>>, %arg12: memref<128x128xbf16, #tpu.memory_space<vmem>>, %arg13: memref<128x128xbf16, #tpu.memory_space<vmem>>, %arg14: memref<1x16x16x128xf32, #tpu.memory_space<vmem>>) attributes {dimension_semantics = [#tpu.dimension_semantics<parallel>], iteration_bounds = array<i64: 2>, scalar_prefetch = 0 : i64, scratch_operands = 0 : i64, tpu.core_type = #tpu.core_type<tc>, window_params = [{transform_indices = @transform_0, window_bounds = array<i64: 1, 18, 18, 128>}, {pipeline_mode = #tpu.pipeline_mode<synchronous>, transform_indices = @transform_1, window_bounds = array<i64: 324, 1>}, {pipeline_mode = #tpu.pipeline_mode<synchronous>, transform_indices = @transform_2, window_bounds = array<i64: 128, 128>}, {pipeline_mode = #tpu.pipeline_mode<synchronous>, transform_indices = @transform_3, window_bounds = array<i64: 1, 128>}, {pipeline_mode = #tpu.pipeline_mode<synchronous>, transform_indices = @transform_4, window_bounds = array<i64: 1, 128>}, {pipeline_mode = #tpu.pipeline_mode<synchronous>, transform_indices = @transform_5, window_bounds = array<i64: 3, 3, 128, 128>}, {pipeline_mode = #tpu.pipeline_mode<synchronous>, transform_indices = @transform_6, window_bounds = array<i64: 1, 128>}, {pipeline_mode = #tpu.pipeline_mode<synchronous>, transform_indices = @transform_7, window_bounds = array<i64: 1, 128>}, {pipeline_mode = #tpu.pipeline_mode<synchronous>, transform_indices = @transform_8, window_bounds = array<i64: 128, 128>}, {pipeline_mode = #tpu.pipeline_mode<synchronous>, transform_indices = @transform_9, window_bounds = array<i64: 1, 128>}, {pipeline_mode = #tpu.pipeline_mode<synchronous>, transform_indices = @transform_10, window_bounds = array<i64: 1, 128>}, {pipeline_mode = #tpu.pipeline_mode<synchronous>, transform_indices = @transform_11, window_bounds = array<i64: 128, 128>}, {pipeline_mode = #tpu.pipeline_mode<synchronous>, transform_indices = @transform_12, window_bounds = array<i64: 128, 128>}, {transform_indices = @transform_13, window_bounds = array<i64: 1, 16, 16, 128>}]} {
    %c0 = arith.constant 0 : index
    %c0_0 = arith.constant 0 : index
    %c0_1 = arith.constant 0 : index
    %c0_2 = arith.constant 0 : index
    %0 = vector.load %arg1[%c0, %c0_0, %c0_1, %c0_2] : memref<1x18x18x128xf32, #tpu.memory_space<vmem>>, vector<1x18x18x128xf32>
    %1 = vector.shape_cast %0 : vector<1x18x18x128xf32> to vector<324x128xf32>
    %2 = arith.truncf %1 : vector<324x128xf32> to vector<324x128xbf16>
    %c0_3 = arith.constant 0 : index
    %c0_4 = arith.constant 0 : index
    %3 = vector.load %arg3[%c0_3, %c0_4] : memref<128x128xbf16, #tpu.memory_space<vmem>>, vector<128x128xbf16>
    %cst = arith.constant dense<0.000000e+00> : vector<324x128xf32>
    %4 = tpu.matmul %2, %3, %cst {dimension_numbers = #tpu.dot_dimension_numbers<[1], [0], [0], [1], [0, 0, 1, 1], [], []>} : vector<324x128xbf16>, vector<128x128xbf16>, vector<324x128xf32> -> vector<324x128xf32>
    %c0_5 = arith.constant 0 : index
    %c0_6 = arith.constant 0 : index
    %5 = vector.load %arg4[%c0_5, %c0_6] : memref<1x128xf32, #tpu.memory_space<vmem>>, vector<1x128xf32>
    %6 = vector.broadcast %5 : vector<1x128xf32> to vector<324x128xf32>
    %7 = arith.mulf %4, %6 : vector<324x128xf32>
    %c0_7 = arith.constant 0 : index
    %c0_8 = arith.constant 0 : index
    %8 = vector.load %arg5[%c0_7, %c0_8] : memref<1x128xf32, #tpu.memory_space<vmem>>, vector<1x128xf32>
    %9 = vector.broadcast %8 : vector<1x128xf32> to vector<324x128xf32>
    %10 = arith.addf %7, %9 : vector<324x128xf32>
    %cst_9 = arith.constant 0.000000e+00 : f32
    %11 = vector.broadcast %cst_9 : f32 to vector<324x128xf32>
    %12 = arith.maximumf %10, %11 : vector<324x128xf32>
    %c0_10 = arith.constant 0 : index
    %c0_11 = arith.constant 0 : index
    %13 = vector.load %arg2[%c0_10, %c0_11] : memref<324x1xf32, #tpu.memory_space<vmem>>, vector<324x1xf32>
    %14 = vector.broadcast %13 : vector<324x1xf32> to vector<324x128xf32>
    %15 = arith.mulf %12, %14 : vector<324x128xf32>
    %16 = vector.shape_cast %15 : vector<324x128xf32> to vector<18x18x128xf32>
    %cst_12 = arith.constant 0.000000e+00 : f32
    %17 = vector.broadcast %cst_12 : f32 to vector<256x128xf32>
    %18 = vector.extract_strided_slice %16 {offsets = [0, 0, 0], sizes = [16, 16, 128], strides = [1, 1, 1]} : vector<18x18x128xf32> to vector<16x16x128xf32>
    %19 = vector.shape_cast %18 : vector<16x16x128xf32> to vector<256x128xf32>
    %20 = arith.truncf %19 : vector<256x128xf32> to vector<256x128xbf16>
    %c0_13 = arith.constant 0 : index
    %c0_14 = arith.constant 0 : index
    %c0_15 = arith.constant 0 : index
    %c0_16 = arith.constant 0 : index
    %21 = vector.load %arg6[%c0_13, %c0_14, %c0_15, %c0_16] : memref<3x3x128x128xbf16, #tpu.memory_space<vmem>>, vector<1x1x128x128xbf16>
    %22 = vector.shape_cast %21 : vector<1x1x128x128xbf16> to vector<128x128xbf16>
    %cst_17 = arith.constant dense<0.000000e+00> : vector<256x128xf32>
    %23 = tpu.matmul %20, %22, %cst_17 {dimension_numbers = #tpu.dot_dimension_numbers<[1], [0], [0], [1], [0, 0, 1, 1], [], []>} : vector<256x128xbf16>, vector<128x128xbf16>, vector<256x128xf32> -> vector<256x128xf32>
    %24 = arith.addf %17, %23 : vector<256x128xf32>
    %25 = vector.extract_strided_slice %16 {offsets = [0, 1, 0], sizes = [16, 16, 128], strides = [1, 1, 1]} : vector<18x18x128xf32> to vector<16x16x128xf32>
    %26 = vector.shape_cast %25 : vector<16x16x128xf32> to vector<256x128xf32>
    %27 = arith.truncf %26 : vector<256x128xf32> to vector<256x128xbf16>
    %c0_18 = arith.constant 0 : index
    %c1 = arith.constant 1 : index
    %c0_19 = arith.constant 0 : index
    %c0_20 = arith.constant 0 : index
    %28 = vector.load %arg6[%c0_18, %c1, %c0_19, %c0_20] : memref<3x3x128x128xbf16, #tpu.memory_space<vmem>>, vector<1x1x128x128xbf16>
    %29 = vector.shape_cast %28 : vector<1x1x128x128xbf16> to vector<128x128xbf16>
    %cst_21 = arith.constant dense<0.000000e+00> : vector<256x128xf32>
    %30 = tpu.matmul %27, %29, %cst_21 {dimension_numbers = #tpu.dot_dimension_numbers<[1], [0], [0], [1], [0, 0, 1, 1], [], []>} : vector<256x128xbf16>, vector<128x128xbf16>, vector<256x128xf32> -> vector<256x128xf32>
    %31 = arith.addf %24, %30 : vector<256x128xf32>
    %32 = vector.extract_strided_slice %16 {offsets = [0, 2, 0], sizes = [16, 16, 128], strides = [1, 1, 1]} : vector<18x18x128xf32> to vector<16x16x128xf32>
    %33 = vector.shape_cast %32 : vector<16x16x128xf32> to vector<256x128xf32>
    %34 = arith.truncf %33 : vector<256x128xf32> to vector<256x128xbf16>
    %c0_22 = arith.constant 0 : index
    %c2 = arith.constant 2 : index
    %c0_23 = arith.constant 0 : index
    %c0_24 = arith.constant 0 : index
    %35 = vector.load %arg6[%c0_22, %c2, %c0_23, %c0_24] : memref<3x3x128x128xbf16, #tpu.memory_space<vmem>>, vector<1x1x128x128xbf16>
    %36 = vector.shape_cast %35 : vector<1x1x128x128xbf16> to vector<128x128xbf16>
    %cst_25 = arith.constant dense<0.000000e+00> : vector<256x128xf32>
    %37 = tpu.matmul %34, %36, %cst_25 {dimension_numbers = #tpu.dot_dimension_numbers<[1], [0], [0], [1], [0, 0, 1, 1], [], []>} : vector<256x128xbf16>, vector<128x128xbf16>, vector<256x128xf32> -> vector<256x128xf32>
    %38 = arith.addf %31, %37 : vector<256x128xf32>
    %39 = vector.extract_strided_slice %16 {offsets = [1, 0, 0], sizes = [16, 16, 128], strides = [1, 1, 1]} : vector<18x18x128xf32> to vector<16x16x128xf32>
    %40 = vector.shape_cast %39 : vector<16x16x128xf32> to vector<256x128xf32>
    %41 = arith.truncf %40 : vector<256x128xf32> to vector<256x128xbf16>
    %c1_26 = arith.constant 1 : index
    %c0_27 = arith.constant 0 : index
    %c0_28 = arith.constant 0 : index
    %c0_29 = arith.constant 0 : index
    %42 = vector.load %arg6[%c1_26, %c0_27, %c0_28, %c0_29] : memref<3x3x128x128xbf16, #tpu.memory_space<vmem>>, vector<1x1x128x128xbf16>
    %43 = vector.shape_cast %42 : vector<1x1x128x128xbf16> to vector<128x128xbf16>
    %cst_30 = arith.constant dense<0.000000e+00> : vector<256x128xf32>
    %44 = tpu.matmul %41, %43, %cst_30 {dimension_numbers = #tpu.dot_dimension_numbers<[1], [0], [0], [1], [0, 0, 1, 1], [], []>} : vector<256x128xbf16>, vector<128x128xbf16>, vector<256x128xf32> -> vector<256x128xf32>
    %45 = arith.addf %38, %44 : vector<256x128xf32>
    %46 = vector.extract_strided_slice %16 {offsets = [1, 1, 0], sizes = [16, 16, 128], strides = [1, 1, 1]} : vector<18x18x128xf32> to vector<16x16x128xf32>
    %47 = vector.shape_cast %46 : vector<16x16x128xf32> to vector<256x128xf32>
    %48 = arith.truncf %47 : vector<256x128xf32> to vector<256x128xbf16>
    %c1_31 = arith.constant 1 : index
    %c1_32 = arith.constant 1 : index
    %c0_33 = arith.constant 0 : index
    %c0_34 = arith.constant 0 : index
    %49 = vector.load %arg6[%c1_31, %c1_32, %c0_33, %c0_34] : memref<3x3x128x128xbf16, #tpu.memory_space<vmem>>, vector<1x1x128x128xbf16>
    %50 = vector.shape_cast %49 : vector<1x1x128x128xbf16> to vector<128x128xbf16>
    %cst_35 = arith.constant dense<0.000000e+00> : vector<256x128xf32>
    %51 = tpu.matmul %48, %50, %cst_35 {dimension_numbers = #tpu.dot_dimension_numbers<[1], [0], [0], [1], [0, 0, 1, 1], [], []>} : vector<256x128xbf16>, vector<128x128xbf16>, vector<256x128xf32> -> vector<256x128xf32>
    %52 = arith.addf %45, %51 : vector<256x128xf32>
    %53 = vector.extract_strided_slice %16 {offsets = [1, 2, 0], sizes = [16, 16, 128], strides = [1, 1, 1]} : vector<18x18x128xf32> to vector<16x16x128xf32>
    %54 = vector.shape_cast %53 : vector<16x16x128xf32> to vector<256x128xf32>
    %55 = arith.truncf %54 : vector<256x128xf32> to vector<256x128xbf16>
    %c1_36 = arith.constant 1 : index
    %c2_37 = arith.constant 2 : index
    %c0_38 = arith.constant 0 : index
    %c0_39 = arith.constant 0 : index
    %56 = vector.load %arg6[%c1_36, %c2_37, %c0_38, %c0_39] : memref<3x3x128x128xbf16, #tpu.memory_space<vmem>>, vector<1x1x128x128xbf16>
    %57 = vector.shape_cast %56 : vector<1x1x128x128xbf16> to vector<128x128xbf16>
    %cst_40 = arith.constant dense<0.000000e+00> : vector<256x128xf32>
    %58 = tpu.matmul %55, %57, %cst_40 {dimension_numbers = #tpu.dot_dimension_numbers<[1], [0], [0], [1], [0, 0, 1, 1], [], []>} : vector<256x128xbf16>, vector<128x128xbf16>, vector<256x128xf32> -> vector<256x128xf32>
    %59 = arith.addf %52, %58 : vector<256x128xf32>
    %60 = vector.extract_strided_slice %16 {offsets = [2, 0, 0], sizes = [16, 16, 128], strides = [1, 1, 1]} : vector<18x18x128xf32> to vector<16x16x128xf32>
    %61 = vector.shape_cast %60 : vector<16x16x128xf32> to vector<256x128xf32>
    %62 = arith.truncf %61 : vector<256x128xf32> to vector<256x128xbf16>
    %c2_41 = arith.constant 2 : index
    %c0_42 = arith.constant 0 : index
    %c0_43 = arith.constant 0 : index
    %c0_44 = arith.constant 0 : index
    %63 = vector.load %arg6[%c2_41, %c0_42, %c0_43, %c0_44] : memref<3x3x128x128xbf16, #tpu.memory_space<vmem>>, vector<1x1x128x128xbf16>
    %64 = vector.shape_cast %63 : vector<1x1x128x128xbf16> to vector<128x128xbf16>
    %cst_45 = arith.constant dense<0.000000e+00> : vector<256x128xf32>
    %65 = tpu.matmul %62, %64, %cst_45 {dimension_numbers = #tpu.dot_dimension_numbers<[1], [0], [0], [1], [0, 0, 1, 1], [], []>} : vector<256x128xbf16>, vector<128x128xbf16>, vector<256x128xf32> -> vector<256x128xf32>
    %66 = arith.addf %59, %65 : vector<256x128xf32>
    %67 = vector.extract_strided_slice %16 {offsets = [2, 1, 0], sizes = [16, 16, 128], strides = [1, 1, 1]} : vector<18x18x128xf32> to vector<16x16x128xf32>
    %68 = vector.shape_cast %67 : vector<16x16x128xf32> to vector<256x128xf32>
    %69 = arith.truncf %68 : vector<256x128xf32> to vector<256x128xbf16>
    %c2_46 = arith.constant 2 : index
    %c1_47 = arith.constant 1 : index
    %c0_48 = arith.constant 0 : index
    %c0_49 = arith.constant 0 : index
    %70 = vector.load %arg6[%c2_46, %c1_47, %c0_48, %c0_49] : memref<3x3x128x128xbf16, #tpu.memory_space<vmem>>, vector<1x1x128x128xbf16>
    %71 = vector.shape_cast %70 : vector<1x1x128x128xbf16> to vector<128x128xbf16>
    %cst_50 = arith.constant dense<0.000000e+00> : vector<256x128xf32>
    %72 = tpu.matmul %69, %71, %cst_50 {dimension_numbers = #tpu.dot_dimension_numbers<[1], [0], [0], [1], [0, 0, 1, 1], [], []>} : vector<256x128xbf16>, vector<128x128xbf16>, vector<256x128xf32> -> vector<256x128xf32>
    %73 = arith.addf %66, %72 : vector<256x128xf32>
    %74 = vector.extract_strided_slice %16 {offsets = [2, 2, 0], sizes = [16, 16, 128], strides = [1, 1, 1]} : vector<18x18x128xf32> to vector<16x16x128xf32>
    %75 = vector.shape_cast %74 : vector<16x16x128xf32> to vector<256x128xf32>
    %76 = arith.truncf %75 : vector<256x128xf32> to vector<256x128xbf16>
    %c2_51 = arith.constant 2 : index
    %c2_52 = arith.constant 2 : index
    %c0_53 = arith.constant 0 : index
    %c0_54 = arith.constant 0 : index
    %77 = vector.load %arg6[%c2_51, %c2_52, %c0_53, %c0_54] : memref<3x3x128x128xbf16, #tpu.memory_space<vmem>>, vector<1x1x128x128xbf16>
    %78 = vector.shape_cast %77 : vector<1x1x128x128xbf16> to vector<128x128xbf16>
    %cst_55 = arith.constant dense<0.000000e+00> : vector<256x128xf32>
    %79 = tpu.matmul %76, %78, %cst_55 {dimension_numbers = #tpu.dot_dimension_numbers<[1], [0], [0], [1], [0, 0, 1, 1], [], []>} : vector<256x128xbf16>, vector<128x128xbf16>, vector<256x128xf32> -> vector<256x128xf32>
    %80 = arith.addf %73, %79 : vector<256x128xf32>
    %c0_56 = arith.constant 0 : index
    %c0_57 = arith.constant 0 : index
    %81 = vector.load %arg7[%c0_56, %c0_57] : memref<1x128xf32, #tpu.memory_space<vmem>>, vector<1x128xf32>
    %82 = vector.broadcast %81 : vector<1x128xf32> to vector<256x128xf32>
    %83 = arith.mulf %80, %82 : vector<256x128xf32>
    %c0_58 = arith.constant 0 : index
    %c0_59 = arith.constant 0 : index
    %84 = vector.load %arg8[%c0_58, %c0_59] : memref<1x128xf32, #tpu.memory_space<vmem>>, vector<1x128xf32>
    %85 = vector.broadcast %84 : vector<1x128xf32> to vector<256x128xf32>
    %86 = arith.addf %83, %85 : vector<256x128xf32>
    %cst_60 = arith.constant 0.000000e+00 : f32
    %87 = vector.broadcast %cst_60 : f32 to vector<256x128xf32>
    %88 = arith.maximumf %86, %87 : vector<256x128xf32>
    %89 = arith.truncf %88 : vector<256x128xf32> to vector<256x128xbf16>
    %c0_61 = arith.constant 0 : index
    %c0_62 = arith.constant 0 : index
    %90 = vector.load %arg9[%c0_61, %c0_62] : memref<128x128xbf16, #tpu.memory_space<vmem>>, vector<128x128xbf16>
    %cst_63 = arith.constant dense<0.000000e+00> : vector<256x128xf32>
    %91 = tpu.matmul %89, %90, %cst_63 {dimension_numbers = #tpu.dot_dimension_numbers<[1], [0], [0], [1], [0, 0, 1, 1], [], []>} : vector<256x128xbf16>, vector<128x128xbf16>, vector<256x128xf32> -> vector<256x128xf32>
    %c0_64 = arith.constant 0 : index
    %c0_65 = arith.constant 0 : index
    %92 = vector.load %arg10[%c0_64, %c0_65] : memref<1x128xf32, #tpu.memory_space<vmem>>, vector<1x128xf32>
    %93 = vector.broadcast %92 : vector<1x128xf32> to vector<256x128xf32>
    %94 = arith.mulf %91, %93 : vector<256x128xf32>
    %c0_66 = arith.constant 0 : index
    %c0_67 = arith.constant 0 : index
    %95 = vector.load %arg11[%c0_66, %c0_67] : memref<1x128xf32, #tpu.memory_space<vmem>>, vector<1x128xf32>
    %96 = vector.broadcast %95 : vector<1x128xf32> to vector<256x128xf32>
    %97 = arith.addf %94, %96 : vector<256x128xf32>
    %cst_68 = arith.constant dense<0.000000e+00> : vector<128xf32>
    %98 = vector.multi_reduction <add>, %97, %cst_68 [0] : vector<256x128xf32> to vector<128xf32>
    %99 = vector.shape_cast %98 : vector<128xf32> to vector<1x128xf32>
    %cst_69 = arith.constant 3.906250e-03 : f32
    %100 = vector.broadcast %cst_69 : f32 to vector<1x128xf32>
    %101 = arith.mulf %99, %100 : vector<1x128xf32>
    %102 = arith.truncf %101 : vector<1x128xf32> to vector<1x128xbf16>
    %c0_70 = arith.constant 0 : index
    %c0_71 = arith.constant 0 : index
    %103 = vector.load %arg12[%c0_70, %c0_71] : memref<128x128xbf16, #tpu.memory_space<vmem>>, vector<128x128xbf16>
    %cst_72 = arith.constant dense<0.000000e+00> : vector<1x128xf32>
    %104 = tpu.matmul %102, %103, %cst_72 {dimension_numbers = #tpu.dot_dimension_numbers<[1], [0], [0], [1], [0, 0, 1, 1], [], []>} : vector<1x128xbf16>, vector<128x128xbf16>, vector<1x128xf32> -> vector<1x128xf32>
    %cst_73 = arith.constant 0.000000e+00 : f32
    %105 = vector.broadcast %cst_73 : f32 to vector<1x128xf32>
    %106 = arith.maximumf %104, %105 : vector<1x128xf32>
    %107 = arith.truncf %106 : vector<1x128xf32> to vector<1x128xbf16>
    %c0_74 = arith.constant 0 : index
    %c0_75 = arith.constant 0 : index
    %108 = vector.load %arg13[%c0_74, %c0_75] : memref<128x128xbf16, #tpu.memory_space<vmem>>, vector<128x128xbf16>
    %cst_76 = arith.constant dense<0.000000e+00> : vector<1x128xf32>
    %109 = tpu.matmul %107, %108, %cst_76 {dimension_numbers = #tpu.dot_dimension_numbers<[1], [0], [0], [1], [0, 0, 1, 1], [], []>} : vector<1x128xbf16>, vector<128x128xbf16>, vector<1x128xf32> -> vector<1x128xf32>
    %cst_77 = arith.constant 0.000000e+00 : f32
    %110 = vector.broadcast %cst_77 : f32 to vector<1x128xf32>
    %111 = arith.subf %110, %109 : vector<1x128xf32>
    %112 = math.exp %111 : vector<1x128xf32>
    %cst_78 = arith.constant 1.000000e+00 : f32
    %113 = vector.broadcast %cst_78 : f32 to vector<1x128xf32>
    %114 = arith.addf %113, %112 : vector<1x128xf32>
    %cst_79 = arith.constant 1.000000e+00 : f32
    %115 = vector.broadcast %cst_79 : f32 to vector<1x128xf32>
    %116 = arith.divf %115, %114 : vector<1x128xf32>
    %117 = vector.shape_cast %0 : vector<1x18x18x128xf32> to vector<18x18x128xf32>
    %118 = vector.extract_strided_slice %117 {offsets = [1, 1, 0], sizes = [16, 16, 128], strides = [1, 1, 1]} : vector<18x18x128xf32> to vector<16x16x128xf32>
    %119 = vector.shape_cast %118 : vector<16x16x128xf32> to vector<256x128xf32>
    %120 = vector.broadcast %116 : vector<1x128xf32> to vector<256x128xf32>
    %121 = arith.mulf %97, %120 : vector<256x128xf32>
    %122 = arith.addf %121, %119 : vector<256x128xf32>
    %cst_80 = arith.constant 0.000000e+00 : f32
    %123 = vector.broadcast %cst_80 : f32 to vector<256x128xf32>
    %124 = arith.maximumf %122, %123 : vector<256x128xf32>
    %125 = vector.shape_cast %124 : vector<256x128xf32> to vector<1x16x16x128xf32>
    %c0_81 = arith.constant 0 : index
    %c0_82 = arith.constant 0 : index
    %c0_83 = arith.constant 0 : index
    %c0_84 = arith.constant 0 : index
    %126 = vector.load %arg14[%c0_81, %c0_82, %c0_83, %c0_84] : memref<1x16x16x128xf32, #tpu.memory_space<vmem>>, vector<1x16x16x128xf32>
    tpu.vector_store %arg14[%c0_81, %c0_82, %c0_83, %c0_84], %125 {strides = array<i32>} : memref<1x16x16x128xf32, #tpu.memory_space<vmem>>, vector<1x16x16x128xf32>,
    return
  }
  func.func @transform_0(%arg0: i32) -> (i32, i32, i32, i32) {
    %c0_i32 = arith.constant 0 : i32
    %c0_i32_0 = arith.constant 0 : i32
    %c0_i32_1 = arith.constant 0 : i32
    %c0_i32_2 = arith.constant 0 : i32
    return %arg0, %c0_i32, %c0_i32_0, %c0_i32_1 : i32, i32, i32, i32
  }
  func.func @transform_1(%arg0: i32) -> (i32, i32) {
    %c0_i32 = arith.constant 0 : i32
    %c0_i32_0 = arith.constant 0 : i32
    %c0_i32_1 = arith.constant 0 : i32
    return %c0_i32, %c0_i32_0 : i32, i32
  }
  func.func @transform_2(%arg0: i32) -> (i32, i32) {
    %c0_i32 = arith.constant 0 : i32
    %c0_i32_0 = arith.constant 0 : i32
    %c0_i32_1 = arith.constant 0 : i32
    return %c0_i32, %c0_i32_0 : i32, i32
  }
  func.func @transform_3(%arg0: i32) -> (i32, i32) {
    %c0_i32 = arith.constant 0 : i32
    %c0_i32_0 = arith.constant 0 : i32
    %c0_i32_1 = arith.constant 0 : i32
    return %c0_i32, %c0_i32_0 : i32, i32
  }
  func.func @transform_4(%arg0: i32) -> (i32, i32) {
    %c0_i32 = arith.constant 0 : i32
    %c0_i32_0 = arith.constant 0 : i32
    %c0_i32_1 = arith.constant 0 : i32
    return %c0_i32, %c0_i32_0 : i32, i32
  }
  func.func @transform_5(%arg0: i32) -> (i32, i32, i32, i32) {
    %c0_i32 = arith.constant 0 : i32
    %c0_i32_0 = arith.constant 0 : i32
    %c0_i32_1 = arith.constant 0 : i32
    %c0_i32_2 = arith.constant 0 : i32
    %c0_i32_3 = arith.constant 0 : i32
    return %c0_i32, %c0_i32_0, %c0_i32_1, %c0_i32_2 : i32, i32, i32, i32
  }
  func.func @transform_6(%arg0: i32) -> (i32, i32) {
    %c0_i32 = arith.constant 0 : i32
    %c0_i32_0 = arith.constant 0 : i32
    %c0_i32_1 = arith.constant 0 : i32
    return %c0_i32, %c0_i32_0 : i32, i32
  }
  func.func @transform_7(%arg0: i32) -> (i32, i32) {
    %c0_i32 = arith.constant 0 : i32
    %c0_i32_0 = arith.constant 0 : i32
    %c0_i32_1 = arith.constant 0 : i32
    return %c0_i32, %c0_i32_0 : i32, i32
  }
  func.func @transform_8(%arg0: i32) -> (i32, i32) {
    %c0_i32 = arith.constant 0 : i32
    %c0_i32_0 = arith.constant 0 : i32
    %c0_i32_1 = arith.constant 0 : i32
    return %c0_i32, %c0_i32_0 : i32, i32
  }
  func.func @transform_9(%arg0: i32) -> (i32, i32) {
    %c0_i32 = arith.constant 0 : i32
    %c0_i32_0 = arith.constant 0 : i32
    %c0_i32_1 = arith.constant 0 : i32
    return %c0_i32, %c0_i32_0 : i32, i32
  }
  func.func @transform_10(%arg0: i32) -> (i32, i32) {
    %c0_i32 = arith.constant 0 : i32
    %c0_i32_0 = arith.constant 0 : i32
    %c0_i32_1 = arith.constant 0 : i32
    return %c0_i32, %c0_i32_0 : i32, i32
  }
  func.func @transform_11(%arg0: i32) -> (i32, i32) {
    %c0_i32 = arith.constant 0 : i32
    %c0_i32_0 = arith.constant 0 : i32
    %c0_i32_1 = arith.constant 0 : i32
    return %c0_i32, %c0_i32_0 : i32, i32
  }
  func.func @transform_12(%arg0: i32) -> (i32, i32) {
    %c0_i32 = arith.constant 0 : i32
    %c0_i32_0 = arith.constant 0 : i32
    %c0_i32_1 = arith.constant 0 : i32
    return %c0_i32, %c0_i32_0 : i32, i32
  }
  func.func @transform_13(%arg0: i32) -> (i32, i32, i32, i32) {
    %c0_i32 = arith.constant 0 : i32
    %c0_i32_0 = arith.constant 0 : i32
    %c0_i32_1 = arith.constant 0 : i32
    %c0_i32_2 = arith.constant 0 : i32
    return %arg0, %c0_i32, %c0_i32_0, %c0_i32_1 : i32, i32, i32, i32
  }
}

</mosaic_0001>

<llo_original>
// kernel: tpu_custom_call.1
$region0: #{tpu_custom_call.1}
  #allocation0 [shape = 'u32[]', space=smem, size = 0x4, offset = 0x4, fixed_abs, tag = 'smem constant byte address 0x4 - core index']
  #allocation1 [shape = 'u32[144,128]{1,0:T(1,128)}', space=vmem, size = 0x12000, scoped, tag = 'internal scratch']
  %s0 = inlined_call_operand.vmem [shape: f32[2,18,18,128], index: 0, kind: input, shape index: {}]
  %s1 = inlined_call_operand.vmem [shape: f32[324,1], index: 1, kind: input, shape index: {}]
  %s2 = inlined_call_operand.vmem [shape: bf16[128,128], index: 2, kind: input, shape index: {}]
  %s3 = inlined_call_operand.vmem [shape: f32[1,128], index: 3, kind: input, shape index: {}]
  %s4 = inlined_call_operand.vmem [shape: f32[1,128], index: 4, kind: input, shape index: {}]
  %s5 = inlined_call_operand.vmem [shape: bf16[3,3,128,128], index: 5, kind: input, shape index: {}]
  %s6 = inlined_call_operand.vmem [shape: f32[1,128], index: 6, kind: input, shape index: {}]
  %s7 = inlined_call_operand.vmem [shape: f32[1,128], index: 7, kind: input, shape index: {}]
  %s8 = inlined_call_operand.vmem [shape: bf16[128,128], index: 8, kind: input, shape index: {}]
  %s9 = inlined_call_operand.vmem [shape: f32[1,128], index: 9, kind: input, shape index: {}]
  %s10 = inlined_call_operand.vmem [shape: f32[1,128], index: 10, kind: input, shape index: {}]
  %s11 = inlined_call_operand.vmem [shape: bf16[128,128], index: 11, kind: input, shape index: {}]
  %s12 = inlined_call_operand.vmem [shape: bf16[128,128], index: 12, kind: input, shape index: {}]
  %s13 = inlined_call_operand.hbm [shape: f32[2,16,16,128], index: 13, kind: output, shape index: {}]
  %s14 = sld [smem:[#allocation0]]
  $region85: #{tpu_custom_call.1} parent=0
    _
  %s16 = ssub.s32 1, %s14
  %s17 = scalar_select 0, %s16, %s14
  $region1: #{tpu_custom_call.1} parent=0
    #allocation2 [shape = 'u8[262144]{0}', space=vmem, size = 0x40000, scoped, tag = 'output window, operand 0']
    #allocation3 [shape = 's32[2]{0}', space=sflag, size = 0x8, scoped, tag = 'scoped memory for tpu_custom_call.1']
    %18 = vsyncpa [#allocation3], 0
    %s19 = scalar_lea.sflag [#allocation3], 1
    %20 = vsyncpa %s19, 0
    loop: start=0, step=1, limit=4
    $region2: #{tpu_custom_call.1} parent=1 // loop_pre_header
      _
    $region3: #{tpu_custom_call.1} parent=1 // loop_header
      %s22 = sphi 0, %s26
      %p23 = scmp.ge.s32.totalorder %s22, 4
      %s32 = sphi 0, %s34
      %s35 = sphi 0, %s32
      %s36 = sphi 0, %s35
      %s52 = sphi 0, %s36
      %s56 = sphi 0, %s56
      %s58 = sphi 0, %s56
      %s59 = sphi 0, %s58
      %s73 = sphi 0, %s59
      %s77 = sphi 0, %s77
      %s79 = sphi 0, %s77
      %s80 = sphi 0, %s79
      %s94 = sphi 0, %s80
      %s98 = sphi 0, %s98
      %s100 = sphi 0, %s98
      %s101 = sphi 0, %s100
      %s115 = sphi 0, %s101
      %s119 = sphi 0, %s119
      %s121 = sphi 0, %s119
      %s122 = sphi 0, %s121
      %s136 = sphi 0, %s122
      %s140 = sphi 0, %s140
      %s142 = sphi 0, %s140
      %s143 = sphi 0, %s142
      %s157 = sphi 0, %s143
      %s161 = sphi 0, %s161
      %s163 = sphi 0, %s161
      %s164 = sphi 0, %s163
      %s178 = sphi 0, %s164
      %s182 = sphi 0, %s182
      %s184 = sphi 0, %s182
      %s185 = sphi 0, %s184
      %s199 = sphi 0, %s185
      %s203 = sphi 0, %s203
      %s205 = sphi 0, %s203
      %s206 = sphi 0, %s205
      %s220 = sphi 0, %s206
      %s224 = sphi 0, %s224
      %s226 = sphi 0, %s224
      %s227 = sphi 0, %s226
      %s241 = sphi 0, %s227
      %s245 = sphi 0, %s245
      %s247 = sphi 0, %s245
      %s248 = sphi 0, %s247
      %s262 = sphi 0, %s248
      %s266 = sphi 0, %s266
      %s268 = sphi 0, %s266
      %s269 = sphi 0, %s268
      %s283 = sphi 0, %s269
      %s287 = sphi 0, %s287
      %s289 = sphi 0, %s287
      %s290 = sphi 0, %s289
      %s304 = sphi 0, %s290
      %s310 = sphi 0, %s312
      %s313 = sphi 0, %s310
      %s314 = sphi 0, %s313
      %s330 = sphi 0, %s314
    $region4: #{tpu_custom_call.1} parent=1 // loop_header_branch
      %25 = sbr.rel (%p23) target = $region8
    $region5: #{tpu_custom_call.1} parent=1 // loop_body
      %s27 = ssub.s32 %s22, 1
      %s28 = ssub.s32 %s22, 2
      %s29 = sadd.s32 %s22, 1
      %s30 = ssub.s32 %s22, %s29
      %p31 = scmp.eq.s32.totalorder %s30, 0
      %s33 = sadd.s32 %s32, 1
      %s34 = scalar_select %p31, %s32, %s33
      %p37 = pneg %p31
      %p38 = scmp.eq.s32.totalorder %s22, 1
      %p39 = por %p37, %p38
      %p40 = scmp.ne.s32.totalorder %s32, %s35
      %p41 = scmp.eq.s32.totalorder %s22, 0
      %p42 = por %p40, %p41
      %p43 = scmp.ne.s32.totalorder %s32, %s35
      %p44 = scmp.eq.s32.totalorder %s27, 1
      %p45 = por %p43, %p44
      %p46 = scmp.ne.s32.totalorder %s35, %s36
      %p47 = scmp.eq.s32.totalorder %s27, 0
      %p48 = por %p46, %p47
      %p49 = scmp.ne.s32.totalorder %s35, %s36
      %p50 = scmp.eq.s32.totalorder %s28, 1
      %p51 = por %p49, %p50
      %p53 = scmp.ne.s32.totalorder %s36, %s52
      %p54 = scmp.eq.s32.totalorder %s28, 0
      %p55 = por %p53, %p54
      %s57 = sadd.s32 %s56, 1
      %p60 = scmp.eq.s32.totalorder %s22, 1
      %p61 = scmp.ne.s32.totalorder %s56, %s58
      %p62 = scmp.eq.s32.totalorder %s22, 0
      %p63 = por %p61, %p62
      %p64 = scmp.ne.s32.totalorder %s56, %s58
      %p65 = scmp.eq.s32.totalorder %s27, 1
      %p66 = por %p64, %p65
      %p67 = scmp.ne.s32.totalorder %s58, %s59
      %p68 = scmp.eq.s32.totalorder %s27, 0
      %p69 = por %p67, %p68
      %p70 = scmp.ne.s32.totalorder %s58, %s59
      %p71 = scmp.eq.s32.totalorder %s28, 1
      %p72 = por %p70, %p71
      %p74 = scmp.ne.s32.totalorder %s59, %s73
      %p75 = scmp.eq.s32.totalorder %s28, 0
      %p76 = por %p74, %p75
      %s78 = sadd.s32 %s77, 1
      %p81 = scmp.eq.s32.totalorder %s22, 1
      %p82 = scmp.ne.s32.totalorder %s77, %s79
      %p83 = scmp.eq.s32.totalorder %s22, 0
      %p84 = por %p82, %p83
      %p85 = scmp.ne.s32.totalorder %s77, %s79
      %p86 = scmp.eq.s32.totalorder %s27, 1
      %p87 = por %p85, %p86
      %p88 = scmp.ne.s32.totalorder %s79, %s80
      %p89 = scmp.eq.s32.totalorder %s27, 0
      %p90 = por %p88, %p89
      %p91 = scmp.ne.s32.totalorder %s79, %s80
      %p92 = scmp.eq.s32.totalorder %s28, 1
      %p93 = por %p91, %p92
      %p95 = scmp.ne.s32.totalorder %s80, %s94
      %p96 = scmp.eq.s32.totalorder %s28, 0
      %p97 = por %p95, %p96
      %s99 = sadd.s32 %s98, 1
      %p102 = scmp.eq.s32.totalorder %s22, 1
      %p103 = scmp.ne.s32.totalorder %s98, %s100
      %p104 = scmp.eq.s32.totalorder %s22, 0
      %p105 = por %p103, %p104
      %p106 = scmp.ne.s32.totalorder %s98, %s100
      %p107 = scmp.eq.s32.totalorder %s27, 1
      %p108 = por %p106, %p107
      %p109 = scmp.ne.s32.totalorder %s100, %s101
      %p110 = scmp.eq.s32.totalorder %s27, 0
      %p111 = por %p109, %p110
      %p112 = scmp.ne.s32.totalorder %s100, %s101
      %p113 = scmp.eq.s32.totalorder %s28, 1
      %p114 = por %p112, %p113
      %p116 = scmp.ne.s32.totalorder %s101, %s115
      %p117 = scmp.eq.s32.totalorder %s28, 0
      %p118 = por %p116, %p117
      %s120 = sadd.s32 %s119, 1
      %p123 = scmp.eq.s32.totalorder %s22, 1
      %p124 = scmp.ne.s32.totalorder %s119, %s121
      %p125 = scmp.eq.s32.totalorder %s22, 0
      %p126 = por %p124, %p125
      %p127 = scmp.ne.s32.totalorder %s119, %s121
      %p128 = scmp.eq.s32.totalorder %s27, 1
      %p129 = por %p127, %p128
      %p130 = scmp.ne.s32.totalorder %s121, %s122
      %p131 = scmp.eq.s32.totalorder %s27, 0
      %p132 = por %p130, %p131
      %p133 = scmp.ne.s32.totalorder %s121, %s122
      %p134 = scmp.eq.s32.totalorder %s28, 1
      %p135 = por %p133, %p134
      %p137 = scmp.ne.s32.totalorder %s122, %s136
      %p138 = scmp.eq.s32.totalorder %s28, 0
      %p139 = por %p137, %p138
      %s141 = sadd.s32 %s140, 1
      %p144 = scmp.eq.s32.totalorder %s22, 1
      %p145 = scmp.ne.s32.totalorder %s140, %s142
      %p146 = scmp.eq.s32.totalorder %s22, 0
      %p147 = por %p145, %p146
      %p148 = scmp.ne.s32.totalorder %s140, %s142
      %p149 = scmp.eq.s32.totalorder %s27, 1
      %p150 = por %p148, %p149
      %p151 = scmp.ne.s32.totalorder %s142, %s143
      %p152 = scmp.eq.s32.totalorder %s27, 0
      %p153 = por %p151, %p152
      %p154 = scmp.ne.s32.totalorder %s142, %s143
      %p155 = scmp.eq.s32.totalorder %s28, 1
      %p156 = por %p154, %p155
      %p158 = scmp.ne.s32.totalorder %s143, %s157
      %p159 = scmp.eq.s32.totalorder %s28, 0
      %p160 = por %p158, %p159
      %s162 = sadd.s32 %s161, 1
      %p165 = scmp.eq.s32.totalorder %s22, 1
      %p166 = scmp.ne.s32.totalorder %s161, %s163
      %p167 = scmp.eq.s32.totalorder %s22, 0
      %p168 = por %p166, %p167
      %p169 = scmp.ne.s32.totalorder %s161, %s163
      %p170 = scmp.eq.s32.totalorder %s27, 1
      %p171 = por %p169, %p170
      %p172 = scmp.ne.s32.totalorder %s163, %s164
      %p173 = scmp.eq.s32.totalorder %s27, 0
      %p174 = por %p172, %p173
      %p175 = scmp.ne.s32.totalorder %s163, %s164
      %p176 = scmp.eq.s32.totalorder %s28, 1
      %p177 = por %p175, %p176
      %p179 = scmp.ne.s32.totalorder %s164, %s178
      %p180 = scmp.eq.s32.totalorder %s28, 0
      %p181 = por %p179, %p180
      %s183 = sadd.s32 %s182, 1
      %p186 = scmp.eq.s32.totalorder %s22, 1
      %p187 = scmp.ne.s32.totalorder %s182, %s184
      %p188 = scmp.eq.s32.totalorder %s22, 0
      %p189 = por %p187, %p188
      %p190 = scmp.ne.s32.totalorder %s182, %s184
      %p191 = scmp.eq.s32.totalorder %s27, 1
      %p192 = por %p190, %p191
      %p193 = scmp.ne.s32.totalorder %s184, %s185
      %p194 = scmp.eq.s32.totalorder %s27, 0
      %p195 = por %p193, %p194
      %p196 = scmp.ne.s32.totalorder %s184, %s185
      %p197 = scmp.eq.s32.totalorder %s28, 1
      %p198 = por %p196, %p197
      %p200 = scmp.ne.s32.totalorder %s185, %s199
      %p201 = scmp.eq.s32.totalorder %s28, 0
      %p202 = por %p200, %p201
      %s204 = sadd.s32 %s203, 1
      %p207 = scmp.eq.s32.totalorder %s22, 1
      %p208 = scmp.ne.s32.totalorder %s203, %s205
      %p209 = scmp.eq.s32.totalorder %s22, 0
      %p210 = por %p208, %p209
      %p211 = scmp.ne.s32.totalorder %s203, %s205
      %p212 = scmp.eq.s32.totalorder %s27, 1
      %p213 = por %p211, %p212
      %p214 = scmp.ne.s32.totalorder %s205, %s206
      %p215 = scmp.eq.s32.totalorder %s27, 0
      %p216 = por %p214, %p215
      %p217 = scmp.ne.s32.totalorder %s205, %s206
      %p218 = scmp.eq.s32.totalorder %s28, 1
      %p219 = por %p217, %p218
      %p221 = scmp.ne.s32.totalorder %s206, %s220
      %p222 = scmp.eq.s32.totalorder %s28, 0
      %p223 = por %p221, %p222
      %s225 = sadd.s32 %s224, 1
      %p228 = scmp.eq.s32.totalorder %s22, 1
      %p229 = scmp.ne.s32.totalorder %s224, %s226
      %p230 = scmp.eq.s32.totalorder %s22, 0
      %p231 = por %p229, %p230
      %p232 = scmp.ne.s32.totalorder %s224, %s226
      %p233 = scmp.eq.s32.totalorder %s27, 1
      %p234 = por %p232, %p233
      %p235 = scmp.ne.s32.totalorder %s226, %s227
      %p236 = scmp.eq.s32.totalorder %s27, 0
      %p237 = por %p235, %p236
      %p238 = scmp.ne.s32.totalorder %s226, %s227
      %p239 = scmp.eq.s32.totalorder %s28, 1
      %p240 = por %p238, %p239
      %p242 = scmp.ne.s32.totalorder %s227, %s241
      %p243 = scmp.eq.s32.totalorder %s28, 0
      %p244 = por %p242, %p243
      %s246 = sadd.s32 %s245, 1
      %p249 = scmp.eq.s32.totalorder %s22, 1
      %p250 = scmp.ne.s32.totalorder %s245, %s247
      %p251 = scmp.eq.s32.totalorder %s22, 0
      %p252 = por %p250, %p251
      %p253 = scmp.ne.s32.totalorder %s245, %s247
      %p254 = scmp.eq.s32.totalorder %s27, 1
      %p255 = por %p253, %p254
      %p256 = scmp.ne.s32.totalorder %s247, %s248
      %p257 = scmp.eq.s32.totalorder %s27, 0
      %p258 = por %p256, %p257
      %p259 = scmp.ne.s32.totalorder %s247, %s248
      %p260 = scmp.eq.s32.totalorder %s28, 1
      %p261 = por %p259, %p260
      %p263 = scmp.ne.s32.totalorder %s248, %s262
      %p264 = scmp.eq.s32.totalorder %s28, 0
      %p265 = por %p263, %p264
      %s267 = sadd.s32 %s266, 1
      %p270 = scmp.eq.s32.totalorder %s22, 1
      %p271 = scmp.ne.s32.totalorder %s266, %s268
      %p272 = scmp.eq.s32.totalorder %s22, 0
      %p273 = por %p271, %p272
      %p274 = scmp.ne.s32.totalorder %s266, %s268
      %p275 = scmp.eq.s32.totalorder %s27, 1
      %p276 = por %p274, %p275
      %p277 = scmp.ne.s32.totalorder %s268, %s269
      %p278 = scmp.eq.s32.totalorder %s27, 0
      %p279 = por %p277, %p278
      %p280 = scmp.ne.s32.totalorder %s268, %s269
      %p281 = scmp.eq.s32.totalorder %s28, 1
      %p282 = por %p280, %p281
      %p284 = scmp.ne.s32.totalorder %s269, %s283
      %p285 = scmp.eq.s32.totalorder %s28, 0
      %p286 = por %p284, %p285
      %s288 = sadd.s32 %s287, 1
      %p291 = scmp.eq.s32.totalorder %s22, 1
      %p292 = scmp.ne.s32.totalorder %s287, %s289
      %p293 = scmp.eq.s32.totalorder %s22, 0
      %p294 = por %p292, %p293
      %p295 = scmp.ne.s32.totalorder %s287, %s289
      %p296 = scmp.eq.s32.totalorder %s27, 1
      %p297 = por %p295, %p296
      %p298 = scmp.ne.s32.totalorder %s289, %s290
      %p299 = scmp.eq.s32.totalorder %s27, 0
      %p300 = por %p298, %p299
      %p301 = scmp.ne.s32.totalorder %s289, %s290
      %p302 = scmp.eq.s32.totalorder %s28, 1
      %p303 = por %p301, %p302
      %p305 = scmp.ne.s32.totalorder %s290, %s304
      %p306 = scmp.eq.s32.totalorder %s28, 0
      %p307 = por %p305, %p306
      %s308 = ssub.s32 %s22, %s29
      %p309 = scmp.eq.s32.totalorder %s308, 0
      %s311 = sadd.s32 %s310, 1
      %s312 = scalar_select %p309, %s310, %s311
      %p315 = pneg %p309
      %p316 = scmp.eq.s32.totalorder %s22, 1
      %p317 = por %p315, %p316
      %p318 = scmp.ne.s32.totalorder %s310, %s313
      %p319 = scmp.eq.s32.totalorder %s22, 0
      %p320 = por %p318, %p319
      %p321 = scmp.ne.s32.totalorder %s310, %s313
      %p322 = scmp.eq.s32.totalorder %s27, 1
      %p323 = por %p321, %p322
      %p324 = scmp.ne.s32.totalorder %s313, %s314
      %p325 = scmp.eq.s32.totalorder %s27, 0
      %p326 = por %p324, %p325
      %p327 = scmp.ne.s32.totalorder %s313, %s314
      %p328 = scmp.eq.s32.totalorder %s28, 1
      %p329 = por %p327, %p328
      %p331 = scmp.ne.s32.totalorder %s314, %s330
      %p332 = scmp.eq.s32.totalorder %s28, 0
      %p333 = por %p331, %p332
      %p334 = scmp.le.s32.totalorder 1, %s22
      %p335 = scmp.lt.s32.totalorder %s22, 3
      %p336 = pnand %p334, %p335
      %p337 = pneg %p336
      // Predicated region
      $region9: #{tpu_custom_call.1} parent=5 // pred_check
        _
      $region10: #{tpu_custom_call.1} parent=5 // pred_check_branch
        %339 = sbr.rel (%p336) target = $region12
      $region11: #{tpu_custom_call.1} parent=5 // pred_region
        %s340 = ssub.s32 %s22, 1
        // Predicated region
        $region13: #{tpu_custom_call.1} parent=11 // pred_check
          %p341 = pneg %p69
        $region14: #{tpu_custom_call.1} parent=11 // pred_check_branch
          %343 = sbr.rel (%p341) target = $region16
        $region15: #{tpu_custom_call.1} parent=11 // pred_region
          _
        $region16: #{tpu_custom_call.1} parent=11 // pred_fallthru
          _
        // Predicated region
        $region17: #{tpu_custom_call.1} parent=11 // pred_check
          %p344 = pneg %p90
        $region18: #{tpu_custom_call.1} parent=11 // pred_check_branch
          %346 = sbr.rel (%p344) target = $region20
        $region19: #{tpu_custom_call.1} parent=11 // pred_region
          _
        $region20: #{tpu_custom_call.1} parent=11 // pred_fallthru
          _
        // Predicated region
        $region21: #{tpu_custom_call.1} parent=11 // pred_check
          %p347 = pneg %p111
        $region22: #{tpu_custom_call.1} parent=11 // pred_check_branch
          %349 = sbr.rel (%p347) target = $region24
        $region23: #{tpu_custom_call.1} parent=11 // pred_region
          _
        $region24: #{tpu_custom_call.1} parent=11 // pred_fallthru
          _
        // Predicated region
        $region25: #{tpu_custom_call.1} parent=11 // pred_check
          %p350 = pneg %p132
        $region26: #{tpu_custom_call.1} parent=11 // pred_check_branch
          %352 = sbr.rel (%p350) target = $region28
        $region27: #{tpu_custom_call.1} parent=11 // pred_region
          _
        $region28: #{tpu_custom_call.1} parent=11 // pred_fallthru
          _
        // Predicated region
        $region29: #{tpu_custom_call.1} parent=11 // pred_check
          %p353 = pneg %p153
        $region30: #{tpu_custom_call.1} parent=11 // pred_check_branch
          %355 = sbr.rel (%p353) target = $region32
        $region31: #{tpu_custom_call.1} parent=11 // pred_region
          _
        $region32: #{tpu_custom_call.1} parent=11 // pred_fallthru
          _
        // Predicated region
        $region33: #{tpu_custom_call.1} parent=11 // pred_check
          %p356 = pneg %p174
        $region34: #{tpu_custom_call.1} parent=11 // pred_check_branch
          %358 = sbr.rel (%p356) target = $region36
        $region35: #{tpu_custom_call.1} parent=11 // pred_region
          _
        $region36: #{tpu_custom_call.1} parent=11 // pred_fallthru
          _
        // Predicated region
        $region37: #{tpu_custom_call.1} parent=11 // pred_check
          %p359 = pneg %p195
        $region38: #{tpu_custom_call.1} parent=11 // pred_check_branch
          %361 = sbr.rel (%p359) target = $region40
        $region39: #{tpu_custom_call.1} parent=11 // pred_region
          _
        $region40: #{tpu_custom_call.1} parent=11 // pred_fallthru
          _
        // Predicated region
        $region41: #{tpu_custom_call.1} parent=11 // pred_check
          %p362 = pneg %p216
        $region42: #{tpu_custom_call.1} parent=11 // pred_check_branch
          %364 = sbr.rel (%p362) target = $region44
        $region43: #{tpu_custom_call.1} parent=11 // pred_region
          _
        $region44: #{tpu_custom_call.1} parent=11 // pred_fallthru
          _
        // Predicated region
        $region45: #{tpu_custom_call.1} parent=11 // pred_check
          %p365 = pneg %p237
        $region46: #{tpu_custom_call.1} parent=11 // pred_check_branch
          %367 = sbr.rel (%p365) target = $region48
        $region47: #{tpu_custom_call.1} parent=11 // pred_region
          _
        $region48: #{tpu_custom_call.1} parent=11 // pred_fallthru
          _
        // Predicated region
        $region49: #{tpu_custom_call.1} parent=11 // pred_check
          %p368 = pneg %p258
        $region50: #{tpu_custom_call.1} parent=11 // pred_check_branch
          %370 = sbr.rel (%p368) target = $region52
        $region51: #{tpu_custom_call.1} parent=11 // pred_region
          _
        $region52: #{tpu_custom_call.1} parent=11 // pred_fallthru
          _
        // Predicated region
        $region53: #{tpu_custom_call.1} parent=11 // pred_check
          %p371 = pneg %p279
        $region54: #{tpu_custom_call.1} parent=11 // pred_check_branch
          %373 = sbr.rel (%p371) target = $region56
        $region55: #{tpu_custom_call.1} parent=11 // pred_region
          _
        $region56: #{tpu_custom_call.1} parent=11 // pred_fallthru
          _
        // Predicated region
        $region57: #{tpu_custom_call.1} parent=11 // pred_check
          %p374 = pneg %p300
        $region58: #{tpu_custom_call.1} parent=11 // pred_check_branch
          %376 = sbr.rel (%p374) target = $region60
        $region59: #{tpu_custom_call.1} parent=11 // pred_region
          _
        $region60: #{tpu_custom_call.1} parent=11 // pred_fallthru
          _
      $region12: #{tpu_custom_call.1} parent=5 // pred_fallthru
        _
      %p377 = scmp.lt.s32.totalorder %s22, 2
      // Predicated region
      $region61: #{tpu_custom_call.1} parent=5 // pred_check
        %p378 = pneg %p377
      $region62: #{tpu_custom_call.1} parent=5 // pred_check_branch
        %380 = sbr.rel (%p378) target = $region64
      $region63: #{tpu_custom_call.1} parent=5 // pred_region
        // Predicated region
        $region65: #{tpu_custom_call.1} parent=63 // pred_check
          %p381 = pneg %p42
        $region66: #{tpu_custom_call.1} parent=63 // pred_check_branch
          %383 = sbr.rel (%p381) target = $region68
        $region67: #{tpu_custom_call.1} parent=63 // pred_region
          %p384 = scmp.lt.s32.totalorder %s22, 1
          %s385 = scalar_select %p384, %s22, 1
          %s386 = smul.addr %s385, 54
          %s387 = smul.addr %s386, 8
          %s388 = scalar_lea.vmem %s0, %s387
        $region68: #{tpu_custom_call.1} parent=63 // pred_fallthru
          _
      $region64: #{tpu_custom_call.1} parent=5 // pred_fallthru
        _
      %p389 = scmp.le.s32.totalorder 1, %s22
      %p390 = scmp.lt.s32.totalorder %s22, 3
      %p391 = pnand %p389, %p390
      %p392 = pneg %p391
      // Predicated region
      $region69: #{tpu_custom_call.1} parent=5 // pred_check
        _
      $region70: #{tpu_custom_call.1} parent=5 // pred_check_branch
        %394 = sbr.rel (%p391) target = $region72
      $region71: #{tpu_custom_call.1} parent=5 // pred_region
        %s395 = ssub.s32 %s22, 1
        %p396 = scmp.lt.s32.totalorder %s27, 1
        %s397 = scalar_select %p396, %s27, 1
        %s398 = smul.addr %s397, 54
        %s399 = smul.addr %s398, 8
        %s400 = scalar_lea.vmem %s0, %s399
        %p401 = pneg %p48
        %p402 = pneg %p45
        %p403 = pneg %p69
        %p404 = pneg %p66
        %p405 = pneg %p90
        %p406 = pneg %p87
        %p407 = pneg %p111
        %p408 = pneg %p108
        %p409 = pneg %p132
        %p410 = pneg %p129
        %p411 = pneg %p153
        %p412 = pneg %p150
        %p413 = pneg %p174
        %p414 = pneg %p171
        %p415 = pneg %p195
        %p416 = pneg %p192
        %p417 = pneg %p216
        %p418 = pneg %p213
        %p419 = pneg %p237
        %p420 = pneg %p234
        %p421 = pneg %p258
        %p422 = pneg %p255
        %p423 = pneg %p279
        %p424 = pneg %p276
        %p425 = pneg %p300
        %p426 = pneg %p297
        %p427 = pneg %p326
        %p428 = pneg %p323
        %s429 = sand.u32 %s313, 1
        %s430 = scalar_lea.sflag [#allocation3], %s429
        %s431 = sand.u32 %s313, 1
        %s432 = smul.addr %s431, 256
        %s433 = scalar_lea.vmem [#allocation2], %s432
        %p434 = scmp.lt.s32.totalorder %s27, 1
        %s435 = scalar_select %p434, %s27, 1
        %s436 = smul.addr %s435, 54
        %s437 = smul.addr %s436, 8
        %s438 = scalar_lea.vmem %s0, %s437
        %v440 = vld [vmem:[%s438] sm:$0xff]
        %v441 = vld [vmem:[%s438 + $0x8] sm:$0xff]
        %v442 = vld [vmem:[%s438 + $0x10] sm:$0x3]
        %v443 = vld [vmem:[%s438 + $0x18] sm:$0xff]
        %v444 = vld [vmem:[%s438 + $0x20] sm:$0xff]
        %v445 = vld [vmem:[%s438 + $0x28] sm:$0x3]
        %v446 = vld [vmem:[%s438 + $0x30] sm:$0xff]
        %v447 = vld [vmem:[%s438 + $0x38] sm:$0xff]
        %v448 = vld [vmem:[%s438 + $0x40] sm:$0x3]
        %v449 = vld [vmem:[%s438 + $0x48] sm:$0xff]
        %v450 = vld [vmem:[%s438 + $0x50] sm:$0xff]
        %v451 = vld [vmem:[%s438 + $0x58] sm:$0x3]
        %v452 = vld [vmem:[%s438 + $0x60] sm:$0xff]
        %v453 = vld [vmem:[%s438 + $0x68] sm:$0xff]
        %v454 = vld [vmem:[%s438 + $0x70] sm:$0x3]
        %v455 = vld [vmem:[%s438 + $0x78] sm:$0xff]
        %v456 = vld [vmem:[%s438 + $0x80] sm:$0xff]
        %v457 = vld [vmem:[%s438 + $0x88] sm:$0x3]
        %v458 = vld [vmem:[%s438 + $0x90] sm:$0xff]
        %v459 = vld [vmem:[%s438 + $0x98] sm:$0xff]
        %v460 = vld [vmem:[%s438 + $0xa0] sm:$0x3]
        %v461 = vld [vmem:[%s438 + $0xa8] sm:$0xff]
        %v462 = vld [vmem:[%s438 + $0xb0] sm:$0xff]
        %v463 = vld [vmem:[%s438 + $0xb8] sm:$0x3]
        %v464 = vld [vmem:[%s438 + $0xc0] sm:$0xff]
        %v465 = vld [vmem:[%s438 + $0xc8] sm:$0xff]
        %v466 = vld [vmem:[%s438 + $0xd0] sm:$0x3]
        %v467 = vld [vmem:[%s438 + $0xd8] sm:$0xff]
        %v468 = vld [vmem:[%s438 + $0xe0] sm:$0xff]
        %v469 = vld [vmem:[%s438 + $0xe8] sm:$0x3]
        %v470 = vld [vmem:[%s438 + $0xf0] sm:$0xff]
        %v471 = vld [vmem:[%s438 + $0xf8] sm:$0xff]
        %v472 = vld [vmem:[%s438 + $0x100] sm:$0x3]
        %v473 = vld [vmem:[%s438 + $0x108] sm:$0xff]
        %v474 = vld [vmem:[%s438 + $0x110] sm:$0xff]
        %v475 = vld [vmem:[%s438 + $0x118] sm:$0x3]
        %v476 = vld [vmem:[%s438 + $0x120] sm:$0xff]
        %v477 = vld [vmem:[%s438 + $0x128] sm:$0xff]
        %v478 = vld [vmem:[%s438 + $0x130] sm:$0x3]
        %v479 = vld [vmem:[%s438 + $0x138] sm:$0xff]
        %v480 = vld [vmem:[%s438 + $0x140] sm:$0xff]
        %v481 = vld [vmem:[%s438 + $0x148] sm:$0x3]
        %v482 = vld [vmem:[%s438 + $0x150] sm:$0xff]
        %v483 = vld [vmem:[%s438 + $0x158] sm:$0xff]
        %v484 = vld [vmem:[%s438 + $0x160] sm:$0x3]
        %v485 = vld [vmem:[%s438 + $0x168] sm:$0xff]
        %v486 = vld [vmem:[%s438 + $0x170] sm:$0xff]
        %v487 = vld [vmem:[%s438 + $0x178] sm:$0x3]
        %v488 = vld [vmem:[%s438 + $0x180] sm:$0xff]
        %v489 = vld [vmem:[%s438 + $0x188] sm:$0xff]
        %v490 = vld [vmem:[%s438 + $0x190] sm:$0x3]
        %v491 = vld [vmem:[%s438 + $0x198] sm:$0xff]
        %v492 = vld [vmem:[%s438 + $0x1a0] sm:$0xff]
        %v493 = vld [vmem:[%s438 + $0x1a8] sm:$0x3]
        %v548 = vcombine.high %v440, %v440
        %v550 = vunpack.c.l.s4 1983009808
        %v551 = vunpack.c.0.s8 %v550
        %v552 = vlaneseq
        %v553 = vshrl.u32 %v552, 7
        %v554 = vsub.s32 %v551, %v553
        %v555 = vrot.slane %v440, %v554
        %v557 = vunpack.c.l.s4 1983009808
        %v558 = vunpack.c.0.s8 %v557
        %v559 = vlaneseq
        %v560 = vshrl.u32 %v559, 7
        %v561 = vsub.s32 %v558, %v560
        %v562 = vrot.slane %v548, %v561
        %v563 = vcombine.high %v555, %v555
        %v564 = vcombine.high %v562, %v562
        %v565 = vcombine.high %v441, %v441
        %v567 = vunpack.c.l.s4 1983009808
        %v568 = vunpack.c.0.s8 %v567
        %v569 = vlaneseq
        %v570 = vshrl.u32 %v569, 7
        %v571 = vsub.s32 %v568, %v570
        %v572 = vrot.slane %v441, %v571
        %v574 = vunpack.c.l.s4 1983009808
        %v575 = vunpack.c.0.s8 %v574
        %v576 = vlaneseq
        %v577 = vshrl.u32 %v576, 7
        %v578 = vsub.s32 %v575, %v577
        %v579 = vrot.slane %v565, %v578
        %v580 = vcombine.high %v572, %v572
        %v581 = vcombine.high %v579, %v579
        %v583 = vunpack.c.l.s4 1983009808
        %v584 = vunpack.c.0.s8 %v583
        %v585 = vlaneseq
        %v586 = vshrl.u32 %v585, 7
        %v587 = vsub.s32 %v584, %v586
        %v588 = vrot.slane %v442, %v587
        %v589 = vcombine.high %v443, %v443
        %v591 = vunpack.c.l.s4 1983009808
        %v592 = vunpack.c.0.s8 %v591
        %v593 = vlaneseq
        %v594 = vshrl.u32 %v593, 7
        %v595 = vsub.s32 %v592, %v594
        %v596 = vrot.slane %v443, %v595
        %v598 = vunpack.c.l.s4 1983009808
        %v599 = vunpack.c.0.s8 %v598
        %v600 = vlaneseq
        %v601 = vshrl.u32 %v600, 7
        %v602 = vsub.s32 %v599, %v601
        %v603 = vrot.slane %v589, %v602
        %v604 = vcombine.high %v596, %v596
        %v605 = vcombine.high %v603, %v603
        %v606 = vcombine.high %v444, %v444
        %v608 = vunpack.c.l.s4 1983009808
        %v609 = vunpack.c.0.s8 %v608
        %v610 = vlaneseq
        %v611 = vshrl.u32 %v610, 7
        %v612 = vsub.s32 %v609, %v611
        %v613 = vrot.slane %v444, %v612
        %v615 = vunpack.c.l.s4 1983009808
        %v616 = vunpack.c.0.s8 %v615
        %v617 = vlaneseq
        %v618 = vshrl.u32 %v617, 7
        %v619 = vsub.s32 %v616, %v618
        %v620 = vrot.slane %v606, %v619
        %v621 = vcombine.high %v613, %v613
        %v622 = vcombine.high %v620, %v620
        %v624 = vunpack.c.l.s4 1983009808
        %v625 = vunpack.c.0.s8 %v624
        %v626 = vlaneseq
        %v627 = vshrl.u32 %v626, 7
        %v628 = vsub.s32 %v625, %v627
        %v629 = vrot.slane %v445, %v628
        %v630 = vcombine.high %v446, %v446
        %v632 = vunpack.c.l.s4 1983009808
        %v633 = vunpack.c.0.s8 %v632
        %v634 = vlaneseq
        %v635 = vshrl.u32 %v634, 7
        %v636 = vsub.s32 %v633, %v635
        %v637 = vrot.slane %v446, %v636
        %v639 = vunpack.c.l.s4 1983009808
        %v640 = vunpack.c.0.s8 %v639
        %v641 = vlaneseq
        %v642 = vshrl.u32 %v641, 7
        %v643 = vsub.s32 %v640, %v642
        %v644 = vrot.slane %v630, %v643
        %v645 = vcombine.high %v637, %v637
        %v646 = vcombine.high %v644, %v644
        %v647 = vcombine.high %v447, %v447
        %v649 = vunpack.c.l.s4 1983009808
        %v650 = vunpack.c.0.s8 %v649
        %v651 = vlaneseq
        %v652 = vshrl.u32 %v651, 7
        %v653 = vsub.s32 %v650, %v652
        %v654 = vrot.slane %v447, %v653
        %v656 = vunpack.c.l.s4 1983009808
        %v657 = vunpack.c.0.s8 %v656
        %v658 = vlaneseq
        %v659 = vshrl.u32 %v658, 7
        %v660 = vsub.s32 %v657, %v659
        %v661 = vrot.slane %v647, %v660
        %v662 = vcombine.high %v654, %v654
        %v663 = vcombine.high %v661, %v661
        %v665 = vunpack.c.l.s4 1983009808
        %v666 = vunpack.c.0.s8 %v665
        %v667 = vlaneseq
        %v668 = vshrl.u32 %v667, 7
        %v669 = vsub.s32 %v666, %v668
        %v670 = vrot.slane %v448, %v669
        %v671 = vcombine.high %v449, %v449
        %v673 = vunpack.c.l.s4 1983009808
        %v674 = vunpack.c.0.s8 %v673
        %v675 = vlaneseq
        %v676 = vshrl.u32 %v675, 7
        %v677 = vsub.s32 %v674, %v676
        %v678 = vrot.slane %v449, %v677
        %v680 = vunpack.c.l.s4 1983009808
        %v681 = vunpack.c.0.s8 %v680
        %v682 = vlaneseq
        %v683 = vshrl.u32 %v682, 7
        %v684 = vsub.s32 %v681, %v683
        %v685 = vrot.slane %v671, %v684
        %v686 = vcombine.high %v678, %v678
        %v687 = vcombine.high %v685, %v685
        %v688 = vcombine.high %v450, %v450
        %v690 = vunpack.c.l.s4 1983009808
        %v691 = vunpack.c.0.s8 %v690
        %v692 = vlaneseq
        %v693 = vshrl.u32 %v692, 7
        %v694 = vsub.s32 %v691, %v693
        %v695 = vrot.slane %v450, %v694
        %v697 = vunpack.c.l.s4 1983009808
        %v698 = vunpack.c.0.s8 %v697
        %v699 = vlaneseq
        %v700 = vshrl.u32 %v699, 7
        %v701 = vsub.s32 %v698, %v700
        %v702 = vrot.slane %v688, %v701
        %v703 = vcombine.high %v695, %v695
        %v704 = vcombine.high %v702, %v702
        %v706 = vunpack.c.l.s4 1983009808
        %v707 = vunpack.c.0.s8 %v706
        %v708 = vlaneseq
        %v709 = vshrl.u32 %v708, 7
        %v710 = vsub.s32 %v707, %v709
        %v711 = vrot.slane %v451, %v710
        %v712 = vcombine.high %v452, %v452
        %v714 = vunpack.c.l.s4 1983009808
        %v715 = vunpack.c.0.s8 %v714
        %v716 = vlaneseq
        %v717 = vshrl.u32 %v716, 7
        %v718 = vsub.s32 %v715, %v717
        %v719 = vrot.slane %v452, %v718
        %v721 = vunpack.c.l.s4 1983009808
        %v722 = vunpack.c.0.s8 %v721
        %v723 = vlaneseq
        %v724 = vshrl.u32 %v723, 7
        %v725 = vsub.s32 %v722, %v724
        %v726 = vrot.slane %v712, %v725
        %v727 = vcombine.high %v719, %v719
        %v728 = vcombine.high %v726, %v726
        %v729 = vcombine.high %v453, %v453
        %v731 = vunpack.c.l.s4 1983009808
        %v732 = vunpack.c.0.s8 %v731
        %v733 = vlaneseq
        %v734 = vshrl.u32 %v733, 7
        %v735 = vsub.s32 %v732, %v734
        %v736 = vrot.slane %v453, %v735
        %v738 = vunpack.c.l.s4 1983009808
        %v739 = vunpack.c.0.s8 %v738
        %v740 = vlaneseq
        %v741 = vshrl.u32 %v740, 7
        %v742 = vsub.s32 %v739, %v741
        %v743 = vrot.slane %v729, %v742
        %v744 = vcombine.high %v736, %v736
        %v745 = vcombine.high %v743, %v743
        %v747 = vunpack.c.l.s4 1983009808
        %v748 = vunpack.c.0.s8 %v747
        %v749 = vlaneseq
        %v750 = vshrl.u32 %v749, 7
        %v751 = vsub.s32 %v748, %v750
        %v752 = vrot.slane %v454, %v751
        %v753 = vcombine.high %v455, %v455
        %v755 = vunpack.c.l.s4 1983009808
        %v756 = vunpack.c.0.s8 %v755
        %v757 = vlaneseq
        %v758 = vshrl.u32 %v757, 7
        %v759 = vsub.s32 %v756, %v758
        %v760 = vrot.slane %v455, %v759
        %v762 = vunpack.c.l.s4 1983009808
        %v763 = vunpack.c.0.s8 %v762
        %v764 = vlaneseq
        %v765 = vshrl.u32 %v764, 7
        %v766 = vsub.s32 %v763, %v765
        %v767 = vrot.slane %v753, %v766
        %v768 = vcombine.high %v760, %v760
        %v769 = vcombine.high %v767, %v767
        %v770 = vcombine.high %v456, %v456
        %v772 = vunpack.c.l.s4 1983009808
        %v773 = vunpack.c.0.s8 %v772
        %v774 = vlaneseq
        %v775 = vshrl.u32 %v774, 7
        %v776 = vsub.s32 %v773, %v775
        %v777 = vrot.slane %v456, %v776
        %v779 = vunpack.c.l.s4 1983009808
        %v780 = vunpack.c.0.s8 %v779
        %v781 = vlaneseq
        %v782 = vshrl.u32 %v781, 7
        %v783 = vsub.s32 %v780, %v782
        %v784 = vrot.slane %v770, %v783
        %v785 = vcombine.high %v777, %v777
        %v786 = vcombine.high %v784, %v784
        %v788 = vunpack.c.l.s4 1983009808
        %v789 = vunpack.c.0.s8 %v788
        %v790 = vlaneseq
        %v791 = vshrl.u32 %v790, 7
        %v792 = vsub.s32 %v789, %v791
        %v793 = vrot.slane %v457, %v792
        %v794 = vcombine.high %v458, %v458
        %v796 = vunpack.c.l.s4 1983009808
        %v797 = vunpack.c.0.s8 %v796
        %v798 = vlaneseq
        %v799 = vshrl.u32 %v798, 7
        %v800 = vsub.s32 %v797, %v799
        %v801 = vrot.slane %v458, %v800
        %v803 = vunpack.c.l.s4 1983009808
        %v804 = vunpack.c.0.s8 %v803
        %v805 = vlaneseq
        %v806 = vshrl.u32 %v805, 7
        %v807 = vsub.s32 %v804, %v806
        %v808 = vrot.slane %v794, %v807
        %v809 = vcombine.high %v801, %v801
        %v810 = vcombine.high %v808, %v808
        %v811 = vcombine.high %v459, %v459
        %v813 = vunpack.c.l.s4 1983009808
        %v814 = vunpack.c.0.s8 %v813
        %v815 = vlaneseq
        %v816 = vshrl.u32 %v815, 7
        %v817 = vsub.s32 %v814, %v816
        %v818 = vrot.slane %v459, %v817
        %v820 = vunpack.c.l.s4 1983009808
        %v821 = vunpack.c.0.s8 %v820
        %v822 = vlaneseq
        %v823 = vshrl.u32 %v822, 7
        %v824 = vsub.s32 %v821, %v823
        %v825 = vrot.slane %v811, %v824
        %v826 = vcombine.high %v818, %v818
        %v827 = vcombine.high %v825, %v825
        %v829 = vunpack.c.l.s4 1983009808
        %v830 = vunpack.c.0.s8 %v829
        %v831 = vlaneseq
        %v832 = vshrl.u32 %v831, 7
        %v833 = vsub.s32 %v830, %v832
        %v834 = vrot.slane %v460, %v833
        %v835 = vcombine.high %v461, %v461
        %v837 = vunpack.c.l.s4 1983009808
        %v838 = vunpack.c.0.s8 %v837
        %v839 = vlaneseq
        %v840 = vshrl.u32 %v839, 7
        %v841 = vsub.s32 %v838, %v840
        %v842 = vrot.slane %v461, %v841
        %v844 = vunpack.c.l.s4 1983009808
        %v845 = vunpack.c.0.s8 %v844
        %v846 = vlaneseq
        %v847 = vshrl.u32 %v846, 7
        %v848 = vsub.s32 %v845, %v847
        %v849 = vrot.slane %v835, %v848
        %v850 = vcombine.high %v842, %v842
        %v851 = vcombine.high %v849, %v849
        %v852 = vcombine.high %v462, %v462
        %v854 = vunpack.c.l.s4 1983009808
        %v855 = vunpack.c.0.s8 %v854
        %v856 = vlaneseq
        %v857 = vshrl.u32 %v856, 7
        %v858 = vsub.s32 %v855, %v857
        %v859 = vrot.slane %v462, %v858
        %v861 = vunpack.c.l.s4 1983009808
        %v862 = vunpack.c.0.s8 %v861
        %v863 = vlaneseq
        %v864 = vshrl.u32 %v863, 7
        %v865 = vsub.s32 %v862, %v864
        %v866 = vrot.slane %v852, %v865
        %v867 = vcombine.high %v859, %v859
        %v868 = vcombine.high %v866, %v866
        %v870 = vunpack.c.l.s4 1983009808
        %v871 = vunpack.c.0.s8 %v870
        %v872 = vlaneseq
        %v873 = vshrl.u32 %v872, 7
        %v874 = vsub.s32 %v871, %v873
        %v875 = vrot.slane %v463, %v874
        %v876 = vcombine.high %v464, %v464
        %v878 = vunpack.c.l.s4 1983009808
        %v879 = vunpack.c.0.s8 %v878
        %v880 = vlaneseq
        %v881 = vshrl.u32 %v880, 7
        %v882 = vsub.s32 %v879, %v881
        %v883 = vrot.slane %v464, %v882
        %v885 = vunpack.c.l.s4 1983009808
        %v886 = vunpack.c.0.s8 %v885
        %v887 = vlaneseq
        %v888 = vshrl.u32 %v887, 7
        %v889 = vsub.s32 %v886, %v888
        %v890 = vrot.slane %v876, %v889
        %v891 = vcombine.high %v883, %v883
        %v892 = vcombine.high %v890, %v890
        %v893 = vcombine.high %v465, %v465
        %v895 = vunpack.c.l.s4 1983009808
        %v896 = vunpack.c.0.s8 %v895
        %v897 = vlaneseq
        %v898 = vshrl.u32 %v897, 7
        %v899 = vsub.s32 %v896, %v898
        %v900 = vrot.slane %v465, %v899
        %v902 = vunpack.c.l.s4 1983009808
        %v903 = vunpack.c.0.s8 %v902
        %v904 = vlaneseq
        %v905 = vshrl.u32 %v904, 7
        %v906 = vsub.s32 %v903, %v905
        %v907 = vrot.slane %v893, %v906
        %v908 = vcombine.high %v900, %v900
        %v909 = vcombine.high %v907, %v907
        %v911 = vunpack.c.l.s4 1983009808
        %v912 = vunpack.c.0.s8 %v911
        %v913 = vlaneseq
        %v914 = vshrl.u32 %v913, 7
        %v915 = vsub.s32 %v912, %v914
        %v916 = vrot.slane %v466, %v915
        %v917 = vcombine.high %v467, %v467
        %v919 = vunpack.c.l.s4 1983009808
        %v920 = vunpack.c.0.s8 %v919
        %v921 = vlaneseq
        %v922 = vshrl.u32 %v921, 7
        %v923 = vsub.s32 %v920, %v922
        %v924 = vrot.slane %v467, %v923
        %v926 = vunpack.c.l.s4 1983009808
        %v927 = vunpack.c.0.s8 %v926
        %v928 = vlaneseq
        %v929 = vshrl.u32 %v928, 7
        %v930 = vsub.s32 %v927, %v929
        %v931 = vrot.slane %v917, %v930
        %v932 = vcombine.high %v924, %v924
        %v933 = vcombine.high %v931, %v931
        %v934 = vcombine.high %v468, %v468
        %v936 = vunpack.c.l.s4 1983009808
        %v937 = vunpack.c.0.s8 %v936
        %v938 = vlaneseq
        %v939 = vshrl.u32 %v938, 7
        %v940 = vsub.s32 %v937, %v939
        %v941 = vrot.slane %v468, %v940
        %v943 = vunpack.c.l.s4 1983009808
        %v944 = vunpack.c.0.s8 %v943
        %v945 = vlaneseq
        %v946 = vshrl.u32 %v945, 7
        %v947 = vsub.s32 %v944, %v946
        %v948 = vrot.slane %v934, %v947
        %v949 = vcombine.high %v941, %v941
        %v950 = vcombine.high %v948, %v948
        %v952 = vunpack.c.l.s4 1983009808
        %v953 = vunpack.c.0.s8 %v952
        %v954 = vlaneseq
        %v955 = vshrl.u32 %v954, 7
        %v956 = vsub.s32 %v953, %v955
        %v957 = vrot.slane %v469, %v956
        %v958 = vcombine.high %v470, %v470
        %v960 = vunpack.c.l.s4 1983009808
        %v961 = vunpack.c.0.s8 %v960
        %v962 = vlaneseq
        %v963 = vshrl.u32 %v962, 7
        %v964 = vsub.s32 %v961, %v963
        %v965 = vrot.slane %v470, %v964
        %v967 = vunpack.c.l.s4 1983009808
        %v968 = vunpack.c.0.s8 %v967
        %v969 = vlaneseq
        %v970 = vshrl.u32 %v969, 7
        %v971 = vsub.s32 %v968, %v970
        %v972 = vrot.slane %v958, %v971
        %v973 = vcombine.high %v965, %v965
        %v974 = vcombine.high %v972, %v972
        %v975 = vcombine.high %v471, %v471
        %v977 = vunpack.c.l.s4 1983009808
        %v978 = vunpack.c.0.s8 %v977
        %v979 = vlaneseq
        %v980 = vshrl.u32 %v979, 7
        %v981 = vsub.s32 %v978, %v980
        %v982 = vrot.slane %v471, %v981
        %v984 = vunpack.c.l.s4 1983009808
        %v985 = vunpack.c.0.s8 %v984
        %v986 = vlaneseq
        %v987 = vshrl.u32 %v986, 7
        %v988 = vsub.s32 %v985, %v987
        %v989 = vrot.slane %v975, %v988
        %v990 = vcombine.high %v982, %v982
        %v991 = vcombine.high %v989, %v989
        %v993 = vunpack.c.l.s4 1983009808
        %v994 = vunpack.c.0.s8 %v993
        %v995 = vlaneseq
        %v996 = vshrl.u32 %v995, 7
        %v997 = vsub.s32 %v994, %v996
        %v998 = vrot.slane %v472, %v997
        %v999 = vcombine.high %v473, %v473
        %v1001 = vunpack.c.l.s4 1983009808
        %v1002 = vunpack.c.0.s8 %v1001
        %v1003 = vlaneseq
        %v1004 = vshrl.u32 %v1003, 7
        %v1005 = vsub.s32 %v1002, %v1004
        %v1006 = vrot.slane %v473, %v1005
        %v1008 = vunpack.c.l.s4 1983009808
        %v1009 = vunpack.c.0.s8 %v1008
        %v1010 = vlaneseq
        %v1011 = vshrl.u32 %v1010, 7
        %v1012 = vsub.s32 %v1009, %v1011
        %v1013 = vrot.slane %v999, %v1012
        %v1014 = vcombine.high %v1006, %v1006
        %v1015 = vcombine.high %v1013, %v1013
        %v1016 = vcombine.high %v474, %v474
        %v1018 = vunpack.c.l.s4 1983009808
        %v1019 = vunpack.c.0.s8 %v1018
        %v1020 = vlaneseq
        %v1021 = vshrl.u32 %v1020, 7
        %v1022 = vsub.s32 %v1019, %v1021
        %v1023 = vrot.slane %v474, %v1022
        %v1025 = vunpack.c.l.s4 1983009808
        %v1026 = vunpack.c.0.s8 %v1025
        %v1027 = vlaneseq
        %v1028 = vshrl.u32 %v1027, 7
        %v1029 = vsub.s32 %v1026, %v1028
        %v1030 = vrot.slane %v1016, %v1029
        %v1031 = vcombine.high %v1023, %v1023
        %v1032 = vcombine.high %v1030, %v1030
        %v1034 = vunpack.c.l.s4 1983009808
        %v1035 = vunpack.c.0.s8 %v1034
        %v1036 = vlaneseq
        %v1037 = vshrl.u32 %v1036, 7
        %v1038 = vsub.s32 %v1035, %v1037
        %v1039 = vrot.slane %v475, %v1038
        %v1040 = vcombine.high %v476, %v476
        %v1042 = vunpack.c.l.s4 1983009808
        %v1043 = vunpack.c.0.s8 %v1042
        %v1044 = vlaneseq
        %v1045 = vshrl.u32 %v1044, 7
        %v1046 = vsub.s32 %v1043, %v1045
        %v1047 = vrot.slane %v476, %v1046
        %v1049 = vunpack.c.l.s4 1983009808
        %v1050 = vunpack.c.0.s8 %v1049
        %v1051 = vlaneseq
        %v1052 = vshrl.u32 %v1051, 7
        %v1053 = vsub.s32 %v1050, %v1052
        %v1054 = vrot.slane %v1040, %v1053
        %v1055 = vcombine.high %v1047, %v1047
        %v1056 = vcombine.high %v1054, %v1054
        %v1057 = vcombine.high %v477, %v477
        %v1059 = vunpack.c.l.s4 1983009808
        %v1060 = vunpack.c.0.s8 %v1059
        %v1061 = vlaneseq
        %v1062 = vshrl.u32 %v1061, 7
        %v1063 = vsub.s32 %v1060, %v1062
        %v1064 = vrot.slane %v477, %v1063
        %v1066 = vunpack.c.l.s4 1983009808
        %v1067 = vunpack.c.0.s8 %v1066
        %v1068 = vlaneseq
        %v1069 = vshrl.u32 %v1068, 7
        %v1070 = vsub.s32 %v1067, %v1069
        %v1071 = vrot.slane %v1057, %v1070
        %v1072 = vcombine.high %v1064, %v1064
        %v1073 = vcombine.high %v1071, %v1071
        %v1075 = vunpack.c.l.s4 1983009808
        %v1076 = vunpack.c.0.s8 %v1075
        %v1077 = vlaneseq
        %v1078 = vshrl.u32 %v1077, 7
        %v1079 = vsub.s32 %v1076, %v1078
        %v1080 = vrot.slane %v478, %v1079
        %v1081 = vcombine.high %v479, %v479
        %v1083 = vunpack.c.l.s4 1983009808
        %v1084 = vunpack.c.0.s8 %v1083
        %v1085 = vlaneseq
        %v1086 = vshrl.u32 %v1085, 7
        %v1087 = vsub.s32 %v1084, %v1086
        %v1088 = vrot.slane %v479, %v1087
        %v1090 = vunpack.c.l.s4 1983009808
        %v1091 = vunpack.c.0.s8 %v1090
        %v1092 = vlaneseq
        %v1093 = vshrl.u32 %v1092, 7
        %v1094 = vsub.s32 %v1091, %v1093
        %v1095 = vrot.slane %v1081, %v1094
        %v1096 = vcombine.high %v1088, %v1088
        %v1097 = vcombine.high %v1095, %v1095
        %v1098 = vcombine.high %v480, %v480
        %v1100 = vunpack.c.l.s4 1983009808
        %v1101 = vunpack.c.0.s8 %v1100
        %v1102 = vlaneseq
        %v1103 = vshrl.u32 %v1102, 7
        %v1104 = vsub.s32 %v1101, %v1103
        %v1105 = vrot.slane %v480, %v1104
        %v1107 = vunpack.c.l.s4 1983009808
        %v1108 = vunpack.c.0.s8 %v1107
        %v1109 = vlaneseq
        %v1110 = vshrl.u32 %v1109, 7
        %v1111 = vsub.s32 %v1108, %v1110
        %v1112 = vrot.slane %v1098, %v1111
        %v1113 = vcombine.high %v1105, %v1105
        %v1114 = vcombine.high %v1112, %v1112
        %v1116 = vunpack.c.l.s4 1983009808
        %v1117 = vunpack.c.0.s8 %v1116
        %v1118 = vlaneseq
        %v1119 = vshrl.u32 %v1118, 7
        %v1120 = vsub.s32 %v1117, %v1119
        %v1121 = vrot.slane %v481, %v1120
        %v1122 = vcombine.high %v482, %v482
        %v1124 = vunpack.c.l.s4 1983009808
        %v1125 = vunpack.c.0.s8 %v1124
        %v1126 = vlaneseq
        %v1127 = vshrl.u32 %v1126, 7
        %v1128 = vsub.s32 %v1125, %v1127
        %v1129 = vrot.slane %v482, %v1128
        %v1131 = vunpack.c.l.s4 1983009808
        %v1132 = vunpack.c.0.s8 %v1131
        %v1133 = vlaneseq
        %v1134 = vshrl.u32 %v1133, 7
        %v1135 = vsub.s32 %v1132, %v1134
        %v1136 = vrot.slane %v1122, %v1135
        %v1137 = vcombine.high %v1129, %v1129
        %v1138 = vcombine.high %v1136, %v1136
        %v1139 = vcombine.high %v483, %v483
        %v1141 = vunpack.c.l.s4 1983009808
        %v1142 = vunpack.c.0.s8 %v1141
        %v1143 = vlaneseq
        %v1144 = vshrl.u32 %v1143, 7
        %v1145 = vsub.s32 %v1142, %v1144
        %v1146 = vrot.slane %v483, %v1145
        %v1148 = vunpack.c.l.s4 1983009808
        %v1149 = vunpack.c.0.s8 %v1148
        %v1150 = vlaneseq
        %v1151 = vshrl.u32 %v1150, 7
        %v1152 = vsub.s32 %v1149, %v1151
        %v1153 = vrot.slane %v1139, %v1152
        %v1154 = vcombine.high %v1146, %v1146
        %v1155 = vcombine.high %v1153, %v1153
        %v1157 = vunpack.c.l.s4 1983009808
        %v1158 = vunpack.c.0.s8 %v1157
        %v1159 = vlaneseq
        %v1160 = vshrl.u32 %v1159, 7
        %v1161 = vsub.s32 %v1158, %v1160
        %v1162 = vrot.slane %v484, %v1161
        %v1163 = vcombine.high %v485, %v485
        %v1165 = vunpack.c.l.s4 1983009808
        %v1166 = vunpack.c.0.s8 %v1165
        %v1167 = vlaneseq
        %v1168 = vshrl.u32 %v1167, 7
        %v1169 = vsub.s32 %v1166, %v1168
        %v1170 = vrot.slane %v485, %v1169
        %v1172 = vunpack.c.l.s4 1983009808
        %v1173 = vunpack.c.0.s8 %v1172
        %v1174 = vlaneseq
        %v1175 = vshrl.u32 %v1174, 7
        %v1176 = vsub.s32 %v1173, %v1175
        %v1177 = vrot.slane %v1163, %v1176
        %v1178 = vcombine.high %v1170, %v1170
        %v1179 = vcombine.high %v1177, %v1177
        %v1180 = vcombine.high %v486, %v486
        %v1182 = vunpack.c.l.s4 1983009808
        %v1183 = vunpack.c.0.s8 %v1182
        %v1184 = vlaneseq
        %v1185 = vshrl.u32 %v1184, 7
        %v1186 = vsub.s32 %v1183, %v1185
        %v1187 = vrot.slane %v486, %v1186
        %v1189 = vunpack.c.l.s4 1983009808
        %v1190 = vunpack.c.0.s8 %v1189
        %v1191 = vlaneseq
        %v1192 = vshrl.u32 %v1191, 7
        %v1193 = vsub.s32 %v1190, %v1192
        %v1194 = vrot.slane %v1180, %v1193
        %v1195 = vcombine.high %v1187, %v1187
        %v1196 = vcombine.high %v1194, %v1194
        %v1198 = vunpack.c.l.s4 1983009808
        %v1199 = vunpack.c.0.s8 %v1198
        %v1200 = vlaneseq
        %v1201 = vshrl.u32 %v1200, 7
        %v1202 = vsub.s32 %v1199, %v1201
        %v1203 = vrot.slane %v487, %v1202
        %v1204 = vcombine.high %v488, %v488
        %v1206 = vunpack.c.l.s4 1983009808
        %v1207 = vunpack.c.0.s8 %v1206
        %v1208 = vlaneseq
        %v1209 = vshrl.u32 %v1208, 7
        %v1210 = vsub.s32 %v1207, %v1209
        %v1211 = vrot.slane %v488, %v1210
        %v1213 = vunpack.c.l.s4 1983009808
        %v1214 = vunpack.c.0.s8 %v1213
        %v1215 = vlaneseq
        %v1216 = vshrl.u32 %v1215, 7
        %v1217 = vsub.s32 %v1214, %v1216
        %v1218 = vrot.slane %v1204, %v1217
        %v1219 = vcombine.high %v1211, %v1211
        %v1220 = vcombine.high %v1218, %v1218
        %v1221 = vcombine.high %v489, %v489
        %v1223 = vunpack.c.l.s4 1983009808
        %v1224 = vunpack.c.0.s8 %v1223
        %v1225 = vlaneseq
        %v1226 = vshrl.u32 %v1225, 7
        %v1227 = vsub.s32 %v1224, %v1226
        %v1228 = vrot.slane %v489, %v1227
        %v1230 = vunpack.c.l.s4 1983009808
        %v1231 = vunpack.c.0.s8 %v1230
        %v1232 = vlaneseq
        %v1233 = vshrl.u32 %v1232, 7
        %v1234 = vsub.s32 %v1231, %v1233
        %v1235 = vrot.slane %v1221, %v1234
        %v1236 = vcombine.high %v1228, %v1228
        %v1237 = vcombine.high %v1235, %v1235
        %v1239 = vunpack.c.l.s4 1983009808
        %v1240 = vunpack.c.0.s8 %v1239
        %v1241 = vlaneseq
        %v1242 = vshrl.u32 %v1241, 7
        %v1243 = vsub.s32 %v1240, %v1242
        %v1244 = vrot.slane %v490, %v1243
        %v1245 = vcombine.high %v491, %v491
        %v1247 = vunpack.c.l.s4 1983009808
        %v1248 = vunpack.c.0.s8 %v1247
        %v1249 = vlaneseq
        %v1250 = vshrl.u32 %v1249, 7
        %v1251 = vsub.s32 %v1248, %v1250
        %v1252 = vrot.slane %v491, %v1251
        %v1254 = vunpack.c.l.s4 1983009808
        %v1255 = vunpack.c.0.s8 %v1254
        %v1256 = vlaneseq
        %v1257 = vshrl.u32 %v1256, 7
        %v1258 = vsub.s32 %v1255, %v1257
        %v1259 = vrot.slane %v1245, %v1258
        %v1260 = vcombine.high %v1252, %v1252
        %v1261 = vcombine.high %v1259, %v1259
        %v1262 = vcombine.high %v492, %v492
        %v1264 = vunpack.c.l.s4 1983009808
        %v1265 = vunpack.c.0.s8 %v1264
        %v1266 = vlaneseq
        %v1267 = vshrl.u32 %v1266, 7
        %v1268 = vsub.s32 %v1265, %v1267
        %v1269 = vrot.slane %v492, %v1268
        %v1271 = vunpack.c.l.s4 1983009808
        %v1272 = vunpack.c.0.s8 %v1271
        %v1273 = vlaneseq
        %v1274 = vshrl.u32 %v1273, 7
        %v1275 = vsub.s32 %v1272, %v1274
        %v1276 = vrot.slane %v1262, %v1275
        %v1277 = vcombine.high %v1269, %v1269
        %v1278 = vcombine.high %v1276, %v1276
        %v1280 = vunpack.c.l.s4 1983009808
        %v1281 = vunpack.c.0.s8 %v1280
        %v1282 = vlaneseq
        %v1283 = vshrl.u32 %v1282, 7
        %v1284 = vsub.s32 %v1281, %v1283
        %v1285 = vrot.slane %v493, %v1284
        %v1286 = vcombine.low %v555, %v563
        %v1287 = vcombine.low %v562, %v564
        %v1289 = vunpack.c.l.s4 1983009808
        %v1290 = vunpack.c.0.s8 %v1289
        %v1291 = vlaneseq
        %v1292 = vshrl.u32 %v1291, 7
        %v1293 = vsub.s32 %v1290, %v1292
        %v1294 = vrot.slane %v1286, %v1293
        %v1296 = vunpack.c.l.s4 1983009808
        %v1297 = vunpack.c.0.s8 %v1296
        %v1298 = vlaneseq
        %v1299 = vshrl.u32 %v1298, 7
        %v1300 = vsub.s32 %v1297, %v1299
        %v1301 = vrot.slane %v1287, %v1300
        %v1302 = vcombine.low %v1294, %v1301
        %v1303 = vcombine.low %v572, %v580
        %v1304 = vcombine.low %v579, %v581
        %v1306 = vunpack.c.l.s4 1983009808
        %v1307 = vunpack.c.0.s8 %v1306
        %v1308 = vlaneseq
        %v1309 = vshrl.u32 %v1308, 7
        %v1310 = vsub.s32 %v1307, %v1309
        %v1311 = vrot.slane %v1303, %v1310
        %v1313 = vunpack.c.l.s4 1983009808
        %v1314 = vunpack.c.0.s8 %v1313
        %v1315 = vlaneseq
        %v1316 = vshrl.u32 %v1315, 7
        %v1317 = vsub.s32 %v1314, %v1316
        %v1318 = vrot.slane %v1304, %v1317
        %v1319 = vcombine.low %v1311, %v1318
        %v1320 = vcombine.low %v588, %v596
        %v1321 = vcombine.low %v604, %v603
        %v1323 = vunpack.c.l.s4 1983009808
        %v1324 = vunpack.c.0.s8 %v1323
        %v1325 = vlaneseq
        %v1326 = vshrl.u32 %v1325, 7
        %v1327 = vsub.s32 %v1324, %v1326
        %v1328 = vrot.slane %v1320, %v1327
        %v1330 = vunpack.c.l.s4 1983009808
        %v1331 = vunpack.c.0.s8 %v1330
        %v1332 = vlaneseq
        %v1333 = vshrl.u32 %v1332, 7
        %v1334 = vsub.s32 %v1331, %v1333
        %v1335 = vrot.slane %v1321, %v1334
        %v1336 = vcombine.low %v1328, %v1335
        %v1337 = vcombine.low %v605, %v613
        %v1338 = vcombine.low %v621, %v620
        %v1340 = vunpack.c.l.s4 1983009808
        %v1341 = vunpack.c.0.s8 %v1340
        %v1342 = vlaneseq
        %v1343 = vshrl.u32 %v1342, 7
        %v1344 = vsub.s32 %v1341, %v1343
        %v1345 = vrot.slane %v1337, %v1344
        %v1347 = vunpack.c.l.s4 1983009808
        %v1348 = vunpack.c.0.s8 %v1347
        %v1349 = vlaneseq
        %v1350 = vshrl.u32 %v1349, 7
        %v1351 = vsub.s32 %v1348, %v1350
        %v1352 = vrot.slane %v1338, %v1351
        %v1353 = vcombine.low %v1345, %v1352
        %v1354 = vcombine.low %v622, %v629
        %v1355 = vcombine.low %v637, %v645
        %v1357 = vunpack.c.l.s4 1983009808
        %v1358 = vunpack.c.0.s8 %v1357
        %v1359 = vlaneseq
        %v1360 = vshrl.u32 %v1359, 7
        %v1361 = vsub.s32 %v1358, %v1360
        %v1362 = vrot.slane %v1354, %v1361
        %v1364 = vunpack.c.l.s4 1983009808
        %v1365 = vunpack.c.0.s8 %v1364
        %v1366 = vlaneseq
        %v1367 = vshrl.u32 %v1366, 7
        %v1368 = vsub.s32 %v1365, %v1367
        %v1369 = vrot.slane %v1355, %v1368
        %v1370 = vcombine.low %v1362, %v1369
        %v1371 = vcombine.low %v644, %v646
        %v1372 = vcombine.low %v654, %v662
        %v1374 = vunpack.c.l.s4 1983009808
        %v1375 = vunpack.c.0.s8 %v1374
        %v1376 = vlaneseq
        %v1377 = vshrl.u32 %v1376, 7
        %v1378 = vsub.s32 %v1375, %v1377
        %v1379 = vrot.slane %v1371, %v1378
        %v1381 = vunpack.c.l.s4 1983009808
        %v1382 = vunpack.c.0.s8 %v1381
        %v1383 = vlaneseq
        %v1384 = vshrl.u32 %v1383, 7
        %v1385 = vsub.s32 %v1382, %v1384
        %v1386 = vrot.slane %v1372, %v1385
        %v1387 = vcombine.low %v1379, %v1386
        %v1388 = vcombine.low %v661, %v663
        %v1389 = vcombine.low %v670, %v678
        %v1391 = vunpack.c.l.s4 1983009808
        %v1392 = vunpack.c.0.s8 %v1391
        %v1393 = vlaneseq
        %v1394 = vshrl.u32 %v1393, 7
        %v1395 = vsub.s32 %v1392, %v1394
        %v1396 = vrot.slane %v1388, %v1395
        %v1398 = vunpack.c.l.s4 1983009808
        %v1399 = vunpack.c.0.s8 %v1398
        %v1400 = vlaneseq
        %v1401 = vshrl.u32 %v1400, 7
        %v1402 = vsub.s32 %v1399, %v1401
        %v1403 = vrot.slane %v1389, %v1402
        %v1404 = vcombine.low %v1396, %v1403
        %v1405 = vcombine.low %v686, %v685
        %v1406 = vcombine.low %v687, %v695
        %v1408 = vunpack.c.l.s4 1983009808
        %v1409 = vunpack.c.0.s8 %v1408
        %v1410 = vlaneseq
        %v1411 = vshrl.u32 %v1410, 7
        %v1412 = vsub.s32 %v1409, %v1411
        %v1413 = vrot.slane %v1405, %v1412
        %v1415 = vunpack.c.l.s4 1983009808
        %v1416 = vunpack.c.0.s8 %v1415
        %v1417 = vlaneseq
        %v1418 = vshrl.u32 %v1417, 7
        %v1419 = vsub.s32 %v1416, %v1418
        %v1420 = vrot.slane %v1406, %v1419
        %v1421 = vcombine.low %v1413, %v1420
        %v1422 = vcombine.low %v703, %v702
        %v1423 = vcombine.low %v704, %v711
        %v1425 = vunpack.c.l.s4 1983009808
        %v1426 = vunpack.c.0.s8 %v1425
        %v1427 = vlaneseq
        %v1428 = vshrl.u32 %v1427, 7
        %v1429 = vsub.s32 %v1426, %v1428
        %v1430 = vrot.slane %v1422, %v1429
        %v1432 = vunpack.c.l.s4 1983009808
        %v1433 = vunpack.c.0.s8 %v1432
        %v1434 = vlaneseq
        %v1435 = vshrl.u32 %v1434, 7
        %v1436 = vsub.s32 %v1433, %v1435
        %v1437 = vrot.slane %v1423, %v1436
        %v1438 = vcombine.low %v1430, %v1437
        %v1439 = vcombine.low %v719, %v727
        %v1440 = vcombine.low %v726, %v728
        %v1442 = vunpack.c.l.s4 1983009808
        %v1443 = vunpack.c.0.s8 %v1442
        %v1444 = vlaneseq
        %v1445 = vshrl.u32 %v1444, 7
        %v1446 = vsub.s32 %v1443, %v1445
        %v1447 = vrot.slane %v1439, %v1446
        %v1449 = vunpack.c.l.s4 1983009808
        %v1450 = vunpack.c.0.s8 %v1449
        %v1451 = vlaneseq
        %v1452 = vshrl.u32 %v1451, 7
        %v1453 = vsub.s32 %v1450, %v1452
        %v1454 = vrot.slane %v1440, %v1453
        %v1455 = vcombine.low %v1447, %v1454
        %v1456 = vcombine.low %v736, %v744
        %v1457 = vcombine.low %v743, %v745
        %v1459 = vunpack.c.l.s4 1983009808
        %v1460 = vunpack.c.0.s8 %v1459
        %v1461 = vlaneseq
        %v1462 = vshrl.u32 %v1461, 7
        %v1463 = vsub.s32 %v1460, %v1462
        %v1464 = vrot.slane %v1456, %v1463
        %v1466 = vunpack.c.l.s4 1983009808
        %v1467 = vunpack.c.0.s8 %v1466
        %v1468 = vlaneseq
        %v1469 = vshrl.u32 %v1468, 7
        %v1470 = vsub.s32 %v1467, %v1469
        %v1471 = vrot.slane %v1457, %v1470
        %v1472 = vcombine.low %v1464, %v1471
        %v1473 = vcombine.low %v752, %v760
        %v1474 = vcombine.low %v768, %v767
        %v1476 = vunpack.c.l.s4 1983009808
        %v1477 = vunpack.c.0.s8 %v1476
        %v1478 = vlaneseq
        %v1479 = vshrl.u32 %v1478, 7
        %v1480 = vsub.s32 %v1477, %v1479
        %v1481 = vrot.slane %v1473, %v1480
        %v1483 = vunpack.c.l.s4 1983009808
        %v1484 = vunpack.c.0.s8 %v1483
        %v1485 = vlaneseq
        %v1486 = vshrl.u32 %v1485, 7
        %v1487 = vsub.s32 %v1484, %v1486
        %v1488 = vrot.slane %v1474, %v1487
        %v1489 = vcombine.low %v1481, %v1488
        %v1490 = vcombine.low %v769, %v777
        %v1491 = vcombine.low %v785, %v784
        %v1493 = vunpack.c.l.s4 1983009808
        %v1494 = vunpack.c.0.s8 %v1493
        %v1495 = vlaneseq
        %v1496 = vshrl.u32 %v1495, 7
        %v1497 = vsub.s32 %v1494, %v1496
        %v1498 = vrot.slane %v1490, %v1497
        %v1500 = vunpack.c.l.s4 1983009808
        %v1501 = vunpack.c.0.s8 %v1500
        %v1502 = vlaneseq
        %v1503 = vshrl.u32 %v1502, 7
        %v1504 = vsub.s32 %v1501, %v1503
        %v1505 = vrot.slane %v1491, %v1504
        %v1506 = vcombine.low %v1498, %v1505
        %v1507 = vcombine.low %v786, %v793
        %v1508 = vcombine.low %v801, %v809
        %v1510 = vunpack.c.l.s4 1983009808
        %v1511 = vunpack.c.0.s8 %v1510
        %v1512 = vlaneseq
        %v1513 = vshrl.u32 %v1512, 7
        %v1514 = vsub.s32 %v1511, %v1513
        %v1515 = vrot.slane %v1507, %v1514
        %v1517 = vunpack.c.l.s4 1983009808
        %v1518 = vunpack.c.0.s8 %v1517
        %v1519 = vlaneseq
        %v1520 = vshrl.u32 %v1519, 7
        %v1521 = vsub.s32 %v1518, %v1520
        %v1522 = vrot.slane %v1508, %v1521
        %v1523 = vcombine.low %v1515, %v1522
        %v1524 = vcombine.low %v808, %v810
        %v1525 = vcombine.low %v818, %v826
        %v1527 = vunpack.c.l.s4 1983009808
        %v1528 = vunpack.c.0.s8 %v1527
        %v1529 = vlaneseq
        %v1530 = vshrl.u32 %v1529, 7
        %v1531 = vsub.s32 %v1528, %v1530
        %v1532 = vrot.slane %v1524, %v1531
        %v1534 = vunpack.c.l.s4 1983009808
        %v1535 = vunpack.c.0.s8 %v1534
        %v1536 = vlaneseq
        %v1537 = vshrl.u32 %v1536, 7
        %v1538 = vsub.s32 %v1535, %v1537
        %v1539 = vrot.slane %v1525, %v1538
        %v1540 = vcombine.low %v1532, %v1539
        %v1541 = vcombine.low %v825, %v827
        %v1542 = vcombine.low %v834, %v842
        %v1544 = vunpack.c.l.s4 1983009808
        %v1545 = vunpack.c.0.s8 %v1544
        %v1546 = vlaneseq
        %v1547 = vshrl.u32 %v1546, 7
        %v1548 = vsub.s32 %v1545, %v1547
        %v1549 = vrot.slane %v1541, %v1548
        %v1551 = vunpack.c.l.s4 1983009808
        %v1552 = vunpack.c.0.s8 %v1551
        %v1553 = vlaneseq
        %v1554 = vshrl.u32 %v1553, 7
        %v1555 = vsub.s32 %v1552, %v1554
        %v1556 = vrot.slane %v1542, %v1555
        %v1557 = vcombine.low %v1549, %v1556
        %v1558 = vcombine.low %v850, %v849
        %v1559 = vcombine.low %v851, %v859
        %v1561 = vunpack.c.l.s4 1983009808
        %v1562 = vunpack.c.0.s8 %v1561
        %v1563 = vlaneseq
        %v1564 = vshrl.u32 %v1563, 7
        %v1565 = vsub.s32 %v1562, %v1564
        %v1566 = vrot.slane %v1558, %v1565
        %v1568 = vunpack.c.l.s4 1983009808
        %v1569 = vunpack.c.0.s8 %v1568
        %v1570 = vlaneseq
        %v1571 = vshrl.u32 %v1570, 7
        %v1572 = vsub.s32 %v1569, %v1571
        %v1573 = vrot.slane %v1559, %v1572
        %v1574 = vcombine.low %v1566, %v1573
        %v1575 = vcombine.low %v867, %v866
        %v1576 = vcombine.low %v868, %v875
        %v1578 = vunpack.c.l.s4 1983009808
        %v1579 = vunpack.c.0.s8 %v1578
        %v1580 = vlaneseq
        %v1581 = vshrl.u32 %v1580, 7
        %v1582 = vsub.s32 %v1579, %v1581
        %v1583 = vrot.slane %v1575, %v1582
        %v1585 = vunpack.c.l.s4 1983009808
        %v1586 = vunpack.c.0.s8 %v1585
        %v1587 = vlaneseq
        %v1588 = vshrl.u32 %v1587, 7
        %v1589 = vsub.s32 %v1586, %v1588
        %v1590 = vrot.slane %v1576, %v1589
        %v1591 = vcombine.low %v1583, %v1590
        %v1592 = vcombine.low %v883, %v891
        %v1593 = vcombine.low %v890, %v892
        %v1595 = vunpack.c.l.s4 1983009808
        %v1596 = vunpack.c.0.s8 %v1595
        %v1597 = vlaneseq
        %v1598 = vshrl.u32 %v1597, 7
        %v1599 = vsub.s32 %v1596, %v1598
        %v1600 = vrot.slane %v1592, %v1599
        %v1602 = vunpack.c.l.s4 1983009808
        %v1603 = vunpack.c.0.s8 %v1602
        %v1604 = vlaneseq
        %v1605 = vshrl.u32 %v1604, 7
        %v1606 = vsub.s32 %v1603, %v1605
        %v1607 = vrot.slane %v1593, %v1606
        %v1608 = vcombine.low %v1600, %v1607
        %v1609 = vcombine.low %v900, %v908
        %v1610 = vcombine.low %v907, %v909
        %v1612 = vunpack.c.l.s4 1983009808
        %v1613 = vunpack.c.0.s8 %v1612
        %v1614 = vlaneseq
        %v1615 = vshrl.u32 %v1614, 7
        %v1616 = vsub.s32 %v1613, %v1615
        %v1617 = vrot.slane %v1609, %v1616
        %v1619 = vunpack.c.l.s4 1983009808
        %v1620 = vunpack.c.0.s8 %v1619
        %v1621 = vlaneseq
        %v1622 = vshrl.u32 %v1621, 7
        %v1623 = vsub.s32 %v1620, %v1622
        %v1624 = vrot.slane %v1610, %v1623
        %v1625 = vcombine.low %v1617, %v1624
        %v1626 = vcombine.low %v916, %v924
        %v1627 = vcombine.low %v932, %v931
        %v1629 = vunpack.c.l.s4 1983009808
        %v1630 = vunpack.c.0.s8 %v1629
        %v1631 = vlaneseq
        %v1632 = vshrl.u32 %v1631, 7
        %v1633 = vsub.s32 %v1630, %v1632
        %v1634 = vrot.slane %v1626, %v1633
        %v1636 = vunpack.c.l.s4 1983009808
        %v1637 = vunpack.c.0.s8 %v1636
        %v1638 = vlaneseq
        %v1639 = vshrl.u32 %v1638, 7
        %v1640 = vsub.s32 %v1637, %v1639
        %v1641 = vrot.slane %v1627, %v1640
        %v1642 = vcombine.low %v1634, %v1641
        %v1643 = vcombine.low %v933, %v941
        %v1644 = vcombine.low %v949, %v948
        %v1646 = vunpack.c.l.s4 1983009808
        %v1647 = vunpack.c.0.s8 %v1646
        %v1648 = vlaneseq
        %v1649 = vshrl.u32 %v1648, 7
        %v1650 = vsub.s32 %v1647, %v1649
        %v1651 = vrot.slane %v1643, %v1650
        %v1653 = vunpack.c.l.s4 1983009808
        %v1654 = vunpack.c.0.s8 %v1653
        %v1655 = vlaneseq
        %v1656 = vshrl.u32 %v1655, 7
        %v1657 = vsub.s32 %v1654, %v1656
        %v1658 = vrot.slane %v1644, %v1657
        %v1659 = vcombine.low %v1651, %v1658
        %v1660 = vcombine.low %v950, %v957
        %v1661 = vcombine.low %v965, %v973
        %v1663 = vunpack.c.l.s4 1983009808
        %v1664 = vunpack.c.0.s8 %v1663
        %v1665 = vlaneseq
        %v1666 = vshrl.u32 %v1665, 7
        %v1667 = vsub.s32 %v1664, %v1666
        %v1668 = vrot.slane %v1660, %v1667
        %v1670 = vunpack.c.l.s4 1983009808
        %v1671 = vunpack.c.0.s8 %v1670
        %v1672 = vlaneseq
        %v1673 = vshrl.u32 %v1672, 7
        %v1674 = vsub.s32 %v1671, %v1673
        %v1675 = vrot.slane %v1661, %v1674
        %v1676 = vcombine.low %v1668, %v1675
        %v1677 = vcombine.low %v972, %v974
        %v1678 = vcombine.low %v982, %v990
        %v1680 = vunpack.c.l.s4 1983009808
        %v1681 = vunpack.c.0.s8 %v1680
        %v1682 = vlaneseq
        %v1683 = vshrl.u32 %v1682, 7
        %v1684 = vsub.s32 %v1681, %v1683
        %v1685 = vrot.slane %v1677, %v1684
        %v1687 = vunpack.c.l.s4 1983009808
        %v1688 = vunpack.c.0.s8 %v1687
        %v1689 = vlaneseq
        %v1690 = vshrl.u32 %v1689, 7
        %v1691 = vsub.s32 %v1688, %v1690
        %v1692 = vrot.slane %v1678, %v1691
        %v1693 = vcombine.low %v1685, %v1692
        %v1694 = vcombine.low %v989, %v991
        %v1695 = vcombine.low %v998, %v1006
        %v1697 = vunpack.c.l.s4 1983009808
        %v1698 = vunpack.c.0.s8 %v1697
        %v1699 = vlaneseq
        %v1700 = vshrl.u32 %v1699, 7
        %v1701 = vsub.s32 %v1698, %v1700
        %v1702 = vrot.slane %v1694, %v1701
        %v1704 = vunpack.c.l.s4 1983009808
        %v1705 = vunpack.c.0.s8 %v1704
        %v1706 = vlaneseq
        %v1707 = vshrl.u32 %v1706, 7
        %v1708 = vsub.s32 %v1705, %v1707
        %v1709 = vrot.slane %v1695, %v1708
        %v1710 = vcombine.low %v1702, %v1709
        %v1711 = vcombine.low %v1014, %v1013
        %v1712 = vcombine.low %v1015, %v1023
        %v1714 = vunpack.c.l.s4 1983009808
        %v1715 = vunpack.c.0.s8 %v1714
        %v1716 = vlaneseq
        %v1717 = vshrl.u32 %v1716, 7
        %v1718 = vsub.s32 %v1715, %v1717
        %v1719 = vrot.slane %v1711, %v1718
        %v1721 = vunpack.c.l.s4 1983009808
        %v1722 = vunpack.c.0.s8 %v1721
        %v1723 = vlaneseq
        %v1724 = vshrl.u32 %v1723, 7
        %v1725 = vsub.s32 %v1722, %v1724
        %v1726 = vrot.slane %v1712, %v1725
        %v1727 = vcombine.low %v1719, %v1726
        %v1728 = vcombine.low %v1031, %v1030
        %v1729 = vcombine.low %v1032, %v1039
        %v1731 = vunpack.c.l.s4 1983009808
        %v1732 = vunpack.c.0.s8 %v1731
        %v1733 = vlaneseq
        %v1734 = vshrl.u32 %v1733, 7
        %v1735 = vsub.s32 %v1732, %v1734
        %v1736 = vrot.slane %v1728, %v1735
        %v1738 = vunpack.c.l.s4 1983009808
        %v1739 = vunpack.c.0.s8 %v1738
        %v1740 = vlaneseq
        %v1741 = vshrl.u32 %v1740, 7
        %v1742 = vsub.s32 %v1739, %v1741
        %v1743 = vrot.slane %v1729, %v1742
        %v1744 = vcombine.low %v1736, %v1743
        %v1745 = vcombine.low %v1047, %v1055
        %v1746 = vcombine.low %v1054, %v1056
        %v1748 = vunpack.c.l.s4 1983009808
        %v1749 = vunpack.c.0.s8 %v1748
        %v1750 = vlaneseq
        %v1751 = vshrl.u32 %v1750, 7
        %v1752 = vsub.s32 %v1749, %v1751
        %v1753 = vrot.slane %v1745, %v1752
        %v1755 = vunpack.c.l.s4 1983009808
        %v1756 = vunpack.c.0.s8 %v1755
        %v1757 = vlaneseq
        %v1758 = vshrl.u32 %v1757, 7
        %v1759 = vsub.s32 %v1756, %v1758
        %v1760 = vrot.slane %v1746, %v1759
        %v1761 = vcombine.low %v1753, %v1760
        %v1762 = vcombine.low %v1064, %v1072
        %v1763 = vcombine.low %v1071, %v1073
        %v1765 = vunpack.c.l.s4 1983009808
        %v1766 = vunpack.c.0.s8 %v1765
        %v1767 = vlaneseq
        %v1768 = vshrl.u32 %v1767, 7
        %v1769 = vsub.s32 %v1766, %v1768
        %v1770 = vrot.slane %v1762, %v1769
        %v1772 = vunpack.c.l.s4 1983009808
        %v1773 = vunpack.c.0.s8 %v1772
        %v1774 = vlaneseq
        %v1775 = vshrl.u32 %v1774, 7
        %v1776 = vsub.s32 %v1773, %v1775
        %v1777 = vrot.slane %v1763, %v1776
        %v1778 = vcombine.low %v1770, %v1777
        %v1779 = vcombine.low %v1080, %v1088
        %v1780 = vcombine.low %v1096, %v1095
        %v1782 = vunpack.c.l.s4 1983009808
        %v1783 = vunpack.c.0.s8 %v1782
        %v1784 = vlaneseq
        %v1785 = vshrl.u32 %v1784, 7
        %v1786 = vsub.s32 %v1783, %v1785
        %v1787 = vrot.slane %v1779, %v1786
        %v1789 = vunpack.c.l.s4 1983009808
        %v1790 = vunpack.c.0.s8 %v1789
        %v1791 = vlaneseq
        %v1792 = vshrl.u32 %v1791, 7
        %v1793 = vsub.s32 %v1790, %v1792
        %v1794 = vrot.slane %v1780, %v1793
        %v1795 = vcombine.low %v1787, %v1794
        %v1796 = vcombine.low %v1097, %v1105
        %v1797 = vcombine.low %v1113, %v1112
        %v1799 = vunpack.c.l.s4 1983009808
        %v1800 = vunpack.c.0.s8 %v1799
        %v1801 = vlaneseq
        %v1802 = vshrl.u32 %v1801, 7
        %v1803 = vsub.s32 %v1800, %v1802
        %v1804 = vrot.slane %v1796, %v1803
        %v1806 = vunpack.c.l.s4 1983009808
        %v1807 = vunpack.c.0.s8 %v1806
        %v1808 = vlaneseq
        %v1809 = vshrl.u32 %v1808, 7
        %v1810 = vsub.s32 %v1807, %v1809
        %v1811 = vrot.slane %v1797, %v1810
        %v1812 = vcombine.low %v1804, %v1811
        %v1813 = vcombine.low %v1114, %v1121
        %v1814 = vcombine.low %v1129, %v1137
        %v1816 = vunpack.c.l.s4 1983009808
        %v1817 = vunpack.c.0.s8 %v1816
        %v1818 = vlaneseq
        %v1819 = vshrl.u32 %v1818, 7
        %v1820 = vsub.s32 %v1817, %v1819
        %v1821 = vrot.slane %v1813, %v1820
        %v1823 = vunpack.c.l.s4 1983009808
        %v1824 = vunpack.c.0.s8 %v1823
        %v1825 = vlaneseq
        %v1826 = vshrl.u32 %v1825, 7
        %v1827 = vsub.s32 %v1824, %v1826
        %v1828 = vrot.slane %v1814, %v1827
        %v1829 = vcombine.low %v1821, %v1828
        %v1830 = vcombine.low %v1136, %v1138
        %v1831 = vcombine.low %v1146, %v1154
        %v1833 = vunpack.c.l.s4 1983009808
        %v1834 = vunpack.c.0.s8 %v1833
        %v1835 = vlaneseq
        %v1836 = vshrl.u32 %v1835, 7
        %v1837 = vsub.s32 %v1834, %v1836
        %v1838 = vrot.slane %v1830, %v1837
        %v1840 = vunpack.c.l.s4 1983009808
        %v1841 = vunpack.c.0.s8 %v1840
        %v1842 = vlaneseq
        %v1843 = vshrl.u32 %v1842, 7
        %v1844 = vsub.s32 %v1841, %v1843
        %v1845 = vrot.slane %v1831, %v1844
        %v1846 = vcombine.low %v1838, %v1845
        %v1847 = vcombine.low %v1153, %v1155
        %v1848 = vcombine.low %v1162, %v1170
        %v1850 = vunpack.c.l.s4 1983009808
        %v1851 = vunpack.c.0.s8 %v1850
        %v1852 = vlaneseq
        %v1853 = vshrl.u32 %v1852, 7
        %v1854 = vsub.s32 %v1851, %v1853
        %v1855 = vrot.slane %v1847, %v1854
        %v1857 = vunpack.c.l.s4 1983009808
        %v1858 = vunpack.c.0.s8 %v1857
        %v1859 = vlaneseq
        %v1860 = vshrl.u32 %v1859, 7
        %v1861 = vsub.s32 %v1858, %v1860
        %v1862 = vrot.slane %v1848, %v1861
        %v1863 = vcombine.low %v1855, %v1862
        %v1864 = vcombine.low %v1178, %v1177
        %v1865 = vcombine.low %v1179, %v1187
        %v1867 = vunpack.c.l.s4 1983009808
        %v1868 = vunpack.c.0.s8 %v1867
        %v1869 = vlaneseq
        %v1870 = vshrl.u32 %v1869, 7
        %v1871 = vsub.s32 %v1868, %v1870
        %v1872 = vrot.slane %v1864, %v1871
        %v1874 = vunpack.c.l.s4 1983009808
        %v1875 = vunpack.c.0.s8 %v1874
        %v1876 = vlaneseq
        %v1877 = vshrl.u32 %v1876, 7
        %v1878 = vsub.s32 %v1875, %v1877
        %v1879 = vrot.slane %v1865, %v1878
        %v1880 = vcombine.low %v1872, %v1879
        %v1881 = vcombine.low %v1195, %v1194
        %v1882 = vcombine.low %v1196, %v1203
        %v1884 = vunpack.c.l.s4 1983009808
        %v1885 = vunpack.c.0.s8 %v1884
        %v1886 = vlaneseq
        %v1887 = vshrl.u32 %v1886, 7
        %v1888 = vsub.s32 %v1885, %v1887
        %v1889 = vrot.slane %v1881, %v1888
        %v1891 = vunpack.c.l.s4 1983009808
        %v1892 = vunpack.c.0.s8 %v1891
        %v1893 = vlaneseq
        %v1894 = vshrl.u32 %v1893, 7
        %v1895 = vsub.s32 %v1892, %v1894
        %v1896 = vrot.slane %v1882, %v1895
        %v1897 = vcombine.low %v1889, %v1896
        %v1898 = vcombine.low %v1211, %v1219
        %v1899 = vcombine.low %v1218, %v1220
        %v1901 = vunpack.c.l.s4 1983009808
        %v1902 = vunpack.c.0.s8 %v1901
        %v1903 = vlaneseq
        %v1904 = vshrl.u32 %v1903, 7
        %v1905 = vsub.s32 %v1902, %v1904
        %v1906 = vrot.slane %v1898, %v1905
        %v1908 = vunpack.c.l.s4 1983009808
        %v1909 = vunpack.c.0.s8 %v1908
        %v1910 = vlaneseq
        %v1911 = vshrl.u32 %v1910, 7
        %v1912 = vsub.s32 %v1909, %v1911
        %v1913 = vrot.slane %v1899, %v1912
        %v1914 = vcombine.low %v1906, %v1913
        %v1915 = vcombine.low %v1228, %v1236
        %v1916 = vcombine.low %v1235, %v1237
        %v1918 = vunpack.c.l.s4 1983009808
        %v1919 = vunpack.c.0.s8 %v1918
        %v1920 = vlaneseq
        %v1921 = vshrl.u32 %v1920, 7
        %v1922 = vsub.s32 %v1919, %v1921
        %v1923 = vrot.slane %v1915, %v1922
        %v1925 = vunpack.c.l.s4 1983009808
        %v1926 = vunpack.c.0.s8 %v1925
        %v1927 = vlaneseq
        %v1928 = vshrl.u32 %v1927, 7
        %v1929 = vsub.s32 %v1926, %v1928
        %v1930 = vrot.slane %v1916, %v1929
        %v1931 = vcombine.low %v1923, %v1930
        %v1932 = vcombine.low %v1244, %v1252
        %v1933 = vcombine.low %v1260, %v1259
        %v1935 = vunpack.c.l.s4 1983009808
        %v1936 = vunpack.c.0.s8 %v1935
        %v1937 = vlaneseq
        %v1938 = vshrl.u32 %v1937, 7
        %v1939 = vsub.s32 %v1936, %v1938
        %v1940 = vrot.slane %v1932, %v1939
        %v1942 = vunpack.c.l.s4 1983009808
        %v1943 = vunpack.c.0.s8 %v1942
        %v1944 = vlaneseq
        %v1945 = vshrl.u32 %v1944, 7
        %v1946 = vsub.s32 %v1943, %v1945
        %v1947 = vrot.slane %v1933, %v1946
        %v1948 = vcombine.low %v1940, %v1947
        %v1949 = vcombine.low %v1261, %v1269
        %v1950 = vcombine.low %v1277, %v1276
        %v1952 = vunpack.c.l.s4 1983009808
        %v1953 = vunpack.c.0.s8 %v1952
        %v1954 = vlaneseq
        %v1955 = vshrl.u32 %v1954, 7
        %v1956 = vsub.s32 %v1953, %v1955
        %v1957 = vrot.slane %v1949, %v1956
        %v1959 = vunpack.c.l.s4 1983009808
        %v1960 = vunpack.c.0.s8 %v1959
        %v1961 = vlaneseq
        %v1962 = vshrl.u32 %v1961, 7
        %v1963 = vsub.s32 %v1960, %v1962
        %v1964 = vrot.slane %v1950, %v1963
        %v1965 = vcombine.low %v1957, %v1964
        %v1966 = vcombine.low %v1278, %v1285
        %v1968 = vunpack.c.l.s4 1983009808
        %v1969 = vunpack.c.0.s8 %v1968
        %v1970 = vlaneseq
        %v1971 = vshrl.u32 %v1970, 7
        %v1972 = vsub.s32 %v1969, %v1971
        %v1973 = vrot.slane %v1966, %v1972
        %v2015 = vpack.c.bf16 %v1319, %v1302
        %v2016 = vpack.c.bf16 %v1353, %v1336
        %v2017 = vpack.c.bf16 %v1387, %v1370
        %v2018 = vpack.c.bf16 %v1421, %v1404
        %v2019 = vpack.c.bf16 %v1455, %v1438
        %v2020 = vpack.c.bf16 %v1489, %v1472
        %v2021 = vpack.c.bf16 %v1523, %v1506
        %v2022 = vpack.c.bf16 %v1557, %v1540
        %v2023 = vpack.c.bf16 %v1591, %v1574
        %v2024 = vpack.c.bf16 %v1625, %v1608
        %v2025 = vpack.c.bf16 %v1659, %v1642
        %v2026 = vpack.c.bf16 %v1693, %v1676
        %v2027 = vpack.c.bf16 %v1727, %v1710
        %v2028 = vpack.c.bf16 %v1761, %v1744
        %v2029 = vpack.c.bf16 %v1795, %v1778
        %v2030 = vpack.c.bf16 %v1829, %v1812
        %v2031 = vpack.c.bf16 %v1863, %v1846
        %v2032 = vpack.c.bf16 %v1897, %v1880
        %v2033 = vpack.c.bf16 %v1931, %v1914
        %v2034 = vpack.c.bf16 %v1965, %v1948
        %v2035 = vpack.c.bf16 %v1973, %v1973
        %v2036 = vld [vmem:[%s2] sm:$0xf]
        %v2037 = vld [vmem:[%s2 + $0x4] sm:$0xf]
        %v2038 = vld [vmem:[%s2 + $0x8] sm:$0xf]
        %v2039 = vld [vmem:[%s2 + $0xc] sm:$0xf]
        %v2040 = vld [vmem:[%s2 + $0x10] sm:$0xf]
        %v2041 = vld [vmem:[%s2 + $0x14] sm:$0xf]
        %v2042 = vld [vmem:[%s2 + $0x18] sm:$0xf]
        %v2043 = vld [vmem:[%s2 + $0x1c] sm:$0xf]
        %v2044 = vld [vmem:[%s2 + $0x20] sm:$0xf]
        %v2045 = vld [vmem:[%s2 + $0x24] sm:$0xf]
        %v2046 = vld [vmem:[%s2 + $0x28] sm:$0xf]
        %v2047 = vld [vmem:[%s2 + $0x2c] sm:$0xf]
        %v2048 = vld [vmem:[%s2 + $0x30] sm:$0xf]
        %v2049 = vld [vmem:[%s2 + $0x34] sm:$0xf]
        %v2050 = vld [vmem:[%s2 + $0x38] sm:$0xf]
        %v2051 = vld [vmem:[%s2 + $0x3c] sm:$0xf]
        %v2068 = vunpack.c.l.b16 %v2036
        %v2069 = vunpack.c.l.b16 %v2037
        %v2070 = vunpack.c.l.b16 %v2038
        %v2071 = vunpack.c.l.b16 %v2039
        %v2072 = vunpack.c.l.b16 %v2040
        %v2073 = vunpack.c.l.b16 %v2041
        %v2074 = vunpack.c.l.b16 %v2042
        %v2075 = vunpack.c.l.b16 %v2043
        %v2076 = vunpack.c.l.b16 %v2044
        %v2077 = vunpack.c.l.b16 %v2045
        %v2078 = vunpack.c.l.b16 %v2046
        %v2079 = vunpack.c.l.b16 %v2047
        %v2080 = vunpack.c.l.b16 %v2048
        %v2081 = vunpack.c.l.b16 %v2049
        %v2082 = vunpack.c.l.b16 %v2050
        %v2083 = vunpack.c.l.b16 %v2051
        %v2084 = vpack.c.b16 %v2069, %v2068
        %v2085 = vpack.c.b16 %v2071, %v2070
        %v2086 = vpack.c.b16 %v2073, %v2072
        %v2087 = vpack.c.b16 %v2075, %v2074
        %v2088 = vpack.c.b16 %v2077, %v2076
        %v2089 = vpack.c.b16 %v2079, %v2078
        %v2090 = vpack.c.b16 %v2081, %v2080
        %v2091 = vpack.c.b16 %v2083, %v2082
        %2100 = vmatprep.subr.bf16.mxu0 0
        %2101 = vmatpush1.bf16.msra.mxu0 %v2091
        %2102 = vmatprep.subr.bf16.mxu0 0
        %2103 = vmatpush1.bf16.msra.mxu0 %v2090
        %2104 = vmatprep.subr.bf16.mxu0 0
        %2105 = vmatpush1.bf16.msra.mxu0 %v2089
        %2106 = vmatprep.subr.bf16.mxu0 0
        %2107 = vmatpush1.bf16.msra.mxu0 %v2088
        %2108 = vmatprep.subr.bf16.mxu0 0
        %2109 = vmatpush1.bf16.msra.mxu0 %v2087
        %2110 = vmatprep.subr.bf16.mxu0 0
        %2111 = vmatpush1.bf16.msra.mxu0 %v2086
        %2112 = vmatprep.subr.bf16.mxu0 0
        %2113 = vmatpush1.bf16.msra.mxu0 %v2085
        %2114 = vmatprep.subr.bf16.mxu0 0
        %2115 = vmatpush1.bf16.msra.mxu0 %v2084
        %2116 = vmatprep.subr.bf16.mxu0 0
        %2117 = vmatpush2.bf16.msra.mxu0 0
        %2118 = vmatprep.subr.bf16.mxu0 0
        %2119 = vmatpush2.bf16.msra.mxu0 0
        %2120 = vmatprep.subr.bf16.mxu0 0
        %2121 = vmatpush2.bf16.msra.mxu0 0
        %2122 = vmatprep.subr.bf16.mxu0 0
        %2123 = vmatpush2.bf16.msra.mxu0 0
        %2124 = vmatprep.subr.bf16.mxu0 0
        %2125 = vmatpush2.bf16.msra.mxu0 0
        %2126 = vmatprep.subr.bf16.mxu0 0
        %2127 = vmatpush2.bf16.msra.mxu0 0
        %2128 = vmatprep.subr.bf16.mxu0 0
        %2129 = vmatpush2.bf16.msra.mxu0 0
        %2130 = vmatprep.subr.bf16.mxu0 0
        %2131 = vmatpush2.bf16.msra.mxu0 0
        %2132 = vmatprep.mubr.bf16.mxu0 0
        %2133 = vmatmul.mubr.bf16.gmra.mxu0 %v2015
        %v2134 = vpop.f32.mrf.mxu0
        %v2135 = vadd.f32 0.0, %v2134
        %v2136 = vpop.f32.mrf.mxu0
        %v2137 = vpop.f32.mrf.mxu0
        %v2138 = vadd.f32 0.0, %v2137
        %v2139 = vpop.f32.mrf.mxu0
        %2140 = vmatprep.mubr.bf16.mxu0 0
        %2141 = vmatmul.mubr.bf16.gmra.mxu0 %v2016
        %v2142 = vpop.f32.mrf.mxu0
        %v2143 = vadd.f32 0.0, %v2142
        %v2144 = vpop.f32.mrf.mxu0
        %v2145 = vpop.f32.mrf.mxu0
        %v2146 = vadd.f32 0.0, %v2145
        %v2147 = vpop.f32.mrf.mxu0
        %2148 = vmatprep.mubr.bf16.mxu0 0
        %2149 = vmatmul.mubr.bf16.gmra.mxu0 %v2017
        %v2150 = vpop.f32.mrf.mxu0
        %v2151 = vadd.f32 0.0, %v2150
        %v2152 = vpop.f32.mrf.mxu0
        %v2153 = vpop.f32.mrf.mxu0
        %v2154 = vadd.f32 0.0, %v2153
        %v2155 = vpop.f32.mrf.mxu0
        %2156 = vmatprep.mubr.bf16.mxu0 0
        %2157 = vmatmul.mubr.bf16.gmra.mxu0 %v2018
        %v2158 = vpop.f32.mrf.mxu0
        %v2159 = vadd.f32 0.0, %v2158
        %v2160 = vpop.f32.mrf.mxu0
        %v2161 = vpop.f32.mrf.mxu0
        %v2162 = vadd.f32 0.0, %v2161
        %v2163 = vpop.f32.mrf.mxu0
        %2164 = vmatprep.mubr.bf16.mxu0 0
        %2165 = vmatmul.mubr.bf16.gmra.mxu0 %v2019
        %v2166 = vpop.f32.mrf.mxu0
        %v2167 = vadd.f32 0.0, %v2166
        %v2168 = vpop.f32.mrf.mxu0
        %v2169 = vpop.f32.mrf.mxu0
        %v2170 = vadd.f32 0.0, %v2169
        %v2171 = vpop.f32.mrf.mxu0
        %2172 = vmatprep.mubr.bf16.mxu0 0
        %2173 = vmatmul.mubr.bf16.gmra.mxu0 %v2020
        %v2174 = vpop.f32.mrf.mxu0
        %v2175 = vadd.f32 0.0, %v2174
        %v2176 = vpop.f32.mrf.mxu0
        %v2177 = vpop.f32.mrf.mxu0
        %v2178 = vadd.f32 0.0, %v2177
        %v2179 = vpop.f32.mrf.mxu0
        %2180 = vmatprep.mubr.bf16.mxu0 0
        %2181 = vmatmul.mubr.bf16.gmra.mxu0 %v2021
        %v2182 = vpop.f32.mrf.mxu0
        %v2183 = vadd.f32 0.0, %v2182
        %v2184 = vpop.f32.mrf.mxu0
        %v2185 = vpop.f32.mrf.mxu0
        %v2186 = vadd.f32 0.0, %v2185
        %v2187 = vpop.f32.mrf.mxu0
        %2188 = vmatprep.mubr.bf16.mxu0 0
        %2189 = vmatmul.mubr.bf16.gmra.mxu0 %v2022
        %v2190 = vpop.f32.mrf.mxu0
        %v2191 = vadd.f32 0.0, %v2190
        %v2192 = vpop.f32.mrf.mxu0
        %v2193 = vpop.f32.mrf.mxu0
        %v2194 = vadd.f32 0.0, %v2193
        %v2195 = vpop.f32.mrf.mxu0
        %2196 = vmatprep.mubr.bf16.mxu0 0
        %2197 = vmatmul.mubr.bf16.gmra.mxu0 %v2023
        %v2198 = vpop.f32.mrf.mxu0
        %v2199 = vadd.f32 0.0, %v2198
        %v2200 = vpop.f32.mrf.mxu0
        %v2201 = vpop.f32.mrf.mxu0
        %v2202 = vadd.f32 0.0, %v2201
        %v2203 = vpop.f32.mrf.mxu0
        %2204 = vmatprep.mubr.bf16.mxu0 0
        %2205 = vmatmul.mubr.bf16.gmra.mxu0 %v2024
        %v2206 = vpop.f32.mrf.mxu0
        %v2207 = vadd.f32 0.0, %v2206
        %v2208 = vpop.f32.mrf.mxu0
        %v2209 = vpop.f32.mrf.mxu0
        %v2210 = vadd.f32 0.0, %v2209
        %v2211 = vpop.f32.mrf.mxu0
        %2212 = vmatprep.mubr.bf16.mxu0 0
        %2213 = vmatmul.mubr.bf16.gmra.mxu0 %v2025
        %v2214 = vpop.f32.mrf.mxu0
        %v2215 = vadd.f32 0.0, %v2214
        %v2216 = vpop.f32.mrf.mxu0
        %v2217 = vpop.f32.mrf.mxu0
        %v2218 = vadd.f32 0.0, %v2217
        %v2219 = vpop.f32.mrf.mxu0
        %2220 = vmatprep.mubr.bf16.mxu0 0
        %2221 = vmatmul.mubr.bf16.gmra.mxu0 %v2026
        %v2222 = vpop.f32.mrf.mxu0
        %v2223 = vadd.f32 0.0, %v2222
        %v2224 = vpop.f32.mrf.mxu0
        %v2225 = vpop.f32.mrf.mxu0
        %v2226 = vadd.f32 0.0, %v2225
        %v2227 = vpop.f32.mrf.mxu0
        %2228 = vmatprep.mubr.bf16.mxu0 0
        %2229 = vmatmul.mubr.bf16.gmra.mxu0 %v2027
        %v2230 = vpop.f32.mrf.mxu0
        %v2231 = vadd.f32 0.0, %v2230
        %v2232 = vpop.f32.mrf.mxu0
        %v2233 = vpop.f32.mrf.mxu0
        %v2234 = vadd.f32 0.0, %v2233
        %v2235 = vpop.f32.mrf.mxu0
        %2236 = vmatprep.mubr.bf16.mxu0 0
        %2237 = vmatmul.mubr.bf16.gmra.mxu0 %v2028
        %v2238 = vpop.f32.mrf.mxu0
        %v2239 = vadd.f32 0.0, %v2238
        %v2240 = vpop.f32.mrf.mxu0
        %v2241 = vpop.f32.mrf.mxu0
        %v2242 = vadd.f32 0.0, %v2241
        %v2243 = vpop.f32.mrf.mxu0
        %2244 = vmatprep.mubr.bf16.mxu0 0
        %2245 = vmatmul.mubr.bf16.gmra.mxu0 %v2029
        %v2246 = vpop.f32.mrf.mxu0
        %v2247 = vadd.f32 0.0, %v2246
        %v2248 = vpop.f32.mrf.mxu0
        %v2249 = vpop.f32.mrf.mxu0
        %v2250 = vadd.f32 0.0, %v2249
        %v2251 = vpop.f32.mrf.mxu0
        %2252 = vmatprep.mubr.bf16.mxu0 0
        %2253 = vmatmul.mubr.bf16.gmra.mxu0 %v2030
        %v2254 = vpop.f32.mrf.mxu0
        %v2255 = vadd.f32 0.0, %v2254
        %v2256 = vpop.f32.mrf.mxu0
        %v2257 = vpop.f32.mrf.mxu0
        %v2258 = vadd.f32 0.0, %v2257
        %v2259 = vpop.f32.mrf.mxu0
        %2260 = vmatprep.mubr.bf16.mxu0 0
        %2261 = vmatmul.mubr.bf16.gmra.mxu0 %v2031
        %v2262 = vpop.f32.mrf.mxu0
        %v2263 = vadd.f32 0.0, %v2262
        %v2264 = vpop.f32.mrf.mxu0
        %v2265 = vpop.f32.mrf.mxu0
        %v2266 = vadd.f32 0.0, %v2265
        %v2267 = vpop.f32.mrf.mxu0
        %2268 = vmatprep.mubr.bf16.mxu0 0
        %2269 = vmatmul.mubr.bf16.gmra.mxu0 %v2032
        %v2270 = vpop.f32.mrf.mxu0
        %v2271 = vadd.f32 0.0, %v2270
        %v2272 = vpop.f32.mrf.mxu0
        %v2273 = vpop.f32.mrf.mxu0
        %v2274 = vadd.f32 0.0, %v2273
        %v2275 = vpop.f32.mrf.mxu0
        %2276 = vmatprep.mubr.bf16.mxu0 0
        %2277 = vmatmul.mubr.bf16.gmra.mxu0 %v2033
        %v2278 = vpop.f32.mrf.mxu0
        %v2279 = vadd.f32 0.0, %v2278
        %v2280 = vpop.f32.mrf.mxu0
        %v2281 = vpop.f32.mrf.mxu0
        %v2282 = vadd.f32 0.0, %v2281
        %v2283 = vpop.f32.mrf.mxu0
        %2284 = vmatprep.mubr.bf16.mxu0 0
        %2285 = vmatmul.mubr.bf16.gmra.mxu0 %v2034
        %v2286 = vpop.f32.mrf.mxu0
        %v2287 = vadd.f32 0.0, %v2286
        %v2288 = vpop.f32.mrf.mxu0
        %v2289 = vpop.f32.mrf.mxu0
        %v2290 = vadd.f32 0.0, %v2289
        %v2291 = vpop.f32.mrf.mxu0
        %2292 = vmatprep.mubr.bf16.mxu0 0
        %2293 = vmatmul.mubr.bf16.gmra.mxu0 %v2035
        %v2294 = vpop.f32.mrf.mxu0
        %v2295 = vadd.f32 0.0, %v2294
        %v2296 = vpop.f32.mrf.mxu0
        %v2297 = vpop.f32.mrf.mxu0
        %v2298 = vpop.f32.mrf.mxu0
        %2299 = vdwg.mxu0
        %v2300 = vld [vmem:[%s3] sm:$0x1]
        %v2302 = vlaneseq
        %v2303 = vshrl.u32 %v2302, 7
        %v2304 = vsub.s32 0, %v2303
        %v2305 = vrot.slane %v2300, %v2304
        %v2307 = vmul.f32 %v2135, %v2305
        %v2308 = vmul.f32 %v2138, %v2305
        %v2309 = vmul.f32 %v2143, %v2305
        %v2310 = vmul.f32 %v2146, %v2305
        %v2311 = vmul.f32 %v2151, %v2305
        %v2312 = vmul.f32 %v2154, %v2305
        %v2313 = vmul.f32 %v2159, %v2305
        %v2314 = vmul.f32 %v2162, %v2305
        %v2315 = vmul.f32 %v2167, %v2305
        %v2316 = vmul.f32 %v2170, %v2305
        %v2317 = vmul.f32 %v2175, %v2305
        %v2318 = vmul.f32 %v2178, %v2305
        %v2319 = vmul.f32 %v2183, %v2305
        %v2320 = vmul.f32 %v2186, %v2305
        %v2321 = vmul.f32 %v2191, %v2305
        %v2322 = vmul.f32 %v2194, %v2305
        %v2323 = vmul.f32 %v2199, %v2305
        %v2324 = vmul.f32 %v2202, %v2305
        %v2325 = vmul.f32 %v2207, %v2305
        %v2326 = vmul.f32 %v2210, %v2305
        %v2327 = vmul.f32 %v2215, %v2305
        %v2328 = vmul.f32 %v2218, %v2305
        %v2329 = vmul.f32 %v2223, %v2305
        %v2330 = vmul.f32 %v2226, %v2305
        %v2331 = vmul.f32 %v2231, %v2305
        %v2332 = vmul.f32 %v2234, %v2305
        %v2333 = vmul.f32 %v2239, %v2305
        %v2334 = vmul.f32 %v2242, %v2305
        %v2335 = vmul.f32 %v2247, %v2305
        %v2336 = vmul.f32 %v2250, %v2305
        %v2337 = vmul.f32 %v2255, %v2305
        %v2338 = vmul.f32 %v2258, %v2305
        %v2339 = vmul.f32 %v2263, %v2305
        %v2340 = vmul.f32 %v2266, %v2305
        %v2341 = vmul.f32 %v2271, %v2305
        %v2342 = vmul.f32 %v2274, %v2305
        %v2343 = vmul.f32 %v2279, %v2305
        %v2344 = vmul.f32 %v2282, %v2305
        %v2345 = vmul.f32 %v2287, %v2305
        %v2346 = vmul.f32 %v2290, %v2305
        %v2347 = vmul.f32 %v2295, %v2305
        %v2348 = vld [vmem:[%s4] sm:$0x1]
        %v2350 = vlaneseq
        %v2351 = vshrl.u32 %v2350, 7
        %v2352 = vsub.s32 0, %v2351
        %v2353 = vrot.slane %v2348, %v2352
        %v2355 = vadd.f32 %v2307, %v2353
        %v2356 = vadd.f32 %v2308, %v2353
        %v2357 = vadd.f32 %v2309, %v2353
        %v2358 = vadd.f32 %v2310, %v2353
        %v2359 = vadd.f32 %v2311, %v2353
        %v2360 = vadd.f32 %v2312, %v2353
        %v2361 = vadd.f32 %v2313, %v2353
        %v2362 = vadd.f32 %v2314, %v2353
        %v2363 = vadd.f32 %v2315, %v2353
        %v2364 = vadd.f32 %v2316, %v2353
        %v2365 = vadd.f32 %v2317, %v2353
        %v2366 = vadd.f32 %v2318, %v2353
        %v2367 = vadd.f32 %v2319, %v2353
        %v2368 = vadd.f32 %v2320, %v2353
        %v2369 = vadd.f32 %v2321, %v2353
        %v2370 = vadd.f32 %v2322, %v2353
        %v2371 = vadd.f32 %v2323, %v2353
        %v2372 = vadd.f32 %v2324, %v2353
        %v2373 = vadd.f32 %v2325, %v2353
        %v2374 = vadd.f32 %v2326, %v2353
        %v2375 = vadd.f32 %v2327, %v2353
        %v2376 = vadd.f32 %v2328, %v2353
        %v2377 = vadd.f32 %v2329, %v2353
        %v2378 = vadd.f32 %v2330, %v2353
        %v2379 = vadd.f32 %v2331, %v2353
        %v2380 = vadd.f32 %v2332, %v2353
        %v2381 = vadd.f32 %v2333, %v2353
        %v2382 = vadd.f32 %v2334, %v2353
        %v2383 = vadd.f32 %v2335, %v2353
        %v2384 = vadd.f32 %v2336, %v2353
        %v2385 = vadd.f32 %v2337, %v2353
        %v2386 = vadd.f32 %v2338, %v2353
        %v2387 = vadd.f32 %v2339, %v2353
        %v2388 = vadd.f32 %v2340, %v2353
        %v2389 = vadd.f32 %v2341, %v2353
        %v2390 = vadd.f32 %v2342, %v2353
        %v2391 = vadd.f32 %v2343, %v2353
        %v2392 = vadd.f32 %v2344, %v2353
        %v2393 = vadd.f32 %v2345, %v2353
        %v2394 = vadd.f32 %v2346, %v2353
        %v2395 = vadd.f32 %v2347, %v2353
        %v2396 = vmax.f32 %v2355, 0.0
        %v2397 = vmax.f32 %v2356, 0.0
        %v2398 = vmax.f32 %v2357, 0.0
        %v2399 = vmax.f32 %v2358, 0.0
        %v2400 = vmax.f32 %v2359, 0.0
        %v2401 = vmax.f32 %v2360, 0.0
        %v2402 = vmax.f32 %v2361, 0.0
        %v2403 = vmax.f32 %v2362, 0.0
        %v2404 = vmax.f32 %v2363, 0.0
        %v2405 = vmax.f32 %v2364, 0.0
        %v2406 = vmax.f32 %v2365, 0.0
        %v2407 = vmax.f32 %v2366, 0.0
        %v2408 = vmax.f32 %v2367, 0.0
        %v2409 = vmax.f32 %v2368, 0.0
        %v2410 = vmax.f32 %v2369, 0.0
        %v2411 = vmax.f32 %v2370, 0.0
        %v2412 = vmax.f32 %v2371, 0.0
        %v2413 = vmax.f32 %v2372, 0.0
        %v2414 = vmax.f32 %v2373, 0.0
        %v2415 = vmax.f32 %v2374, 0.0
        %v2416 = vmax.f32 %v2375, 0.0
        %v2417 = vmax.f32 %v2376, 0.0
        %v2418 = vmax.f32 %v2377, 0.0
        %v2419 = vmax.f32 %v2378, 0.0
        %v2420 = vmax.f32 %v2379, 0.0
        %v2421 = vmax.f32 %v2380, 0.0
        %v2422 = vmax.f32 %v2381, 0.0
        %v2423 = vmax.f32 %v2382, 0.0
        %v2424 = vmax.f32 %v2383, 0.0
        %v2425 = vmax.f32 %v2384, 0.0
        %v2426 = vmax.f32 %v2385, 0.0
        %v2427 = vmax.f32 %v2386, 0.0
        %v2428 = vmax.f32 %v2387, 0.0
        %v2429 = vmax.f32 %v2388, 0.0
        %v2430 = vmax.f32 %v2389, 0.0
        %v2431 = vmax.f32 %v2390, 0.0
        %v2432 = vmax.f32 %v2391, 0.0
        %v2433 = vmax.f32 %v2392, 0.0
        %v2434 = vmax.f32 %v2393, 0.0
        %v2435 = vmax.f32 %v2394, 0.0
        %v2436 = vmax.f32 %v2395, 0.0
        %v2437 = vld [vmem:[%s1] sm:$0xff]
        %v2438 = vld [vmem:[%s1 + $0x8] sm:$0xff]
        %v2439 = vld [vmem:[%s1 + $0x10] sm:$0xff]
        %v2440 = vld [vmem:[%s1 + $0x18] sm:$0xff]
        %v2441 = vld [vmem:[%s1 + $0x20] sm:$0xff]
        %v2442 = vld [vmem:[%s1 + $0x28] sm:$0xff]
        %v2443 = vld [vmem:[%s1 + $0x30] sm:$0xff]
        %v2444 = vld [vmem:[%s1 + $0x38] sm:$0xff]
        %v2445 = vld [vmem:[%s1 + $0x40] sm:$0xff]
        %v2446 = vld [vmem:[%s1 + $0x48] sm:$0xff]
        %v2447 = vld [vmem:[%s1 + $0x50] sm:$0xff]
        %v2448 = vld [vmem:[%s1 + $0x58] sm:$0xff]
        %v2449 = vld [vmem:[%s1 + $0x60] sm:$0xff]
        %v2450 = vld [vmem:[%s1 + $0x68] sm:$0xff]
        %v2451 = vld [vmem:[%s1 + $0x70] sm:$0xff]
        %v2452 = vld [vmem:[%s1 + $0x78] sm:$0xff]
        %v2453 = vld [vmem:[%s1 + $0x80] sm:$0xff]
        %v2454 = vld [vmem:[%s1 + $0x88] sm:$0xff]
        %v2455 = vld [vmem:[%s1 + $0x90] sm:$0xff]
        %v2456 = vld [vmem:[%s1 + $0x98] sm:$0xff]
        %v2457 = vld [vmem:[%s1 + $0xa0] sm:$0xff]
        %v2458 = vld [vmem:[%s1 + $0xa8] sm:$0xff]
        %v2459 = vld [vmem:[%s1 + $0xb0] sm:$0xff]
        %v2460 = vld [vmem:[%s1 + $0xb8] sm:$0xff]
        %v2461 = vld [vmem:[%s1 + $0xc0] sm:$0xff]
        %v2462 = vld [vmem:[%s1 + $0xc8] sm:$0xff]
        %v2463 = vld [vmem:[%s1 + $0xd0] sm:$0xff]
        %v2464 = vld [vmem:[%s1 + $0xd8] sm:$0xff]
        %v2465 = vld [vmem:[%s1 + $0xe0] sm:$0xff]
        %v2466 = vld [vmem:[%s1 + $0xe8] sm:$0xff]
        %v2467 = vld [vmem:[%s1 + $0xf0] sm:$0xff]
        %v2468 = vld [vmem:[%s1 + $0xf8] sm:$0xff]
        %v2469 = vld [vmem:[%s1 + $0x100] sm:$0xff]
        %v2470 = vld [vmem:[%s1 + $0x108] sm:$0xff]
        %v2471 = vld [vmem:[%s1 + $0x110] sm:$0xff]
        %v2472 = vld [vmem:[%s1 + $0x118] sm:$0xff]
        %v2473 = vld [vmem:[%s1 + $0x120] sm:$0xff]
        %v2474 = vld [vmem:[%s1 + $0x128] sm:$0xff]
        %v2475 = vld [vmem:[%s1 + $0x130] sm:$0xff]
        %v2476 = vld [vmem:[%s1 + $0x138] sm:$0xff]
        %v2477 = vld [vmem:[%s1 + $0x140] sm:$0xf]
        %2479 = vset.pattern.permute.xlu0 0
        %2480 = vperm.xlu0 %2479, %v2437
        %v2481 = vpop.permute.xlu0 %2480
        %2484 = vset.pattern.permute.xlu0 0
        %2485 = vperm.xlu0 %2484, %v2438
        %v2486 = vpop.permute.xlu0 %2485
        %2489 = vset.pattern.permute.xlu0 0
        %2490 = vperm.xlu0 %2489, %v2439
        %v2491 = vpop.permute.xlu0 %2490
        %2494 = vset.pattern.permute.xlu0 0
        %2495 = vperm.xlu0 %2494, %v2440
        %v2496 = vpop.permute.xlu0 %2495
        %2499 = vset.pattern.permute.xlu0 0
        %2500 = vperm.xlu0 %2499, %v2441
        %v2501 = vpop.permute.xlu0 %2500
        %2504 = vset.pattern.permute.xlu0 0
        %2505 = vperm.xlu0 %2504, %v2442
        %v2506 = vpop.permute.xlu0 %2505
        %2509 = vset.pattern.permute.xlu0 0
        %2510 = vperm.xlu0 %2509, %v2443
        %v2511 = vpop.permute.xlu0 %2510
        %2514 = vset.pattern.permute.xlu0 0
        %2515 = vperm.xlu0 %2514, %v2444
        %v2516 = vpop.permute.xlu0 %2515
        %2519 = vset.pattern.permute.xlu0 0
        %2520 = vperm.xlu0 %2519, %v2445
        %v2521 = vpop.permute.xlu0 %2520
        %2524 = vset.pattern.permute.xlu0 0
        %2525 = vperm.xlu0 %2524, %v2446
        %v2526 = vpop.permute.xlu0 %2525
        %2529 = vset.pattern.permute.xlu0 0
        %2530 = vperm.xlu0 %2529, %v2447
        %v2531 = vpop.permute.xlu0 %2530
        %2534 = vset.pattern.permute.xlu0 0
        %2535 = vperm.xlu0 %2534, %v2448
        %v2536 = vpop.permute.xlu0 %2535
        %2539 = vset.pattern.permute.xlu0 0
        %2540 = vperm.xlu0 %2539, %v2449
        %v2541 = vpop.permute.xlu0 %2540
        %2544 = vset.pattern.permute.xlu0 0
        %2545 = vperm.xlu0 %2544, %v2450
        %v2546 = vpop.permute.xlu0 %2545
        %2549 = vset.pattern.permute.xlu0 0
        %2550 = vperm.xlu0 %2549, %v2451
        %v2551 = vpop.permute.xlu0 %2550
        %2554 = vset.pattern.permute.xlu0 0
        %2555 = vperm.xlu0 %2554, %v2452
        %v2556 = vpop.permute.xlu0 %2555
        %2559 = vset.pattern.permute.xlu0 0
        %2560 = vperm.xlu0 %2559, %v2453
        %v2561 = vpop.permute.xlu0 %2560
        %2564 = vset.pattern.permute.xlu0 0
        %2565 = vperm.xlu0 %2564, %v2454
        %v2566 = vpop.permute.xlu0 %2565
        %2569 = vset.pattern.permute.xlu0 0
        %2570 = vperm.xlu0 %2569, %v2455
        %v2571 = vpop.permute.xlu0 %2570
        %2574 = vset.pattern.permute.xlu0 0
        %2575 = vperm.xlu0 %2574, %v2456
        %v2576 = vpop.permute.xlu0 %2575
        %2579 = vset.pattern.permute.xlu0 0
        %2580 = vperm.xlu0 %2579, %v2457
        %v2581 = vpop.permute.xlu0 %2580
        %2584 = vset.pattern.permute.xlu0 0
        %2585 = vperm.xlu0 %2584, %v2458
        %v2586 = vpop.permute.xlu0 %2585
        %2589 = vset.pattern.permute.xlu0 0
        %2590 = vperm.xlu0 %2589, %v2459
        %v2591 = vpop.permute.xlu0 %2590
        %2594 = vset.pattern.permute.xlu0 0
        %2595 = vperm.xlu0 %2594, %v2460
        %v2596 = vpop.permute.xlu0 %2595
        %2599 = vset.pattern.permute.xlu0 0
        %2600 = vperm.xlu0 %2599, %v2461
        %v2601 = vpop.permute.xlu0 %2600
        %2604 = vset.pattern.permute.xlu0 0
        %2605 = vperm.xlu0 %2604, %v2462
        %v2606 = vpop.permute.xlu0 %2605
        %2609 = vset.pattern.permute.xlu0 0
        %2610 = vperm.xlu0 %2609, %v2463
        %v2611 = vpop.permute.xlu0 %2610
        %2614 = vset.pattern.permute.xlu0 0
        %2615 = vperm.xlu0 %2614, %v2464
        %v2616 = vpop.permute.xlu0 %2615
        %2619 = vset.pattern.permute.xlu0 0
        %2620 = vperm.xlu0 %2619, %v2465
        %v2621 = vpop.permute.xlu0 %2620
        %2624 = vset.pattern.permute.xlu0 0
        %2625 = vperm.xlu0 %2624, %v2466
        %v2626 = vpop.permute.xlu0 %2625
        %2629 = vset.pattern.permute.xlu0 0
        %2630 = vperm.xlu0 %2629, %v2467
        %v2631 = vpop.permute.xlu0 %2630
        %2634 = vset.pattern.permute.xlu0 0
        %2635 = vperm.xlu0 %2634, %v2468
        %v2636 = vpop.permute.xlu0 %2635
        %2639 = vset.pattern.permute.xlu0 0
        %2640 = vperm.xlu0 %2639, %v2469
        %v2641 = vpop.permute.xlu0 %2640
        %2644 = vset.pattern.permute.xlu0 0
        %2645 = vperm.xlu0 %2644, %v2470
        %v2646 = vpop.permute.xlu0 %2645
        %2649 = vset.pattern.permute.xlu0 0
        %2650 = vperm.xlu0 %2649, %v2471
        %v2651 = vpop.permute.xlu0 %2650
        %2654 = vset.pattern.permute.xlu0 0
        %2655 = vperm.xlu0 %2654, %v2472
        %v2656 = vpop.permute.xlu0 %2655
        %2659 = vset.pattern.permute.xlu0 0
        %2660 = vperm.xlu0 %2659, %v2473
        %v2661 = vpop.permute.xlu0 %2660
        %2664 = vset.pattern.permute.xlu0 0
        %2665 = vperm.xlu0 %2664, %v2474
        %v2666 = vpop.permute.xlu0 %2665
        %2669 = vset.pattern.permute.xlu0 0
        %2670 = vperm.xlu0 %2669, %v2475
        %v2671 = vpop.permute.xlu0 %2670
        %2674 = vset.pattern.permute.xlu0 0
        %2675 = vperm.xlu0 %2674, %v2476
        %v2676 = vpop.permute.xlu0 %2675
        %2679 = vset.pattern.permute.xlu0 0
        %2680 = vperm.xlu0 %2679, %v2477
        %v2681 = vpop.permute.xlu0 %2680
        %v2683 = vmul.f32 %v2396, %v2481
        %v2684 = vmul.f32 %v2397, %v2486
        %v2685 = vmul.f32 %v2398, %v2491
        %v2686 = vmul.f32 %v2399, %v2496
        %v2687 = vmul.f32 %v2400, %v2501
        %v2688 = vmul.f32 %v2401, %v2506
        %v2689 = vmul.f32 %v2402, %v2511
        %v2690 = vmul.f32 %v2403, %v2516
        %v2691 = vmul.f32 %v2404, %v2521
        %v2692 = vmul.f32 %v2405, %v2526
        %v2693 = vmul.f32 %v2406, %v2531
        %v2694 = vmul.f32 %v2407, %v2536
        %v2695 = vmul.f32 %v2408, %v2541
        %v2696 = vmul.f32 %v2409, %v2546
        %v2697 = vmul.f32 %v2410, %v2551
        %v2698 = vmul.f32 %v2411, %v2556
        %v2699 = vmul.f32 %v2412, %v2561
        %v2700 = vmul.f32 %v2413, %v2566
        %v2701 = vmul.f32 %v2414, %v2571
        %v2702 = vmul.f32 %v2415, %v2576
        %v2703 = vmul.f32 %v2416, %v2581
        %v2704 = vmul.f32 %v2417, %v2586
        %v2705 = vmul.f32 %v2418, %v2591
        %v2706 = vmul.f32 %v2419, %v2596
        %v2707 = vmul.f32 %v2420, %v2601
        %v2708 = vmul.f32 %v2421, %v2606
        %v2709 = vmul.f32 %v2422, %v2611
        %v2710 = vmul.f32 %v2423, %v2616
        %v2711 = vmul.f32 %v2424, %v2621
        %v2712 = vmul.f32 %v2425, %v2626
        %v2713 = vmul.f32 %v2426, %v2631
        %v2714 = vmul.f32 %v2427, %v2636
        %v2715 = vmul.f32 %v2428, %v2641
        %v2716 = vmul.f32 %v2429, %v2646
        %v2717 = vmul.f32 %v2430, %v2651
        %v2718 = vmul.f32 %v2431, %v2656
        %v2719 = vmul.f32 %v2432, %v2661
        %v2720 = vmul.f32 %v2433, %v2666
        %v2721 = vmul.f32 %v2434, %v2671
        %v2722 = vmul.f32 %v2435, %v2676
        %v2723 = vmul.f32 %v2436, %v2681
        %v2765 = vcombine.high %v2683, %v2683
        %v2767 = vunpack.c.l.s4 1983009808
        %v2768 = vunpack.c.0.s8 %v2767
        %v2769 = vlaneseq
        %v2770 = vshrl.u32 %v2769, 7
        %v2771 = vsub.s32 %v2768, %v2770
        %v2772 = vrot.slane %v2683, %v2771
        %v2774 = vunpack.c.l.s4 1983009808
        %v2775 = vunpack.c.0.s8 %v2774
        %v2776 = vlaneseq
        %v2777 = vshrl.u32 %v2776, 7
        %v2778 = vsub.s32 %v2775, %v2777
        %v2779 = vrot.slane %v2765, %v2778
        %v2780 = vcombine.high %v2772, %v2772
        %v2781 = vcombine.high %v2779, %v2779
        %v2782 = vcombine.high %v2684, %v2684
        %v2784 = vunpack.c.l.s4 1983009808
        %v2785 = vunpack.c.0.s8 %v2784
        %v2786 = vlaneseq
        %v2787 = vshrl.u32 %v2786, 7
        %v2788 = vsub.s32 %v2785, %v2787
        %v2789 = vrot.slane %v2684, %v2788
        %v2791 = vunpack.c.l.s4 1983009808
        %v2792 = vunpack.c.0.s8 %v2791
        %v2793 = vlaneseq
        %v2794 = vshrl.u32 %v2793, 7
        %v2795 = vsub.s32 %v2792, %v2794
        %v2796 = vrot.slane %v2782, %v2795
        %v2797 = vcombine.high %v2789, %v2789
        %v2798 = vcombine.high %v2796, %v2796
        %v2799 = vcombine.high %v2685, %v2685
        %v2801 = vunpack.c.l.s4 1983009808
        %v2802 = vunpack.c.0.s8 %v2801
        %v2803 = vlaneseq
        %v2804 = vshrl.u32 %v2803, 7
        %v2805 = vsub.s32 %v2802, %v2804
        %v2806 = vrot.slane %v2685, %v2805
        %v2808 = vunpack.c.l.s4 1983009808
        %v2809 = vunpack.c.0.s8 %v2808
        %v2810 = vlaneseq
        %v2811 = vshrl.u32 %v2810, 7
        %v2812 = vsub.s32 %v2809, %v2811
        %v2813 = vrot.slane %v2799, %v2812
        %v2814 = vcombine.high %v2806, %v2806
        %v2815 = vcombine.high %v2813, %v2813
        %v2816 = vcombine.high %v2686, %v2686
        %v2818 = vunpack.c.l.s4 1983009808
        %v2819 = vunpack.c.0.s8 %v2818
        %v2820 = vlaneseq
        %v2821 = vshrl.u32 %v2820, 7
        %v2822 = vsub.s32 %v2819, %v2821
        %v2823 = vrot.slane %v2686, %v2822
        %v2825 = vunpack.c.l.s4 1983009808
        %v2826 = vunpack.c.0.s8 %v2825
        %v2827 = vlaneseq
        %v2828 = vshrl.u32 %v2827, 7
        %v2829 = vsub.s32 %v2826, %v2828
        %v2830 = vrot.slane %v2816, %v2829
        %v2831 = vcombine.high %v2823, %v2823
        %v2832 = vcombine.high %v2830, %v2830
        %v2833 = vcombine.high %v2687, %v2687
        %v2835 = vunpack.c.l.s4 1983009808
        %v2836 = vunpack.c.0.s8 %v2835
        %v2837 = vlaneseq
        %v2838 = vshrl.u32 %v2837, 7
        %v2839 = vsub.s32 %v2836, %v2838
        %v2840 = vrot.slane %v2687, %v2839
        %v2842 = vunpack.c.l.s4 1983009808
        %v2843 = vunpack.c.0.s8 %v2842
        %v2844 = vlaneseq
        %v2845 = vshrl.u32 %v2844, 7
        %v2846 = vsub.s32 %v2843, %v2845
        %v2847 = vrot.slane %v2833, %v2846
        %v2848 = vcombine.high %v2840, %v2840
        %v2849 = vcombine.high %v2847, %v2847
        %v2850 = vcombine.high %v2688, %v2688
        %v2852 = vunpack.c.l.s4 1983009808
        %v2853 = vunpack.c.0.s8 %v2852
        %v2854 = vlaneseq
        %v2855 = vshrl.u32 %v2854, 7
        %v2856 = vsub.s32 %v2853, %v2855
        %v2857 = vrot.slane %v2688, %v2856
        %v2859 = vunpack.c.l.s4 1983009808
        %v2860 = vunpack.c.0.s8 %v2859
        %v2861 = vlaneseq
        %v2862 = vshrl.u32 %v2861, 7
        %v2863 = vsub.s32 %v2860, %v2862
        %v2864 = vrot.slane %v2850, %v2863
        %v2865 = vcombine.high %v2857, %v2857
        %v2866 = vcombine.high %v2864, %v2864
        %v2867 = vcombine.high %v2689, %v2689
        %v2869 = vunpack.c.l.s4 1983009808
        %v2870 = vunpack.c.0.s8 %v2869
        %v2871 = vlaneseq
        %v2872 = vshrl.u32 %v2871, 7
        %v2873 = vsub.s32 %v2870, %v2872
        %v2874 = vrot.slane %v2689, %v2873
        %v2876 = vunpack.c.l.s4 1983009808
        %v2877 = vunpack.c.0.s8 %v2876
        %v2878 = vlaneseq
        %v2879 = vshrl.u32 %v2878, 7
        %v2880 = vsub.s32 %v2877, %v2879
        %v2881 = vrot.slane %v2867, %v2880
        %v2882 = vcombine.high %v2874, %v2874
        %v2883 = vcombine.high %v2881, %v2881
        %v2884 = vcombine.high %v2690, %v2690
        %v2886 = vunpack.c.l.s4 1983009808
        %v2887 = vunpack.c.0.s8 %v2886
        %v2888 = vlaneseq
        %v2889 = vshrl.u32 %v2888, 7
        %v2890 = vsub.s32 %v2887, %v2889
        %v2891 = vrot.slane %v2690, %v2890
        %v2893 = vunpack.c.l.s4 1983009808
        %v2894 = vunpack.c.0.s8 %v2893
        %v2895 = vlaneseq
        %v2896 = vshrl.u32 %v2895, 7
        %v2897 = vsub.s32 %v2894, %v2896
        %v2898 = vrot.slane %v2884, %v2897
        %v2899 = vcombine.high %v2891, %v2891
        %v2900 = vcombine.high %v2898, %v2898
        %v2901 = vcombine.high %v2691, %v2691
        %v2903 = vunpack.c.l.s4 1983009808
        %v2904 = vunpack.c.0.s8 %v2903
        %v2905 = vlaneseq
        %v2906 = vshrl.u32 %v2905, 7
        %v2907 = vsub.s32 %v2904, %v2906
        %v2908 = vrot.slane %v2691, %v2907
        %v2910 = vunpack.c.l.s4 1983009808
        %v2911 = vunpack.c.0.s8 %v2910
        %v2912 = vlaneseq
        %v2913 = vshrl.u32 %v2912, 7
        %v2914 = vsub.s32 %v2911, %v2913
        %v2915 = vrot.slane %v2901, %v2914
        %v2916 = vcombine.high %v2908, %v2908
        %v2917 = vcombine.high %v2915, %v2915
        %v2918 = vcombine.high %v2692, %v2692
        %v2920 = vunpack.c.l.s4 1983009808
        %v2921 = vunpack.c.0.s8 %v2920
        %v2922 = vlaneseq
        %v2923 = vshrl.u32 %v2922, 7
        %v2924 = vsub.s32 %v2921, %v2923
        %v2925 = vrot.slane %v2692, %v2924
        %v2927 = vunpack.c.l.s4 1983009808
        %v2928 = vunpack.c.0.s8 %v2927
        %v2929 = vlaneseq
        %v2930 = vshrl.u32 %v2929, 7
        %v2931 = vsub.s32 %v2928, %v2930
        %v2932 = vrot.slane %v2918, %v2931
        %v2933 = vcombine.high %v2925, %v2925
        %v2934 = vcombine.high %v2932, %v2932
        %v2935 = vcombine.high %v2693, %v2693
        %v2937 = vunpack.c.l.s4 1983009808
        %v2938 = vunpack.c.0.s8 %v2937
        %v2939 = vlaneseq
        %v2940 = vshrl.u32 %v2939, 7
        %v2941 = vsub.s32 %v2938, %v2940
        %v2942 = vrot.slane %v2693, %v2941
        %v2944 = vunpack.c.l.s4 1983009808
        %v2945 = vunpack.c.0.s8 %v2944
        %v2946 = vlaneseq
        %v2947 = vshrl.u32 %v2946, 7
        %v2948 = vsub.s32 %v2945, %v2947
        %v2949 = vrot.slane %v2935, %v2948
        %v2950 = vcombine.high %v2942, %v2942
        %v2951 = vcombine.high %v2949, %v2949
        %v2952 = vcombine.high %v2694, %v2694
        %v2954 = vunpack.c.l.s4 1983009808
        %v2955 = vunpack.c.0.s8 %v2954
        %v2956 = vlaneseq
        %v2957 = vshrl.u32 %v2956, 7
        %v2958 = vsub.s32 %v2955, %v2957
        %v2959 = vrot.slane %v2694, %v2958
        %v2961 = vunpack.c.l.s4 1983009808
        %v2962 = vunpack.c.0.s8 %v2961
        %v2963 = vlaneseq
        %v2964 = vshrl.u32 %v2963, 7
        %v2965 = vsub.s32 %v2962, %v2964
        %v2966 = vrot.slane %v2952, %v2965
        %v2967 = vcombine.high %v2959, %v2959
        %v2968 = vcombine.high %v2966, %v2966
        %v2969 = vcombine.high %v2695, %v2695
        %v2971 = vunpack.c.l.s4 1983009808
        %v2972 = vunpack.c.0.s8 %v2971
        %v2973 = vlaneseq
        %v2974 = vshrl.u32 %v2973, 7
        %v2975 = vsub.s32 %v2972, %v2974
        %v2976 = vrot.slane %v2695, %v2975
        %v2978 = vunpack.c.l.s4 1983009808
        %v2979 = vunpack.c.0.s8 %v2978
        %v2980 = vlaneseq
        %v2981 = vshrl.u32 %v2980, 7
        %v2982 = vsub.s32 %v2979, %v2981
        %v2983 = vrot.slane %v2969, %v2982
        %v2984 = vcombine.high %v2976, %v2976
        %v2985 = vcombine.high %v2983, %v2983
        %v2986 = vcombine.high %v2696, %v2696
        %v2988 = vunpack.c.l.s4 1983009808
        %v2989 = vunpack.c.0.s8 %v2988
        %v2990 = vlaneseq
        %v2991 = vshrl.u32 %v2990, 7
        %v2992 = vsub.s32 %v2989, %v2991
        %v2993 = vrot.slane %v2696, %v2992
        %v2995 = vunpack.c.l.s4 1983009808
        %v2996 = vunpack.c.0.s8 %v2995
        %v2997 = vlaneseq
        %v2998 = vshrl.u32 %v2997, 7
        %v2999 = vsub.s32 %v2996, %v2998
        %v3000 = vrot.slane %v2986, %v2999
        %v3001 = vcombine.high %v2993, %v2993
        %v3002 = vcombine.high %v3000, %v3000
        %v3003 = vcombine.high %v2697, %v2697
        %v3005 = vunpack.c.l.s4 1983009808
        %v3006 = vunpack.c.0.s8 %v3005
        %v3007 = vlaneseq
        %v3008 = vshrl.u32 %v3007, 7
        %v3009 = vsub.s32 %v3006, %v3008
        %v3010 = vrot.slane %v2697, %v3009
        %v3012 = vunpack.c.l.s4 1983009808
        %v3013 = vunpack.c.0.s8 %v3012
        %v3014 = vlaneseq
        %v3015 = vshrl.u32 %v3014, 7
        %v3016 = vsub.s32 %v3013, %v3015
        %v3017 = vrot.slane %v3003, %v3016
        %v3018 = vcombine.high %v3010, %v3010
        %v3019 = vcombine.high %v3017, %v3017
        %v3020 = vcombine.high %v2698, %v2698
        %v3022 = vunpack.c.l.s4 1983009808
        %v3023 = vunpack.c.0.s8 %v3022
        %v3024 = vlaneseq
        %v3025 = vshrl.u32 %v3024, 7
        %v3026 = vsub.s32 %v3023, %v3025
        %v3027 = vrot.slane %v2698, %v3026
        %v3029 = vunpack.c.l.s4 1983009808
        %v3030 = vunpack.c.0.s8 %v3029
        %v3031 = vlaneseq
        %v3032 = vshrl.u32 %v3031, 7
        %v3033 = vsub.s32 %v3030, %v3032
        %v3034 = vrot.slane %v3020, %v3033
        %v3035 = vcombine.high %v3027, %v3027
        %v3036 = vcombine.high %v3034, %v3034
        %v3037 = vcombine.high %v2699, %v2699
        %v3039 = vunpack.c.l.s4 1983009808
        %v3040 = vunpack.c.0.s8 %v3039
        %v3041 = vlaneseq
        %v3042 = vshrl.u32 %v3041, 7
        %v3043 = vsub.s32 %v3040, %v3042
        %v3044 = vrot.slane %v2699, %v3043
        %v3046 = vunpack.c.l.s4 1983009808
        %v3047 = vunpack.c.0.s8 %v3046
        %v3048 = vlaneseq
        %v3049 = vshrl.u32 %v3048, 7
        %v3050 = vsub.s32 %v3047, %v3049
        %v3051 = vrot.slane %v3037, %v3050
        %v3052 = vcombine.high %v3044, %v3044
        %v3053 = vcombine.high %v3051, %v3051
        %v3054 = vcombine.high %v2700, %v2700
        %v3056 = vunpack.c.l.s4 1983009808
        %v3057 = vunpack.c.0.s8 %v3056
        %v3058 = vlaneseq
        %v3059 = vshrl.u32 %v3058, 7
        %v3060 = vsub.s32 %v3057, %v3059
        %v3061 = vrot.slane %v2700, %v3060
        %v3063 = vunpack.c.l.s4 1983009808
        %v3064 = vunpack.c.0.s8 %v3063
        %v3065 = vlaneseq
        %v3066 = vshrl.u32 %v3065, 7
        %v3067 = vsub.s32 %v3064, %v3066
        %v3068 = vrot.slane %v3054, %v3067
        %v3069 = vcombine.high %v3061, %v3061
        %v3070 = vcombine.high %v3068, %v3068
        %v3071 = vcombine.high %v2701, %v2701
        %v3073 = vunpack.c.l.s4 1983009808
        %v3074 = vunpack.c.0.s8 %v3073
        %v3075 = vlaneseq
        %v3076 = vshrl.u32 %v3075, 7
        %v3077 = vsub.s32 %v3074, %v3076
        %v3078 = vrot.slane %v2701, %v3077
        %v3080 = vunpack.c.l.s4 1983009808
        %v3081 = vunpack.c.0.s8 %v3080
        %v3082 = vlaneseq
        %v3083 = vshrl.u32 %v3082, 7
        %v3084 = vsub.s32 %v3081, %v3083
        %v3085 = vrot.slane %v3071, %v3084
        %v3086 = vcombine.high %v3078, %v3078
        %v3087 = vcombine.high %v3085, %v3085
        %v3088 = vcombine.high %v2702, %v2702
        %v3090 = vunpack.c.l.s4 1983009808
        %v3091 = vunpack.c.0.s8 %v3090
        %v3092 = vlaneseq
        %v3093 = vshrl.u32 %v3092, 7
        %v3094 = vsub.s32 %v3091, %v3093
        %v3095 = vrot.slane %v2702, %v3094
        %v3097 = vunpack.c.l.s4 1983009808
        %v3098 = vunpack.c.0.s8 %v3097
        %v3099 = vlaneseq
        %v3100 = vshrl.u32 %v3099, 7
        %v3101 = vsub.s32 %v3098, %v3100
        %v3102 = vrot.slane %v3088, %v3101
        %v3103 = vcombine.high %v3095, %v3095
        %v3104 = vcombine.high %v3102, %v3102
        %v3105 = vcombine.high %v2703, %v2703
        %v3107 = vunpack.c.l.s4 1983009808
        %v3108 = vunpack.c.0.s8 %v3107
        %v3109 = vlaneseq
        %v3110 = vshrl.u32 %v3109, 7
        %v3111 = vsub.s32 %v3108, %v3110
        %v3112 = vrot.slane %v2703, %v3111
        %v3114 = vunpack.c.l.s4 1983009808
        %v3115 = vunpack.c.0.s8 %v3114
        %v3116 = vlaneseq
        %v3117 = vshrl.u32 %v3116, 7
        %v3118 = vsub.s32 %v3115, %v3117
        %v3119 = vrot.slane %v3105, %v3118
        %v3120 = vcombine.high %v3112, %v3112
        %v3121 = vcombine.high %v3119, %v3119
        %v3122 = vcombine.high %v2704, %v2704
        %v3124 = vunpack.c.l.s4 1983009808
        %v3125 = vunpack.c.0.s8 %v3124
        %v3126 = vlaneseq
        %v3127 = vshrl.u32 %v3126, 7
        %v3128 = vsub.s32 %v3125, %v3127
        %v3129 = vrot.slane %v2704, %v3128
        %v3131 = vunpack.c.l.s4 1983009808
        %v3132 = vunpack.c.0.s8 %v3131
        %v3133 = vlaneseq
        %v3134 = vshrl.u32 %v3133, 7
        %v3135 = vsub.s32 %v3132, %v3134
        %v3136 = vrot.slane %v3122, %v3135
        %v3137 = vcombine.high %v3129, %v3129
        %v3138 = vcombine.high %v3136, %v3136
        %v3139 = vcombine.high %v2705, %v2705
        %v3141 = vunpack.c.l.s4 1983009808
        %v3142 = vunpack.c.0.s8 %v3141
        %v3143 = vlaneseq
        %v3144 = vshrl.u32 %v3143, 7
        %v3145 = vsub.s32 %v3142, %v3144
        %v3146 = vrot.slane %v2705, %v3145
        %v3148 = vunpack.c.l.s4 1983009808
        %v3149 = vunpack.c.0.s8 %v3148
        %v3150 = vlaneseq
        %v3151 = vshrl.u32 %v3150, 7
        %v3152 = vsub.s32 %v3149, %v3151
        %v3153 = vrot.slane %v3139, %v3152
        %v3154 = vcombine.high %v3146, %v3146
        %v3155 = vcombine.high %v3153, %v3153
        %v3156 = vcombine.high %v2706, %v2706
        %v3158 = vunpack.c.l.s4 1983009808
        %v3159 = vunpack.c.0.s8 %v3158
        %v3160 = vlaneseq
        %v3161 = vshrl.u32 %v3160, 7
        %v3162 = vsub.s32 %v3159, %v3161
        %v3163 = vrot.slane %v2706, %v3162
        %v3165 = vunpack.c.l.s4 1983009808
        %v3166 = vunpack.c.0.s8 %v3165
        %v3167 = vlaneseq
        %v3168 = vshrl.u32 %v3167, 7
        %v3169 = vsub.s32 %v3166, %v3168
        %v3170 = vrot.slane %v3156, %v3169
        %v3171 = vcombine.high %v3163, %v3163
        %v3172 = vcombine.high %v3170, %v3170
        %v3173 = vcombine.high %v2707, %v2707
        %v3175 = vunpack.c.l.s4 1983009808
        %v3176 = vunpack.c.0.s8 %v3175
        %v3177 = vlaneseq
        %v3178 = vshrl.u32 %v3177, 7
        %v3179 = vsub.s32 %v3176, %v3178
        %v3180 = vrot.slane %v2707, %v3179
        %v3182 = vunpack.c.l.s4 1983009808
        %v3183 = vunpack.c.0.s8 %v3182
        %v3184 = vlaneseq
        %v3185 = vshrl.u32 %v3184, 7
        %v3186 = vsub.s32 %v3183, %v3185
        %v3187 = vrot.slane %v3173, %v3186
        %v3188 = vcombine.high %v3180, %v3180
        %v3189 = vcombine.high %v3187, %v3187
        %v3190 = vcombine.high %v2708, %v2708
        %v3192 = vunpack.c.l.s4 1983009808
        %v3193 = vunpack.c.0.s8 %v3192
        %v3194 = vlaneseq
        %v3195 = vshrl.u32 %v3194, 7
        %v3196 = vsub.s32 %v3193, %v3195
        %v3197 = vrot.slane %v2708, %v3196
        %v3199 = vunpack.c.l.s4 1983009808
        %v3200 = vunpack.c.0.s8 %v3199
        %v3201 = vlaneseq
        %v3202 = vshrl.u32 %v3201, 7
        %v3203 = vsub.s32 %v3200, %v3202
        %v3204 = vrot.slane %v3190, %v3203
        %v3205 = vcombine.high %v3197, %v3197
        %v3206 = vcombine.high %v3204, %v3204
        %v3207 = vcombine.high %v2709, %v2709
        %v3209 = vunpack.c.l.s4 1983009808
        %v3210 = vunpack.c.0.s8 %v3209
        %v3211 = vlaneseq
        %v3212 = vshrl.u32 %v3211, 7
        %v3213 = vsub.s32 %v3210, %v3212
        %v3214 = vrot.slane %v2709, %v3213
        %v3216 = vunpack.c.l.s4 1983009808
        %v3217 = vunpack.c.0.s8 %v3216
        %v3218 = vlaneseq
        %v3219 = vshrl.u32 %v3218, 7
        %v3220 = vsub.s32 %v3217, %v3219
        %v3221 = vrot.slane %v3207, %v3220
        %v3222 = vcombine.high %v3214, %v3214
        %v3223 = vcombine.high %v3221, %v3221
        %v3224 = vcombine.high %v2710, %v2710
        %v3226 = vunpack.c.l.s4 1983009808
        %v3227 = vunpack.c.0.s8 %v3226
        %v3228 = vlaneseq
        %v3229 = vshrl.u32 %v3228, 7
        %v3230 = vsub.s32 %v3227, %v3229
        %v3231 = vrot.slane %v2710, %v3230
        %v3233 = vunpack.c.l.s4 1983009808
        %v3234 = vunpack.c.0.s8 %v3233
        %v3235 = vlaneseq
        %v3236 = vshrl.u32 %v3235, 7
        %v3237 = vsub.s32 %v3234, %v3236
        %v3238 = vrot.slane %v3224, %v3237
        %v3239 = vcombine.high %v3231, %v3231
        %v3240 = vcombine.high %v3238, %v3238
        %v3241 = vcombine.high %v2711, %v2711
        %v3243 = vunpack.c.l.s4 1983009808
        %v3244 = vunpack.c.0.s8 %v3243
        %v3245 = vlaneseq
        %v3246 = vshrl.u32 %v3245, 7
        %v3247 = vsub.s32 %v3244, %v3246
        %v3248 = vrot.slane %v2711, %v3247
        %v3250 = vunpack.c.l.s4 1983009808
        %v3251 = vunpack.c.0.s8 %v3250
        %v3252 = vlaneseq
        %v3253 = vshrl.u32 %v3252, 7
        %v3254 = vsub.s32 %v3251, %v3253
        %v3255 = vrot.slane %v3241, %v3254
        %v3256 = vcombine.high %v3248, %v3248
        %v3257 = vcombine.high %v3255, %v3255
        %v3258 = vcombine.high %v2712, %v2712
        %v3260 = vunpack.c.l.s4 1983009808
        %v3261 = vunpack.c.0.s8 %v3260
        %v3262 = vlaneseq
        %v3263 = vshrl.u32 %v3262, 7
        %v3264 = vsub.s32 %v3261, %v3263
        %v3265 = vrot.slane %v2712, %v3264
        %v3267 = vunpack.c.l.s4 1983009808
        %v3268 = vunpack.c.0.s8 %v3267
        %v3269 = vlaneseq
        %v3270 = vshrl.u32 %v3269, 7
        %v3271 = vsub.s32 %v3268, %v3270
        %v3272 = vrot.slane %v3258, %v3271
        %v3273 = vcombine.high %v3265, %v3265
        %v3274 = vcombine.high %v3272, %v3272
        %v3275 = vcombine.high %v2713, %v2713
        %v3277 = vunpack.c.l.s4 1983009808
        %v3278 = vunpack.c.0.s8 %v3277
        %v3279 = vlaneseq
        %v3280 = vshrl.u32 %v3279, 7
        %v3281 = vsub.s32 %v3278, %v3280
        %v3282 = vrot.slane %v2713, %v3281
        %v3284 = vunpack.c.l.s4 1983009808
        %v3285 = vunpack.c.0.s8 %v3284
        %v3286 = vlaneseq
        %v3287 = vshrl.u32 %v3286, 7
        %v3288 = vsub.s32 %v3285, %v3287
        %v3289 = vrot.slane %v3275, %v3288
        %v3290 = vcombine.high %v3282, %v3282
        %v3291 = vcombine.high %v3289, %v3289
        %v3292 = vcombine.high %v2714, %v2714
        %v3294 = vunpack.c.l.s4 1983009808
        %v3295 = vunpack.c.0.s8 %v3294
        %v3296 = vlaneseq
        %v3297 = vshrl.u32 %v3296, 7
        %v3298 = vsub.s32 %v3295, %v3297
        %v3299 = vrot.slane %v2714, %v3298
        %v3301 = vunpack.c.l.s4 1983009808
        %v3302 = vunpack.c.0.s8 %v3301
        %v3303 = vlaneseq
        %v3304 = vshrl.u32 %v3303, 7
        %v3305 = vsub.s32 %v3302, %v3304
        %v3306 = vrot.slane %v3292, %v3305
        %v3307 = vcombine.high %v3299, %v3299
        %v3308 = vcombine.high %v3306, %v3306
        %v3309 = vcombine.high %v2715, %v2715
        %v3311 = vunpack.c.l.s4 1983009808
        %v3312 = vunpack.c.0.s8 %v3311
        %v3313 = vlaneseq
        %v3314 = vshrl.u32 %v3313, 7
        %v3315 = vsub.s32 %v3312, %v3314
        %v3316 = vrot.slane %v2715, %v3315
        %v3318 = vunpack.c.l.s4 1983009808
        %v3319 = vunpack.c.0.s8 %v3318
        %v3320 = vlaneseq
        %v3321 = vshrl.u32 %v3320, 7
        %v3322 = vsub.s32 %v3319, %v3321
        %v3323 = vrot.slane %v3309, %v3322
        %v3324 = vcombine.high %v3316, %v3316
        %v3325 = vcombine.high %v3323, %v3323
        %v3326 = vcombine.high %v2716, %v2716
        %v3328 = vunpack.c.l.s4 1983009808
        %v3329 = vunpack.c.0.s8 %v3328
        %v3330 = vlaneseq
        %v3331 = vshrl.u32 %v3330, 7
        %v3332 = vsub.s32 %v3329, %v3331
        %v3333 = vrot.slane %v2716, %v3332
        %v3335 = vunpack.c.l.s4 1983009808
        %v3336 = vunpack.c.0.s8 %v3335
        %v3337 = vlaneseq
        %v3338 = vshrl.u32 %v3337, 7
        %v3339 = vsub.s32 %v3336, %v3338
        %v3340 = vrot.slane %v3326, %v3339
        %v3341 = vcombine.high %v3333, %v3333
        %v3342 = vcombine.high %v3340, %v3340
        %v3343 = vcombine.high %v2717, %v2717
        %v3345 = vunpack.c.l.s4 1983009808
        %v3346 = vunpack.c.0.s8 %v3345
        %v3347 = vlaneseq
        %v3348 = vshrl.u32 %v3347, 7
        %v3349 = vsub.s32 %v3346, %v3348
        %v3350 = vrot.slane %v2717, %v3349
        %v3352 = vunpack.c.l.s4 1983009808
        %v3353 = vunpack.c.0.s8 %v3352
        %v3354 = vlaneseq
        %v3355 = vshrl.u32 %v3354, 7
        %v3356 = vsub.s32 %v3353, %v3355
        %v3357 = vrot.slane %v3343, %v3356
        %v3358 = vcombine.high %v3350, %v3350
        %v3359 = vcombine.high %v3357, %v3357
        %v3360 = vcombine.high %v2718, %v2718
        %v3362 = vunpack.c.l.s4 1983009808
        %v3363 = vunpack.c.0.s8 %v3362
        %v3364 = vlaneseq
        %v3365 = vshrl.u32 %v3364, 7
        %v3366 = vsub.s32 %v3363, %v3365
        %v3367 = vrot.slane %v2718, %v3366
        %v3369 = vunpack.c.l.s4 1983009808
        %v3370 = vunpack.c.0.s8 %v3369
        %v3371 = vlaneseq
        %v3372 = vshrl.u32 %v3371, 7
        %v3373 = vsub.s32 %v3370, %v3372
        %v3374 = vrot.slane %v3360, %v3373
        %v3375 = vcombine.high %v3367, %v3367
        %v3376 = vcombine.high %v3374, %v3374
        %v3377 = vcombine.high %v2719, %v2719
        %v3379 = vunpack.c.l.s4 1983009808
        %v3380 = vunpack.c.0.s8 %v3379
        %v3381 = vlaneseq
        %v3382 = vshrl.u32 %v3381, 7
        %v3383 = vsub.s32 %v3380, %v3382
        %v3384 = vrot.slane %v2719, %v3383
        %v3386 = vunpack.c.l.s4 1983009808
        %v3387 = vunpack.c.0.s8 %v3386
        %v3388 = vlaneseq
        %v3389 = vshrl.u32 %v3388, 7
        %v3390 = vsub.s32 %v3387, %v3389
        %v3391 = vrot.slane %v3377, %v3390
        %v3392 = vcombine.high %v3384, %v3384
        %v3393 = vcombine.high %v3391, %v3391
        %v3394 = vcombine.high %v2720, %v2720
        %v3396 = vunpack.c.l.s4 1983009808
        %v3397 = vunpack.c.0.s8 %v3396
        %v3398 = vlaneseq
        %v3399 = vshrl.u32 %v3398, 7
        %v3400 = vsub.s32 %v3397, %v3399
        %v3401 = vrot.slane %v2720, %v3400
        %v3403 = vunpack.c.l.s4 1983009808
        %v3404 = vunpack.c.0.s8 %v3403
        %v3405 = vlaneseq
        %v3406 = vshrl.u32 %v3405, 7
        %v3407 = vsub.s32 %v3404, %v3406
        %v3408 = vrot.slane %v3394, %v3407
        %v3409 = vcombine.high %v3401, %v3401
        %v3410 = vcombine.high %v3408, %v3408
        %v3411 = vcombine.high %v2721, %v2721
        %v3413 = vunpack.c.l.s4 1983009808
        %v3414 = vunpack.c.0.s8 %v3413
        %v3415 = vlaneseq
        %v3416 = vshrl.u32 %v3415, 7
        %v3417 = vsub.s32 %v3414, %v3416
        %v3418 = vrot.slane %v2721, %v3417
        %v3420 = vunpack.c.l.s4 1983009808
        %v3421 = vunpack.c.0.s8 %v3420
        %v3422 = vlaneseq
        %v3423 = vshrl.u32 %v3422, 7
        %v3424 = vsub.s32 %v3421, %v3423
        %v3425 = vrot.slane %v3411, %v3424
        %v3426 = vcombine.high %v3418, %v3418
        %v3427 = vcombine.high %v3425, %v3425
        %v3428 = vcombine.high %v2722, %v2722
        %v3430 = vunpack.c.l.s4 1983009808
        %v3431 = vunpack.c.0.s8 %v3430
        %v3432 = vlaneseq
        %v3433 = vshrl.u32 %v3432, 7
        %v3434 = vsub.s32 %v3431, %v3433
        %v3435 = vrot.slane %v2722, %v3434
        %v3437 = vunpack.c.l.s4 1983009808
        %v3438 = vunpack.c.0.s8 %v3437
        %v3439 = vlaneseq
        %v3440 = vshrl.u32 %v3439, 7
        %v3441 = vsub.s32 %v3438, %v3440
        %v3442 = vrot.slane %v3428, %v3441
        %v3443 = vcombine.high %v3435, %v3435
        %v3444 = vcombine.high %v3442, %v3442
        %v3446 = vunpack.c.l.s4 1983009808
        %v3447 = vunpack.c.0.s8 %v3446
        %v3448 = vlaneseq
        %v3449 = vshrl.u32 %v3448, 7
        %v3450 = vsub.s32 %v3447, %v3449
        %v3451 = vrot.slane %v2723, %v3450
        %v3452 = vcombine.high %v3451, %v3451
        %v3453 = vcombine.low %v2772, %v2780
        %v3454 = vcombine.low %v2779, %v2781
        %v3456 = vunpack.c.l.s4 1983009808
        %v3457 = vunpack.c.0.s8 %v3456
        %v3458 = vlaneseq
        %v3459 = vshrl.u32 %v3458, 7
        %v3460 = vsub.s32 %v3457, %v3459
        %v3461 = vrot.slane %v3453, %v3460
        %v3463 = vunpack.c.l.s4 1983009808
        %v3464 = vunpack.c.0.s8 %v3463
        %v3465 = vlaneseq
        %v3466 = vshrl.u32 %v3465, 7
        %v3467 = vsub.s32 %v3464, %v3466
        %v3468 = vrot.slane %v3454, %v3467
        %v3469 = vcombine.low %v3461, %v3468
        %v3470 = vcombine.low %v2789, %v2797
        %v3471 = vcombine.low %v2796, %v2798
        %v3473 = vunpack.c.l.s4 1983009808
        %v3474 = vunpack.c.0.s8 %v3473
        %v3475 = vlaneseq
        %v3476 = vshrl.u32 %v3475, 7
        %v3477 = vsub.s32 %v3474, %v3476
        %v3478 = vrot.slane %v3470, %v3477
        %v3480 = vunpack.c.l.s4 1983009808
        %v3481 = vunpack.c.0.s8 %v3480
        %v3482 = vlaneseq
        %v3483 = vshrl.u32 %v3482, 7
        %v3484 = vsub.s32 %v3481, %v3483
        %v3485 = vrot.slane %v3471, %v3484
        %v3486 = vcombine.low %v3478, %v3485
        %v3487 = vcombine.low %v2814, %v2813
        %v3488 = vcombine.low %v2815, %v2823
        %v3490 = vunpack.c.l.s4 1983009808
        %v3491 = vunpack.c.0.s8 %v3490
        %v3492 = vlaneseq
        %v3493 = vshrl.u32 %v3492, 7
        %v3494 = vsub.s32 %v3491, %v3493
        %v3495 = vrot.slane %v3487, %v3494
        %v3497 = vunpack.c.l.s4 1983009808
        %v3498 = vunpack.c.0.s8 %v3497
        %v3499 = vlaneseq
        %v3500 = vshrl.u32 %v3499, 7
        %v3501 = vsub.s32 %v3498, %v3500
        %v3502 = vrot.slane %v3488, %v3501
        %v3503 = vcombine.low %v3495, %v3502
        %v3504 = vcombine.low %v2831, %v2830
        %v3505 = vcombine.low %v2832, %v2840
        %v3507 = vunpack.c.l.s4 1983009808
        %v3508 = vunpack.c.0.s8 %v3507
        %v3509 = vlaneseq
        %v3510 = vshrl.u32 %v3509, 7
        %v3511 = vsub.s32 %v3508, %v3510
        %v3512 = vrot.slane %v3504, %v3511
        %v3514 = vunpack.c.l.s4 1983009808
        %v3515 = vunpack.c.0.s8 %v3514
        %v3516 = vlaneseq
        %v3517 = vshrl.u32 %v3516, 7
        %v3518 = vsub.s32 %v3515, %v3517
        %v3519 = vrot.slane %v3505, %v3518
        %v3520 = vcombine.low %v3512, %v3519
        %v3521 = vcombine.low %v2847, %v2849
        %v3522 = vcombine.low %v2857, %v2865
        %v3524 = vunpack.c.l.s4 1983009808
        %v3525 = vunpack.c.0.s8 %v3524
        %v3526 = vlaneseq
        %v3527 = vshrl.u32 %v3526, 7
        %v3528 = vsub.s32 %v3525, %v3527
        %v3529 = vrot.slane %v3521, %v3528
        %v3531 = vunpack.c.l.s4 1983009808
        %v3532 = vunpack.c.0.s8 %v3531
        %v3533 = vlaneseq
        %v3534 = vshrl.u32 %v3533, 7
        %v3535 = vsub.s32 %v3532, %v3534
        %v3536 = vrot.slane %v3522, %v3535
        %v3537 = vcombine.low %v3529, %v3536
        %v3538 = vcombine.low %v2864, %v2866
        %v3539 = vcombine.low %v2874, %v2882
        %v3541 = vunpack.c.l.s4 1983009808
        %v3542 = vunpack.c.0.s8 %v3541
        %v3543 = vlaneseq
        %v3544 = vshrl.u32 %v3543, 7
        %v3545 = vsub.s32 %v3542, %v3544
        %v3546 = vrot.slane %v3538, %v3545
        %v3548 = vunpack.c.l.s4 1983009808
        %v3549 = vunpack.c.0.s8 %v3548
        %v3550 = vlaneseq
        %v3551 = vshrl.u32 %v3550, 7
        %v3552 = vsub.s32 %v3549, %v3551
        %v3553 = vrot.slane %v3539, %v3552
        %v3554 = vcombine.low %v3546, %v3553
        %v3555 = vcombine.low %v2883, %v2891
        %v3556 = vcombine.low %v2899, %v2898
        %v3558 = vunpack.c.l.s4 1983009808
        %v3559 = vunpack.c.0.s8 %v3558
        %v3560 = vlaneseq
        %v3561 = vshrl.u32 %v3560, 7
        %v3562 = vsub.s32 %v3559, %v3561
        %v3563 = vrot.slane %v3555, %v3562
        %v3565 = vunpack.c.l.s4 1983009808
        %v3566 = vunpack.c.0.s8 %v3565
        %v3567 = vlaneseq
        %v3568 = vshrl.u32 %v3567, 7
        %v3569 = vsub.s32 %v3566, %v3568
        %v3570 = vrot.slane %v3556, %v3569
        %v3571 = vcombine.low %v3563, %v3570
        %v3572 = vcombine.low %v2900, %v2908
        %v3573 = vcombine.low %v2916, %v2915
        %v3575 = vunpack.c.l.s4 1983009808
        %v3576 = vunpack.c.0.s8 %v3575
        %v3577 = vlaneseq
        %v3578 = vshrl.u32 %v3577, 7
        %v3579 = vsub.s32 %v3576, %v3578
        %v3580 = vrot.slane %v3572, %v3579
        %v3582 = vunpack.c.l.s4 1983009808
        %v3583 = vunpack.c.0.s8 %v3582
        %v3584 = vlaneseq
        %v3585 = vshrl.u32 %v3584, 7
        %v3586 = vsub.s32 %v3583, %v3585
        %v3587 = vrot.slane %v3573, %v3586
        %v3588 = vcombine.low %v3580, %v3587
        %v3589 = vcombine.low %v2925, %v2933
        %v3590 = vcombine.low %v2932, %v2934
        %v3592 = vunpack.c.l.s4 1983009808
        %v3593 = vunpack.c.0.s8 %v3592
        %v3594 = vlaneseq
        %v3595 = vshrl.u32 %v3594, 7
        %v3596 = vsub.s32 %v3593, %v3595
        %v3597 = vrot.slane %v3589, %v3596
        %v3599 = vunpack.c.l.s4 1983009808
        %v3600 = vunpack.c.0.s8 %v3599
        %v3601 = vlaneseq
        %v3602 = vshrl.u32 %v3601, 7
        %v3603 = vsub.s32 %v3600, %v3602
        %v3604 = vrot.slane %v3590, %v3603
        %v3605 = vcombine.low %v3597, %v3604
        %v3606 = vcombine.low %v2942, %v2950
        %v3607 = vcombine.low %v2949, %v2951
        %v3609 = vunpack.c.l.s4 1983009808
        %v3610 = vunpack.c.0.s8 %v3609
        %v3611 = vlaneseq
        %v3612 = vshrl.u32 %v3611, 7
        %v3613 = vsub.s32 %v3610, %v3612
        %v3614 = vrot.slane %v3606, %v3613
        %v3616 = vunpack.c.l.s4 1983009808
        %v3617 = vunpack.c.0.s8 %v3616
        %v3618 = vlaneseq
        %v3619 = vshrl.u32 %v3618, 7
        %v3620 = vsub.s32 %v3617, %v3619
        %v3621 = vrot.slane %v3607, %v3620
        %v3622 = vcombine.low %v3614, %v3621
        %v3623 = vcombine.low %v2967, %v2966
        %v3624 = vcombine.low %v2968, %v2976
        %v3626 = vunpack.c.l.s4 1983009808
        %v3627 = vunpack.c.0.s8 %v3626
        %v3628 = vlaneseq
        %v3629 = vshrl.u32 %v3628, 7
        %v3630 = vsub.s32 %v3627, %v3629
        %v3631 = vrot.slane %v3623, %v3630
        %v3633 = vunpack.c.l.s4 1983009808
        %v3634 = vunpack.c.0.s8 %v3633
        %v3635 = vlaneseq
        %v3636 = vshrl.u32 %v3635, 7
        %v3637 = vsub.s32 %v3634, %v3636
        %v3638 = vrot.slane %v3624, %v3637
        %v3639 = vcombine.low %v3631, %v3638
        %v3640 = vcombine.low %v2984, %v2983
        %v3641 = vcombine.low %v2985, %v2993
        %v3643 = vunpack.c.l.s4 1983009808
        %v3644 = vunpack.c.0.s8 %v3643
        %v3645 = vlaneseq
        %v3646 = vshrl.u32 %v3645, 7
        %v3647 = vsub.s32 %v3644, %v3646
        %v3648 = vrot.slane %v3640, %v3647
        %v3650 = vunpack.c.l.s4 1983009808
        %v3651 = vunpack.c.0.s8 %v3650
        %v3652 = vlaneseq
        %v3653 = vshrl.u32 %v3652, 7
        %v3654 = vsub.s32 %v3651, %v3653
        %v3655 = vrot.slane %v3641, %v3654
        %v3656 = vcombine.low %v3648, %v3655
        %v3657 = vcombine.low %v3000, %v3002
        %v3658 = vcombine.low %v3010, %v3018
        %v3660 = vunpack.c.l.s4 1983009808
        %v3661 = vunpack.c.0.s8 %v3660
        %v3662 = vlaneseq
        %v3663 = vshrl.u32 %v3662, 7
        %v3664 = vsub.s32 %v3661, %v3663
        %v3665 = vrot.slane %v3657, %v3664
        %v3667 = vunpack.c.l.s4 1983009808
        %v3668 = vunpack.c.0.s8 %v3667
        %v3669 = vlaneseq
        %v3670 = vshrl.u32 %v3669, 7
        %v3671 = vsub.s32 %v3668, %v3670
        %v3672 = vrot.slane %v3658, %v3671
        %v3673 = vcombine.low %v3665, %v3672
        %v3674 = vcombine.low %v3017, %v3019
        %v3675 = vcombine.low %v3027, %v3035
        %v3677 = vunpack.c.l.s4 1983009808
        %v3678 = vunpack.c.0.s8 %v3677
        %v3679 = vlaneseq
        %v3680 = vshrl.u32 %v3679, 7
        %v3681 = vsub.s32 %v3678, %v3680
        %v3682 = vrot.slane %v3674, %v3681
        %v3684 = vunpack.c.l.s4 1983009808
        %v3685 = vunpack.c.0.s8 %v3684
        %v3686 = vlaneseq
        %v3687 = vshrl.u32 %v3686, 7
        %v3688 = vsub.s32 %v3685, %v3687
        %v3689 = vrot.slane %v3675, %v3688
        %v3690 = vcombine.low %v3682, %v3689
        %v3691 = vcombine.low %v3036, %v3044
        %v3692 = vcombine.low %v3052, %v3051
        %v3694 = vunpack.c.l.s4 1983009808
        %v3695 = vunpack.c.0.s8 %v3694
        %v3696 = vlaneseq
        %v3697 = vshrl.u32 %v3696, 7
        %v3698 = vsub.s32 %v3695, %v3697
        %v3699 = vrot.slane %v3691, %v3698
        %v3701 = vunpack.c.l.s4 1983009808
        %v3702 = vunpack.c.0.s8 %v3701
        %v3703 = vlaneseq
        %v3704 = vshrl.u32 %v3703, 7
        %v3705 = vsub.s32 %v3702, %v3704
        %v3706 = vrot.slane %v3692, %v3705
        %v3707 = vcombine.low %v3699, %v3706
        %v3708 = vcombine.low %v3053, %v3061
        %v3709 = vcombine.low %v3069, %v3068
        %v3711 = vunpack.c.l.s4 1983009808
        %v3712 = vunpack.c.0.s8 %v3711
        %v3713 = vlaneseq
        %v3714 = vshrl.u32 %v3713, 7
        %v3715 = vsub.s32 %v3712, %v3714
        %v3716 = vrot.slane %v3708, %v3715
        %v3718 = vunpack.c.l.s4 1983009808
        %v3719 = vunpack.c.0.s8 %v3718
        %v3720 = vlaneseq
        %v3721 = vshrl.u32 %v3720, 7
        %v3722 = vsub.s32 %v3719, %v3721
        %v3723 = vrot.slane %v3709, %v3722
        %v3724 = vcombine.low %v3716, %v3723
        %v3725 = vcombine.low %v3078, %v3086
        %v3726 = vcombine.low %v3085, %v3087
        %v3728 = vunpack.c.l.s4 1983009808
        %v3729 = vunpack.c.0.s8 %v3728
        %v3730 = vlaneseq
        %v3731 = vshrl.u32 %v3730, 7
        %v3732 = vsub.s32 %v3729, %v3731
        %v3733 = vrot.slane %v3725, %v3732
        %v3735 = vunpack.c.l.s4 1983009808
        %v3736 = vunpack.c.0.s8 %v3735
        %v3737 = vlaneseq
        %v3738 = vshrl.u32 %v3737, 7
        %v3739 = vsub.s32 %v3736, %v3738
        %v3740 = vrot.slane %v3726, %v3739
        %v3741 = vcombine.low %v3733, %v3740
        %v3742 = vcombine.low %v3095, %v3103
        %v3743 = vcombine.low %v3102, %v3104
        %v3745 = vunpack.c.l.s4 1983009808
        %v3746 = vunpack.c.0.s8 %v3745
        %v3747 = vlaneseq
        %v3748 = vshrl.u32 %v3747, 7
        %v3749 = vsub.s32 %v3746, %v3748
        %v3750 = vrot.slane %v3742, %v3749
        %v3752 = vunpack.c.l.s4 1983009808
        %v3753 = vunpack.c.0.s8 %v3752
        %v3754 = vlaneseq
        %v3755 = vshrl.u32 %v3754, 7
        %v3756 = vsub.s32 %v3753, %v3755
        %v3757 = vrot.slane %v3743, %v3756
        %v3758 = vcombine.low %v3750, %v3757
        %v3759 = vcombine.low %v3120, %v3119
        %v3760 = vcombine.low %v3121, %v3129
        %v3762 = vunpack.c.l.s4 1983009808
        %v3763 = vunpack.c.0.s8 %v3762
        %v3764 = vlaneseq
        %v3765 = vshrl.u32 %v3764, 7
        %v3766 = vsub.s32 %v3763, %v3765
        %v3767 = vrot.slane %v3759, %v3766
        %v3769 = vunpack.c.l.s4 1983009808
        %v3770 = vunpack.c.0.s8 %v3769
        %v3771 = vlaneseq
        %v3772 = vshrl.u32 %v3771, 7
        %v3773 = vsub.s32 %v3770, %v3772
        %v3774 = vrot.slane %v3760, %v3773
        %v3775 = vcombine.low %v3767, %v3774
        %v3776 = vcombine.low %v3137, %v3136
        %v3777 = vcombine.low %v3138, %v3146
        %v3779 = vunpack.c.l.s4 1983009808
        %v3780 = vunpack.c.0.s8 %v3779
        %v3781 = vlaneseq
        %v3782 = vshrl.u32 %v3781, 7
        %v3783 = vsub.s32 %v3780, %v3782
        %v3784 = vrot.slane %v3776, %v3783
        %v3786 = vunpack.c.l.s4 1983009808
        %v3787 = vunpack.c.0.s8 %v3786
        %v3788 = vlaneseq
        %v3789 = vshrl.u32 %v3788, 7
        %v3790 = vsub.s32 %v3787, %v3789
        %v3791 = vrot.slane %v3777, %v3790
        %v3792 = vcombine.low %v3784, %v3791
        %v3793 = vcombine.low %v3153, %v3155
        %v3794 = vcombine.low %v3163, %v3171
        %v3796 = vunpack.c.l.s4 1983009808
        %v3797 = vunpack.c.0.s8 %v3796
        %v3798 = vlaneseq
        %v3799 = vshrl.u32 %v3798, 7
        %v3800 = vsub.s32 %v3797, %v3799
        %v3801 = vrot.slane %v3793, %v3800
        %v3803 = vunpack.c.l.s4 1983009808
        %v3804 = vunpack.c.0.s8 %v3803
        %v3805 = vlaneseq
        %v3806 = vshrl.u32 %v3805, 7
        %v3807 = vsub.s32 %v3804, %v3806
        %v3808 = vrot.slane %v3794, %v3807
        %v3809 = vcombine.low %v3801, %v3808
        %v3810 = vcombine.low %v3170, %v3172
        %v3811 = vcombine.low %v3180, %v3188
        %v3813 = vunpack.c.l.s4 1983009808
        %v3814 = vunpack.c.0.s8 %v3813
        %v3815 = vlaneseq
        %v3816 = vshrl.u32 %v3815, 7
        %v3817 = vsub.s32 %v3814, %v3816
        %v3818 = vrot.slane %v3810, %v3817
        %v3820 = vunpack.c.l.s4 1983009808
        %v3821 = vunpack.c.0.s8 %v3820
        %v3822 = vlaneseq
        %v3823 = vshrl.u32 %v3822, 7
        %v3824 = vsub.s32 %v3821, %v3823
        %v3825 = vrot.slane %v3811, %v3824
        %v3826 = vcombine.low %v3818, %v3825
        %v3827 = vcombine.low %v3189, %v3197
        %v3828 = vcombine.low %v3205, %v3204
        %v3830 = vunpack.c.l.s4 1983009808
        %v3831 = vunpack.c.0.s8 %v3830
        %v3832 = vlaneseq
        %v3833 = vshrl.u32 %v3832, 7
        %v3834 = vsub.s32 %v3831, %v3833
        %v3835 = vrot.slane %v3827, %v3834
        %v3837 = vunpack.c.l.s4 1983009808
        %v3838 = vunpack.c.0.s8 %v3837
        %v3839 = vlaneseq
        %v3840 = vshrl.u32 %v3839, 7
        %v3841 = vsub.s32 %v3838, %v3840
        %v3842 = vrot.slane %v3828, %v3841
        %v3843 = vcombine.low %v3835, %v3842
        %v3844 = vcombine.low %v3206, %v3214
        %v3845 = vcombine.low %v3222, %v3221
        %v3847 = vunpack.c.l.s4 1983009808
        %v3848 = vunpack.c.0.s8 %v3847
        %v3849 = vlaneseq
        %v3850 = vshrl.u32 %v3849, 7
        %v3851 = vsub.s32 %v3848, %v3850
        %v3852 = vrot.slane %v3844, %v3851
        %v3854 = vunpack.c.l.s4 1983009808
        %v3855 = vunpack.c.0.s8 %v3854
        %v3856 = vlaneseq
        %v3857 = vshrl.u32 %v3856, 7
        %v3858 = vsub.s32 %v3855, %v3857
        %v3859 = vrot.slane %v3845, %v3858
        %v3860 = vcombine.low %v3852, %v3859
        %v3861 = vcombine.low %v3231, %v3239
        %v3862 = vcombine.low %v3238, %v3240
        %v3864 = vunpack.c.l.s4 1983009808
        %v3865 = vunpack.c.0.s8 %v3864
        %v3866 = vlaneseq
        %v3867 = vshrl.u32 %v3866, 7
        %v3868 = vsub.s32 %v3865, %v3867
        %v3869 = vrot.slane %v3861, %v3868
        %v3871 = vunpack.c.l.s4 1983009808
        %v3872 = vunpack.c.0.s8 %v3871
        %v3873 = vlaneseq
        %v3874 = vshrl.u32 %v3873, 7
        %v3875 = vsub.s32 %v3872, %v3874
        %v3876 = vrot.slane %v3862, %v3875
        %v3877 = vcombine.low %v3869, %v3876
        %v3878 = vcombine.low %v3248, %v3256
        %v3879 = vcombine.low %v3255, %v3257
        %v3881 = vunpack.c.l.s4 1983009808
        %v3882 = vunpack.c.0.s8 %v3881
        %v3883 = vlaneseq
        %v3884 = vshrl.u32 %v3883, 7
        %v3885 = vsub.s32 %v3882, %v3884
        %v3886 = vrot.slane %v3878, %v3885
        %v3888 = vunpack.c.l.s4 1983009808
        %v3889 = vunpack.c.0.s8 %v3888
        %v3890 = vlaneseq
        %v3891 = vshrl.u32 %v3890, 7
        %v3892 = vsub.s32 %v3889, %v3891
        %v3893 = vrot.slane %v3879, %v3892
        %v3894 = vcombine.low %v3886, %v3893
        %v3895 = vcombine.low %v3273, %v3272
        %v3896 = vcombine.low %v3274, %v3282
        %v3898 = vunpack.c.l.s4 1983009808
        %v3899 = vunpack.c.0.s8 %v3898
        %v3900 = vlaneseq
        %v3901 = vshrl.u32 %v3900, 7
        %v3902 = vsub.s32 %v3899, %v3901
        %v3903 = vrot.slane %v3895, %v3902
        %v3905 = vunpack.c.l.s4 1983009808
        %v3906 = vunpack.c.0.s8 %v3905
        %v3907 = vlaneseq
        %v3908 = vshrl.u32 %v3907, 7
        %v3909 = vsub.s32 %v3906, %v3908
        %v3910 = vrot.slane %v3896, %v3909
        %v3911 = vcombine.low %v3903, %v3910
        %v3912 = vcombine.low %v3290, %v3289
        %v3913 = vcombine.low %v3291, %v3299
        %v3915 = vunpack.c.l.s4 1983009808
        %v3916 = vunpack.c.0.s8 %v3915
        %v3917 = vlaneseq
        %v3918 = vshrl.u32 %v3917, 7
        %v3919 = vsub.s32 %v3916, %v3918
        %v3920 = vrot.slane %v3912, %v3919
        %v3922 = vunpack.c.l.s4 1983009808
        %v3923 = vunpack.c.0.s8 %v3922
        %v3924 = vlaneseq
        %v3925 = vshrl.u32 %v3924, 7
        %v3926 = vsub.s32 %v3923, %v3925
        %v3927 = vrot.slane %v3913, %v3926
        %v3928 = vcombine.low %v3920, %v3927
        %v3929 = vcombine.low %v3306, %v3308
        %v3930 = vcombine.low %v3316, %v3324
        %v3932 = vunpack.c.l.s4 1983009808
        %v3933 = vunpack.c.0.s8 %v3932
        %v3934 = vlaneseq
        %v3935 = vshrl.u32 %v3934, 7
        %v3936 = vsub.s32 %v3933, %v3935
        %v3937 = vrot.slane %v3929, %v3936
        %v3939 = vunpack.c.l.s4 1983009808
        %v3940 = vunpack.c.0.s8 %v3939
        %v3941 = vlaneseq
        %v3942 = vshrl.u32 %v3941, 7
        %v3943 = vsub.s32 %v3940, %v3942
        %v3944 = vrot.slane %v3930, %v3943
        %v3945 = vcombine.low %v3937, %v3944
        %v3946 = vcombine.low %v3323, %v3325
        %v3947 = vcombine.low %v3333, %v3341
        %v3949 = vunpack.c.l.s4 1983009808
        %v3950 = vunpack.c.0.s8 %v3949
        %v3951 = vlaneseq
        %v3952 = vshrl.u32 %v3951, 7
        %v3953 = vsub.s32 %v3950, %v3952
        %v3954 = vrot.slane %v3946, %v3953
        %v3956 = vunpack.c.l.s4 1983009808
        %v3957 = vunpack.c.0.s8 %v3956
        %v3958 = vlaneseq
        %v3959 = vshrl.u32 %v3958, 7
        %v3960 = vsub.s32 %v3957, %v3959
        %v3961 = vrot.slane %v3947, %v3960
        %v3962 = vcombine.low %v3954, %v3961
        %v3963 = vcombine.low %v3342, %v3350
        %v3964 = vcombine.low %v3358, %v3357
        %v3966 = vunpack.c.l.s4 1983009808
        %v3967 = vunpack.c.0.s8 %v3966
        %v3968 = vlaneseq
        %v3969 = vshrl.u32 %v3968, 7
        %v3970 = vsub.s32 %v3967, %v3969
        %v3971 = vrot.slane %v3963, %v3970
        %v3973 = vunpack.c.l.s4 1983009808
        %v3974 = vunpack.c.0.s8 %v3973
        %v3975 = vlaneseq
        %v3976 = vshrl.u32 %v3975, 7
        %v3977 = vsub.s32 %v3974, %v3976
        %v3978 = vrot.slane %v3964, %v3977
        %v3979 = vcombine.low %v3971, %v3978
        %v3980 = vcombine.low %v3359, %v3367
        %v3981 = vcombine.low %v3375, %v3374
        %v3983 = vunpack.c.l.s4 1983009808
        %v3984 = vunpack.c.0.s8 %v3983
        %v3985 = vlaneseq
        %v3986 = vshrl.u32 %v3985, 7
        %v3987 = vsub.s32 %v3984, %v3986
        %v3988 = vrot.slane %v3980, %v3987
        %v3990 = vunpack.c.l.s4 1983009808
        %v3991 = vunpack.c.0.s8 %v3990
        %v3992 = vlaneseq
        %v3993 = vshrl.u32 %v3992, 7
        %v3994 = vsub.s32 %v3991, %v3993
        %v3995 = vrot.slane %v3981, %v3994
        %v3996 = vcombine.low %v3988, %v3995
        %v4029 = vpack.c.bf16 %v3486, %v3469
        %v4030 = vpack.c.bf16 %v3520, %v3503
        %v4031 = vpack.c.bf16 %v3554, %v3537
        %v4032 = vpack.c.bf16 %v3588, %v3571
        %v4033 = vpack.c.bf16 %v3622, %v3605
        %v4034 = vpack.c.bf16 %v3656, %v3639
        %v4035 = vpack.c.bf16 %v3690, %v3673
        %v4036 = vpack.c.bf16 %v3724, %v3707
        %v4037 = vpack.c.bf16 %v3758, %v3741
        %v4038 = vpack.c.bf16 %v3792, %v3775
        %v4039 = vpack.c.bf16 %v3826, %v3809
        %v4040 = vpack.c.bf16 %v3860, %v3843
        %v4041 = vpack.c.bf16 %v3894, %v3877
        %v4042 = vpack.c.bf16 %v3928, %v3911
        %v4043 = vpack.c.bf16 %v3962, %v3945
        %v4044 = vpack.c.bf16 %v3996, %v3979
        %v4045 = vld [vmem:[%s5] sm:$0xf]
        %v4046 = vld [vmem:[%s5 + $0x4] sm:$0xf]
        %v4047 = vld [vmem:[%s5 + $0x8] sm:$0xf]
        %v4048 = vld [vmem:[%s5 + $0xc] sm:$0xf]
        %v4049 = vld [vmem:[%s5 + $0x10] sm:$0xf]
        %v4050 = vld [vmem:[%s5 + $0x14] sm:$0xf]
        %v4051 = vld [vmem:[%s5 + $0x18] sm:$0xf]
        %v4052 = vld [vmem:[%s5 + $0x1c] sm:$0xf]
        %v4053 = vld [vmem:[%s5 + $0x20] sm:$0xf]
        %v4054 = vld [vmem:[%s5 + $0x24] sm:$0xf]
        %v4055 = vld [vmem:[%s5 + $0x28] sm:$0xf]
        %v4056 = vld [vmem:[%s5 + $0x2c] sm:$0xf]
        %v4057 = vld [vmem:[%s5 + $0x30] sm:$0xf]
        %v4058 = vld [vmem:[%s5 + $0x34] sm:$0xf]
        %v4059 = vld [vmem:[%s5 + $0x38] sm:$0xf]
        %v4060 = vld [vmem:[%s5 + $0x3c] sm:$0xf]
        %vm4061 = vcmask 1040384
        %vm4062 = vcmask 1042434
        %vm4063 = vmor %vm4061, %vm4062
        %vm4064 = vcmask 1044484
        %vm4065 = vmor %vm4063, %vm4064
        %vm4066 = vcmask 1046534
        %vm4067 = vmor %vm4065, %vm4066
        %v4068 = vrot.slane %v2772, 7
        %v4069 = vrot.slane %v4068, 2
        %v4070 = vrot.slane %v2780, 7
        %v4071 = vsel %vm4067, %v4069, %v4070
        %v4072 = vrot.slane %v4070, 2
        %v4073 = vrot.slane %v2779, 7
        %v4074 = vsel %vm4067, %v4072, %v4073
        %v4075 = vrot.slane %v4073, 2
        %v4076 = vrot.slane %v2781, 7
        %v4077 = vsel %vm4067, %v4075, %v4076
        %v4078 = vrot.slane %v4076, 2
        %v4079 = vrot.slane %v2789, 7
        %v4080 = vsel %vm4067, %v4078, %v4079
        %v4081 = vrot.slane %v4079, 2
        %v4082 = vrot.slane %v2797, 7
        %v4083 = vsel %vm4067, %v4081, %v4082
        %v4084 = vrot.slane %v4082, 2
        %v4085 = vrot.slane %v2796, 7
        %v4086 = vsel %vm4067, %v4084, %v4085
        %v4087 = vrot.slane %v4085, 2
        %v4088 = vrot.slane %v2798, 7
        %v4089 = vsel %vm4067, %v4087, %v4088
        %v4090 = vrot.slane %v4088, 2
        %v4091 = vrot.slane %v2806, 7
        %v4092 = vsel %vm4067, %v4090, %v4091
        %v4093 = vrot.slane %v2814, 7
        %v4094 = vrot.slane %v4093, 2
        %v4095 = vrot.slane %v2813, 7
        %v4096 = vsel %vm4067, %v4094, %v4095
        %v4097 = vrot.slane %v4095, 2
        %v4098 = vrot.slane %v2815, 7
        %v4099 = vsel %vm4067, %v4097, %v4098
        %v4100 = vrot.slane %v4098, 2
        %v4101 = vrot.slane %v2823, 7
        %v4102 = vsel %vm4067, %v4100, %v4101
        %v4103 = vrot.slane %v4101, 2
        %v4104 = vrot.slane %v2831, 7
        %v4105 = vsel %vm4067, %v4103, %v4104
        %v4106 = vrot.slane %v4104, 2
        %v4107 = vrot.slane %v2830, 7
        %v4108 = vsel %vm4067, %v4106, %v4107
        %v4109 = vrot.slane %v4107, 2
        %v4110 = vrot.slane %v2832, 7
        %v4111 = vsel %vm4067, %v4109, %v4110
        %v4112 = vrot.slane %v4110, 2
        %v4113 = vrot.slane %v2840, 7
        %v4114 = vsel %vm4067, %v4112, %v4113
        %v4115 = vrot.slane %v4113, 2
        %v4116 = vrot.slane %v2848, 7
        %v4117 = vsel %vm4067, %v4115, %v4116
        %v4118 = vrot.slane %v2847, 7
        %v4119 = vrot.slane %v4118, 2
        %v4120 = vrot.slane %v2849, 7
        %v4121 = vsel %vm4067, %v4119, %v4120
        %v4122 = vrot.slane %v4120, 2
        %v4123 = vrot.slane %v2857, 7
        %v4124 = vsel %vm4067, %v4122, %v4123
        %v4125 = vrot.slane %v4123, 2
        %v4126 = vrot.slane %v2865, 7
        %v4127 = vsel %vm4067, %v4125, %v4126
        %v4128 = vrot.slane %v4126, 2
        %v4129 = vrot.slane %v2864, 7
        %v4130 = vsel %vm4067, %v4128, %v4129
        %v4131 = vrot.slane %v4129, 2
        %v4132 = vrot.slane %v2866, 7
        %v4133 = vsel %vm4067, %v4131, %v4132
        %v4134 = vrot.slane %v4132, 2
        %v4135 = vrot.slane %v2874, 7
        %v4136 = vsel %vm4067, %v4134, %v4135
        %v4137 = vrot.slane %v4135, 2
        %v4138 = vrot.slane %v2882, 7
        %v4139 = vsel %vm4067, %v4137, %v4138
        %v4140 = vrot.slane %v4138, 2
        %v4141 = vrot.slane %v2881, 7
        %v4142 = vsel %vm4067, %v4140, %v4141
        %v4143 = vrot.slane %v2883, 7
        %v4144 = vrot.slane %v4143, 2
        %v4145 = vrot.slane %v2891, 7
        %v4146 = vsel %vm4067, %v4144, %v4145
        %v4147 = vrot.slane %v4145, 2
        %v4148 = vrot.slane %v2899, 7
        %v4149 = vsel %vm4067, %v4147, %v4148
        %v4150 = vrot.slane %v4148, 2
        %v4151 = vrot.slane %v2898, 7
        %v4152 = vsel %vm4067, %v4150, %v4151
        %v4153 = vrot.slane %v4151, 2
        %v4154 = vrot.slane %v2900, 7
        %v4155 = vsel %vm4067, %v4153, %v4154
        %v4156 = vrot.slane %v4154, 2
        %v4157 = vrot.slane %v2908, 7
        %v4158 = vsel %vm4067, %v4156, %v4157
        %v4159 = vrot.slane %v4157, 2
        %v4160 = vrot.slane %v2916, 7
        %v4161 = vsel %vm4067, %v4159, %v4160
        %v4162 = vrot.slane %v4160, 2
        %v4163 = vrot.slane %v2915, 7
        %v4164 = vsel %vm4067, %v4162, %v4163
        %v4165 = vrot.slane %v4163, 2
        %v4166 = vrot.slane %v2917, 7
        %v4167 = vsel %vm4067, %v4165, %v4166
        %v4168 = vrot.slane %v2925, 7
        %v4169 = vrot.slane %v4168, 2
        %v4170 = vrot.slane %v2933, 7
        %v4171 = vsel %vm4067, %v4169, %v4170
        %v4172 = vrot.slane %v4170, 2
        %v4173 = vrot.slane %v2932, 7
        %v4174 = vsel %vm4067, %v4172, %v4173
        %v4175 = vrot.slane %v4173, 2
        %v4176 = vrot.slane %v2934, 7
        %v4177 = vsel %vm4067, %v4175, %v4176
        %v4178 = vrot.slane %v4176, 2
        %v4179 = vrot.slane %v2942, 7
        %v4180 = vsel %vm4067, %v4178, %v4179
        %v4181 = vrot.slane %v4179, 2
        %v4182 = vrot.slane %v2950, 7
        %v4183 = vsel %vm4067, %v4181, %v4182
        %v4184 = vrot.slane %v4182, 2
        %v4185 = vrot.slane %v2949, 7
        %v4186 = vsel %vm4067, %v4184, %v4185
        %v4187 = vrot.slane %v4185, 2
        %v4188 = vrot.slane %v2951, 7
        %v4189 = vsel %vm4067, %v4187, %v4188
        %v4190 = vrot.slane %v4188, 2
        %v4191 = vrot.slane %v2959, 7
        %v4192 = vsel %vm4067, %v4190, %v4191
        %v4193 = vrot.slane %v2967, 7
        %v4194 = vrot.slane %v4193, 2
        %v4195 = vrot.slane %v2966, 7
        %v4196 = vsel %vm4067, %v4194, %v4195
        %v4197 = vrot.slane %v4195, 2
        %v4198 = vrot.slane %v2968, 7
        %v4199 = vsel %vm4067, %v4197, %v4198
        %v4200 = vrot.slane %v4198, 2
        %v4201 = vrot.slane %v2976, 7
        %v4202 = vsel %vm4067, %v4200, %v4201
        %v4203 = vrot.slane %v4201, 2
        %v4204 = vrot.slane %v2984, 7
        %v4205 = vsel %vm4067, %v4203, %v4204
        %v4206 = vrot.slane %v4204, 2
        %v4207 = vrot.slane %v2983, 7
        %v4208 = vsel %vm4067, %v4206, %v4207
        %v4209 = vrot.slane %v4207, 2
        %v4210 = vrot.slane %v2985, 7
        %v4211 = vsel %vm4067, %v4209, %v4210
        %v4212 = vrot.slane %v4210, 2
        %v4213 = vrot.slane %v2993, 7
        %v4214 = vsel %vm4067, %v4212, %v4213
        %v4215 = vrot.slane %v4213, 2
        %v4216 = vrot.slane %v3001, 7
        %v4217 = vsel %vm4067, %v4215, %v4216
        %v4218 = vrot.slane %v3000, 7
        %v4219 = vrot.slane %v4218, 2
        %v4220 = vrot.slane %v3002, 7
        %v4221 = vsel %vm4067, %v4219, %v4220
        %v4222 = vrot.slane %v4220, 2
        %v4223 = vrot.slane %v3010, 7
        %v4224 = vsel %vm4067, %v4222, %v4223
        %v4225 = vrot.slane %v4223, 2
        %v4226 = vrot.slane %v3018, 7
        %v4227 = vsel %vm4067, %v4225, %v4226
        %v4228 = vrot.slane %v4226, 2
        %v4229 = vrot.slane %v3017, 7
        %v4230 = vsel %vm4067, %v4228, %v4229
        %v4231 = vrot.slane %v4229, 2
        %v4232 = vrot.slane %v3019, 7
        %v4233 = vsel %vm4067, %v4231, %v4232
        %v4234 = vrot.slane %v4232, 2
        %v4235 = vrot.slane %v3027, 7
        %v4236 = vsel %vm4067, %v4234, %v4235
        %v4237 = vrot.slane %v4235, 2
        %v4238 = vrot.slane %v3035, 7
        %v4239 = vsel %vm4067, %v4237, %v4238
        %v4240 = vrot.slane %v4238, 2
        %v4241 = vrot.slane %v3034, 7
        %v4242 = vsel %vm4067, %v4240, %v4241
        %v4243 = vrot.slane %v3036, 7
        %v4244 = vrot.slane %v4243, 2
        %v4245 = vrot.slane %v3044, 7
        %v4246 = vsel %vm4067, %v4244, %v4245
        %v4247 = vrot.slane %v4245, 2
        %v4248 = vrot.slane %v3052, 7
        %v4249 = vsel %vm4067, %v4247, %v4248
        %v4250 = vrot.slane %v4248, 2
        %v4251 = vrot.slane %v3051, 7
        %v4252 = vsel %vm4067, %v4250, %v4251
        %v4253 = vrot.slane %v4251, 2
        %v4254 = vrot.slane %v3053, 7
        %v4255 = vsel %vm4067, %v4253, %v4254
        %v4256 = vrot.slane %v4254, 2
        %v4257 = vrot.slane %v3061, 7
        %v4258 = vsel %vm4067, %v4256, %v4257
        %v4259 = vrot.slane %v4257, 2
        %v4260 = vrot.slane %v3069, 7
        %v4261 = vsel %vm4067, %v4259, %v4260
        %v4262 = vrot.slane %v4260, 2
        %v4263 = vrot.slane %v3068, 7
        %v4264 = vsel %vm4067, %v4262, %v4263
        %v4265 = vrot.slane %v4263, 2
        %v4266 = vrot.slane %v3070, 7
        %v4267 = vsel %vm4067, %v4265, %v4266
        %v4268 = vrot.slane %v3078, 7
        %v4269 = vrot.slane %v4268, 2
        %v4270 = vrot.slane %v3086, 7
        %v4271 = vsel %vm4067, %v4269, %v4270
        %v4272 = vrot.slane %v4270, 2
        %v4273 = vrot.slane %v3085, 7
        %v4274 = vsel %vm4067, %v4272, %v4273
        %v4275 = vrot.slane %v4273, 2
        %v4276 = vrot.slane %v3087, 7
        %v4277 = vsel %vm4067, %v4275, %v4276
        %v4278 = vrot.slane %v4276, 2
        %v4279 = vrot.slane %v3095, 7
        %v4280 = vsel %vm4067, %v4278, %v4279
        %v4281 = vrot.slane %v4279, 2
        %v4282 = vrot.slane %v3103, 7
        %v4283 = vsel %vm4067, %v4281, %v4282
        %v4284 = vrot.slane %v4282, 2
        %v4285 = vrot.slane %v3102, 7
        %v4286 = vsel %vm4067, %v4284, %v4285
        %v4287 = vrot.slane %v4285, 2
        %v4288 = vrot.slane %v3104, 7
        %v4289 = vsel %vm4067, %v4287, %v4288
        %v4290 = vrot.slane %v4288, 2
        %v4291 = vrot.slane %v3112, 7
        %v4292 = vsel %vm4067, %v4290, %v4291
        %v4293 = vrot.slane %v3120, 7
        %v4294 = vrot.slane %v4293, 2
        %v4295 = vrot.slane %v3119, 7
        %v4296 = vsel %vm4067, %v4294, %v4295
        %v4297 = vrot.slane %v4295, 2
        %v4298 = vrot.slane %v3121, 7
        %v4299 = vsel %vm4067, %v4297, %v4298
        %v4300 = vrot.slane %v4298, 2
        %v4301 = vrot.slane %v3129, 7
        %v4302 = vsel %vm4067, %v4300, %v4301
        %v4303 = vrot.slane %v4301, 2
        %v4304 = vrot.slane %v3137, 7
        %v4305 = vsel %vm4067, %v4303, %v4304
        %v4306 = vrot.slane %v4304, 2
        %v4307 = vrot.slane %v3136, 7
        %v4308 = vsel %vm4067, %v4306, %v4307
        %v4309 = vrot.slane %v4307, 2
        %v4310 = vrot.slane %v3138, 7
        %v4311 = vsel %vm4067, %v4309, %v4310
        %v4312 = vrot.slane %v4310, 2
        %v4313 = vrot.slane %v3146, 7
        %v4314 = vsel %vm4067, %v4312, %v4313
        %v4315 = vrot.slane %v4313, 2
        %v4316 = vrot.slane %v3154, 7
        %v4317 = vsel %vm4067, %v4315, %v4316
        %v4318 = vrot.slane %v3153, 7
        %v4319 = vrot.slane %v4318, 2
        %v4320 = vrot.slane %v3155, 7
        %v4321 = vsel %vm4067, %v4319, %v4320
        %v4322 = vrot.slane %v4320, 2
        %v4323 = vrot.slane %v3163, 7
        %v4324 = vsel %vm4067, %v4322, %v4323
        %v4325 = vrot.slane %v4323, 2
        %v4326 = vrot.slane %v3171, 7
        %v4327 = vsel %vm4067, %v4325, %v4326
        %v4328 = vrot.slane %v4326, 2
        %v4329 = vrot.slane %v3170, 7
        %v4330 = vsel %vm4067, %v4328, %v4329
        %v4331 = vrot.slane %v4329, 2
        %v4332 = vrot.slane %v3172, 7
        %v4333 = vsel %vm4067, %v4331, %v4332
        %v4334 = vrot.slane %v4332, 2
        %v4335 = vrot.slane %v3180, 7
        %v4336 = vsel %vm4067, %v4334, %v4335
        %v4337 = vrot.slane %v4335, 2
        %v4338 = vrot.slane %v3188, 7
        %v4339 = vsel %vm4067, %v4337, %v4338
        %v4340 = vrot.slane %v4338, 2
        %v4341 = vrot.slane %v3187, 7
        %v4342 = vsel %vm4067, %v4340, %v4341
        %v4343 = vrot.slane %v3189, 7
        %v4344 = vrot.slane %v4343, 2
        %v4345 = vrot.slane %v3197, 7
        %v4346 = vsel %vm4067, %v4344, %v4345
        %v4347 = vrot.slane %v4345, 2
        %v4348 = vrot.slane %v3205, 7
        %v4349 = vsel %vm4067, %v4347, %v4348
        %v4350 = vrot.slane %v4348, 2
        %v4351 = vrot.slane %v3204, 7
        %v4352 = vsel %vm4067, %v4350, %v4351
        %v4353 = vrot.slane %v4351, 2
        %v4354 = vrot.slane %v3206, 7
        %v4355 = vsel %vm4067, %v4353, %v4354
        %v4356 = vrot.slane %v4354, 2
        %v4357 = vrot.slane %v3214, 7
        %v4358 = vsel %vm4067, %v4356, %v4357
        %v4359 = vrot.slane %v4357, 2
        %v4360 = vrot.slane %v3222, 7
        %v4361 = vsel %vm4067, %v4359, %v4360
        %v4362 = vrot.slane %v4360, 2
        %v4363 = vrot.slane %v3221, 7
        %v4364 = vsel %vm4067, %v4362, %v4363
        %v4365 = vrot.slane %v4363, 2
        %v4366 = vrot.slane %v3223, 7
        %v4367 = vsel %vm4067, %v4365, %v4366
        %v4368 = vrot.slane %v3231, 7
        %v4369 = vrot.slane %v4368, 2
        %v4370 = vrot.slane %v3239, 7
        %v4371 = vsel %vm4067, %v4369, %v4370
        %v4372 = vrot.slane %v4370, 2
        %v4373 = vrot.slane %v3238, 7
        %v4374 = vsel %vm4067, %v4372, %v4373
        %v4375 = vrot.slane %v4373, 2
        %v4376 = vrot.slane %v3240, 7
        %v4377 = vsel %vm4067, %v4375, %v4376
        %v4378 = vrot.slane %v4376, 2
        %v4379 = vrot.slane %v3248, 7
        %v4380 = vsel %vm4067, %v4378, %v4379
        %v4381 = vrot.slane %v4379, 2
        %v4382 = vrot.slane %v3256, 7
        %v4383 = vsel %vm4067, %v4381, %v4382
        %v4384 = vrot.slane %v4382, 2
        %v4385 = vrot.slane %v3255, 7
        %v4386 = vsel %vm4067, %v4384, %v4385
        %v4387 = vrot.slane %v4385, 2
        %v4388 = vrot.slane %v3257, 7
        %v4389 = vsel %vm4067, %v4387, %v4388
        %v4390 = vrot.slane %v4388, 2
        %v4391 = vrot.slane %v3265, 7
        %v4392 = vsel %vm4067, %v4390, %v4391
        %v4393 = vrot.slane %v3273, 7
        %v4394 = vrot.slane %v4393, 2
        %v4395 = vrot.slane %v3272, 7
        %v4396 = vsel %vm4067, %v4394, %v4395
        %v4397 = vrot.slane %v4395, 2
        %v4398 = vrot.slane %v3274, 7
        %v4399 = vsel %vm4067, %v4397, %v4398
        %v4400 = vrot.slane %v4398, 2
        %v4401 = vrot.slane %v3282, 7
        %v4402 = vsel %vm4067, %v4400, %v4401
        %v4403 = vrot.slane %v4401, 2
        %v4404 = vrot.slane %v3290, 7
        %v4405 = vsel %vm4067, %v4403, %v4404
        %v4406 = vrot.slane %v4404, 2
        %v4407 = vrot.slane %v3289, 7
        %v4408 = vsel %vm4067, %v4406, %v4407
        %v4409 = vrot.slane %v4407, 2
        %v4410 = vrot.slane %v3291, 7
        %v4411 = vsel %vm4067, %v4409, %v4410
        %v4412 = vrot.slane %v4410, 2
        %v4413 = vrot.slane %v3299, 7
        %v4414 = vsel %vm4067, %v4412, %v4413
        %v4415 = vrot.slane %v4413, 2
        %v4416 = vrot.slane %v3307, 7
        %v4417 = vsel %vm4067, %v4415, %v4416
        %v4418 = vrot.slane %v3306, 7
        %v4419 = vrot.slane %v4418, 2
        %v4420 = vrot.slane %v3308, 7
        %v4421 = vsel %vm4067, %v4419, %v4420
        %v4422 = vrot.slane %v4420, 2
        %v4423 = vrot.slane %v3316, 7
        %v4424 = vsel %vm4067, %v4422, %v4423
        %v4425 = vrot.slane %v4423, 2
        %v4426 = vrot.slane %v3324, 7
        %v4427 = vsel %vm4067, %v4425, %v4426
        %v4428 = vrot.slane %v4426, 2
        %v4429 = vrot.slane %v3323, 7
        %v4430 = vsel %vm4067, %v4428, %v4429
        %v4431 = vrot.slane %v4429, 2
        %v4432 = vrot.slane %v3325, 7
        %v4433 = vsel %vm4067, %v4431, %v4432
        %v4434 = vrot.slane %v4432, 2
        %v4435 = vrot.slane %v3333, 7
        %v4436 = vsel %vm4067, %v4434, %v4435
        %v4437 = vrot.slane %v4435, 2
        %v4438 = vrot.slane %v3341, 7
        %v4439 = vsel %vm4067, %v4437, %v4438
        %v4440 = vrot.slane %v4438, 2
        %v4441 = vrot.slane %v3340, 7
        %v4442 = vsel %vm4067, %v4440, %v4441
        %v4443 = vrot.slane %v3342, 7
        %v4444 = vrot.slane %v4443, 2
        %v4445 = vrot.slane %v3350, 7
        %v4446 = vsel %vm4067, %v4444, %v4445
        %v4447 = vrot.slane %v4445, 2
        %v4448 = vrot.slane %v3358, 7
        %v4449 = vsel %vm4067, %v4447, %v4448
        %v4450 = vrot.slane %v4448, 2
        %v4451 = vrot.slane %v3357, 7
        %v4452 = vsel %vm4067, %v4450, %v4451
        %v4453 = vrot.slane %v4451, 2
        %v4454 = vrot.slane %v3359, 7
        %v4455 = vsel %vm4067, %v4453, %v4454
        %v4456 = vrot.slane %v4454, 2
        %v4457 = vrot.slane %v3367, 7
        %v4458 = vsel %vm4067, %v4456, %v4457
        %v4459 = vrot.slane %v4457, 2
        %v4460 = vrot.slane %v3375, 7
        %v4461 = vsel %vm4067, %v4459, %v4460
        %v4462 = vrot.slane %v4460, 2
        %v4463 = vrot.slane %v3374, 7
        %v4464 = vsel %vm4067, %v4462, %v4463
        %v4465 = vrot.slane %v4463, 2
        %v4466 = vrot.slane %v3376, 7
        %v4467 = vsel %vm4067, %v4465, %v4466
        %v4468 = vcombine.low %v4071, %v4074
        %v4469 = vcombine.low %v4077, %v4080
        %v4471 = vunpack.c.l.s4 1983009808
        %v4472 = vunpack.c.0.s8 %v4471
        %v4473 = vlaneseq
        %v4474 = vshrl.u32 %v4473, 7
        %v4475 = vsub.s32 %v4472, %v4474
        %v4476 = vrot.slane %v4468, %v4475
        %v4478 = vunpack.c.l.s4 1983009808
        %v4479 = vunpack.c.0.s8 %v4478
        %v4480 = vlaneseq
        %v4481 = vshrl.u32 %v4480, 7
        %v4482 = vsub.s32 %v4479, %v4481
        %v4483 = vrot.slane %v4469, %v4482
        %v4484 = vcombine.low %v4476, %v4483
        %v4485 = vcombine.low %v4083, %v4086
        %v4486 = vcombine.low %v4089, %v4092
        %v4488 = vunpack.c.l.s4 1983009808
        %v4489 = vunpack.c.0.s8 %v4488
        %v4490 = vlaneseq
        %v4491 = vshrl.u32 %v4490, 7
        %v4492 = vsub.s32 %v4489, %v4491
        %v4493 = vrot.slane %v4485, %v4492
        %v4495 = vunpack.c.l.s4 1983009808
        %v4496 = vunpack.c.0.s8 %v4495
        %v4497 = vlaneseq
        %v4498 = vshrl.u32 %v4497, 7
        %v4499 = vsub.s32 %v4496, %v4498
        %v4500 = vrot.slane %v4486, %v4499
        %v4501 = vcombine.low %v4493, %v4500
        %v4502 = vcombine.low %v4096, %v4099
        %v4503 = vcombine.low %v4102, %v4105
        %v4505 = vunpack.c.l.s4 1983009808
        %v4506 = vunpack.c.0.s8 %v4505
        %v4507 = vlaneseq
        %v4508 = vshrl.u32 %v4507, 7
        %v4509 = vsub.s32 %v4506, %v4508
        %v4510 = vrot.slane %v4502, %v4509
        %v4512 = vunpack.c.l.s4 1983009808
        %v4513 = vunpack.c.0.s8 %v4512
        %v4514 = vlaneseq
        %v4515 = vshrl.u32 %v4514, 7
        %v4516 = vsub.s32 %v4513, %v4515
        %v4517 = vrot.slane %v4503, %v4516
        %v4518 = vcombine.low %v4510, %v4517
        %v4519 = vcombine.low %v4108, %v4111
        %v4520 = vcombine.low %v4114, %v4117
        %v4522 = vunpack.c.l.s4 1983009808
        %v4523 = vunpack.c.0.s8 %v4522
        %v4524 = vlaneseq
        %v4525 = vshrl.u32 %v4524, 7
        %v4526 = vsub.s32 %v4523, %v4525
        %v4527 = vrot.slane %v4519, %v4526
        %v4529 = vunpack.c.l.s4 1983009808
        %v4530 = vunpack.c.0.s8 %v4529
        %v4531 = vlaneseq
        %v4532 = vshrl.u32 %v4531, 7
        %v4533 = vsub.s32 %v4530, %v4532
        %v4534 = vrot.slane %v4520, %v4533
        %v4535 = vcombine.low %v4527, %v4534
        %v4536 = vcombine.low %v4121, %v4124
        %v4537 = vcombine.low %v4127, %v4130
        %v4539 = vunpack.c.l.s4 1983009808
        %v4540 = vunpack.c.0.s8 %v4539
        %v4541 = vlaneseq
        %v4542 = vshrl.u32 %v4541, 7
        %v4543 = vsub.s32 %v4540, %v4542
        %v4544 = vrot.slane %v4536, %v4543
        %v4546 = vunpack.c.l.s4 1983009808
        %v4547 = vunpack.c.0.s8 %v4546
        %v4548 = vlaneseq
        %v4549 = vshrl.u32 %v4548, 7
        %v4550 = vsub.s32 %v4547, %v4549
        %v4551 = vrot.slane %v4537, %v4550
        %v4552 = vcombine.low %v4544, %v4551
        %v4553 = vcombine.low %v4133, %v4136
        %v4554 = vcombine.low %v4139, %v4142
        %v4556 = vunpack.c.l.s4 1983009808
        %v4557 = vunpack.c.0.s8 %v4556
        %v4558 = vlaneseq
        %v4559 = vshrl.u32 %v4558, 7
        %v4560 = vsub.s32 %v4557, %v4559
        %v4561 = vrot.slane %v4553, %v4560
        %v4563 = vunpack.c.l.s4 1983009808
        %v4564 = vunpack.c.0.s8 %v4563
        %v4565 = vlaneseq
        %v4566 = vshrl.u32 %v4565, 7
        %v4567 = vsub.s32 %v4564, %v4566
        %v4568 = vrot.slane %v4554, %v4567
        %v4569 = vcombine.low %v4561, %v4568
        %v4570 = vcombine.low %v4146, %v4149
        %v4571 = vcombine.low %v4152, %v4155
        %v4573 = vunpack.c.l.s4 1983009808
        %v4574 = vunpack.c.0.s8 %v4573
        %v4575 = vlaneseq
        %v4576 = vshrl.u32 %v4575, 7
        %v4577 = vsub.s32 %v4574, %v4576
        %v4578 = vrot.slane %v4570, %v4577
        %v4580 = vunpack.c.l.s4 1983009808
        %v4581 = vunpack.c.0.s8 %v4580
        %v4582 = vlaneseq
        %v4583 = vshrl.u32 %v4582, 7
        %v4584 = vsub.s32 %v4581, %v4583
        %v4585 = vrot.slane %v4571, %v4584
        %v4586 = vcombine.low %v4578, %v4585
        %v4587 = vcombine.low %v4158, %v4161
        %v4588 = vcombine.low %v4164, %v4167
        %v4590 = vunpack.c.l.s4 1983009808
        %v4591 = vunpack.c.0.s8 %v4590
        %v4592 = vlaneseq
        %v4593 = vshrl.u32 %v4592, 7
        %v4594 = vsub.s32 %v4591, %v4593
        %v4595 = vrot.slane %v4587, %v4594
        %v4597 = vunpack.c.l.s4 1983009808
        %v4598 = vunpack.c.0.s8 %v4597
        %v4599 = vlaneseq
        %v4600 = vshrl.u32 %v4599, 7
        %v4601 = vsub.s32 %v4598, %v4600
        %v4602 = vrot.slane %v4588, %v4601
        %v4603 = vcombine.low %v4595, %v4602
        %v4604 = vcombine.low %v4171, %v4174
        %v4605 = vcombine.low %v4177, %v4180
        %v4607 = vunpack.c.l.s4 1983009808
        %v4608 = vunpack.c.0.s8 %v4607
        %v4609 = vlaneseq
        %v4610 = vshrl.u32 %v4609, 7
        %v4611 = vsub.s32 %v4608, %v4610
        %v4612 = vrot.slane %v4604, %v4611
        %v4614 = vunpack.c.l.s4 1983009808
        %v4615 = vunpack.c.0.s8 %v4614
        %v4616 = vlaneseq
        %v4617 = vshrl.u32 %v4616, 7
        %v4618 = vsub.s32 %v4615, %v4617
        %v4619 = vrot.slane %v4605, %v4618
        %v4620 = vcombine.low %v4612, %v4619
        %v4621 = vcombine.low %v4183, %v4186
        %v4622 = vcombine.low %v4189, %v4192
        %v4624 = vunpack.c.l.s4 1983009808
        %v4625 = vunpack.c.0.s8 %v4624
        %v4626 = vlaneseq
        %v4627 = vshrl.u32 %v4626, 7
        %v4628 = vsub.s32 %v4625, %v4627
        %v4629 = vrot.slane %v4621, %v4628
        %v4631 = vunpack.c.l.s4 1983009808
        %v4632 = vunpack.c.0.s8 %v4631
        %v4633 = vlaneseq
        %v4634 = vshrl.u32 %v4633, 7
        %v4635 = vsub.s32 %v4632, %v4634
        %v4636 = vrot.slane %v4622, %v4635
        %v4637 = vcombine.low %v4629, %v4636
        %v4638 = vcombine.low %v4196, %v4199
        %v4639 = vcombine.low %v4202, %v4205
        %v4641 = vunpack.c.l.s4 1983009808
        %v4642 = vunpack.c.0.s8 %v4641
        %v4643 = vlaneseq
        %v4644 = vshrl.u32 %v4643, 7
        %v4645 = vsub.s32 %v4642, %v4644
        %v4646 = vrot.slane %v4638, %v4645
        %v4648 = vunpack.c.l.s4 1983009808
        %v4649 = vunpack.c.0.s8 %v4648
        %v4650 = vlaneseq
        %v4651 = vshrl.u32 %v4650, 7
        %v4652 = vsub.s32 %v4649, %v4651
        %v4653 = vrot.slane %v4639, %v4652
        %v4654 = vcombine.low %v4646, %v4653
        %v4655 = vcombine.low %v4208, %v4211
        %v4656 = vcombine.low %v4214, %v4217
        %v4658 = vunpack.c.l.s4 1983009808
        %v4659 = vunpack.c.0.s8 %v4658
        %v4660 = vlaneseq
        %v4661 = vshrl.u32 %v4660, 7
        %v4662 = vsub.s32 %v4659, %v4661
        %v4663 = vrot.slane %v4655, %v4662
        %v4665 = vunpack.c.l.s4 1983009808
        %v4666 = vunpack.c.0.s8 %v4665
        %v4667 = vlaneseq
        %v4668 = vshrl.u32 %v4667, 7
        %v4669 = vsub.s32 %v4666, %v4668
        %v4670 = vrot.slane %v4656, %v4669
        %v4671 = vcombine.low %v4663, %v4670
        %v4672 = vcombine.low %v4221, %v4224
        %v4673 = vcombine.low %v4227, %v4230
        %v4675 = vunpack.c.l.s4 1983009808
        %v4676 = vunpack.c.0.s8 %v4675
        %v4677 = vlaneseq
        %v4678 = vshrl.u32 %v4677, 7
        %v4679 = vsub.s32 %v4676, %v4678
        %v4680 = vrot.slane %v4672, %v4679
        %v4682 = vunpack.c.l.s4 1983009808
        %v4683 = vunpack.c.0.s8 %v4682
        %v4684 = vlaneseq
        %v4685 = vshrl.u32 %v4684, 7
        %v4686 = vsub.s32 %v4683, %v4685
        %v4687 = vrot.slane %v4673, %v4686
        %v4688 = vcombine.low %v4680, %v4687
        %v4689 = vcombine.low %v4233, %v4236
        %v4690 = vcombine.low %v4239, %v4242
        %v4692 = vunpack.c.l.s4 1983009808
        %v4693 = vunpack.c.0.s8 %v4692
        %v4694 = vlaneseq
        %v4695 = vshrl.u32 %v4694, 7
        %v4696 = vsub.s32 %v4693, %v4695
        %v4697 = vrot.slane %v4689, %v4696
        %v4699 = vunpack.c.l.s4 1983009808
        %v4700 = vunpack.c.0.s8 %v4699
        %v4701 = vlaneseq
        %v4702 = vshrl.u32 %v4701, 7
        %v4703 = vsub.s32 %v4700, %v4702
        %v4704 = vrot.slane %v4690, %v4703
        %v4705 = vcombine.low %v4697, %v4704
        %v4706 = vcombine.low %v4246, %v4249
        %v4707 = vcombine.low %v4252, %v4255
        %v4709 = vunpack.c.l.s4 1983009808
        %v4710 = vunpack.c.0.s8 %v4709
        %v4711 = vlaneseq
        %v4712 = vshrl.u32 %v4711, 7
        %v4713 = vsub.s32 %v4710, %v4712
        %v4714 = vrot.slane %v4706, %v4713
        %v4716 = vunpack.c.l.s4 1983009808
        %v4717 = vunpack.c.0.s8 %v4716
        %v4718 = vlaneseq
        %v4719 = vshrl.u32 %v4718, 7
        %v4720 = vsub.s32 %v4717, %v4719
        %v4721 = vrot.slane %v4707, %v4720
        %v4722 = vcombine.low %v4714, %v4721
        %v4723 = vcombine.low %v4258, %v4261
        %v4724 = vcombine.low %v4264, %v4267
        %v4726 = vunpack.c.l.s4 1983009808
        %v4727 = vunpack.c.0.s8 %v4726
        %v4728 = vlaneseq
        %v4729 = vshrl.u32 %v4728, 7
        %v4730 = vsub.s32 %v4727, %v4729
        %v4731 = vrot.slane %v4723, %v4730
        %v4733 = vunpack.c.l.s4 1983009808
        %v4734 = vunpack.c.0.s8 %v4733
        %v4735 = vlaneseq
        %v4736 = vshrl.u32 %v4735, 7
        %v4737 = vsub.s32 %v4734, %v4736
        %v4738 = vrot.slane %v4724, %v4737
        %v4739 = vcombine.low %v4731, %v4738
        %v4740 = vcombine.low %v4271, %v4274
        %v4741 = vcombine.low %v4277, %v4280
        %v4743 = vunpack.c.l.s4 1983009808
        %v4744 = vunpack.c.0.s8 %v4743
        %v4745 = vlaneseq
        %v4746 = vshrl.u32 %v4745, 7
        %v4747 = vsub.s32 %v4744, %v4746
        %v4748 = vrot.slane %v4740, %v4747
        %v4750 = vunpack.c.l.s4 1983009808
        %v4751 = vunpack.c.0.s8 %v4750
        %v4752 = vlaneseq
        %v4753 = vshrl.u32 %v4752, 7
        %v4754 = vsub.s32 %v4751, %v4753
        %v4755 = vrot.slane %v4741, %v4754
        %v4756 = vcombine.low %v4748, %v4755
        %v4757 = vcombine.low %v4283, %v4286
        %v4758 = vcombine.low %v4289, %v4292
        %v4760 = vunpack.c.l.s4 1983009808
        %v4761 = vunpack.c.0.s8 %v4760
        %v4762 = vlaneseq
        %v4763 = vshrl.u32 %v4762, 7
        %v4764 = vsub.s32 %v4761, %v4763
        %v4765 = vrot.slane %v4757, %v4764
        %v4767 = vunpack.c.l.s4 1983009808
        %v4768 = vunpack.c.0.s8 %v4767
        %v4769 = vlaneseq
        %v4770 = vshrl.u32 %v4769, 7
        %v4771 = vsub.s32 %v4768, %v4770
        %v4772 = vrot.slane %v4758, %v4771
        %v4773 = vcombine.low %v4765, %v4772
        %v4774 = vcombine.low %v4296, %v4299
        %v4775 = vcombine.low %v4302, %v4305
        %v4777 = vunpack.c.l.s4 1983009808
        %v4778 = vunpack.c.0.s8 %v4777
        %v4779 = vlaneseq
        %v4780 = vshrl.u32 %v4779, 7
        %v4781 = vsub.s32 %v4778, %v4780
        %v4782 = vrot.slane %v4774, %v4781
        %v4784 = vunpack.c.l.s4 1983009808
        %v4785 = vunpack.c.0.s8 %v4784
        %v4786 = vlaneseq
        %v4787 = vshrl.u32 %v4786, 7
        %v4788 = vsub.s32 %v4785, %v4787
        %v4789 = vrot.slane %v4775, %v4788
        %v4790 = vcombine.low %v4782, %v4789
        %v4791 = vcombine.low %v4308, %v4311
        %v4792 = vcombine.low %v4314, %v4317
        %v4794 = vunpack.c.l.s4 1983009808
        %v4795 = vunpack.c.0.s8 %v4794
        %v4796 = vlaneseq
        %v4797 = vshrl.u32 %v4796, 7
        %v4798 = vsub.s32 %v4795, %v4797
        %v4799 = vrot.slane %v4791, %v4798
        %v4801 = vunpack.c.l.s4 1983009808
        %v4802 = vunpack.c.0.s8 %v4801
        %v4803 = vlaneseq
        %v4804 = vshrl.u32 %v4803, 7
        %v4805 = vsub.s32 %v4802, %v4804
        %v4806 = vrot.slane %v4792, %v4805
        %v4807 = vcombine.low %v4799, %v4806
        %v4808 = vcombine.low %v4321, %v4324
        %v4809 = vcombine.low %v4327, %v4330
        %v4811 = vunpack.c.l.s4 1983009808
        %v4812 = vunpack.c.0.s8 %v4811
        %v4813 = vlaneseq
        %v4814 = vshrl.u32 %v4813, 7
        %v4815 = vsub.s32 %v4812, %v4814
        %v4816 = vrot.slane %v4808, %v4815
        %v4818 = vunpack.c.l.s4 1983009808
        %v4819 = vunpack.c.0.s8 %v4818
        %v4820 = vlaneseq
        %v4821 = vshrl.u32 %v4820, 7
        %v4822 = vsub.s32 %v4819, %v4821
        %v4823 = vrot.slane %v4809, %v4822
        %v4824 = vcombine.low %v4816, %v4823
        %v4825 = vcombine.low %v4333, %v4336
        %v4826 = vcombine.low %v4339, %v4342
        %v4828 = vunpack.c.l.s4 1983009808
        %v4829 = vunpack.c.0.s8 %v4828
        %v4830 = vlaneseq
        %v4831 = vshrl.u32 %v4830, 7
        %v4832 = vsub.s32 %v4829, %v4831
        %v4833 = vrot.slane %v4825, %v4832
        %v4835 = vunpack.c.l.s4 1983009808
        %v4836 = vunpack.c.0.s8 %v4835
        %v4837 = vlaneseq
        %v4838 = vshrl.u32 %v4837, 7
        %v4839 = vsub.s32 %v4836, %v4838
        %v4840 = vrot.slane %v4826, %v4839
        %v4841 = vcombine.low %v4833, %v4840
        %v4842 = vcombine.low %v4346, %v4349
        %v4843 = vcombine.low %v4352, %v4355
        %v4845 = vunpack.c.l.s4 1983009808
        %v4846 = vunpack.c.0.s8 %v4845
        %v4847 = vlaneseq
        %v4848 = vshrl.u32 %v4847, 7
        %v4849 = vsub.s32 %v4846, %v4848
        %v4850 = vrot.slane %v4842, %v4849
        %v4852 = vunpack.c.l.s4 1983009808
        %v4853 = vunpack.c.0.s8 %v4852
        %v4854 = vlaneseq
        %v4855 = vshrl.u32 %v4854, 7
        %v4856 = vsub.s32 %v4853, %v4855
        %v4857 = vrot.slane %v4843, %v4856
        %v4858 = vcombine.low %v4850, %v4857
        %v4859 = vcombine.low %v4358, %v4361
        %v4860 = vcombine.low %v4364, %v4367
        %v4862 = vunpack.c.l.s4 1983009808
        %v4863 = vunpack.c.0.s8 %v4862
        %v4864 = vlaneseq
        %v4865 = vshrl.u32 %v4864, 7
        %v4866 = vsub.s32 %v4863, %v4865
        %v4867 = vrot.slane %v4859, %v4866
        %v4869 = vunpack.c.l.s4 1983009808
        %v4870 = vunpack.c.0.s8 %v4869
        %v4871 = vlaneseq
        %v4872 = vshrl.u32 %v4871, 7
        %v4873 = vsub.s32 %v4870, %v4872
        %v4874 = vrot.slane %v4860, %v4873
        %v4875 = vcombine.low %v4867, %v4874
        %v4876 = vcombine.low %v4371, %v4374
        %v4877 = vcombine.low %v4377, %v4380
        %v4879 = vunpack.c.l.s4 1983009808
        %v4880 = vunpack.c.0.s8 %v4879
        %v4881 = vlaneseq
        %v4882 = vshrl.u32 %v4881, 7
        %v4883 = vsub.s32 %v4880, %v4882
        %v4884 = vrot.slane %v4876, %v4883
        %v4886 = vunpack.c.l.s4 1983009808
        %v4887 = vunpack.c.0.s8 %v4886
        %v4888 = vlaneseq
        %v4889 = vshrl.u32 %v4888, 7
        %v4890 = vsub.s32 %v4887, %v4889
        %v4891 = vrot.slane %v4877, %v4890
        %v4892 = vcombine.low %v4884, %v4891
        %v4893 = vcombine.low %v4383, %v4386
        %v4894 = vcombine.low %v4389, %v4392
        %v4896 = vunpack.c.l.s4 1983009808
        %v4897 = vunpack.c.0.s8 %v4896
        %v4898 = vlaneseq
        %v4899 = vshrl.u32 %v4898, 7
        %v4900 = vsub.s32 %v4897, %v4899
        %v4901 = vrot.slane %v4893, %v4900
        %v4903 = vunpack.c.l.s4 1983009808
        %v4904 = vunpack.c.0.s8 %v4903
        %v4905 = vlaneseq
        %v4906 = vshrl.u32 %v4905, 7
        %v4907 = vsub.s32 %v4904, %v4906
        %v4908 = vrot.slane %v4894, %v4907
        %v4909 = vcombine.low %v4901, %v4908
        %v4910 = vcombine.low %v4396, %v4399
        %v4911 = vcombine.low %v4402, %v4405
        %v4913 = vunpack.c.l.s4 1983009808
        %v4914 = vunpack.c.0.s8 %v4913
        %v4915 = vlaneseq
        %v4916 = vshrl.u32 %v4915, 7
        %v4917 = vsub.s32 %v4914, %v4916
        %v4918 = vrot.slane %v4910, %v4917
        %v4920 = vunpack.c.l.s4 1983009808
        %v4921 = vunpack.c.0.s8 %v4920
        %v4922 = vlaneseq
        %v4923 = vshrl.u32 %v4922, 7
        %v4924 = vsub.s32 %v4921, %v4923
        %v4925 = vrot.slane %v4911, %v4924
        %v4926 = vcombine.low %v4918, %v4925
        %v4927 = vcombine.low %v4408, %v4411
        %v4928 = vcombine.low %v4414, %v4417
        %v4930 = vunpack.c.l.s4 1983009808
        %v4931 = vunpack.c.0.s8 %v4930
        %v4932 = vlaneseq
        %v4933 = vshrl.u32 %v4932, 7
        %v4934 = vsub.s32 %v4931, %v4933
        %v4935 = vrot.slane %v4927, %v4934
        %v4937 = vunpack.c.l.s4 1983009808
        %v4938 = vunpack.c.0.s8 %v4937
        %v4939 = vlaneseq
        %v4940 = vshrl.u32 %v4939, 7
        %v4941 = vsub.s32 %v4938, %v4940
        %v4942 = vrot.slane %v4928, %v4941
        %v4943 = vcombine.low %v4935, %v4942
        %v4944 = vcombine.low %v4421, %v4424
        %v4945 = vcombine.low %v4427, %v4430
        %v4947 = vunpack.c.l.s4 1983009808
        %v4948 = vunpack.c.0.s8 %v4947
        %v4949 = vlaneseq
        %v4950 = vshrl.u32 %v4949, 7
        %v4951 = vsub.s32 %v4948, %v4950
        %v4952 = vrot.slane %v4944, %v4951
        %v4954 = vunpack.c.l.s4 1983009808
        %v4955 = vunpack.c.0.s8 %v4954
        %v4956 = vlaneseq
        %v4957 = vshrl.u32 %v4956, 7
        %v4958 = vsub.s32 %v4955, %v4957
        %v4959 = vrot.slane %v4945, %v4958
        %v4960 = vcombine.low %v4952, %v4959
        %v4961 = vcombine.low %v4433, %v4436
        %v4962 = vcombine.low %v4439, %v4442
        %v4964 = vunpack.c.l.s4 1983009808
        %v4965 = vunpack.c.0.s8 %v4964
        %v4966 = vlaneseq
        %v4967 = vshrl.u32 %v4966, 7
        %v4968 = vsub.s32 %v4965, %v4967
        %v4969 = vrot.slane %v4961, %v4968
        %v4971 = vunpack.c.l.s4 1983009808
        %v4972 = vunpack.c.0.s8 %v4971
        %v4973 = vlaneseq
        %v4974 = vshrl.u32 %v4973, 7
        %v4975 = vsub.s32 %v4972, %v4974
        %v4976 = vrot.slane %v4962, %v4975
        %v4977 = vcombine.low %v4969, %v4976
        %v4978 = vcombine.low %v4446, %v4449
        %v4979 = vcombine.low %v4452, %v4455
        %v4981 = vunpack.c.l.s4 1983009808
        %v4982 = vunpack.c.0.s8 %v4981
        %v4983 = vlaneseq
        %v4984 = vshrl.u32 %v4983, 7
        %v4985 = vsub.s32 %v4982, %v4984
        %v4986 = vrot.slane %v4978, %v4985
        %v4988 = vunpack.c.l.s4 1983009808
        %v4989 = vunpack.c.0.s8 %v4988
        %v4990 = vlaneseq
        %v4991 = vshrl.u32 %v4990, 7
        %v4992 = vsub.s32 %v4989, %v4991
        %v4993 = vrot.slane %v4979, %v4992
        %v4994 = vcombine.low %v4986, %v4993
        %v4995 = vcombine.low %v4458, %v4461
        %v4996 = vcombine.low %v4464, %v4467
        %v4998 = vunpack.c.l.s4 1983009808
        %v4999 = vunpack.c.0.s8 %v4998
        %v5000 = vlaneseq
        %v5001 = vshrl.u32 %v5000, 7
        %v5002 = vsub.s32 %v4999, %v5001
        %v5003 = vrot.slane %v4995, %v5002
        %v5005 = vunpack.c.l.s4 1983009808
        %v5006 = vunpack.c.0.s8 %v5005
        %v5007 = vlaneseq
        %v5008 = vshrl.u32 %v5007, 7
        %v5009 = vsub.s32 %v5006, %v5008
        %v5010 = vrot.slane %v4996, %v5009
        %v5011 = vcombine.low %v5003, %v5010
        %v5044 = vpack.c.bf16 %v4501, %v4484
        %v5045 = vpack.c.bf16 %v4535, %v4518
        %v5046 = vpack.c.bf16 %v4569, %v4552
        %v5047 = vpack.c.bf16 %v4603, %v4586
        %v5048 = vpack.c.bf16 %v4637, %v4620
        %v5049 = vpack.c.bf16 %v4671, %v4654
        %v5050 = vpack.c.bf16 %v4705, %v4688
        %v5051 = vpack.c.bf16 %v4739, %v4722
        %v5052 = vpack.c.bf16 %v4773, %v4756
        %v5053 = vpack.c.bf16 %v4807, %v4790
        %v5054 = vpack.c.bf16 %v4841, %v4824
        %v5055 = vpack.c.bf16 %v4875, %v4858
        %v5056 = vpack.c.bf16 %v4909, %v4892
        %v5057 = vpack.c.bf16 %v4943, %v4926
        %v5058 = vpack.c.bf16 %v4977, %v4960
        %v5059 = vpack.c.bf16 %v5011, %v4994
        %s5060 = scalar_lea.vmem %s5, 64
        %v5061 = vld [vmem:[%s5060] sm:$0xf]
        %v5062 = vld [vmem:[%s5060 + $0x4] sm:$0xf]
        %v5063 = vld [vmem:[%s5060 + $0x8] sm:$0xf]
        %v5064 = vld [vmem:[%s5060 + $0xc] sm:$0xf]
        %v5065 = vld [vmem:[%s5060 + $0x10] sm:$0xf]
        %v5066 = vld [vmem:[%s5060 + $0x14] sm:$0xf]
        %v5067 = vld [vmem:[%s5060 + $0x18] sm:$0xf]
        %v5068 = vld [vmem:[%s5060 + $0x1c] sm:$0xf]
        %v5069 = vld [vmem:[%s5060 + $0x20] sm:$0xf]
        %v5070 = vld [vmem:[%s5060 + $0x24] sm:$0xf]
        %v5071 = vld [vmem:[%s5060 + $0x28] sm:$0xf]
        %v5072 = vld [vmem:[%s5060 + $0x2c] sm:$0xf]
        %v5073 = vld [vmem:[%s5060 + $0x30] sm:$0xf]
        %v5074 = vld [vmem:[%s5060 + $0x34] sm:$0xf]
        %v5075 = vld [vmem:[%s5060 + $0x38] sm:$0xf]
        %v5076 = vld [vmem:[%s5060 + $0x3c] sm:$0xf]
        %v5093 = vunpack.c.l.b16 %v5061
        %v5094 = vunpack.c.l.b16 %v5062
        %v5095 = vunpack.c.l.b16 %v5063
        %v5096 = vunpack.c.l.b16 %v5064
        %v5097 = vunpack.c.l.b16 %v5065
        %v5098 = vunpack.c.l.b16 %v5066
        %v5099 = vunpack.c.l.b16 %v5067
        %v5100 = vunpack.c.l.b16 %v5068
        %v5101 = vunpack.c.l.b16 %v5069
        %v5102 = vunpack.c.l.b16 %v5070
        %v5103 = vunpack.c.l.b16 %v5071
        %v5104 = vunpack.c.l.b16 %v5072
        %v5105 = vunpack.c.l.b16 %v5073
        %v5106 = vunpack.c.l.b16 %v5074
        %v5107 = vunpack.c.l.b16 %v5075
        %v5108 = vunpack.c.l.b16 %v5076
        %v5109 = vpack.c.b16 %v5094, %v5093
        %v5110 = vpack.c.b16 %v5096, %v5095
        %v5111 = vpack.c.b16 %v5098, %v5097
        %v5112 = vpack.c.b16 %v5100, %v5099
        %v5113 = vpack.c.b16 %v5102, %v5101
        %v5114 = vpack.c.b16 %v5104, %v5103
        %v5115 = vpack.c.b16 %v5106, %v5105
        %v5116 = vpack.c.b16 %v5108, %v5107
        %5125 = vmatprep.subr.bf16.mxu0 0
        %5126 = vmatpush1.bf16.msra.mxu0 %v5116
        %5127 = vmatprep.subr.bf16.mxu0 0
        %5128 = vmatpush1.bf16.msra.mxu0 %v5115
        %5129 = vmatprep.subr.bf16.mxu0 0
        %5130 = vmatpush1.bf16.msra.mxu0 %v5114
        %5131 = vmatprep.subr.bf16.mxu0 0
        %5132 = vmatpush1.bf16.msra.mxu0 %v5113
        %5133 = vmatprep.subr.bf16.mxu0 0
        %5134 = vmatpush1.bf16.msra.mxu0 %v5112
        %5135 = vmatprep.subr.bf16.mxu0 0
        %5136 = vmatpush1.bf16.msra.mxu0 %v5111
        %5137 = vmatprep.subr.bf16.mxu0 0
        %5138 = vmatpush1.bf16.msra.mxu0 %v5110
        %5139 = vmatprep.subr.bf16.mxu0 0
        %5140 = vmatpush1.bf16.msra.mxu0 %v5109
        %5141 = vmatprep.subr.bf16.mxu0 0
        %5142 = vmatpush2.bf16.msra.mxu0 0
        %5143 = vmatprep.subr.bf16.mxu0 0
        %5144 = vmatpush2.bf16.msra.mxu0 0
        %5145 = vmatprep.subr.bf16.mxu0 0
        %5146 = vmatpush2.bf16.msra.mxu0 0
        %5147 = vmatprep.subr.bf16.mxu0 0
        %5148 = vmatpush2.bf16.msra.mxu0 0
        %5149 = vmatprep.subr.bf16.mxu0 0
        %5150 = vmatpush2.bf16.msra.mxu0 0
        %5151 = vmatprep.subr.bf16.mxu0 0
        %5152 = vmatpush2.bf16.msra.mxu0 0
        %5153 = vmatprep.subr.bf16.mxu0 0
        %5154 = vmatpush2.bf16.msra.mxu0 0
        %5155 = vmatprep.subr.bf16.mxu0 0
        %5156 = vmatpush2.bf16.msra.mxu0 0
        %5157 = vmatprep.mubr.bf16.mxu0 0
        %5158 = vmatmul.mubr.bf16.gmra.mxu0 %v5044
        %v5159 = vpop.f32.mrf.mxu0
        %v5160 = vadd.f32 0.0, %v5159
        %v5161 = vpop.f32.mrf.mxu0
        %v5162 = vpop.f32.mrf.mxu0
        %v5163 = vadd.f32 0.0, %v5162
        %v5164 = vpop.f32.mrf.mxu0
        %5165 = vmatprep.mubr.bf16.mxu0 0
        %5166 = vmatmul.mubr.bf16.gmra.mxu0 %v5045
        %v5167 = vpop.f32.mrf.mxu0
        %v5168 = vadd.f32 0.0, %v5167
        %v5169 = vpop.f32.mrf.mxu0
        %v5170 = vpop.f32.mrf.mxu0
        %v5171 = vadd.f32 0.0, %v5170
        %v5172 = vpop.f32.mrf.mxu0
        %5173 = vmatprep.mubr.bf16.mxu0 0
        %5174 = vmatmul.mubr.bf16.gmra.mxu0 %v5046
        %v5175 = vpop.f32.mrf.mxu0
        %v5176 = vadd.f32 0.0, %v5175
        %v5177 = vpop.f32.mrf.mxu0
        %v5178 = vpop.f32.mrf.mxu0
        %v5179 = vadd.f32 0.0, %v5178
        %v5180 = vpop.f32.mrf.mxu0
        %5181 = vmatprep.mubr.bf16.mxu0 0
        %5182 = vmatmul.mubr.bf16.gmra.mxu0 %v5047
        %v5183 = vpop.f32.mrf.mxu0
        %v5184 = vadd.f32 0.0, %v5183
        %v5185 = vpop.f32.mrf.mxu0
        %v5186 = vpop.f32.mrf.mxu0
        %v5187 = vadd.f32 0.0, %v5186
        %v5188 = vpop.f32.mrf.mxu0
        %5189 = vmatprep.mubr.bf16.mxu0 0
        %5190 = vmatmul.mubr.bf16.gmra.mxu0 %v5048
        %v5191 = vpop.f32.mrf.mxu0
        %v5192 = vadd.f32 0.0, %v5191
        %v5193 = vpop.f32.mrf.mxu0
        %v5194 = vpop.f32.mrf.mxu0
        %v5195 = vadd.f32 0.0, %v5194
        %v5196 = vpop.f32.mrf.mxu0
        %5197 = vmatprep.mubr.bf16.mxu0 0
        %5198 = vmatmul.mubr.bf16.gmra.mxu0 %v5049
        %v5199 = vpop.f32.mrf.mxu0
        %v5200 = vadd.f32 0.0, %v5199
        %v5201 = vpop.f32.mrf.mxu0
        %v5202 = vpop.f32.mrf.mxu0
        %v5203 = vadd.f32 0.0, %v5202
        %v5204 = vpop.f32.mrf.mxu0
        %5205 = vmatprep.mubr.bf16.mxu0 0
        %5206 = vmatmul.mubr.bf16.gmra.mxu0 %v5050
        %v5207 = vpop.f32.mrf.mxu0
        %v5208 = vadd.f32 0.0, %v5207
        %v5209 = vpop.f32.mrf.mxu0
        %v5210 = vpop.f32.mrf.mxu0
        %v5211 = vadd.f32 0.0, %v5210
        %v5212 = vpop.f32.mrf.mxu0
        %5213 = vmatprep.mubr.bf16.mxu0 0
        %5214 = vmatmul.mubr.bf16.gmra.mxu0 %v5051
        %v5215 = vpop.f32.mrf.mxu0
        %v5216 = vadd.f32 0.0, %v5215
        %v5217 = vpop.f32.mrf.mxu0
        %v5218 = vpop.f32.mrf.mxu0
        %v5219 = vadd.f32 0.0, %v5218
        %v5220 = vpop.f32.mrf.mxu0
        %5221 = vmatprep.mubr.bf16.mxu0 0
        %5222 = vmatmul.mubr.bf16.gmra.mxu0 %v5052
        %v5223 = vpop.f32.mrf.mxu0
        %v5224 = vadd.f32 0.0, %v5223
        %v5225 = vpop.f32.mrf.mxu0
        %v5226 = vpop.f32.mrf.mxu0
        %v5227 = vadd.f32 0.0, %v5226
        %v5228 = vpop.f32.mrf.mxu0
        %5229 = vmatprep.mubr.bf16.mxu0 0
        %5230 = vmatmul.mubr.bf16.gmra.mxu0 %v5053
        %v5231 = vpop.f32.mrf.mxu0
        %v5232 = vadd.f32 0.0, %v5231
        %v5233 = vpop.f32.mrf.mxu0
        %v5234 = vpop.f32.mrf.mxu0
        %v5235 = vadd.f32 0.0, %v5234
        %v5236 = vpop.f32.mrf.mxu0
        %5237 = vmatprep.mubr.bf16.mxu0 0
        %5238 = vmatmul.mubr.bf16.gmra.mxu0 %v5054
        %v5239 = vpop.f32.mrf.mxu0
        %v5240 = vadd.f32 0.0, %v5239
        %v5241 = vpop.f32.mrf.mxu0
        %v5242 = vpop.f32.mrf.mxu0
        %v5243 = vadd.f32 0.0, %v5242
        %v5244 = vpop.f32.mrf.mxu0
        %5245 = vmatprep.mubr.bf16.mxu0 0
        %5246 = vmatmul.mubr.bf16.gmra.mxu0 %v5055
        %v5247 = vpop.f32.mrf.mxu0
        %v5248 = vadd.f32 0.0, %v5247
        %v5249 = vpop.f32.mrf.mxu0
        %v5250 = vpop.f32.mrf.mxu0
        %v5251 = vadd.f32 0.0, %v5250
        %v5252 = vpop.f32.mrf.mxu0
        %5253 = vmatprep.mubr.bf16.mxu0 0
        %5254 = vmatmul.mubr.bf16.gmra.mxu0 %v5056
        %v5255 = vpop.f32.mrf.mxu0
        %v5256 = vadd.f32 0.0, %v5255
        %v5257 = vpop.f32.mrf.mxu0
        %v5258 = vpop.f32.mrf.mxu0
        %v5259 = vadd.f32 0.0, %v5258
        %v5260 = vpop.f32.mrf.mxu0
        %5261 = vmatprep.mubr.bf16.mxu0 0
        %5262 = vmatmul.mubr.bf16.gmra.mxu0 %v5057
        %v5263 = vpop.f32.mrf.mxu0
        %v5264 = vadd.f32 0.0, %v5263
        %v5265 = vpop.f32.mrf.mxu0
        %v5266 = vpop.f32.mrf.mxu0
        %v5267 = vadd.f32 0.0, %v5266
        %v5268 = vpop.f32.mrf.mxu0
        %5269 = vmatprep.mubr.bf16.mxu0 0
        %5270 = vmatmul.mubr.bf16.gmra.mxu0 %v5058
        %v5271 = vpop.f32.mrf.mxu0
        %v5272 = vadd.f32 0.0, %v5271
        %v5273 = vpop.f32.mrf.mxu0
        %v5274 = vpop.f32.mrf.mxu0
        %v5275 = vadd.f32 0.0, %v5274
        %v5276 = vpop.f32.mrf.mxu0
        %5277 = vmatprep.mubr.bf16.mxu0 0
        %5278 = vmatmul.mubr.bf16.gmra.mxu0 %v5059
        %v5279 = vpop.f32.mrf.mxu0
        %v5280 = vadd.f32 0.0, %v5279
        %v5281 = vpop.f32.mrf.mxu0
        %v5282 = vpop.f32.mrf.mxu0
        %v5283 = vadd.f32 0.0, %v5282
        %v5284 = vpop.f32.mrf.mxu0
        %5285 = vdwg.mxu0
        %v5302 = vunpack.c.l.b16 %v4045
        %v5303 = vunpack.c.l.b16 %v4046
        %v5304 = vunpack.c.l.b16 %v4047
        %v5305 = vunpack.c.l.b16 %v4048
        %v5306 = vunpack.c.l.b16 %v4049
        %v5307 = vunpack.c.l.b16 %v4050
        %v5308 = vunpack.c.l.b16 %v4051
        %v5309 = vunpack.c.l.b16 %v4052
        %v5310 = vunpack.c.l.b16 %v4053
        %v5311 = vunpack.c.l.b16 %v4054
        %v5312 = vunpack.c.l.b16 %v4055
        %v5313 = vunpack.c.l.b16 %v4056
        %v5314 = vunpack.c.l.b16 %v4057
        %v5315 = vunpack.c.l.b16 %v4058
        %v5316 = vunpack.c.l.b16 %v4059
        %v5317 = vunpack.c.l.b16 %v4060
        %v5318 = vpack.c.b16 %v5303, %v5302
        %v5319 = vpack.c.b16 %v5305, %v5304
        %v5320 = vpack.c.b16 %v5307, %v5306
        %v5321 = vpack.c.b16 %v5309, %v5308
        %v5322 = vpack.c.b16 %v5311, %v5310
        %v5323 = vpack.c.b16 %v5313, %v5312
        %v5324 = vpack.c.b16 %v5315, %v5314
        %v5325 = vpack.c.b16 %v5317, %v5316
        %5334 = vmatprep.subr.bf16.mxu0 0
        %5335 = vmatpush1.bf16.msra.mxu0 %v5325
        %5336 = vmatprep.subr.bf16.mxu0 0
        %5337 = vmatpush1.bf16.msra.mxu0 %v5324
        %5338 = vmatprep.subr.bf16.mxu0 0
        %5339 = vmatpush1.bf16.msra.mxu0 %v5323
        %5340 = vmatprep.subr.bf16.mxu0 0
        %5341 = vmatpush1.bf16.msra.mxu0 %v5322
        %5342 = vmatprep.subr.bf16.mxu0 0
        %5343 = vmatpush1.bf16.msra.mxu0 %v5321
        %5344 = vmatprep.subr.bf16.mxu0 0
        %5345 = vmatpush1.bf16.msra.mxu0 %v5320
        %5346 = vmatprep.subr.bf16.mxu0 0
        %5347 = vmatpush1.bf16.msra.mxu0 %v5319
        %5348 = vmatprep.subr.bf16.mxu0 0
        %5349 = vmatpush1.bf16.msra.mxu0 %v5318
        %5350 = vmatprep.subr.bf16.mxu0 0
        %5351 = vmatpush2.bf16.msra.mxu0 0
        %5352 = vmatprep.subr.bf16.mxu0 0
        %5353 = vmatpush2.bf16.msra.mxu0 0
        %5354 = vmatprep.subr.bf16.mxu0 0
        %5355 = vmatpush2.bf16.msra.mxu0 0
        %5356 = vmatprep.subr.bf16.mxu0 0
        %5357 = vmatpush2.bf16.msra.mxu0 0
        %5358 = vmatprep.subr.bf16.mxu0 0
        %5359 = vmatpush2.bf16.msra.mxu0 0
        %5360 = vmatprep.subr.bf16.mxu0 0
        %5361 = vmatpush2.bf16.msra.mxu0 0
        %5362 = vmatprep.subr.bf16.mxu0 0
        %5363 = vmatpush2.bf16.msra.mxu0 0
        %5364 = vmatprep.subr.bf16.mxu0 0
        %5365 = vmatpush2.bf16.msra.mxu0 0
        %5366 = vmatprep.mubr.bf16.mxu0 0
        %5367 = vmatmul.mubr.bf16.gmra.mxu0 %v4029
        %v5368 = vpop.f32.mrf.mxu0
        %v5369 = vadd.f32 %v5160, %v5368
        %v5370 = vpop.f32.mrf.mxu0
        %v5371 = vpop.f32.mrf.mxu0
        %v5372 = vadd.f32 %v5163, %v5371
        %v5373 = vpop.f32.mrf.mxu0
        %5374 = vmatprep.mubr.bf16.mxu0 0
        %5375 = vmatmul.mubr.bf16.gmra.mxu0 %v4030
        %v5376 = vpop.f32.mrf.mxu0
        %v5377 = vadd.f32 %v5168, %v5376
        %v5378 = vpop.f32.mrf.mxu0
        %v5379 = vpop.f32.mrf.mxu0
        %v5380 = vadd.f32 %v5171, %v5379
        %v5381 = vpop.f32.mrf.mxu0
        %5382 = vmatprep.mubr.bf16.mxu0 0
        %5383 = vmatmul.mubr.bf16.gmra.mxu0 %v4031
        %v5384 = vpop.f32.mrf.mxu0
        %v5385 = vadd.f32 %v5176, %v5384
        %v5386 = vpop.f32.mrf.mxu0
        %v5387 = vpop.f32.mrf.mxu0
        %v5388 = vadd.f32 %v5179, %v5387
        %v5389 = vpop.f32.mrf.mxu0
        %5390 = vmatprep.mubr.bf16.mxu0 0
        %5391 = vmatmul.mubr.bf16.gmra.mxu0 %v4032
        %v5392 = vpop.f32.mrf.mxu0
        %v5393 = vadd.f32 %v5184, %v5392
        %v5394 = vpop.f32.mrf.mxu0
        %v5395 = vpop.f32.mrf.mxu0
        %v5396 = vadd.f32 %v5187, %v5395
        %v5397 = vpop.f32.mrf.mxu0
        %5398 = vmatprep.mubr.bf16.mxu0 0
        %5399 = vmatmul.mubr.bf16.gmra.mxu0 %v4033
        %v5400 = vpop.f32.mrf.mxu0
        %v5401 = vadd.f32 %v5192, %v5400
        %v5402 = vpop.f32.mrf.mxu0
        %v5403 = vpop.f32.mrf.mxu0
        %v5404 = vadd.f32 %v5195, %v5403
        %v5405 = vpop.f32.mrf.mxu0
        %5406 = vmatprep.mubr.bf16.mxu0 0
        %5407 = vmatmul.mubr.bf16.gmra.mxu0 %v4034
        %v5408 = vpop.f32.mrf.mxu0
        %v5409 = vadd.f32 %v5200, %v5408
        %v5410 = vpop.f32.mrf.mxu0
        %v5411 = vpop.f32.mrf.mxu0
        %v5412 = vadd.f32 %v5203, %v5411
        %v5413 = vpop.f32.mrf.mxu0
        %5414 = vmatprep.mubr.bf16.mxu0 0
        %5415 = vmatmul.mubr.bf16.gmra.mxu0 %v4035
        %v5416 = vpop.f32.mrf.mxu0
        %v5417 = vadd.f32 %v5208, %v5416
        %v5418 = vpop.f32.mrf.mxu0
        %v5419 = vpop.f32.mrf.mxu0
        %v5420 = vadd.f32 %v5211, %v5419
        %v5421 = vpop.f32.mrf.mxu0
        %5422 = vmatprep.mubr.bf16.mxu0 0
        %5423 = vmatmul.mubr.bf16.gmra.mxu0 %v4036
        %v5424 = vpop.f32.mrf.mxu0
        %v5425 = vadd.f32 %v5216, %v5424
        %v5426 = vpop.f32.mrf.mxu0
        %v5427 = vpop.f32.mrf.mxu0
        %v5428 = vadd.f32 %v5219, %v5427
        %v5429 = vpop.f32.mrf.mxu0
        %5430 = vmatprep.mubr.bf16.mxu0 0
        %5431 = vmatmul.mubr.bf16.gmra.mxu0 %v4037
        %v5432 = vpop.f32.mrf.mxu0
        %v5433 = vadd.f32 %v5224, %v5432
        %v5434 = vpop.f32.mrf.mxu0
        %v5435 = vpop.f32.mrf.mxu0
        %v5436 = vadd.f32 %v5227, %v5435
        %v5437 = vpop.f32.mrf.mxu0
        %5438 = vmatprep.mubr.bf16.mxu0 0
        %5439 = vmatmul.mubr.bf16.gmra.mxu0 %v4038
        %v5440 = vpop.f32.mrf.mxu0
        %v5441 = vadd.f32 %v5232, %v5440
        %v5442 = vpop.f32.mrf.mxu0
        %v5443 = vpop.f32.mrf.mxu0
        %v5444 = vadd.f32 %v5235, %v5443
        %v5445 = vpop.f32.mrf.mxu0
        %5446 = vmatprep.mubr.bf16.mxu0 0
        %5447 = vmatmul.mubr.bf16.gmra.mxu0 %v4039
        %v5448 = vpop.f32.mrf.mxu0
        %v5449 = vadd.f32 %v5240, %v5448
        %v5450 = vpop.f32.mrf.mxu0
        %v5451 = vpop.f32.mrf.mxu0
        %v5452 = vadd.f32 %v5243, %v5451
        %v5453 = vpop.f32.mrf.mxu0
        %5454 = vmatprep.mubr.bf16.mxu0 0
        %5455 = vmatmul.mubr.bf16.gmra.mxu0 %v4040
        %v5456 = vpop.f32.mrf.mxu0
        %v5457 = vadd.f32 %v5248, %v5456
        %v5458 = vpop.f32.mrf.mxu0
        %v5459 = vpop.f32.mrf.mxu0
        %v5460 = vadd.f32 %v5251, %v5459
        %v5461 = vpop.f32.mrf.mxu0
        %5462 = vmatprep.mubr.bf16.mxu0 0
        %5463 = vmatmul.mubr.bf16.gmra.mxu0 %v4041
        %v5464 = vpop.f32.mrf.mxu0
        %v5465 = vadd.f32 %v5256, %v5464
        %v5466 = vpop.f32.mrf.mxu0
        %v5467 = vpop.f32.mrf.mxu0
        %v5468 = vadd.f32 %v5259, %v5467
        %v5469 = vpop.f32.mrf.mxu0
        %5470 = vmatprep.mubr.bf16.mxu0 0
        %5471 = vmatmul.mubr.bf16.gmra.mxu0 %v4042
        %v5472 = vpop.f32.mrf.mxu0
        %v5473 = vadd.f32 %v5264, %v5472
        %v5474 = vpop.f32.mrf.mxu0
        %v5475 = vpop.f32.mrf.mxu0
        %v5476 = vadd.f32 %v5267, %v5475
        %v5477 = vpop.f32.mrf.mxu0
        %5478 = vmatprep.mubr.bf16.mxu0 0
        %5479 = vmatmul.mubr.bf16.gmra.mxu0 %v4043
        %v5480 = vpop.f32.mrf.mxu0
        %v5481 = vadd.f32 %v5272, %v5480
        %v5482 = vpop.f32.mrf.mxu0
        %v5483 = vpop.f32.mrf.mxu0
        %v5484 = vadd.f32 %v5275, %v5483
        %v5485 = vpop.f32.mrf.mxu0
        %5486 = vmatprep.mubr.bf16.mxu0 0
        %5487 = vmatmul.mubr.bf16.gmra.mxu0 %v4044
        %v5488 = vpop.f32.mrf.mxu0
        %v5489 = vadd.f32 %v5280, %v5488
        %v5490 = vpop.f32.mrf.mxu0
        %v5491 = vpop.f32.mrf.mxu0
        %v5492 = vadd.f32 %v5283, %v5491
        %v5493 = vpop.f32.mrf.mxu0
        %5494 = vdwg.mxu0
        %v5495 = vcombine.low %v2780, %v2779
        %v5496 = vcombine.low %v2781, %v2789
        %v5498 = vunpack.c.l.s4 1983009808
        %v5499 = vunpack.c.0.s8 %v5498
        %v5500 = vlaneseq
        %v5501 = vshrl.u32 %v5500, 7
        %v5502 = vsub.s32 %v5499, %v5501
        %v5503 = vrot.slane %v5495, %v5502
        %v5505 = vunpack.c.l.s4 1983009808
        %v5506 = vunpack.c.0.s8 %v5505
        %v5507 = vlaneseq
        %v5508 = vshrl.u32 %v5507, 7
        %v5509 = vsub.s32 %v5506, %v5508
        %v5510 = vrot.slane %v5496, %v5509
        %v5511 = vcombine.low %v5503, %v5510
        %v5512 = vcombine.low %v2797, %v2796
        %v5513 = vcombine.low %v2798, %v2806
        %v5515 = vunpack.c.l.s4 1983009808
        %v5516 = vunpack.c.0.s8 %v5515
        %v5517 = vlaneseq
        %v5518 = vshrl.u32 %v5517, 7
        %v5519 = vsub.s32 %v5516, %v5518
        %v5520 = vrot.slane %v5512, %v5519
        %v5522 = vunpack.c.l.s4 1983009808
        %v5523 = vunpack.c.0.s8 %v5522
        %v5524 = vlaneseq
        %v5525 = vshrl.u32 %v5524, 7
        %v5526 = vsub.s32 %v5523, %v5525
        %v5527 = vrot.slane %v5513, %v5526
        %v5528 = vcombine.low %v5520, %v5527
        %v5529 = vcombine.low %v2813, %v2815
        %v5530 = vcombine.low %v2823, %v2831
        %v5532 = vunpack.c.l.s4 1983009808
        %v5533 = vunpack.c.0.s8 %v5532
        %v5534 = vlaneseq
        %v5535 = vshrl.u32 %v5534, 7
        %v5536 = vsub.s32 %v5533, %v5535
        %v5537 = vrot.slane %v5529, %v5536
        %v5539 = vunpack.c.l.s4 1983009808
        %v5540 = vunpack.c.0.s8 %v5539
        %v5541 = vlaneseq
        %v5542 = vshrl.u32 %v5541, 7
        %v5543 = vsub.s32 %v5540, %v5542
        %v5544 = vrot.slane %v5530, %v5543
        %v5545 = vcombine.low %v5537, %v5544
        %v5546 = vcombine.low %v2830, %v2832
        %v5547 = vcombine.low %v2840, %v2848
        %v5549 = vunpack.c.l.s4 1983009808
        %v5550 = vunpack.c.0.s8 %v5549
        %v5551 = vlaneseq
        %v5552 = vshrl.u32 %v5551, 7
        %v5553 = vsub.s32 %v5550, %v5552
        %v5554 = vrot.slane %v5546, %v5553
        %v5556 = vunpack.c.l.s4 1983009808
        %v5557 = vunpack.c.0.s8 %v5556
        %v5558 = vlaneseq
        %v5559 = vshrl.u32 %v5558, 7
        %v5560 = vsub.s32 %v5557, %v5559
        %v5561 = vrot.slane %v5547, %v5560
        %v5562 = vcombine.low %v5554, %v5561
        %v5563 = vcombine.low %v2849, %v2857
        %v5564 = vcombine.low %v2865, %v2864
        %v5566 = vunpack.c.l.s4 1983009808
        %v5567 = vunpack.c.0.s8 %v5566
        %v5568 = vlaneseq
        %v5569 = vshrl.u32 %v5568, 7
        %v5570 = vsub.s32 %v5567, %v5569
        %v5571 = vrot.slane %v5563, %v5570
        %v5573 = vunpack.c.l.s4 1983009808
        %v5574 = vunpack.c.0.s8 %v5573
        %v5575 = vlaneseq
        %v5576 = vshrl.u32 %v5575, 7
        %v5577 = vsub.s32 %v5574, %v5576
        %v5578 = vrot.slane %v5564, %v5577
        %v5579 = vcombine.low %v5571, %v5578
        %v5580 = vcombine.low %v2866, %v2874
        %v5581 = vcombine.low %v2882, %v2881
        %v5583 = vunpack.c.l.s4 1983009808
        %v5584 = vunpack.c.0.s8 %v5583
        %v5585 = vlaneseq
        %v5586 = vshrl.u32 %v5585, 7
        %v5587 = vsub.s32 %v5584, %v5586
        %v5588 = vrot.slane %v5580, %v5587
        %v5590 = vunpack.c.l.s4 1983009808
        %v5591 = vunpack.c.0.s8 %v5590
        %v5592 = vlaneseq
        %v5593 = vshrl.u32 %v5592, 7
        %v5594 = vsub.s32 %v5591, %v5593
        %v5595 = vrot.slane %v5581, %v5594
        %v5596 = vcombine.low %v5588, %v5595
        %v5597 = vcombine.low %v2891, %v2899
        %v5598 = vcombine.low %v2898, %v2900
        %v5600 = vunpack.c.l.s4 1983009808
        %v5601 = vunpack.c.0.s8 %v5600
        %v5602 = vlaneseq
        %v5603 = vshrl.u32 %v5602, 7
        %v5604 = vsub.s32 %v5601, %v5603
        %v5605 = vrot.slane %v5597, %v5604
        %v5607 = vunpack.c.l.s4 1983009808
        %v5608 = vunpack.c.0.s8 %v5607
        %v5609 = vlaneseq
        %v5610 = vshrl.u32 %v5609, 7
        %v5611 = vsub.s32 %v5608, %v5610
        %v5612 = vrot.slane %v5598, %v5611
        %v5613 = vcombine.low %v5605, %v5612
        %v5614 = vcombine.low %v2908, %v2916
        %v5615 = vcombine.low %v2915, %v2917
        %v5617 = vunpack.c.l.s4 1983009808
        %v5618 = vunpack.c.0.s8 %v5617
        %v5619 = vlaneseq
        %v5620 = vshrl.u32 %v5619, 7
        %v5621 = vsub.s32 %v5618, %v5620
        %v5622 = vrot.slane %v5614, %v5621
        %v5624 = vunpack.c.l.s4 1983009808
        %v5625 = vunpack.c.0.s8 %v5624
        %v5626 = vlaneseq
        %v5627 = vshrl.u32 %v5626, 7
        %v5628 = vsub.s32 %v5625, %v5627
        %v5629 = vrot.slane %v5615, %v5628
        %v5630 = vcombine.low %v5622, %v5629
        %v5631 = vcombine.low %v2933, %v2932
        %v5632 = vcombine.low %v2934, %v2942
        %v5634 = vunpack.c.l.s4 1983009808
        %v5635 = vunpack.c.0.s8 %v5634
        %v5636 = vlaneseq
        %v5637 = vshrl.u32 %v5636, 7
        %v5638 = vsub.s32 %v5635, %v5637
        %v5639 = vrot.slane %v5631, %v5638
        %v5641 = vunpack.c.l.s4 1983009808
        %v5642 = vunpack.c.0.s8 %v5641
        %v5643 = vlaneseq
        %v5644 = vshrl.u32 %v5643, 7
        %v5645 = vsub.s32 %v5642, %v5644
        %v5646 = vrot.slane %v5632, %v5645
        %v5647 = vcombine.low %v5639, %v5646
        %v5648 = vcombine.low %v2950, %v2949
        %v5649 = vcombine.low %v2951, %v2959
        %v5651 = vunpack.c.l.s4 1983009808
        %v5652 = vunpack.c.0.s8 %v5651
        %v5653 = vlaneseq
        %v5654 = vshrl.u32 %v5653, 7
        %v5655 = vsub.s32 %v5652, %v5654
        %v5656 = vrot.slane %v5648, %v5655
        %v5658 = vunpack.c.l.s4 1983009808
        %v5659 = vunpack.c.0.s8 %v5658
        %v5660 = vlaneseq
        %v5661 = vshrl.u32 %v5660, 7
        %v5662 = vsub.s32 %v5659, %v5661
        %v5663 = vrot.slane %v5649, %v5662
        %v5664 = vcombine.low %v5656, %v5663
        %v5665 = vcombine.low %v2966, %v2968
        %v5666 = vcombine.low %v2976, %v2984
        %v5668 = vunpack.c.l.s4 1983009808
        %v5669 = vunpack.c.0.s8 %v5668
        %v5670 = vlaneseq
        %v5671 = vshrl.u32 %v5670, 7
        %v5672 = vsub.s32 %v5669, %v5671
        %v5673 = vrot.slane %v5665, %v5672
        %v5675 = vunpack.c.l.s4 1983009808
        %v5676 = vunpack.c.0.s8 %v5675
        %v5677 = vlaneseq
        %v5678 = vshrl.u32 %v5677, 7
        %v5679 = vsub.s32 %v5676, %v5678
        %v5680 = vrot.slane %v5666, %v5679
        %v5681 = vcombine.low %v5673, %v5680
        %v5682 = vcombine.low %v2983, %v2985
        %v5683 = vcombine.low %v2993, %v3001
        %v5685 = vunpack.c.l.s4 1983009808
        %v5686 = vunpack.c.0.s8 %v5685
        %v5687 = vlaneseq
        %v5688 = vshrl.u32 %v5687, 7
        %v5689 = vsub.s32 %v5686, %v5688
        %v5690 = vrot.slane %v5682, %v5689
        %v5692 = vunpack.c.l.s4 1983009808
        %v5693 = vunpack.c.0.s8 %v5692
        %v5694 = vlaneseq
        %v5695 = vshrl.u32 %v5694, 7
        %v5696 = vsub.s32 %v5693, %v5695
        %v5697 = vrot.slane %v5683, %v5696
        %v5698 = vcombine.low %v5690, %v5697
        %v5699 = vcombine.low %v3002, %v3010
        %v5700 = vcombine.low %v3018, %v3017
        %v5702 = vunpack.c.l.s4 1983009808
        %v5703 = vunpack.c.0.s8 %v5702
        %v5704 = vlaneseq
        %v5705 = vshrl.u32 %v5704, 7
        %v5706 = vsub.s32 %v5703, %v5705
        %v5707 = vrot.slane %v5699, %v5706
        %v5709 = vunpack.c.l.s4 1983009808
        %v5710 = vunpack.c.0.s8 %v5709
        %v5711 = vlaneseq
        %v5712 = vshrl.u32 %v5711, 7
        %v5713 = vsub.s32 %v5710, %v5712
        %v5714 = vrot.slane %v5700, %v5713
        %v5715 = vcombine.low %v5707, %v5714
        %v5716 = vcombine.low %v3019, %v3027
        %v5717 = vcombine.low %v3035, %v3034
        %v5719 = vunpack.c.l.s4 1983009808
        %v5720 = vunpack.c.0.s8 %v5719
        %v5721 = vlaneseq
        %v5722 = vshrl.u32 %v5721, 7
        %v5723 = vsub.s32 %v5720, %v5722
        %v5724 = vrot.slane %v5716, %v5723
        %v5726 = vunpack.c.l.s4 1983009808
        %v5727 = vunpack.c.0.s8 %v5726
        %v5728 = vlaneseq
        %v5729 = vshrl.u32 %v5728, 7
        %v5730 = vsub.s32 %v5727, %v5729
        %v5731 = vrot.slane %v5717, %v5730
        %v5732 = vcombine.low %v5724, %v5731
        %v5733 = vcombine.low %v3044, %v3052
        %v5734 = vcombine.low %v3051, %v3053
        %v5736 = vunpack.c.l.s4 1983009808
        %v5737 = vunpack.c.0.s8 %v5736
        %v5738 = vlaneseq
        %v5739 = vshrl.u32 %v5738, 7
        %v5740 = vsub.s32 %v5737, %v5739
        %v5741 = vrot.slane %v5733, %v5740
        %v5743 = vunpack.c.l.s4 1983009808
        %v5744 = vunpack.c.0.s8 %v5743
        %v5745 = vlaneseq
        %v5746 = vshrl.u32 %v5745, 7
        %v5747 = vsub.s32 %v5744, %v5746
        %v5748 = vrot.slane %v5734, %v5747
        %v5749 = vcombine.low %v5741, %v5748
        %v5750 = vcombine.low %v3061, %v3069
        %v5751 = vcombine.low %v3068, %v3070
        %v5753 = vunpack.c.l.s4 1983009808
        %v5754 = vunpack.c.0.s8 %v5753
        %v5755 = vlaneseq
        %v5756 = vshrl.u32 %v5755, 7
        %v5757 = vsub.s32 %v5754, %v5756
        %v5758 = vrot.slane %v5750, %v5757
        %v5760 = vunpack.c.l.s4 1983009808
        %v5761 = vunpack.c.0.s8 %v5760
        %v5762 = vlaneseq
        %v5763 = vshrl.u32 %v5762, 7
        %v5764 = vsub.s32 %v5761, %v5763
        %v5765 = vrot.slane %v5751, %v5764
        %v5766 = vcombine.low %v5758, %v5765
        %v5767 = vcombine.low %v3086, %v3085
        %v5768 = vcombine.low %v3087, %v3095
        %v5770 = vunpack.c.l.s4 1983009808
        %v5771 = vunpack.c.0.s8 %v5770
        %v5772 = vlaneseq
        %v5773 = vshrl.u32 %v5772, 7
        %v5774 = vsub.s32 %v5771, %v5773
        %v5775 = vrot.slane %v5767, %v5774
        %v5777 = vunpack.c.l.s4 1983009808
        %v5778 = vunpack.c.0.s8 %v5777
        %v5779 = vlaneseq
        %v5780 = vshrl.u32 %v5779, 7
        %v5781 = vsub.s32 %v5778, %v5780
        %v5782 = vrot.slane %v5768, %v5781
        %v5783 = vcombine.low %v5775, %v5782
        %v5784 = vcombine.low %v3103, %v3102
        %v5785 = vcombine.low %v3104, %v3112
        %v5787 = vunpack.c.l.s4 1983009808
        %v5788 = vunpack.c.0.s8 %v5787
        %v5789 = vlaneseq
        %v5790 = vshrl.u32 %v5789, 7
        %v5791 = vsub.s32 %v5788, %v5790
        %v5792 = vrot.slane %v5784, %v5791
        %v5794 = vunpack.c.l.s4 1983009808
        %v5795 = vunpack.c.0.s8 %v5794
        %v5796 = vlaneseq
        %v5797 = vshrl.u32 %v5796, 7
        %v5798 = vsub.s32 %v5795, %v5797
        %v5799 = vrot.slane %v5785, %v5798
        %v5800 = vcombine.low %v5792, %v5799
        %v5801 = vcombine.low %v3119, %v3121
        %v5802 = vcombine.low %v3129, %v3137
        %v5804 = vunpack.c.l.s4 1983009808
        %v5805 = vunpack.c.0.s8 %v5804
        %v5806 = vlaneseq
        %v5807 = vshrl.u32 %v5806, 7
        %v5808 = vsub.s32 %v5805, %v5807
        %v5809 = vrot.slane %v5801, %v5808
        %v5811 = vunpack.c.l.s4 1983009808
        %v5812 = vunpack.c.0.s8 %v5811
        %v5813 = vlaneseq
        %v5814 = vshrl.u32 %v5813, 7
        %v5815 = vsub.s32 %v5812, %v5814
        %v5816 = vrot.slane %v5802, %v5815
        %v5817 = vcombine.low %v5809, %v5816
        %v5818 = vcombine.low %v3136, %v3138
        %v5819 = vcombine.low %v3146, %v3154
        %v5821 = vunpack.c.l.s4 1983009808
        %v5822 = vunpack.c.0.s8 %v5821
        %v5823 = vlaneseq
        %v5824 = vshrl.u32 %v5823, 7
        %v5825 = vsub.s32 %v5822, %v5824
        %v5826 = vrot.slane %v5818, %v5825
        %v5828 = vunpack.c.l.s4 1983009808
        %v5829 = vunpack.c.0.s8 %v5828
        %v5830 = vlaneseq
        %v5831 = vshrl.u32 %v5830, 7
        %v5832 = vsub.s32 %v5829, %v5831
        %v5833 = vrot.slane %v5819, %v5832
        %v5834 = vcombine.low %v5826, %v5833
        %v5835 = vcombine.low %v3155, %v3163
        %v5836 = vcombine.low %v3171, %v3170
        %v5838 = vunpack.c.l.s4 1983009808
        %v5839 = vunpack.c.0.s8 %v5838
        %v5840 = vlaneseq
        %v5841 = vshrl.u32 %v5840, 7
        %v5842 = vsub.s32 %v5839, %v5841
        %v5843 = vrot.slane %v5835, %v5842
        %v5845 = vunpack.c.l.s4 1983009808
        %v5846 = vunpack.c.0.s8 %v5845
        %v5847 = vlaneseq
        %v5848 = vshrl.u32 %v5847, 7
        %v5849 = vsub.s32 %v5846, %v5848
        %v5850 = vrot.slane %v5836, %v5849
        %v5851 = vcombine.low %v5843, %v5850
        %v5852 = vcombine.low %v3172, %v3180
        %v5853 = vcombine.low %v3188, %v3187
        %v5855 = vunpack.c.l.s4 1983009808
        %v5856 = vunpack.c.0.s8 %v5855
        %v5857 = vlaneseq
        %v5858 = vshrl.u32 %v5857, 7
        %v5859 = vsub.s32 %v5856, %v5858
        %v5860 = vrot.slane %v5852, %v5859
        %v5862 = vunpack.c.l.s4 1983009808
        %v5863 = vunpack.c.0.s8 %v5862
        %v5864 = vlaneseq
        %v5865 = vshrl.u32 %v5864, 7
        %v5866 = vsub.s32 %v5863, %v5865
        %v5867 = vrot.slane %v5853, %v5866
        %v5868 = vcombine.low %v5860, %v5867
        %v5869 = vcombine.low %v3197, %v3205
        %v5870 = vcombine.low %v3204, %v3206
        %v5872 = vunpack.c.l.s4 1983009808
        %v5873 = vunpack.c.0.s8 %v5872
        %v5874 = vlaneseq
        %v5875 = vshrl.u32 %v5874, 7
        %v5876 = vsub.s32 %v5873, %v5875
        %v5877 = vrot.slane %v5869, %v5876
        %v5879 = vunpack.c.l.s4 1983009808
        %v5880 = vunpack.c.0.s8 %v5879
        %v5881 = vlaneseq
        %v5882 = vshrl.u32 %v5881, 7
        %v5883 = vsub.s32 %v5880, %v5882
        %v5884 = vrot.slane %v5870, %v5883
        %v5885 = vcombine.low %v5877, %v5884
        %v5886 = vcombine.low %v3214, %v3222
        %v5887 = vcombine.low %v3221, %v3223
        %v5889 = vunpack.c.l.s4 1983009808
        %v5890 = vunpack.c.0.s8 %v5889
        %v5891 = vlaneseq
        %v5892 = vshrl.u32 %v5891, 7
        %v5893 = vsub.s32 %v5890, %v5892
        %v5894 = vrot.slane %v5886, %v5893
        %v5896 = vunpack.c.l.s4 1983009808
        %v5897 = vunpack.c.0.s8 %v5896
        %v5898 = vlaneseq
        %v5899 = vshrl.u32 %v5898, 7
        %v5900 = vsub.s32 %v5897, %v5899
        %v5901 = vrot.slane %v5887, %v5900
        %v5902 = vcombine.low %v5894, %v5901
        %v5903 = vcombine.low %v3239, %v3238
        %v5904 = vcombine.low %v3240, %v3248
        %v5906 = vunpack.c.l.s4 1983009808
        %v5907 = vunpack.c.0.s8 %v5906
        %v5908 = vlaneseq
        %v5909 = vshrl.u32 %v5908, 7
        %v5910 = vsub.s32 %v5907, %v5909
        %v5911 = vrot.slane %v5903, %v5910
        %v5913 = vunpack.c.l.s4 1983009808
        %v5914 = vunpack.c.0.s8 %v5913
        %v5915 = vlaneseq
        %v5916 = vshrl.u32 %v5915, 7
        %v5917 = vsub.s32 %v5914, %v5916
        %v5918 = vrot.slane %v5904, %v5917
        %v5919 = vcombine.low %v5911, %v5918
        %v5920 = vcombine.low %v3256, %v3255
        %v5921 = vcombine.low %v3257, %v3265
        %v5923 = vunpack.c.l.s4 1983009808
        %v5924 = vunpack.c.0.s8 %v5923
        %v5925 = vlaneseq
        %v5926 = vshrl.u32 %v5925, 7
        %v5927 = vsub.s32 %v5924, %v5926
        %v5928 = vrot.slane %v5920, %v5927
        %v5930 = vunpack.c.l.s4 1983009808
        %v5931 = vunpack.c.0.s8 %v5930
        %v5932 = vlaneseq
        %v5933 = vshrl.u32 %v5932, 7
        %v5934 = vsub.s32 %v5931, %v5933
        %v5935 = vrot.slane %v5921, %v5934
        %v5936 = vcombine.low %v5928, %v5935
        %v5937 = vcombine.low %v3272, %v3274
        %v5938 = vcombine.low %v3282, %v3290
        %v5940 = vunpack.c.l.s4 1983009808
        %v5941 = vunpack.c.0.s8 %v5940
        %v5942 = vlaneseq
        %v5943 = vshrl.u32 %v5942, 7
        %v5944 = vsub.s32 %v5941, %v5943
        %v5945 = vrot.slane %v5937, %v5944
        %v5947 = vunpack.c.l.s4 1983009808
        %v5948 = vunpack.c.0.s8 %v5947
        %v5949 = vlaneseq
        %v5950 = vshrl.u32 %v5949, 7
        %v5951 = vsub.s32 %v5948, %v5950
        %v5952 = vrot.slane %v5938, %v5951
        %v5953 = vcombine.low %v5945, %v5952
        %v5954 = vcombine.low %v3289, %v3291
        %v5955 = vcombine.low %v3299, %v3307
        %v5957 = vunpack.c.l.s4 1983009808
        %v5958 = vunpack.c.0.s8 %v5957
        %v5959 = vlaneseq
        %v5960 = vshrl.u32 %v5959, 7
        %v5961 = vsub.s32 %v5958, %v5960
        %v5962 = vrot.slane %v5954, %v5961
        %v5964 = vunpack.c.l.s4 1983009808
        %v5965 = vunpack.c.0.s8 %v5964
        %v5966 = vlaneseq
        %v5967 = vshrl.u32 %v5966, 7
        %v5968 = vsub.s32 %v5965, %v5967
        %v5969 = vrot.slane %v5955, %v5968
        %v5970 = vcombine.low %v5962, %v5969
        %v5971 = vcombine.low %v3308, %v3316
        %v5972 = vcombine.low %v3324, %v3323
        %v5974 = vunpack.c.l.s4 1983009808
        %v5975 = vunpack.c.0.s8 %v5974
        %v5976 = vlaneseq
        %v5977 = vshrl.u32 %v5976, 7
        %v5978 = vsub.s32 %v5975, %v5977
        %v5979 = vrot.slane %v5971, %v5978
        %v5981 = vunpack.c.l.s4 1983009808
        %v5982 = vunpack.c.0.s8 %v5981
        %v5983 = vlaneseq
        %v5984 = vshrl.u32 %v5983, 7
        %v5985 = vsub.s32 %v5982, %v5984
        %v5986 = vrot.slane %v5972, %v5985
        %v5987 = vcombine.low %v5979, %v5986
        %v5988 = vcombine.low %v3325, %v3333
        %v5989 = vcombine.low %v3341, %v3340
        %v5991 = vunpack.c.l.s4 1983009808
        %v5992 = vunpack.c.0.s8 %v5991
        %v5993 = vlaneseq
        %v5994 = vshrl.u32 %v5993, 7
        %v5995 = vsub.s32 %v5992, %v5994
        %v5996 = vrot.slane %v5988, %v5995
        %v5998 = vunpack.c.l.s4 1983009808
        %v5999 = vunpack.c.0.s8 %v5998
        %v6000 = vlaneseq
        %v6001 = vshrl.u32 %v6000, 7
        %v6002 = vsub.s32 %v5999, %v6001
        %v6003 = vrot.slane %v5989, %v6002
        %v6004 = vcombine.low %v5996, %v6003
        %v6005 = vcombine.low %v3350, %v3358
        %v6006 = vcombine.low %v3357, %v3359
        %v6008 = vunpack.c.l.s4 1983009808
        %v6009 = vunpack.c.0.s8 %v6008
        %v6010 = vlaneseq
        %v6011 = vshrl.u32 %v6010, 7
        %v6012 = vsub.s32 %v6009, %v6011
        %v6013 = vrot.slane %v6005, %v6012
        %v6015 = vunpack.c.l.s4 1983009808
        %v6016 = vunpack.c.0.s8 %v6015
        %v6017 = vlaneseq
        %v6018 = vshrl.u32 %v6017, 7
        %v6019 = vsub.s32 %v6016, %v6018
        %v6020 = vrot.slane %v6006, %v6019
        %v6021 = vcombine.low %v6013, %v6020
        %v6022 = vcombine.low %v3367, %v3375
        %v6023 = vcombine.low %v3374, %v3376
        %v6025 = vunpack.c.l.s4 1983009808
        %v6026 = vunpack.c.0.s8 %v6025
        %v6027 = vlaneseq
        %v6028 = vshrl.u32 %v6027, 7
        %v6029 = vsub.s32 %v6026, %v6028
        %v6030 = vrot.slane %v6022, %v6029
        %v6032 = vunpack.c.l.s4 1983009808
        %v6033 = vunpack.c.0.s8 %v6032
        %v6034 = vlaneseq
        %v6035 = vshrl.u32 %v6034, 7
        %v6036 = vsub.s32 %v6033, %v6035
        %v6037 = vrot.slane %v6023, %v6036
        %v6038 = vcombine.low %v6030, %v6037
        %v6071 = vpack.c.bf16 %v5528, %v5511
        %v6072 = vpack.c.bf16 %v5562, %v5545
        %v6073 = vpack.c.bf16 %v5596, %v5579
        %v6074 = vpack.c.bf16 %v5630, %v5613
        %v6075 = vpack.c.bf16 %v5664, %v5647
        %v6076 = vpack.c.bf16 %v5698, %v5681
        %v6077 = vpack.c.bf16 %v5732, %v5715
        %v6078 = vpack.c.bf16 %v5766, %v5749
        %v6079 = vpack.c.bf16 %v5800, %v5783
        %v6080 = vpack.c.bf16 %v5834, %v5817
        %v6081 = vpack.c.bf16 %v5868, %v5851
        %v6082 = vpack.c.bf16 %v5902, %v5885
        %v6083 = vpack.c.bf16 %v5936, %v5919
        %v6084 = vpack.c.bf16 %v5970, %v5953
        %v6085 = vpack.c.bf16 %v6004, %v5987
        %v6086 = vpack.c.bf16 %v6038, %v6021
        %s6087 = scalar_lea.vmem %s5, 128
        %v6088 = vld [vmem:[%s6087] sm:$0xf]
        %v6089 = vld [vmem:[%s6087 + $0x4] sm:$0xf]
        %v6090 = vld [vmem:[%s6087 + $0x8] sm:$0xf]
        %v6091 = vld [vmem:[%s6087 + $0xc] sm:$0xf]
        %v6092 = vld [vmem:[%s6087 + $0x10] sm:$0xf]
        %v6093 = vld [vmem:[%s6087 + $0x14] sm:$0xf]
        %v6094 = vld [vmem:[%s6087 + $0x18] sm:$0xf]
        %v6095 = vld [vmem:[%s6087 + $0x1c] sm:$0xf]
        %v6096 = vld [vmem:[%s6087 + $0x20] sm:$0xf]
        %v6097 = vld [vmem:[%s6087 + $0x24] sm:$0xf]
        %v6098 = vld [vmem:[%s6087 + $0x28] sm:$0xf]
        %v6099 = vld [vmem:[%s6087 + $0x2c] sm:$0xf]
        %v6100 = vld [vmem:[%s6087 + $0x30] sm:$0xf]
        %v6101 = vld [vmem:[%s6087 + $0x34] sm:$0xf]
        %v6102 = vld [vmem:[%s6087 + $0x38] sm:$0xf]
        %v6103 = vld [vmem:[%s6087 + $0x3c] sm:$0xf]
        %v6120 = vunpack.c.l.b16 %v6088
        %v6121 = vunpack.c.l.b16 %v6089
        %v6122 = vunpack.c.l.b16 %v6090
        %v6123 = vunpack.c.l.b16 %v6091
        %v6124 = vunpack.c.l.b16 %v6092
        %v6125 = vunpack.c.l.b16 %v6093
        %v6126 = vunpack.c.l.b16 %v6094
        %v6127 = vunpack.c.l.b16 %v6095
        %v6128 = vunpack.c.l.b16 %v6096
        %v6129 = vunpack.c.l.b16 %v6097
        %v6130 = vunpack.c.l.b16 %v6098
        %v6131 = vunpack.c.l.b16 %v6099
        %v6132 = vunpack.c.l.b16 %v6100
        %v6133 = vunpack.c.l.b16 %v6101
        %v6134 = vunpack.c.l.b16 %v6102
        %v6135 = vunpack.c.l.b16 %v6103
        %v6136 = vpack.c.b16 %v6121, %v6120
        %v6137 = vpack.c.b16 %v6123, %v6122
        %v6138 = vpack.c.b16 %v6125, %v6124
        %v6139 = vpack.c.b16 %v6127, %v6126
        %v6140 = vpack.c.b16 %v6129, %v6128
        %v6141 = vpack.c.b16 %v6131, %v6130
        %v6142 = vpack.c.b16 %v6133, %v6132
        %v6143 = vpack.c.b16 %v6135, %v6134
        %6152 = vmatprep.subr.bf16.mxu0 0
        %6153 = vmatpush1.bf16.msra.mxu0 %v6143
        %6154 = vmatprep.subr.bf16.mxu0 0
        %6155 = vmatpush1.bf16.msra.mxu0 %v6142
        %6156 = vmatprep.subr.bf16.mxu0 0
        %6157 = vmatpush1.bf16.msra.mxu0 %v6141
        %6158 = vmatprep.subr.bf16.mxu0 0
        %6159 = vmatpush1.bf16.msra.mxu0 %v6140
        %6160 = vmatprep.subr.bf16.mxu0 0
        %6161 = vmatpush1.bf16.msra.mxu0 %v6139
        %6162 = vmatprep.subr.bf16.mxu0 0
        %6163 = vmatpush1.bf16.msra.mxu0 %v6138
        %6164 = vmatprep.subr.bf16.mxu0 0
        %6165 = vmatpush1.bf16.msra.mxu0 %v6137
        %6166 = vmatprep.subr.bf16.mxu0 0
        %6167 = vmatpush1.bf16.msra.mxu0 %v6136
        %6168 = vmatprep.subr.bf16.mxu0 0
        %6169 = vmatpush2.bf16.msra.mxu0 0
        %6170 = vmatprep.subr.bf16.mxu0 0
        %6171 = vmatpush2.bf16.msra.mxu0 0
        %6172 = vmatprep.subr.bf16.mxu0 0
        %6173 = vmatpush2.bf16.msra.mxu0 0
        %6174 = vmatprep.subr.bf16.mxu0 0
        %6175 = vmatpush2.bf16.msra.mxu0 0
        %6176 = vmatprep.subr.bf16.mxu0 0
        %6177 = vmatpush2.bf16.msra.mxu0 0
        %6178 = vmatprep.subr.bf16.mxu0 0
        %6179 = vmatpush2.bf16.msra.mxu0 0
        %6180 = vmatprep.subr.bf16.mxu0 0
        %6181 = vmatpush2.bf16.msra.mxu0 0
        %6182 = vmatprep.subr.bf16.mxu0 0
        %6183 = vmatpush2.bf16.msra.mxu0 0
        %6184 = vmatprep.mubr.bf16.mxu0 0
        %6185 = vmatmul.mubr.bf16.gmra.mxu0 %v6071
        %v6186 = vpop.f32.mrf.mxu0
        %v6187 = vadd.f32 0.0, %v6186
        %v6188 = vpop.f32.mrf.mxu0
        %v6189 = vpop.f32.mrf.mxu0
        %v6190 = vadd.f32 0.0, %v6189
        %v6191 = vpop.f32.mrf.mxu0
        %6192 = vmatprep.mubr.bf16.mxu0 0
        %6193 = vmatmul.mubr.bf16.gmra.mxu0 %v6072
        %v6194 = vpop.f32.mrf.mxu0
        %v6195 = vadd.f32 0.0, %v6194
        %v6196 = vpop.f32.mrf.mxu0
        %v6197 = vpop.f32.mrf.mxu0
        %v6198 = vadd.f32 0.0, %v6197
        %v6199 = vpop.f32.mrf.mxu0
        %6200 = vmatprep.mubr.bf16.mxu0 0
        %6201 = vmatmul.mubr.bf16.gmra.mxu0 %v6073
        %v6202 = vpop.f32.mrf.mxu0
        %v6203 = vadd.f32 0.0, %v6202
        %v6204 = vpop.f32.mrf.mxu0
        %v6205 = vpop.f32.mrf.mxu0
        %v6206 = vadd.f32 0.0, %v6205
        %v6207 = vpop.f32.mrf.mxu0
        %6208 = vmatprep.mubr.bf16.mxu0 0
        %6209 = vmatmul.mubr.bf16.gmra.mxu0 %v6074
        %v6210 = vpop.f32.mrf.mxu0
        %v6211 = vadd.f32 0.0, %v6210
        %v6212 = vpop.f32.mrf.mxu0
        %v6213 = vpop.f32.mrf.mxu0
        %v6214 = vadd.f32 0.0, %v6213
        %v6215 = vpop.f32.mrf.mxu0
        %6216 = vmatprep.mubr.bf16.mxu0 0
        %6217 = vmatmul.mubr.bf16.gmra.mxu0 %v6075
        %v6218 = vpop.f32.mrf.mxu0
        %v6219 = vadd.f32 0.0, %v6218
        %v6220 = vpop.f32.mrf.mxu0
        %v6221 = vpop.f32.mrf.mxu0
        %v6222 = vadd.f32 0.0, %v6221
        %v6223 = vpop.f32.mrf.mxu0
        %6224 = vmatprep.mubr.bf16.mxu0 0
        %6225 = vmatmul.mubr.bf16.gmra.mxu0 %v6076
        %v6226 = vpop.f32.mrf.mxu0
        %v6227 = vadd.f32 0.0, %v6226
        %v6228 = vpop.f32.mrf.mxu0
        %v6229 = vpop.f32.mrf.mxu0
        %v6230 = vadd.f32 0.0, %v6229
        %v6231 = vpop.f32.mrf.mxu0
        %6232 = vmatprep.mubr.bf16.mxu0 0
        %6233 = vmatmul.mubr.bf16.gmra.mxu0 %v6077
        %v6234 = vpop.f32.mrf.mxu0
        %v6235 = vadd.f32 0.0, %v6234
        %v6236 = vpop.f32.mrf.mxu0
        %v6237 = vpop.f32.mrf.mxu0
        %v6238 = vadd.f32 0.0, %v6237
        %v6239 = vpop.f32.mrf.mxu0
        %6240 = vmatprep.mubr.bf16.mxu0 0
        %6241 = vmatmul.mubr.bf16.gmra.mxu0 %v6078
        %v6242 = vpop.f32.mrf.mxu0
        %v6243 = vadd.f32 0.0, %v6242
        %v6244 = vpop.f32.mrf.mxu0
        %v6245 = vpop.f32.mrf.mxu0
        %v6246 = vadd.f32 0.0, %v6245
        %v6247 = vpop.f32.mrf.mxu0
        %6248 = vmatprep.mubr.bf16.mxu0 0
        %6249 = vmatmul.mubr.bf16.gmra.mxu0 %v6079
        %v6250 = vpop.f32.mrf.mxu0
        %v6251 = vadd.f32 0.0, %v6250
        %v6252 = vpop.f32.mrf.mxu0
        %v6253 = vpop.f32.mrf.mxu0
        %v6254 = vadd.f32 0.0, %v6253
        %v6255 = vpop.f32.mrf.mxu0
        %6256 = vmatprep.mubr.bf16.mxu0 0
        %6257 = vmatmul.mubr.bf16.gmra.mxu0 %v6080
        %v6258 = vpop.f32.mrf.mxu0
        %v6259 = vadd.f32 0.0, %v6258
        %v6260 = vpop.f32.mrf.mxu0
        %v6261 = vpop.f32.mrf.mxu0
        %v6262 = vadd.f32 0.0, %v6261
        %v6263 = vpop.f32.mrf.mxu0
        %6264 = vmatprep.mubr.bf16.mxu0 0
        %6265 = vmatmul.mubr.bf16.gmra.mxu0 %v6081
        %v6266 = vpop.f32.mrf.mxu0
        %v6267 = vadd.f32 0.0, %v6266
        %v6268 = vpop.f32.mrf.mxu0
        %v6269 = vpop.f32.mrf.mxu0
        %v6270 = vadd.f32 0.0, %v6269
        %v6271 = vpop.f32.mrf.mxu0
        %6272 = vmatprep.mubr.bf16.mxu0 0
        %6273 = vmatmul.mubr.bf16.gmra.mxu0 %v6082
        %v6274 = vpop.f32.mrf.mxu0
        %v6275 = vadd.f32 0.0, %v6274
        %v6276 = vpop.f32.mrf.mxu0
        %v6277 = vpop.f32.mrf.mxu0
        %v6278 = vadd.f32 0.0, %v6277
        %v6279 = vpop.f32.mrf.mxu0
        %6280 = vmatprep.mubr.bf16.mxu0 0
        %6281 = vmatmul.mubr.bf16.gmra.mxu0 %v6083
        %v6282 = vpop.f32.mrf.mxu0
        %v6283 = vadd.f32 0.0, %v6282
        %v6284 = vpop.f32.mrf.mxu0
        %v6285 = vpop.f32.mrf.mxu0
        %v6286 = vadd.f32 0.0, %v6285
        %v6287 = vpop.f32.mrf.mxu0
        %6288 = vmatprep.mubr.bf16.mxu0 0
        %6289 = vmatmul.mubr.bf16.gmra.mxu0 %v6084
        %v6290 = vpop.f32.mrf.mxu0
        %v6291 = vadd.f32 0.0, %v6290
        %v6292 = vpop.f32.mrf.mxu0
        %v6293 = vpop.f32.mrf.mxu0
        %v6294 = vadd.f32 0.0, %v6293
        %v6295 = vpop.f32.mrf.mxu0
        %6296 = vmatprep.mubr.bf16.mxu0 0
        %6297 = vmatmul.mubr.bf16.gmra.mxu0 %v6085
        %v6298 = vpop.f32.mrf.mxu0
        %v6299 = vadd.f32 0.0, %v6298
        %v6300 = vpop.f32.mrf.mxu0
        %v6301 = vpop.f32.mrf.mxu0
        %v6302 = vadd.f32 0.0, %v6301
        %v6303 = vpop.f32.mrf.mxu0
        %6304 = vmatprep.mubr.bf16.mxu0 0
        %6305 = vmatmul.mubr.bf16.gmra.mxu0 %v6086
        %v6306 = vpop.f32.mrf.mxu0
        %v6307 = vadd.f32 0.0, %v6306
        %v6308 = vpop.f32.mrf.mxu0
        %v6309 = vpop.f32.mrf.mxu0
        %v6310 = vadd.f32 0.0, %v6309
        %v6311 = vpop.f32.mrf.mxu0
        %6312 = vdwg.mxu0
        %v6313 = vadd.f32 %v5369, %v6187
        %v6314 = vadd.f32 %v5372, %v6190
        %v6315 = vadd.f32 %v5377, %v6195
        %v6316 = vadd.f32 %v5380, %v6198
        %v6317 = vadd.f32 %v5385, %v6203
        %v6318 = vadd.f32 %v5388, %v6206
        %v6319 = vadd.f32 %v5393, %v6211
        %v6320 = vadd.f32 %v5396, %v6214
        %v6321 = vadd.f32 %v5401, %v6219
        %v6322 = vadd.f32 %v5404, %v6222
        %v6323 = vadd.f32 %v5409, %v6227
        %v6324 = vadd.f32 %v5412, %v6230
        %v6325 = vadd.f32 %v5417, %v6235
        %v6326 = vadd.f32 %v5420, %v6238
        %v6327 = vadd.f32 %v5425, %v6243
        %v6328 = vadd.f32 %v5428, %v6246
        %v6329 = vadd.f32 %v5433, %v6251
        %v6330 = vadd.f32 %v5436, %v6254
        %v6331 = vadd.f32 %v5441, %v6259
        %v6332 = vadd.f32 %v5444, %v6262
        %v6333 = vadd.f32 %v5449, %v6267
        %v6334 = vadd.f32 %v5452, %v6270
        %v6335 = vadd.f32 %v5457, %v6275
        %v6336 = vadd.f32 %v5460, %v6278
        %v6337 = vadd.f32 %v5465, %v6283
        %v6338 = vadd.f32 %v5468, %v6286
        %v6339 = vadd.f32 %v5473, %v6291
        %v6340 = vadd.f32 %v5476, %v6294
        %v6341 = vadd.f32 %v5481, %v6299
        %v6342 = vadd.f32 %v5484, %v6302
        %v6343 = vadd.f32 %v5489, %v6307
        %v6344 = vadd.f32 %v5492, %v6310
        %v6345 = vcombine.low %v3384, %v3392
        %v6346 = vcombine.low %v3391, %v3393
        %v6348 = vunpack.c.l.s4 1983009808
        %v6349 = vunpack.c.0.s8 %v6348
        %v6350 = vlaneseq
        %v6351 = vshrl.u32 %v6350, 7
        %v6352 = vsub.s32 %v6349, %v6351
        %v6353 = vrot.slane %v6345, %v6352
        %v6355 = vunpack.c.l.s4 1983009808
        %v6356 = vunpack.c.0.s8 %v6355
        %v6357 = vlaneseq
        %v6358 = vshrl.u32 %v6357, 7
        %v6359 = vsub.s32 %v6356, %v6358
        %v6360 = vrot.slane %v6346, %v6359
        %v6361 = vcombine.low %v6353, %v6360
        %v6362 = vcombine.low %v3401, %v3409
        %v6363 = vcombine.low %v3408, %v3410
        %v6365 = vunpack.c.l.s4 1983009808
        %v6366 = vunpack.c.0.s8 %v6365
        %v6367 = vlaneseq
        %v6368 = vshrl.u32 %v6367, 7
        %v6369 = vsub.s32 %v6366, %v6368
        %v6370 = vrot.slane %v6362, %v6369
        %v6372 = vunpack.c.l.s4 1983009808
        %v6373 = vunpack.c.0.s8 %v6372
        %v6374 = vlaneseq
        %v6375 = vshrl.u32 %v6374, 7
        %v6376 = vsub.s32 %v6373, %v6375
        %v6377 = vrot.slane %v6363, %v6376
        %v6378 = vcombine.low %v6370, %v6377
        %v6381 = vpack.c.bf16 %v6378, %v6361
        %s6382 = scalar_lea.vmem %s5, 192
        %v6383 = vld [vmem:[%s6382] sm:$0xf]
        %v6384 = vld [vmem:[%s6382 + $0x4] sm:$0xf]
        %v6385 = vld [vmem:[%s6382 + $0x8] sm:$0xf]
        %v6386 = vld [vmem:[%s6382 + $0xc] sm:$0xf]
        %v6387 = vld [vmem:[%s6382 + $0x10] sm:$0xf]
        %v6388 = vld [vmem:[%s6382 + $0x14] sm:$0xf]
        %v6389 = vld [vmem:[%s6382 + $0x18] sm:$0xf]
        %v6390 = vld [vmem:[%s6382 + $0x1c] sm:$0xf]
        %v6391 = vld [vmem:[%s6382 + $0x20] sm:$0xf]
        %v6392 = vld [vmem:[%s6382 + $0x24] sm:$0xf]
        %v6393 = vld [vmem:[%s6382 + $0x28] sm:$0xf]
        %v6394 = vld [vmem:[%s6382 + $0x2c] sm:$0xf]
        %v6395 = vld [vmem:[%s6382 + $0x30] sm:$0xf]
        %v6396 = vld [vmem:[%s6382 + $0x34] sm:$0xf]
        %v6397 = vld [vmem:[%s6382 + $0x38] sm:$0xf]
        %v6398 = vld [vmem:[%s6382 + $0x3c] sm:$0xf]
        %v6415 = vunpack.c.l.b16 %v6383
        %v6416 = vunpack.c.l.b16 %v6384
        %v6417 = vunpack.c.l.b16 %v6385
        %v6418 = vunpack.c.l.b16 %v6386
        %v6419 = vunpack.c.l.b16 %v6387
        %v6420 = vunpack.c.l.b16 %v6388
        %v6421 = vunpack.c.l.b16 %v6389
        %v6422 = vunpack.c.l.b16 %v6390
        %v6423 = vunpack.c.l.b16 %v6391
        %v6424 = vunpack.c.l.b16 %v6392
        %v6425 = vunpack.c.l.b16 %v6393
        %v6426 = vunpack.c.l.b16 %v6394
        %v6427 = vunpack.c.l.b16 %v6395
        %v6428 = vunpack.c.l.b16 %v6396
        %v6429 = vunpack.c.l.b16 %v6397
        %v6430 = vunpack.c.l.b16 %v6398
        %v6431 = vpack.c.b16 %v6416, %v6415
        %v6432 = vpack.c.b16 %v6418, %v6417
        %v6433 = vpack.c.b16 %v6420, %v6419
        %v6434 = vpack.c.b16 %v6422, %v6421
        %v6435 = vpack.c.b16 %v6424, %v6423
        %v6436 = vpack.c.b16 %v6426, %v6425
        %v6437 = vpack.c.b16 %v6428, %v6427
        %v6438 = vpack.c.b16 %v6430, %v6429
        %6447 = vmatprep.subr.bf16.mxu0 0
        %6448 = vmatpush1.bf16.msra.mxu0 %v6438
        %6449 = vmatprep.subr.bf16.mxu0 0
        %6450 = vmatpush1.bf16.msra.mxu0 %v6437
        %6451 = vmatprep.subr.bf16.mxu0 0
        %6452 = vmatpush1.bf16.msra.mxu0 %v6436
        %6453 = vmatprep.subr.bf16.mxu0 0
        %6454 = vmatpush1.bf16.msra.mxu0 %v6435
        %6455 = vmatprep.subr.bf16.mxu0 0
        %6456 = vmatpush1.bf16.msra.mxu0 %v6434
        %6457 = vmatprep.subr.bf16.mxu0 0
        %6458 = vmatpush1.bf16.msra.mxu0 %v6433
        %6459 = vmatprep.subr.bf16.mxu0 0
        %6460 = vmatpush1.bf16.msra.mxu0 %v6432
        %6461 = vmatprep.subr.bf16.mxu0 0
        %6462 = vmatpush1.bf16.msra.mxu0 %v6431
        %6463 = vmatprep.subr.bf16.mxu0 0
        %6464 = vmatpush2.bf16.msra.mxu0 0
        %6465 = vmatprep.subr.bf16.mxu0 0
        %6466 = vmatpush2.bf16.msra.mxu0 0
        %6467 = vmatprep.subr.bf16.mxu0 0
        %6468 = vmatpush2.bf16.msra.mxu0 0
        %6469 = vmatprep.subr.bf16.mxu0 0
        %6470 = vmatpush2.bf16.msra.mxu0 0
        %6471 = vmatprep.subr.bf16.mxu0 0
        %6472 = vmatpush2.bf16.msra.mxu0 0
        %6473 = vmatprep.subr.bf16.mxu0 0
        %6474 = vmatpush2.bf16.msra.mxu0 0
        %6475 = vmatprep.subr.bf16.mxu0 0
        %6476 = vmatpush2.bf16.msra.mxu0 0
        %6477 = vmatprep.subr.bf16.mxu0 0
        %6478 = vmatpush2.bf16.msra.mxu0 0
        %6479 = vmatprep.mubr.bf16.mxu0 0
        %6480 = vmatmul.mubr.bf16.gmra.mxu0 %v4030
        %v6481 = vpop.f32.mrf.mxu0
        %v6482 = vadd.f32 0.0, %v6481
        %v6483 = vpop.f32.mrf.mxu0
        %v6484 = vpop.f32.mrf.mxu0
        %v6485 = vadd.f32 0.0, %v6484
        %v6486 = vpop.f32.mrf.mxu0
        %6487 = vmatprep.mubr.bf16.mxu0 0
        %6488 = vmatmul.mubr.bf16.gmra.mxu0 %v4031
        %v6489 = vpop.f32.mrf.mxu0
        %v6490 = vadd.f32 0.0, %v6489
        %v6491 = vpop.f32.mrf.mxu0
        %v6492 = vpop.f32.mrf.mxu0
        %v6493 = vadd.f32 0.0, %v6492
        %v6494 = vpop.f32.mrf.mxu0
        %6495 = vmatprep.mubr.bf16.mxu0 0
        %6496 = vmatmul.mubr.bf16.gmra.mxu0 %v4032
        %v6497 = vpop.f32.mrf.mxu0
        %v6498 = vadd.f32 0.0, %v6497
        %v6499 = vpop.f32.mrf.mxu0
        %v6500 = vpop.f32.mrf.mxu0
        %v6501 = vadd.f32 0.0, %v6500
        %v6502 = vpop.f32.mrf.mxu0
        %6503 = vmatprep.mubr.bf16.mxu0 0
        %6504 = vmatmul.mubr.bf16.gmra.mxu0 %v4033
        %v6505 = vpop.f32.mrf.mxu0
        %v6506 = vadd.f32 0.0, %v6505
        %v6507 = vpop.f32.mrf.mxu0
        %v6508 = vpop.f32.mrf.mxu0
        %v6509 = vadd.f32 0.0, %v6508
        %v6510 = vpop.f32.mrf.mxu0
        %6511 = vmatprep.mubr.bf16.mxu0 0
        %6512 = vmatmul.mubr.bf16.gmra.mxu0 %v4034
        %v6513 = vpop.f32.mrf.mxu0
        %v6514 = vadd.f32 0.0, %v6513
        %v6515 = vpop.f32.mrf.mxu0
        %v6516 = vpop.f32.mrf.mxu0
        %v6517 = vadd.f32 0.0, %v6516
        %v6518 = vpop.f32.mrf.mxu0
        %6519 = vmatprep.mubr.bf16.mxu0 0
        %6520 = vmatmul.mubr.bf16.gmra.mxu0 %v4035
        %v6521 = vpop.f32.mrf.mxu0
        %v6522 = vadd.f32 0.0, %v6521
        %v6523 = vpop.f32.mrf.mxu0
        %v6524 = vpop.f32.mrf.mxu0
        %v6525 = vadd.f32 0.0, %v6524
        %v6526 = vpop.f32.mrf.mxu0
        %6527 = vmatprep.mubr.bf16.mxu0 0
        %6528 = vmatmul.mubr.bf16.gmra.mxu0 %v4036
        %v6529 = vpop.f32.mrf.mxu0
        %v6530 = vadd.f32 0.0, %v6529
        %v6531 = vpop.f32.mrf.mxu0
        %v6532 = vpop.f32.mrf.mxu0
        %v6533 = vadd.f32 0.0, %v6532
        %v6534 = vpop.f32.mrf.mxu0
        %6535 = vmatprep.mubr.bf16.mxu0 0
        %6536 = vmatmul.mubr.bf16.gmra.mxu0 %v4037
        %v6537 = vpop.f32.mrf.mxu0
        %v6538 = vadd.f32 0.0, %v6537
        %v6539 = vpop.f32.mrf.mxu0
        %v6540 = vpop.f32.mrf.mxu0
        %v6541 = vadd.f32 0.0, %v6540
        %v6542 = vpop.f32.mrf.mxu0
        %6543 = vmatprep.mubr.bf16.mxu0 0
        %6544 = vmatmul.mubr.bf16.gmra.mxu0 %v4038
        %v6545 = vpop.f32.mrf.mxu0
        %v6546 = vadd.f32 0.0, %v6545
        %v6547 = vpop.f32.mrf.mxu0
        %v6548 = vpop.f32.mrf.mxu0
        %v6549 = vadd.f32 0.0, %v6548
        %v6550 = vpop.f32.mrf.mxu0
        %6551 = vmatprep.mubr.bf16.mxu0 0
        %6552 = vmatmul.mubr.bf16.gmra.mxu0 %v4039
        %v6553 = vpop.f32.mrf.mxu0
        %v6554 = vadd.f32 0.0, %v6553
        %v6555 = vpop.f32.mrf.mxu0
        %v6556 = vpop.f32.mrf.mxu0
        %v6557 = vadd.f32 0.0, %v6556
        %v6558 = vpop.f32.mrf.mxu0
        %6559 = vmatprep.mubr.bf16.mxu0 0
        %6560 = vmatmul.mubr.bf16.gmra.mxu0 %v4040
        %v6561 = vpop.f32.mrf.mxu0
        %v6562 = vadd.f32 0.0, %v6561
        %v6563 = vpop.f32.mrf.mxu0
        %v6564 = vpop.f32.mrf.mxu0
        %v6565 = vadd.f32 0.0, %v6564
        %v6566 = vpop.f32.mrf.mxu0
        %6567 = vmatprep.mubr.bf16.mxu0 0
        %6568 = vmatmul.mubr.bf16.gmra.mxu0 %v4041
        %v6569 = vpop.f32.mrf.mxu0
        %v6570 = vadd.f32 0.0, %v6569
        %v6571 = vpop.f32.mrf.mxu0
        %v6572 = vpop.f32.mrf.mxu0
        %v6573 = vadd.f32 0.0, %v6572
        %v6574 = vpop.f32.mrf.mxu0
        %6575 = vmatprep.mubr.bf16.mxu0 0
        %6576 = vmatmul.mubr.bf16.gmra.mxu0 %v4042
        %v6577 = vpop.f32.mrf.mxu0
        %v6578 = vadd.f32 0.0, %v6577
        %v6579 = vpop.f32.mrf.mxu0
        %v6580 = vpop.f32.mrf.mxu0
        %v6581 = vadd.f32 0.0, %v6580
        %v6582 = vpop.f32.mrf.mxu0
        %6583 = vmatprep.mubr.bf16.mxu0 0
        %6584 = vmatmul.mubr.bf16.gmra.mxu0 %v4043
        %v6585 = vpop.f32.mrf.mxu0
        %v6586 = vadd.f32 0.0, %v6585
        %v6587 = vpop.f32.mrf.mxu0
        %v6588 = vpop.f32.mrf.mxu0
        %v6589 = vadd.f32 0.0, %v6588
        %v6590 = vpop.f32.mrf.mxu0
        %6591 = vmatprep.mubr.bf16.mxu0 0
        %6592 = vmatmul.mubr.bf16.gmra.mxu0 %v4044
        %v6593 = vpop.f32.mrf.mxu0
        %v6594 = vadd.f32 0.0, %v6593
        %v6595 = vpop.f32.mrf.mxu0
        %v6596 = vpop.f32.mrf.mxu0
        %v6597 = vadd.f32 0.0, %v6596
        %v6598 = vpop.f32.mrf.mxu0
        %6599 = vmatprep.mubr.bf16.mxu0 0
        %6600 = vmatmul.mubr.bf16.gmra.mxu0 %v6381
        %v6601 = vpop.f32.mrf.mxu0
        %v6602 = vadd.f32 0.0, %v6601
        %v6603 = vpop.f32.mrf.mxu0
        %v6604 = vpop.f32.mrf.mxu0
        %v6605 = vadd.f32 0.0, %v6604
        %v6606 = vpop.f32.mrf.mxu0
        %6607 = vdwg.mxu0
        %v6608 = vadd.f32 %v6313, %v6482
        %v6609 = vadd.f32 %v6314, %v6485
        %v6610 = vadd.f32 %v6315, %v6490
        %v6611 = vadd.f32 %v6316, %v6493
        %v6612 = vadd.f32 %v6317, %v6498
        %v6613 = vadd.f32 %v6318, %v6501
        %v6614 = vadd.f32 %v6319, %v6506
        %v6615 = vadd.f32 %v6320, %v6509
        %v6616 = vadd.f32 %v6321, %v6514
        %v6617 = vadd.f32 %v6322, %v6517
        %v6618 = vadd.f32 %v6323, %v6522
        %v6619 = vadd.f32 %v6324, %v6525
        %v6620 = vadd.f32 %v6325, %v6530
        %v6621 = vadd.f32 %v6326, %v6533
        %v6622 = vadd.f32 %v6327, %v6538
        %v6623 = vadd.f32 %v6328, %v6541
        %v6624 = vadd.f32 %v6329, %v6546
        %v6625 = vadd.f32 %v6330, %v6549
        %v6626 = vadd.f32 %v6331, %v6554
        %v6627 = vadd.f32 %v6332, %v6557
        %v6628 = vadd.f32 %v6333, %v6562
        %v6629 = vadd.f32 %v6334, %v6565
        %v6630 = vadd.f32 %v6335, %v6570
        %v6631 = vadd.f32 %v6336, %v6573
        %v6632 = vadd.f32 %v6337, %v6578
        %v6633 = vadd.f32 %v6338, %v6581
        %v6634 = vadd.f32 %v6339, %v6586
        %v6635 = vadd.f32 %v6340, %v6589
        %v6636 = vadd.f32 %v6341, %v6594
        %v6637 = vadd.f32 %v6342, %v6597
        %v6638 = vadd.f32 %v6343, %v6602
        %v6639 = vadd.f32 %v6344, %v6605
        %v6640 = vrot.slane %v3384, 7
        %v6641 = vrot.slane %v6640, 2
        %v6642 = vrot.slane %v3392, 7
        %v6643 = vsel %vm4067, %v6641, %v6642
        %v6644 = vrot.slane %v6642, 2
        %v6645 = vrot.slane %v3391, 7
        %v6646 = vsel %vm4067, %v6644, %v6645
        %v6647 = vrot.slane %v6645, 2
        %v6648 = vrot.slane %v3393, 7
        %v6649 = vsel %vm4067, %v6647, %v6648
        %v6650 = vrot.slane %v6648, 2
        %v6651 = vrot.slane %v3401, 7
        %v6652 = vsel %vm4067, %v6650, %v6651
        %v6653 = vrot.slane %v6651, 2
        %v6654 = vrot.slane %v3409, 7
        %v6655 = vsel %vm4067, %v6653, %v6654
        %v6656 = vrot.slane %v6654, 2
        %v6657 = vrot.slane %v3408, 7
        %v6658 = vsel %vm4067, %v6656, %v6657
        %v6659 = vrot.slane %v6657, 2
        %v6660 = vrot.slane %v3410, 7
        %v6661 = vsel %vm4067, %v6659, %v6660
        %v6662 = vrot.slane %v6660, 2
        %v6663 = vrot.slane %v3418, 7
        %v6664 = vsel %vm4067, %v6662, %v6663
        %v6665 = vcombine.low %v6643, %v6646
        %v6666 = vcombine.low %v6649, %v6652
        %v6668 = vunpack.c.l.s4 1983009808
        %v6669 = vunpack.c.0.s8 %v6668
        %v6670 = vlaneseq
        %v6671 = vshrl.u32 %v6670, 7
        %v6672 = vsub.s32 %v6669, %v6671
        %v6673 = vrot.slane %v6665, %v6672
        %v6675 = vunpack.c.l.s4 1983009808
        %v6676 = vunpack.c.0.s8 %v6675
        %v6677 = vlaneseq
        %v6678 = vshrl.u32 %v6677, 7
        %v6679 = vsub.s32 %v6676, %v6678
        %v6680 = vrot.slane %v6666, %v6679
        %v6681 = vcombine.low %v6673, %v6680
        %v6682 = vcombine.low %v6655, %v6658
        %v6683 = vcombine.low %v6661, %v6664
        %v6685 = vunpack.c.l.s4 1983009808
        %v6686 = vunpack.c.0.s8 %v6685
        %v6687 = vlaneseq
        %v6688 = vshrl.u32 %v6687, 7
        %v6689 = vsub.s32 %v6686, %v6688
        %v6690 = vrot.slane %v6682, %v6689
        %v6692 = vunpack.c.l.s4 1983009808
        %v6693 = vunpack.c.0.s8 %v6692
        %v6694 = vlaneseq
        %v6695 = vshrl.u32 %v6694, 7
        %v6696 = vsub.s32 %v6693, %v6695
        %v6697 = vrot.slane %v6683, %v6696
        %v6698 = vcombine.low %v6690, %v6697
        %v6701 = vpack.c.bf16 %v6698, %v6681
        %s6702 = scalar_lea.vmem %s5, 256
        %v6703 = vld [vmem:[%s6702] sm:$0xf]
        %v6704 = vld [vmem:[%s6702 + $0x4] sm:$0xf]
        %v6705 = vld [vmem:[%s6702 + $0x8] sm:$0xf]
        %v6706 = vld [vmem:[%s6702 + $0xc] sm:$0xf]
        %v6707 = vld [vmem:[%s6702 + $0x10] sm:$0xf]
        %v6708 = vld [vmem:[%s6702 + $0x14] sm:$0xf]
        %v6709 = vld [vmem:[%s6702 + $0x18] sm:$0xf]
        %v6710 = vld [vmem:[%s6702 + $0x1c] sm:$0xf]
        %v6711 = vld [vmem:[%s6702 + $0x20] sm:$0xf]
        %v6712 = vld [vmem:[%s6702 + $0x24] sm:$0xf]
        %v6713 = vld [vmem:[%s6702 + $0x28] sm:$0xf]
        %v6714 = vld [vmem:[%s6702 + $0x2c] sm:$0xf]
        %v6715 = vld [vmem:[%s6702 + $0x30] sm:$0xf]
        %v6716 = vld [vmem:[%s6702 + $0x34] sm:$0xf]
        %v6717 = vld [vmem:[%s6702 + $0x38] sm:$0xf]
        %v6718 = vld [vmem:[%s6702 + $0x3c] sm:$0xf]
        %v6735 = vunpack.c.l.b16 %v6703
        %v6736 = vunpack.c.l.b16 %v6704
        %v6737 = vunpack.c.l.b16 %v6705
        %v6738 = vunpack.c.l.b16 %v6706
        %v6739 = vunpack.c.l.b16 %v6707
        %v6740 = vunpack.c.l.b16 %v6708
        %v6741 = vunpack.c.l.b16 %v6709
        %v6742 = vunpack.c.l.b16 %v6710
        %v6743 = vunpack.c.l.b16 %v6711
        %v6744 = vunpack.c.l.b16 %v6712
        %v6745 = vunpack.c.l.b16 %v6713
        %v6746 = vunpack.c.l.b16 %v6714
        %v6747 = vunpack.c.l.b16 %v6715
        %v6748 = vunpack.c.l.b16 %v6716
        %v6749 = vunpack.c.l.b16 %v6717
        %v6750 = vunpack.c.l.b16 %v6718
        %v6751 = vpack.c.b16 %v6736, %v6735
        %v6752 = vpack.c.b16 %v6738, %v6737
        %v6753 = vpack.c.b16 %v6740, %v6739
        %v6754 = vpack.c.b16 %v6742, %v6741
        %v6755 = vpack.c.b16 %v6744, %v6743
        %v6756 = vpack.c.b16 %v6746, %v6745
        %v6757 = vpack.c.b16 %v6748, %v6747
        %v6758 = vpack.c.b16 %v6750, %v6749
        %6767 = vmatprep.subr.bf16.mxu0 0
        %6768 = vmatpush1.bf16.msra.mxu0 %v6758
        %6769 = vmatprep.subr.bf16.mxu0 0
        %6770 = vmatpush1.bf16.msra.mxu0 %v6757
        %6771 = vmatprep.subr.bf16.mxu0 0
        %6772 = vmatpush1.bf16.msra.mxu0 %v6756
        %6773 = vmatprep.subr.bf16.mxu0 0
        %6774 = vmatpush1.bf16.msra.mxu0 %v6755
        %6775 = vmatprep.subr.bf16.mxu0 0
        %6776 = vmatpush1.bf16.msra.mxu0 %v6754
        %6777 = vmatprep.subr.bf16.mxu0 0
        %6778 = vmatpush1.bf16.msra.mxu0 %v6753
        %6779 = vmatprep.subr.bf16.mxu0 0
        %6780 = vmatpush1.bf16.msra.mxu0 %v6752
        %6781 = vmatprep.subr.bf16.mxu0 0
        %6782 = vmatpush1.bf16.msra.mxu0 %v6751
        %6783 = vmatprep.subr.bf16.mxu0 0
        %6784 = vmatpush2.bf16.msra.mxu0 0
        %6785 = vmatprep.subr.bf16.mxu0 0
        %6786 = vmatpush2.bf16.msra.mxu0 0
        %6787 = vmatprep.subr.bf16.mxu0 0
        %6788 = vmatpush2.bf16.msra.mxu0 0
        %6789 = vmatprep.subr.bf16.mxu0 0
        %6790 = vmatpush2.bf16.msra.mxu0 0
        %6791 = vmatprep.subr.bf16.mxu0 0
        %6792 = vmatpush2.bf16.msra.mxu0 0
        %6793 = vmatprep.subr.bf16.mxu0 0
        %6794 = vmatpush2.bf16.msra.mxu0 0
        %6795 = vmatprep.subr.bf16.mxu0 0
        %6796 = vmatpush2.bf16.msra.mxu0 0
        %6797 = vmatprep.subr.bf16.mxu0 0
        %6798 = vmatpush2.bf16.msra.mxu0 0
        %6799 = vmatprep.mubr.bf16.mxu0 0
        %6800 = vmatmul.mubr.bf16.gmra.mxu0 %v5045
        %v6801 = vpop.f32.mrf.mxu0
        %v6802 = vadd.f32 0.0, %v6801
        %v6803 = vpop.f32.mrf.mxu0
        %v6804 = vpop.f32.mrf.mxu0
        %v6805 = vadd.f32 0.0, %v6804
        %v6806 = vpop.f32.mrf.mxu0
        %6807 = vmatprep.mubr.bf16.mxu0 0
        %6808 = vmatmul.mubr.bf16.gmra.mxu0 %v5046
        %v6809 = vpop.f32.mrf.mxu0
        %v6810 = vadd.f32 0.0, %v6809
        %v6811 = vpop.f32.mrf.mxu0
        %v6812 = vpop.f32.mrf.mxu0
        %v6813 = vadd.f32 0.0, %v6812
        %v6814 = vpop.f32.mrf.mxu0
        %6815 = vmatprep.mubr.bf16.mxu0 0
        %6816 = vmatmul.mubr.bf16.gmra.mxu0 %v5047
        %v6817 = vpop.f32.mrf.mxu0
        %v6818 = vadd.f32 0.0, %v6817
        %v6819 = vpop.f32.mrf.mxu0
        %v6820 = vpop.f32.mrf.mxu0
        %v6821 = vadd.f32 0.0, %v6820
        %v6822 = vpop.f32.mrf.mxu0
        %6823 = vmatprep.mubr.bf16.mxu0 0
        %6824 = vmatmul.mubr.bf16.gmra.mxu0 %v5048
        %v6825 = vpop.f32.mrf.mxu0
        %v6826 = vadd.f32 0.0, %v6825
        %v6827 = vpop.f32.mrf.mxu0
        %v6828 = vpop.f32.mrf.mxu0
        %v6829 = vadd.f32 0.0, %v6828
        %v6830 = vpop.f32.mrf.mxu0
        %6831 = vmatprep.mubr.bf16.mxu0 0
        %6832 = vmatmul.mubr.bf16.gmra.mxu0 %v5049
        %v6833 = vpop.f32.mrf.mxu0
        %v6834 = vadd.f32 0.0, %v6833
        %v6835 = vpop.f32.mrf.mxu0
        %v6836 = vpop.f32.mrf.mxu0
        %v6837 = vadd.f32 0.0, %v6836
        %v6838 = vpop.f32.mrf.mxu0
        %6839 = vmatprep.mubr.bf16.mxu0 0
        %6840 = vmatmul.mubr.bf16.gmra.mxu0 %v5050
        %v6841 = vpop.f32.mrf.mxu0
        %v6842 = vadd.f32 0.0, %v6841
        %v6843 = vpop.f32.mrf.mxu0
        %v6844 = vpop.f32.mrf.mxu0
        %v6845 = vadd.f32 0.0, %v6844
        %v6846 = vpop.f32.mrf.mxu0
        %6847 = vmatprep.mubr.bf16.mxu0 0
        %6848 = vmatmul.mubr.bf16.gmra.mxu0 %v5051
        %v6849 = vpop.f32.mrf.mxu0
        %v6850 = vadd.f32 0.0, %v6849
        %v6851 = vpop.f32.mrf.mxu0
        %v6852 = vpop.f32.mrf.mxu0
        %v6853 = vadd.f32 0.0, %v6852
        %v6854 = vpop.f32.mrf.mxu0
        %6855 = vmatprep.mubr.bf16.mxu0 0
        %6856 = vmatmul.mubr.bf16.gmra.mxu0 %v5052
        %v6857 = vpop.f32.mrf.mxu0
        %v6858 = vadd.f32 0.0, %v6857
        %v6859 = vpop.f32.mrf.mxu0
        %v6860 = vpop.f32.mrf.mxu0
        %v6861 = vadd.f32 0.0, %v6860
        %v6862 = vpop.f32.mrf.mxu0
        %6863 = vmatprep.mubr.bf16.mxu0 0
        %6864 = vmatmul.mubr.bf16.gmra.mxu0 %v5053
        %v6865 = vpop.f32.mrf.mxu0
        %v6866 = vadd.f32 0.0, %v6865
        %v6867 = vpop.f32.mrf.mxu0
        %v6868 = vpop.f32.mrf.mxu0
        %v6869 = vadd.f32 0.0, %v6868
        %v6870 = vpop.f32.mrf.mxu0
        %6871 = vmatprep.mubr.bf16.mxu0 0
        %6872 = vmatmul.mubr.bf16.gmra.mxu0 %v5054
        %v6873 = vpop.f32.mrf.mxu0
        %v6874 = vadd.f32 0.0, %v6873
        %v6875 = vpop.f32.mrf.mxu0
        %v6876 = vpop.f32.mrf.mxu0
        %v6877 = vadd.f32 0.0, %v6876
        %v6878 = vpop.f32.mrf.mxu0
        %6879 = vmatprep.mubr.bf16.mxu0 0
        %6880 = vmatmul.mubr.bf16.gmra.mxu0 %v5055
        %v6881 = vpop.f32.mrf.mxu0
        %v6882 = vadd.f32 0.0, %v6881
        %v6883 = vpop.f32.mrf.mxu0
        %v6884 = vpop.f32.mrf.mxu0
        %v6885 = vadd.f32 0.0, %v6884
        %v6886 = vpop.f32.mrf.mxu0
        %6887 = vmatprep.mubr.bf16.mxu0 0
        %6888 = vmatmul.mubr.bf16.gmra.mxu0 %v5056
        %v6889 = vpop.f32.mrf.mxu0
        %v6890 = vadd.f32 0.0, %v6889
        %v6891 = vpop.f32.mrf.mxu0
        %v6892 = vpop.f32.mrf.mxu0
        %v6893 = vadd.f32 0.0, %v6892
        %v6894 = vpop.f32.mrf.mxu0
        %6895 = vmatprep.mubr.bf16.mxu0 0
        %6896 = vmatmul.mubr.bf16.gmra.mxu0 %v5057
        %v6897 = vpop.f32.mrf.mxu0
        %v6898 = vadd.f32 0.0, %v6897
        %v6899 = vpop.f32.mrf.mxu0
        %v6900 = vpop.f32.mrf.mxu0
        %v6901 = vadd.f32 0.0, %v6900
        %v6902 = vpop.f32.mrf.mxu0
        %6903 = vmatprep.mubr.bf16.mxu0 0
        %6904 = vmatmul.mubr.bf16.gmra.mxu0 %v5058
        %v6905 = vpop.f32.mrf.mxu0
        %v6906 = vadd.f32 0.0, %v6905
        %v6907 = vpop.f32.mrf.mxu0
        %v6908 = vpop.f32.mrf.mxu0
        %v6909 = vadd.f32 0.0, %v6908
        %v6910 = vpop.f32.mrf.mxu0
        %6911 = vmatprep.mubr.bf16.mxu0 0
        %6912 = vmatmul.mubr.bf16.gmra.mxu0 %v5059
        %v6913 = vpop.f32.mrf.mxu0
        %v6914 = vadd.f32 0.0, %v6913
        %v6915 = vpop.f32.mrf.mxu0
        %v6916 = vpop.f32.mrf.mxu0
        %v6917 = vadd.f32 0.0, %v6916
        %v6918 = vpop.f32.mrf.mxu0
        %6919 = vmatprep.mubr.bf16.mxu0 0
        %6920 = vmatmul.mubr.bf16.gmra.mxu0 %v6701
        %v6921 = vpop.f32.mrf.mxu0
        %v6922 = vadd.f32 0.0, %v6921
        %v6923 = vpop.f32.mrf.mxu0
        %v6924 = vpop.f32.mrf.mxu0
        %v6925 = vadd.f32 0.0, %v6924
        %v6926 = vpop.f32.mrf.mxu0
        %6927 = vdwg.mxu0
        %v6928 = vadd.f32 %v6608, %v6802
        %v6929 = vadd.f32 %v6609, %v6805
        %v6930 = vadd.f32 %v6610, %v6810
        %v6931 = vadd.f32 %v6611, %v6813
        %v6932 = vadd.f32 %v6612, %v6818
        %v6933 = vadd.f32 %v6613, %v6821
        %v6934 = vadd.f32 %v6614, %v6826
        %v6935 = vadd.f32 %v6615, %v6829
        %v6936 = vadd.f32 %v6616, %v6834
        %v6937 = vadd.f32 %v6617, %v6837
        %v6938 = vadd.f32 %v6618, %v6842
        %v6939 = vadd.f32 %v6619, %v6845
        %v6940 = vadd.f32 %v6620, %v6850
        %v6941 = vadd.f32 %v6621, %v6853
        %v6942 = vadd.f32 %v6622, %v6858
        %v6943 = vadd.f32 %v6623, %v6861
        %v6944 = vadd.f32 %v6624, %v6866
        %v6945 = vadd.f32 %v6625, %v6869
        %v6946 = vadd.f32 %v6626, %v6874
        %v6947 = vadd.f32 %v6627, %v6877
        %v6948 = vadd.f32 %v6628, %v6882
        %v6949 = vadd.f32 %v6629, %v6885
        %v6950 = vadd.f32 %v6630, %v6890
        %v6951 = vadd.f32 %v6631, %v6893
        %v6952 = vadd.f32 %v6632, %v6898
        %v6953 = vadd.f32 %v6633, %v6901
        %v6954 = vadd.f32 %v6634, %v6906
        %v6955 = vadd.f32 %v6635, %v6909
        %v6956 = vadd.f32 %v6636, %v6914
        %v6957 = vadd.f32 %v6637, %v6917
        %v6958 = vadd.f32 %v6638, %v6922
        %v6959 = vadd.f32 %v6639, %v6925
        %v6960 = vcombine.low %v3392, %v3391
        %v6961 = vcombine.low %v3393, %v3401
        %v6963 = vunpack.c.l.s4 1983009808
        %v6964 = vunpack.c.0.s8 %v6963
        %v6965 = vlaneseq
        %v6966 = vshrl.u32 %v6965, 7
        %v6967 = vsub.s32 %v6964, %v6966
        %v6968 = vrot.slane %v6960, %v6967
        %v6970 = vunpack.c.l.s4 1983009808
        %v6971 = vunpack.c.0.s8 %v6970
        %v6972 = vlaneseq
        %v6973 = vshrl.u32 %v6972, 7
        %v6974 = vsub.s32 %v6971, %v6973
        %v6975 = vrot.slane %v6961, %v6974
        %v6976 = vcombine.low %v6968, %v6975
        %v6977 = vcombine.low %v3409, %v3408
        %v6978 = vcombine.low %v3410, %v3418
        %v6980 = vunpack.c.l.s4 1983009808
        %v6981 = vunpack.c.0.s8 %v6980
        %v6982 = vlaneseq
        %v6983 = vshrl.u32 %v6982, 7
        %v6984 = vsub.s32 %v6981, %v6983
        %v6985 = vrot.slane %v6977, %v6984
        %v6987 = vunpack.c.l.s4 1983009808
        %v6988 = vunpack.c.0.s8 %v6987
        %v6989 = vlaneseq
        %v6990 = vshrl.u32 %v6989, 7
        %v6991 = vsub.s32 %v6988, %v6990
        %v6992 = vrot.slane %v6978, %v6991
        %v6993 = vcombine.low %v6985, %v6992
        %v6996 = vpack.c.bf16 %v6993, %v6976
        %s6997 = scalar_lea.vmem %s5, 320
        %v6998 = vld [vmem:[%s6997] sm:$0xf]
        %v6999 = vld [vmem:[%s6997 + $0x4] sm:$0xf]
        %v7000 = vld [vmem:[%s6997 + $0x8] sm:$0xf]
        %v7001 = vld [vmem:[%s6997 + $0xc] sm:$0xf]
        %v7002 = vld [vmem:[%s6997 + $0x10] sm:$0xf]
        %v7003 = vld [vmem:[%s6997 + $0x14] sm:$0xf]
        %v7004 = vld [vmem:[%s6997 + $0x18] sm:$0xf]
        %v7005 = vld [vmem:[%s6997 + $0x1c] sm:$0xf]
        %v7006 = vld [vmem:[%s6997 + $0x20] sm:$0xf]
        %v7007 = vld [vmem:[%s6997 + $0x24] sm:$0xf]
        %v7008 = vld [vmem:[%s6997 + $0x28] sm:$0xf]
        %v7009 = vld [vmem:[%s6997 + $0x2c] sm:$0xf]
        %v7010 = vld [vmem:[%s6997 + $0x30] sm:$0xf]
        %v7011 = vld [vmem:[%s6997 + $0x34] sm:$0xf]
        %v7012 = vld [vmem:[%s6997 + $0x38] sm:$0xf]
        %v7013 = vld [vmem:[%s6997 + $0x3c] sm:$0xf]
        %v7030 = vunpack.c.l.b16 %v6998
        %v7031 = vunpack.c.l.b16 %v6999
        %v7032 = vunpack.c.l.b16 %v7000
        %v7033 = vunpack.c.l.b16 %v7001
        %v7034 = vunpack.c.l.b16 %v7002
        %v7035 = vunpack.c.l.b16 %v7003
        %v7036 = vunpack.c.l.b16 %v7004
        %v7037 = vunpack.c.l.b16 %v7005
        %v7038 = vunpack.c.l.b16 %v7006
        %v7039 = vunpack.c.l.b16 %v7007
        %v7040 = vunpack.c.l.b16 %v7008
        %v7041 = vunpack.c.l.b16 %v7009
        %v7042 = vunpack.c.l.b16 %v7010
        %v7043 = vunpack.c.l.b16 %v7011
        %v7044 = vunpack.c.l.b16 %v7012
        %v7045 = vunpack.c.l.b16 %v7013
        %v7046 = vpack.c.b16 %v7031, %v7030
        %v7047 = vpack.c.b16 %v7033, %v7032
        %v7048 = vpack.c.b16 %v7035, %v7034
        %v7049 = vpack.c.b16 %v7037, %v7036
        %v7050 = vpack.c.b16 %v7039, %v7038
        %v7051 = vpack.c.b16 %v7041, %v7040
        %v7052 = vpack.c.b16 %v7043, %v7042
        %v7053 = vpack.c.b16 %v7045, %v7044
        %7062 = vmatprep.subr.bf16.mxu0 0
        %7063 = vmatpush1.bf16.msra.mxu0 %v7053
        %7064 = vmatprep.subr.bf16.mxu0 0
        %7065 = vmatpush1.bf16.msra.mxu0 %v7052
        %7066 = vmatprep.subr.bf16.mxu0 0
        %7067 = vmatpush1.bf16.msra.mxu0 %v7051
        %7068 = vmatprep.subr.bf16.mxu0 0
        %7069 = vmatpush1.bf16.msra.mxu0 %v7050
        %7070 = vmatprep.subr.bf16.mxu0 0
        %7071 = vmatpush1.bf16.msra.mxu0 %v7049
        %7072 = vmatprep.subr.bf16.mxu0 0
        %7073 = vmatpush1.bf16.msra.mxu0 %v7048
        %7074 = vmatprep.subr.bf16.mxu0 0
        %7075 = vmatpush1.bf16.msra.mxu0 %v7047
        %7076 = vmatprep.subr.bf16.mxu0 0
        %7077 = vmatpush1.bf16.msra.mxu0 %v7046
        %7078 = vmatprep.subr.bf16.mxu0 0
        %7079 = vmatpush2.bf16.msra.mxu0 0
        %7080 = vmatprep.subr.bf16.mxu0 0
        %7081 = vmatpush2.bf16.msra.mxu0 0
        %7082 = vmatprep.subr.bf16.mxu0 0
        %7083 = vmatpush2.bf16.msra.mxu0 0
        %7084 = vmatprep.subr.bf16.mxu0 0
        %7085 = vmatpush2.bf16.msra.mxu0 0
        %7086 = vmatprep.subr.bf16.mxu0 0
        %7087 = vmatpush2.bf16.msra.mxu0 0
        %7088 = vmatprep.subr.bf16.mxu0 0
        %7089 = vmatpush2.bf16.msra.mxu0 0
        %7090 = vmatprep.subr.bf16.mxu0 0
        %7091 = vmatpush2.bf16.msra.mxu0 0
        %7092 = vmatprep.subr.bf16.mxu0 0
        %7093 = vmatpush2.bf16.msra.mxu0 0
        %7094 = vmatprep.mubr.bf16.mxu0 0
        %7095 = vmatmul.mubr.bf16.gmra.mxu0 %v6072
        %v7096 = vpop.f32.mrf.mxu0
        %v7097 = vadd.f32 0.0, %v7096
        %v7098 = vpop.f32.mrf.mxu0
        %v7099 = vpop.f32.mrf.mxu0
        %v7100 = vadd.f32 0.0, %v7099
        %v7101 = vpop.f32.mrf.mxu0
        %7102 = vmatprep.mubr.bf16.mxu0 0
        %7103 = vmatmul.mubr.bf16.gmra.mxu0 %v6073
        %v7104 = vpop.f32.mrf.mxu0
        %v7105 = vadd.f32 0.0, %v7104
        %v7106 = vpop.f32.mrf.mxu0
        %v7107 = vpop.f32.mrf.mxu0
        %v7108 = vadd.f32 0.0, %v7107
        %v7109 = vpop.f32.mrf.mxu0
        %7110 = vmatprep.mubr.bf16.mxu0 0
        %7111 = vmatmul.mubr.bf16.gmra.mxu0 %v6074
        %v7112 = vpop.f32.mrf.mxu0
        %v7113 = vadd.f32 0.0, %v7112
        %v7114 = vpop.f32.mrf.mxu0
        %v7115 = vpop.f32.mrf.mxu0
        %v7116 = vadd.f32 0.0, %v7115
        %v7117 = vpop.f32.mrf.mxu0
        %7118 = vmatprep.mubr.bf16.mxu0 0
        %7119 = vmatmul.mubr.bf16.gmra.mxu0 %v6075
        %v7120 = vpop.f32.mrf.mxu0
        %v7121 = vadd.f32 0.0, %v7120
        %v7122 = vpop.f32.mrf.mxu0
        %v7123 = vpop.f32.mrf.mxu0
        %v7124 = vadd.f32 0.0, %v7123
        %v7125 = vpop.f32.mrf.mxu0
        %7126 = vmatprep.mubr.bf16.mxu0 0
        %7127 = vmatmul.mubr.bf16.gmra.mxu0 %v6076
        %v7128 = vpop.f32.mrf.mxu0
        %v7129 = vadd.f32 0.0, %v7128
        %v7130 = vpop.f32.mrf.mxu0
        %v7131 = vpop.f32.mrf.mxu0
        %v7132 = vadd.f32 0.0, %v7131
        %v7133 = vpop.f32.mrf.mxu0
        %7134 = vmatprep.mubr.bf16.mxu0 0
        %7135 = vmatmul.mubr.bf16.gmra.mxu0 %v6077
        %v7136 = vpop.f32.mrf.mxu0
        %v7137 = vadd.f32 0.0, %v7136
        %v7138 = vpop.f32.mrf.mxu0
        %v7139 = vpop.f32.mrf.mxu0
        %v7140 = vadd.f32 0.0, %v7139
        %v7141 = vpop.f32.mrf.mxu0
        %7142 = vmatprep.mubr.bf16.mxu0 0
        %7143 = vmatmul.mubr.bf16.gmra.mxu0 %v6078
        %v7144 = vpop.f32.mrf.mxu0
        %v7145 = vadd.f32 0.0, %v7144
        %v7146 = vpop.f32.mrf.mxu0
        %v7147 = vpop.f32.mrf.mxu0
        %v7148 = vadd.f32 0.0, %v7147
        %v7149 = vpop.f32.mrf.mxu0
        %7150 = vmatprep.mubr.bf16.mxu0 0
        %7151 = vmatmul.mubr.bf16.gmra.mxu0 %v6079
        %v7152 = vpop.f32.mrf.mxu0
        %v7153 = vadd.f32 0.0, %v7152
        %v7154 = vpop.f32.mrf.mxu0
        %v7155 = vpop.f32.mrf.mxu0
        %v7156 = vadd.f32 0.0, %v7155
        %v7157 = vpop.f32.mrf.mxu0
        %7158 = vmatprep.mubr.bf16.mxu0 0
        %7159 = vmatmul.mubr.bf16.gmra.mxu0 %v6080
        %v7160 = vpop.f32.mrf.mxu0
        %v7161 = vadd.f32 0.0, %v7160
        %v7162 = vpop.f32.mrf.mxu0
        %v7163 = vpop.f32.mrf.mxu0
        %v7164 = vadd.f32 0.0, %v7163
        %v7165 = vpop.f32.mrf.mxu0
        %7166 = vmatprep.mubr.bf16.mxu0 0
        %7167 = vmatmul.mubr.bf16.gmra.mxu0 %v6081
        %v7168 = vpop.f32.mrf.mxu0
        %v7169 = vadd.f32 0.0, %v7168
        %v7170 = vpop.f32.mrf.mxu0
        %v7171 = vpop.f32.mrf.mxu0
        %v7172 = vadd.f32 0.0, %v7171
        %v7173 = vpop.f32.mrf.mxu0
        %7174 = vmatprep.mubr.bf16.mxu0 0
        %7175 = vmatmul.mubr.bf16.gmra.mxu0 %v6082
        %v7176 = vpop.f32.mrf.mxu0
        %v7177 = vadd.f32 0.0, %v7176
        %v7178 = vpop.f32.mrf.mxu0
        %v7179 = vpop.f32.mrf.mxu0
        %v7180 = vadd.f32 0.0, %v7179
        %v7181 = vpop.f32.mrf.mxu0
        %7182 = vmatprep.mubr.bf16.mxu0 0
        %7183 = vmatmul.mubr.bf16.gmra.mxu0 %v6083
        %v7184 = vpop.f32.mrf.mxu0
        %v7185 = vadd.f32 0.0, %v7184
        %v7186 = vpop.f32.mrf.mxu0
        %v7187 = vpop.f32.mrf.mxu0
        %v7188 = vadd.f32 0.0, %v7187
        %v7189 = vpop.f32.mrf.mxu0
        %7190 = vmatprep.mubr.bf16.mxu0 0
        %7191 = vmatmul.mubr.bf16.gmra.mxu0 %v6084
        %v7192 = vpop.f32.mrf.mxu0
        %v7193 = vadd.f32 0.0, %v7192
        %v7194 = vpop.f32.mrf.mxu0
        %v7195 = vpop.f32.mrf.mxu0
        %v7196 = vadd.f32 0.0, %v7195
        %v7197 = vpop.f32.mrf.mxu0
        %7198 = vmatprep.mubr.bf16.mxu0 0
        %7199 = vmatmul.mubr.bf16.gmra.mxu0 %v6085
        %v7200 = vpop.f32.mrf.mxu0
        %v7201 = vadd.f32 0.0, %v7200
        %v7202 = vpop.f32.mrf.mxu0
        %v7203 = vpop.f32.mrf.mxu0
        %v7204 = vadd.f32 0.0, %v7203
        %v7205 = vpop.f32.mrf.mxu0
        %7206 = vmatprep.mubr.bf16.mxu0 0
        %7207 = vmatmul.mubr.bf16.gmra.mxu0 %v6086
        %v7208 = vpop.f32.mrf.mxu0
        %v7209 = vadd.f32 0.0, %v7208
        %v7210 = vpop.f32.mrf.mxu0
        %v7211 = vpop.f32.mrf.mxu0
        %v7212 = vadd.f32 0.0, %v7211
        %v7213 = vpop.f32.mrf.mxu0
        %7214 = vmatprep.mubr.bf16.mxu0 0
        %7215 = vmatmul.mubr.bf16.gmra.mxu0 %v6996
        %v7216 = vpop.f32.mrf.mxu0
        %v7217 = vadd.f32 0.0, %v7216
        %v7218 = vpop.f32.mrf.mxu0
        %v7219 = vpop.f32.mrf.mxu0
        %v7220 = vadd.f32 0.0, %v7219
        %v7221 = vpop.f32.mrf.mxu0
        %7222 = vdwg.mxu0
        %v7223 = vadd.f32 %v6928, %v7097
        %v7224 = vadd.f32 %v6929, %v7100
        %v7225 = vadd.f32 %v6930, %v7105
        %v7226 = vadd.f32 %v6931, %v7108
        %v7227 = vadd.f32 %v6932, %v7113
        %v7228 = vadd.f32 %v6933, %v7116
        %v7229 = vadd.f32 %v6934, %v7121
        %v7230 = vadd.f32 %v6935, %v7124
        %v7231 = vadd.f32 %v6936, %v7129
        %v7232 = vadd.f32 %v6937, %v7132
        %v7233 = vadd.f32 %v6938, %v7137
        %v7234 = vadd.f32 %v6939, %v7140
        %v7235 = vadd.f32 %v6940, %v7145
        %v7236 = vadd.f32 %v6941, %v7148
        %v7237 = vadd.f32 %v6942, %v7153
        %v7238 = vadd.f32 %v6943, %v7156
        %v7239 = vadd.f32 %v6944, %v7161
        %v7240 = vadd.f32 %v6945, %v7164
        %v7241 = vadd.f32 %v6946, %v7169
        %v7242 = vadd.f32 %v6947, %v7172
        %v7243 = vadd.f32 %v6948, %v7177
        %v7244 = vadd.f32 %v6949, %v7180
        %v7245 = vadd.f32 %v6950, %v7185
        %v7246 = vadd.f32 %v6951, %v7188
        %v7247 = vadd.f32 %v6952, %v7193
        %v7248 = vadd.f32 %v6953, %v7196
        %v7249 = vadd.f32 %v6954, %v7201
        %v7250 = vadd.f32 %v6955, %v7204
        %v7251 = vadd.f32 %v6956, %v7209
        %v7252 = vadd.f32 %v6957, %v7212
        %v7253 = vadd.f32 %v6958, %v7217
        %v7254 = vadd.f32 %v6959, %v7220
        %v7255 = vcombine.low %v3426, %v3425
        %v7256 = vcombine.low %v3427, %v3435
        %v7258 = vunpack.c.l.s4 1983009808
        %v7259 = vunpack.c.0.s8 %v7258
        %v7260 = vlaneseq
        %v7261 = vshrl.u32 %v7260, 7
        %v7262 = vsub.s32 %v7259, %v7261
        %v7263 = vrot.slane %v7255, %v7262
        %v7265 = vunpack.c.l.s4 1983009808
        %v7266 = vunpack.c.0.s8 %v7265
        %v7267 = vlaneseq
        %v7268 = vshrl.u32 %v7267, 7
        %v7269 = vsub.s32 %v7266, %v7268
        %v7270 = vrot.slane %v7256, %v7269
        %v7271 = vcombine.low %v7263, %v7270
        %v7272 = vcombine.low %v3443, %v3442
        %v7273 = vcombine.low %v3444, %v3451
        %v7275 = vunpack.c.l.s4 1983009808
        %v7276 = vunpack.c.0.s8 %v7275
        %v7277 = vlaneseq
        %v7278 = vshrl.u32 %v7277, 7
        %v7279 = vsub.s32 %v7276, %v7278
        %v7280 = vrot.slane %v7272, %v7279
        %v7282 = vunpack.c.l.s4 1983009808
        %v7283 = vunpack.c.0.s8 %v7282
        %v7284 = vlaneseq
        %v7285 = vshrl.u32 %v7284, 7
        %v7286 = vsub.s32 %v7283, %v7285
        %v7287 = vrot.slane %v7273, %v7286
        %v7288 = vcombine.low %v7280, %v7287
        %v7291 = vpack.c.bf16 %v7288, %v7271
        %s7292 = scalar_lea.vmem %s5, 384
        %v7293 = vld [vmem:[%s7292] sm:$0xf]
        %v7294 = vld [vmem:[%s7292 + $0x4] sm:$0xf]
        %v7295 = vld [vmem:[%s7292 + $0x8] sm:$0xf]
        %v7296 = vld [vmem:[%s7292 + $0xc] sm:$0xf]
        %v7297 = vld [vmem:[%s7292 + $0x10] sm:$0xf]
        %v7298 = vld [vmem:[%s7292 + $0x14] sm:$0xf]
        %v7299 = vld [vmem:[%s7292 + $0x18] sm:$0xf]
        %v7300 = vld [vmem:[%s7292 + $0x1c] sm:$0xf]
        %v7301 = vld [vmem:[%s7292 + $0x20] sm:$0xf]
        %v7302 = vld [vmem:[%s7292 + $0x24] sm:$0xf]
        %v7303 = vld [vmem:[%s7292 + $0x28] sm:$0xf]
        %v7304 = vld [vmem:[%s7292 + $0x2c] sm:$0xf]
        %v7305 = vld [vmem:[%s7292 + $0x30] sm:$0xf]
        %v7306 = vld [vmem:[%s7292 + $0x34] sm:$0xf]
        %v7307 = vld [vmem:[%s7292 + $0x38] sm:$0xf]
        %v7308 = vld [vmem:[%s7292 + $0x3c] sm:$0xf]
        %v7325 = vunpack.c.l.b16 %v7293
        %v7326 = vunpack.c.l.b16 %v7294
        %v7327 = vunpack.c.l.b16 %v7295
        %v7328 = vunpack.c.l.b16 %v7296
        %v7329 = vunpack.c.l.b16 %v7297
        %v7330 = vunpack.c.l.b16 %v7298
        %v7331 = vunpack.c.l.b16 %v7299
        %v7332 = vunpack.c.l.b16 %v7300
        %v7333 = vunpack.c.l.b16 %v7301
        %v7334 = vunpack.c.l.b16 %v7302
        %v7335 = vunpack.c.l.b16 %v7303
        %v7336 = vunpack.c.l.b16 %v7304
        %v7337 = vunpack.c.l.b16 %v7305
        %v7338 = vunpack.c.l.b16 %v7306
        %v7339 = vunpack.c.l.b16 %v7307
        %v7340 = vunpack.c.l.b16 %v7308
        %v7341 = vpack.c.b16 %v7326, %v7325
        %v7342 = vpack.c.b16 %v7328, %v7327
        %v7343 = vpack.c.b16 %v7330, %v7329
        %v7344 = vpack.c.b16 %v7332, %v7331
        %v7345 = vpack.c.b16 %v7334, %v7333
        %v7346 = vpack.c.b16 %v7336, %v7335
        %v7347 = vpack.c.b16 %v7338, %v7337
        %v7348 = vpack.c.b16 %v7340, %v7339
        %7357 = vmatprep.subr.bf16.mxu0 0
        %7358 = vmatpush1.bf16.msra.mxu0 %v7348
        %7359 = vmatprep.subr.bf16.mxu0 0
        %7360 = vmatpush1.bf16.msra.mxu0 %v7347
        %7361 = vmatprep.subr.bf16.mxu0 0
        %7362 = vmatpush1.bf16.msra.mxu0 %v7346
        %7363 = vmatprep.subr.bf16.mxu0 0
        %7364 = vmatpush1.bf16.msra.mxu0 %v7345
        %7365 = vmatprep.subr.bf16.mxu0 0
        %7366 = vmatpush1.bf16.msra.mxu0 %v7344
        %7367 = vmatprep.subr.bf16.mxu0 0
        %7368 = vmatpush1.bf16.msra.mxu0 %v7343
        %7369 = vmatprep.subr.bf16.mxu0 0
        %7370 = vmatpush1.bf16.msra.mxu0 %v7342
        %7371 = vmatprep.subr.bf16.mxu0 0
        %7372 = vmatpush1.bf16.msra.mxu0 %v7341
        %7373 = vmatprep.subr.bf16.mxu0 0
        %7374 = vmatpush2.bf16.msra.mxu0 0
        %7375 = vmatprep.subr.bf16.mxu0 0
        %7376 = vmatpush2.bf16.msra.mxu0 0
        %7377 = vmatprep.subr.bf16.mxu0 0
        %7378 = vmatpush2.bf16.msra.mxu0 0
        %7379 = vmatprep.subr.bf16.mxu0 0
        %7380 = vmatpush2.bf16.msra.mxu0 0
        %7381 = vmatprep.subr.bf16.mxu0 0
        %7382 = vmatpush2.bf16.msra.mxu0 0
        %7383 = vmatprep.subr.bf16.mxu0 0
        %7384 = vmatpush2.bf16.msra.mxu0 0
        %7385 = vmatprep.subr.bf16.mxu0 0
        %7386 = vmatpush2.bf16.msra.mxu0 0
        %7387 = vmatprep.subr.bf16.mxu0 0
        %7388 = vmatpush2.bf16.msra.mxu0 0
        %7389 = vmatprep.mubr.bf16.mxu0 0
        %7390 = vmatmul.mubr.bf16.gmra.mxu0 %v4031
        %v7391 = vpop.f32.mrf.mxu0
        %v7392 = vadd.f32 0.0, %v7391
        %v7393 = vpop.f32.mrf.mxu0
        %v7394 = vpop.f32.mrf.mxu0
        %v7395 = vadd.f32 0.0, %v7394
        %v7396 = vpop.f32.mrf.mxu0
        %7397 = vmatprep.mubr.bf16.mxu0 0
        %7398 = vmatmul.mubr.bf16.gmra.mxu0 %v4032
        %v7399 = vpop.f32.mrf.mxu0
        %v7400 = vadd.f32 0.0, %v7399
        %v7401 = vpop.f32.mrf.mxu0
        %v7402 = vpop.f32.mrf.mxu0
        %v7403 = vadd.f32 0.0, %v7402
        %v7404 = vpop.f32.mrf.mxu0
        %7405 = vmatprep.mubr.bf16.mxu0 0
        %7406 = vmatmul.mubr.bf16.gmra.mxu0 %v4033
        %v7407 = vpop.f32.mrf.mxu0
        %v7408 = vadd.f32 0.0, %v7407
        %v7409 = vpop.f32.mrf.mxu0
        %v7410 = vpop.f32.mrf.mxu0
        %v7411 = vadd.f32 0.0, %v7410
        %v7412 = vpop.f32.mrf.mxu0
        %7413 = vmatprep.mubr.bf16.mxu0 0
        %7414 = vmatmul.mubr.bf16.gmra.mxu0 %v4034
        %v7415 = vpop.f32.mrf.mxu0
        %v7416 = vadd.f32 0.0, %v7415
        %v7417 = vpop.f32.mrf.mxu0
        %v7418 = vpop.f32.mrf.mxu0
        %v7419 = vadd.f32 0.0, %v7418
        %v7420 = vpop.f32.mrf.mxu0
        %7421 = vmatprep.mubr.bf16.mxu0 0
        %7422 = vmatmul.mubr.bf16.gmra.mxu0 %v4035
        %v7423 = vpop.f32.mrf.mxu0
        %v7424 = vadd.f32 0.0, %v7423
        %v7425 = vpop.f32.mrf.mxu0
        %v7426 = vpop.f32.mrf.mxu0
        %v7427 = vadd.f32 0.0, %v7426
        %v7428 = vpop.f32.mrf.mxu0
        %7429 = vmatprep.mubr.bf16.mxu0 0
        %7430 = vmatmul.mubr.bf16.gmra.mxu0 %v4036
        %v7431 = vpop.f32.mrf.mxu0
        %v7432 = vadd.f32 0.0, %v7431
        %v7433 = vpop.f32.mrf.mxu0
        %v7434 = vpop.f32.mrf.mxu0
        %v7435 = vadd.f32 0.0, %v7434
        %v7436 = vpop.f32.mrf.mxu0
        %7437 = vmatprep.mubr.bf16.mxu0 0
        %7438 = vmatmul.mubr.bf16.gmra.mxu0 %v4037
        %v7439 = vpop.f32.mrf.mxu0
        %v7440 = vadd.f32 0.0, %v7439
        %v7441 = vpop.f32.mrf.mxu0
        %v7442 = vpop.f32.mrf.mxu0
        %v7443 = vadd.f32 0.0, %v7442
        %v7444 = vpop.f32.mrf.mxu0
        %7445 = vmatprep.mubr.bf16.mxu0 0
        %7446 = vmatmul.mubr.bf16.gmra.mxu0 %v4038
        %v7447 = vpop.f32.mrf.mxu0
        %v7448 = vadd.f32 0.0, %v7447
        %v7449 = vpop.f32.mrf.mxu0
        %v7450 = vpop.f32.mrf.mxu0
        %v7451 = vadd.f32 0.0, %v7450
        %v7452 = vpop.f32.mrf.mxu0
        %7453 = vmatprep.mubr.bf16.mxu0 0
        %7454 = vmatmul.mubr.bf16.gmra.mxu0 %v4039
        %v7455 = vpop.f32.mrf.mxu0
        %v7456 = vadd.f32 0.0, %v7455
        %v7457 = vpop.f32.mrf.mxu0
        %v7458 = vpop.f32.mrf.mxu0
        %v7459 = vadd.f32 0.0, %v7458
        %v7460 = vpop.f32.mrf.mxu0
        %7461 = vmatprep.mubr.bf16.mxu0 0
        %7462 = vmatmul.mubr.bf16.gmra.mxu0 %v4040
        %v7463 = vpop.f32.mrf.mxu0
        %v7464 = vadd.f32 0.0, %v7463
        %v7465 = vpop.f32.mrf.mxu0
        %v7466 = vpop.f32.mrf.mxu0
        %v7467 = vadd.f32 0.0, %v7466
        %v7468 = vpop.f32.mrf.mxu0
        %7469 = vmatprep.mubr.bf16.mxu0 0
        %7470 = vmatmul.mubr.bf16.gmra.mxu0 %v4041
        %v7471 = vpop.f32.mrf.mxu0
        %v7472 = vadd.f32 0.0, %v7471
        %v7473 = vpop.f32.mrf.mxu0
        %v7474 = vpop.f32.mrf.mxu0
        %v7475 = vadd.f32 0.0, %v7474
        %v7476 = vpop.f32.mrf.mxu0
        %7477 = vmatprep.mubr.bf16.mxu0 0
        %7478 = vmatmul.mubr.bf16.gmra.mxu0 %v4042
        %v7479 = vpop.f32.mrf.mxu0
        %v7480 = vadd.f32 0.0, %v7479
        %v7481 = vpop.f32.mrf.mxu0
        %v7482 = vpop.f32.mrf.mxu0
        %v7483 = vadd.f32 0.0, %v7482
        %v7484 = vpop.f32.mrf.mxu0
        %7485 = vmatprep.mubr.bf16.mxu0 0
        %7486 = vmatmul.mubr.bf16.gmra.mxu0 %v4043
        %v7487 = vpop.f32.mrf.mxu0
        %v7488 = vadd.f32 0.0, %v7487
        %v7489 = vpop.f32.mrf.mxu0
        %v7490 = vpop.f32.mrf.mxu0
        %v7491 = vadd.f32 0.0, %v7490
        %v7492 = vpop.f32.mrf.mxu0
        %7493 = vmatprep.mubr.bf16.mxu0 0
        %7494 = vmatmul.mubr.bf16.gmra.mxu0 %v4044
        %v7495 = vpop.f32.mrf.mxu0
        %v7496 = vadd.f32 0.0, %v7495
        %v7497 = vpop.f32.mrf.mxu0
        %v7498 = vpop.f32.mrf.mxu0
        %v7499 = vadd.f32 0.0, %v7498
        %v7500 = vpop.f32.mrf.mxu0
        %7501 = vmatprep.mubr.bf16.mxu0 0
        %7502 = vmatmul.mubr.bf16.gmra.mxu0 %v6381
        %v7503 = vpop.f32.mrf.mxu0
        %v7504 = vadd.f32 0.0, %v7503
        %v7505 = vpop.f32.mrf.mxu0
        %v7506 = vpop.f32.mrf.mxu0
        %v7507 = vadd.f32 0.0, %v7506
        %v7508 = vpop.f32.mrf.mxu0
        %7509 = vmatprep.mubr.bf16.mxu0 0
        %7510 = vmatmul.mubr.bf16.gmra.mxu0 %v7291
        %v7511 = vpop.f32.mrf.mxu0
        %v7512 = vadd.f32 0.0, %v7511
        %v7513 = vpop.f32.mrf.mxu0
        %v7514 = vpop.f32.mrf.mxu0
        %v7515 = vadd.f32 0.0, %v7514
        %v7516 = vpop.f32.mrf.mxu0
        %7517 = vdwg.mxu0
        %v7518 = vadd.f32 %v7223, %v7392
        %v7519 = vadd.f32 %v7224, %v7395
        %v7520 = vadd.f32 %v7225, %v7400
        %v7521 = vadd.f32 %v7226, %v7403
        %v7522 = vadd.f32 %v7227, %v7408
        %v7523 = vadd.f32 %v7228, %v7411
        %v7524 = vadd.f32 %v7229, %v7416
        %v7525 = vadd.f32 %v7230, %v7419
        %v7526 = vadd.f32 %v7231, %v7424
        %v7527 = vadd.f32 %v7232, %v7427
        %v7528 = vadd.f32 %v7233, %v7432
        %v7529 = vadd.f32 %v7234, %v7435
        %v7530 = vadd.f32 %v7235, %v7440
        %v7531 = vadd.f32 %v7236, %v7443
        %v7532 = vadd.f32 %v7237, %v7448
        %v7533 = vadd.f32 %v7238, %v7451
        %v7534 = vadd.f32 %v7239, %v7456
        %v7535 = vadd.f32 %v7240, %v7459
        %v7536 = vadd.f32 %v7241, %v7464
        %v7537 = vadd.f32 %v7242, %v7467
        %v7538 = vadd.f32 %v7243, %v7472
        %v7539 = vadd.f32 %v7244, %v7475
        %v7540 = vadd.f32 %v7245, %v7480
        %v7541 = vadd.f32 %v7246, %v7483
        %v7542 = vadd.f32 %v7247, %v7488
        %v7543 = vadd.f32 %v7248, %v7491
        %v7544 = vadd.f32 %v7249, %v7496
        %v7545 = vadd.f32 %v7250, %v7499
        %v7546 = vadd.f32 %v7251, %v7504
        %v7547 = vadd.f32 %v7252, %v7507
        %v7548 = vadd.f32 %v7253, %v7512
        %v7549 = vadd.f32 %v7254, %v7515
        %v7550 = vrot.slane %v3426, 7
        %v7551 = vrot.slane %v7550, 2
        %v7552 = vrot.slane %v3425, 7
        %v7553 = vsel %vm4067, %v7551, %v7552
        %v7554 = vrot.slane %v7552, 2
        %v7555 = vrot.slane %v3427, 7
        %v7556 = vsel %vm4067, %v7554, %v7555
        %v7557 = vrot.slane %v7555, 2
        %v7558 = vrot.slane %v3435, 7
        %v7559 = vsel %vm4067, %v7557, %v7558
        %v7560 = vrot.slane %v7558, 2
        %v7561 = vrot.slane %v3443, 7
        %v7562 = vsel %vm4067, %v7560, %v7561
        %v7563 = vrot.slane %v7561, 2
        %v7564 = vrot.slane %v3442, 7
        %v7565 = vsel %vm4067, %v7563, %v7564
        %v7566 = vrot.slane %v7564, 2
        %v7567 = vrot.slane %v3444, 7
        %v7568 = vsel %vm4067, %v7566, %v7567
        %v7569 = vrot.slane %v7567, 2
        %v7570 = vrot.slane %v3451, 7
        %v7571 = vsel %vm4067, %v7569, %v7570
        %v7572 = vrot.slane %v7570, 2
        %v7573 = vrot.slane %v3452, 7
        %v7574 = vsel %vm4067, %v7572, %v7573
        %v7575 = vcombine.low %v7553, %v7556
        %v7576 = vcombine.low %v7559, %v7562
        %v7578 = vunpack.c.l.s4 1983009808
        %v7579 = vunpack.c.0.s8 %v7578
        %v7580 = vlaneseq
        %v7581 = vshrl.u32 %v7580, 7
        %v7582 = vsub.s32 %v7579, %v7581
        %v7583 = vrot.slane %v7575, %v7582
        %v7585 = vunpack.c.l.s4 1983009808
        %v7586 = vunpack.c.0.s8 %v7585
        %v7587 = vlaneseq
        %v7588 = vshrl.u32 %v7587, 7
        %v7589 = vsub.s32 %v7586, %v7588
        %v7590 = vrot.slane %v7576, %v7589
        %v7591 = vcombine.low %v7583, %v7590
        %v7592 = vcombine.low %v7565, %v7568
        %v7593 = vcombine.low %v7571, %v7574
        %v7595 = vunpack.c.l.s4 1983009808
        %v7596 = vunpack.c.0.s8 %v7595
        %v7597 = vlaneseq
        %v7598 = vshrl.u32 %v7597, 7
        %v7599 = vsub.s32 %v7596, %v7598
        %v7600 = vrot.slane %v7592, %v7599
        %v7602 = vunpack.c.l.s4 1983009808
        %v7603 = vunpack.c.0.s8 %v7602
        %v7604 = vlaneseq
        %v7605 = vshrl.u32 %v7604, 7
        %v7606 = vsub.s32 %v7603, %v7605
        %v7607 = vrot.slane %v7593, %v7606
        %v7608 = vcombine.low %v7600, %v7607
        %v7611 = vpack.c.bf16 %v7608, %v7591
        %s7612 = scalar_lea.vmem %s5, 448
        %v7613 = vld [vmem:[%s7612] sm:$0xf]
        %v7614 = vld [vmem:[%s7612 + $0x4] sm:$0xf]
        %v7615 = vld [vmem:[%s7612 + $0x8] sm:$0xf]
        %v7616 = vld [vmem:[%s7612 + $0xc] sm:$0xf]
        %v7617 = vld [vmem:[%s7612 + $0x10] sm:$0xf]
        %v7618 = vld [vmem:[%s7612 + $0x14] sm:$0xf]
        %v7619 = vld [vmem:[%s7612 + $0x18] sm:$0xf]
        %v7620 = vld [vmem:[%s7612 + $0x1c] sm:$0xf]
        %v7621 = vld [vmem:[%s7612 + $0x20] sm:$0xf]
        %v7622 = vld [vmem:[%s7612 + $0x24] sm:$0xf]
        %v7623 = vld [vmem:[%s7612 + $0x28] sm:$0xf]
        %v7624 = vld [vmem:[%s7612 + $0x2c] sm:$0xf]
        %v7625 = vld [vmem:[%s7612 + $0x30] sm:$0xf]
        %v7626 = vld [vmem:[%s7612 + $0x34] sm:$0xf]
        %v7627 = vld [vmem:[%s7612 + $0x38] sm:$0xf]
        %v7628 = vld [vmem:[%s7612 + $0x3c] sm:$0xf]
        %v7645 = vunpack.c.l.b16 %v7613
        %v7646 = vunpack.c.l.b16 %v7614
        %v7647 = vunpack.c.l.b16 %v7615
        %v7648 = vunpack.c.l.b16 %v7616
        %v7649 = vunpack.c.l.b16 %v7617
        %v7650 = vunpack.c.l.b16 %v7618
        %v7651 = vunpack.c.l.b16 %v7619
        %v7652 = vunpack.c.l.b16 %v7620
        %v7653 = vunpack.c.l.b16 %v7621
        %v7654 = vunpack.c.l.b16 %v7622
        %v7655 = vunpack.c.l.b16 %v7623
        %v7656 = vunpack.c.l.b16 %v7624
        %v7657 = vunpack.c.l.b16 %v7625
        %v7658 = vunpack.c.l.b16 %v7626
        %v7659 = vunpack.c.l.b16 %v7627
        %v7660 = vunpack.c.l.b16 %v7628
        %v7661 = vpack.c.b16 %v7646, %v7645
        %v7662 = vpack.c.b16 %v7648, %v7647
        %v7663 = vpack.c.b16 %v7650, %v7649
        %v7664 = vpack.c.b16 %v7652, %v7651
        %v7665 = vpack.c.b16 %v7654, %v7653
        %v7666 = vpack.c.b16 %v7656, %v7655
        %v7667 = vpack.c.b16 %v7658, %v7657
        %v7668 = vpack.c.b16 %v7660, %v7659
        %7677 = vmatprep.subr.bf16.mxu0 0
        %7678 = vmatpush1.bf16.msra.mxu0 %v7668
        %7679 = vmatprep.subr.bf16.mxu0 0
        %7680 = vmatpush1.bf16.msra.mxu0 %v7667
        %7681 = vmatprep.subr.bf16.mxu0 0
        %7682 = vmatpush1.bf16.msra.mxu0 %v7666
        %7683 = vmatprep.subr.bf16.mxu0 0
        %7684 = vmatpush1.bf16.msra.mxu0 %v7665
        %7685 = vmatprep.subr.bf16.mxu0 0
        %7686 = vmatpush1.bf16.msra.mxu0 %v7664
        %7687 = vmatprep.subr.bf16.mxu0 0
        %7688 = vmatpush1.bf16.msra.mxu0 %v7663
        %7689 = vmatprep.subr.bf16.mxu0 0
        %7690 = vmatpush1.bf16.msra.mxu0 %v7662
        %7691 = vmatprep.subr.bf16.mxu0 0
        %7692 = vmatpush1.bf16.msra.mxu0 %v7661
        %7693 = vmatprep.subr.bf16.mxu0 0
        %7694 = vmatpush2.bf16.msra.mxu0 0
        %7695 = vmatprep.subr.bf16.mxu0 0
        %7696 = vmatpush2.bf16.msra.mxu0 0
        %7697 = vmatprep.subr.bf16.mxu0 0
        %7698 = vmatpush2.bf16.msra.mxu0 0
        %7699 = vmatprep.subr.bf16.mxu0 0
        %7700 = vmatpush2.bf16.msra.mxu0 0
        %7701 = vmatprep.subr.bf16.mxu0 0
        %7702 = vmatpush2.bf16.msra.mxu0 0
        %7703 = vmatprep.subr.bf16.mxu0 0
        %7704 = vmatpush2.bf16.msra.mxu0 0
        %7705 = vmatprep.subr.bf16.mxu0 0
        %7706 = vmatpush2.bf16.msra.mxu0 0
        %7707 = vmatprep.subr.bf16.mxu0 0
        %7708 = vmatpush2.bf16.msra.mxu0 0
        %7709 = vmatprep.mubr.bf16.mxu0 0
        %7710 = vmatmul.mubr.bf16.gmra.mxu0 %v5046
        %v7711 = vpop.f32.mrf.mxu0
        %v7712 = vadd.f32 0.0, %v7711
        %v7713 = vpop.f32.mrf.mxu0
        %v7714 = vpop.f32.mrf.mxu0
        %v7715 = vadd.f32 0.0, %v7714
        %v7716 = vpop.f32.mrf.mxu0
        %7717 = vmatprep.mubr.bf16.mxu0 0
        %7718 = vmatmul.mubr.bf16.gmra.mxu0 %v5047
        %v7719 = vpop.f32.mrf.mxu0
        %v7720 = vadd.f32 0.0, %v7719
        %v7721 = vpop.f32.mrf.mxu0
        %v7722 = vpop.f32.mrf.mxu0
        %v7723 = vadd.f32 0.0, %v7722
        %v7724 = vpop.f32.mrf.mxu0
        %7725 = vmatprep.mubr.bf16.mxu0 0
        %7726 = vmatmul.mubr.bf16.gmra.mxu0 %v5048
        %v7727 = vpop.f32.mrf.mxu0
        %v7728 = vadd.f32 0.0, %v7727
        %v7729 = vpop.f32.mrf.mxu0
        %v7730 = vpop.f32.mrf.mxu0
        %v7731 = vadd.f32 0.0, %v7730
        %v7732 = vpop.f32.mrf.mxu0
        %7733 = vmatprep.mubr.bf16.mxu0 0
        %7734 = vmatmul.mubr.bf16.gmra.mxu0 %v5049
        %v7735 = vpop.f32.mrf.mxu0
        %v7736 = vadd.f32 0.0, %v7735
        %v7737 = vpop.f32.mrf.mxu0
        %v7738 = vpop.f32.mrf.mxu0
        %v7739 = vadd.f32 0.0, %v7738
        %v7740 = vpop.f32.mrf.mxu0
        %7741 = vmatprep.mubr.bf16.mxu0 0
        %7742 = vmatmul.mubr.bf16.gmra.mxu0 %v5050
        %v7743 = vpop.f32.mrf.mxu0
        %v7744 = vadd.f32 0.0, %v7743
        %v7745 = vpop.f32.mrf.mxu0
        %v7746 = vpop.f32.mrf.mxu0
        %v7747 = vadd.f32 0.0, %v7746
        %v7748 = vpop.f32.mrf.mxu0
        %7749 = vmatprep.mubr.bf16.mxu0 0
        %7750 = vmatmul.mubr.bf16.gmra.mxu0 %v5051
        %v7751 = vpop.f32.mrf.mxu0
        %v7752 = vadd.f32 0.0, %v7751
        %v7753 = vpop.f32.mrf.mxu0
        %v7754 = vpop.f32.mrf.mxu0
        %v7755 = vadd.f32 0.0, %v7754
        %v7756 = vpop.f32.mrf.mxu0
        %7757 = vmatprep.mubr.bf16.mxu0 0
        %7758 = vmatmul.mubr.bf16.gmra.mxu0 %v5052
        %v7759 = vpop.f32.mrf.mxu0
        %v7760 = vadd.f32 0.0, %v7759
        %v7761 = vpop.f32.mrf.mxu0
        %v7762 = vpop.f32.mrf.mxu0
        %v7763 = vadd.f32 0.0, %v7762
        %v7764 = vpop.f32.mrf.mxu0
        %7765 = vmatprep.mubr.bf16.mxu0 0
        %7766 = vmatmul.mubr.bf16.gmra.mxu0 %v5053
        %v7767 = vpop.f32.mrf.mxu0
        %v7768 = vadd.f32 0.0, %v7767
        %v7769 = vpop.f32.mrf.mxu0
        %v7770 = vpop.f32.mrf.mxu0
        %v7771 = vadd.f32 0.0, %v7770
        %v7772 = vpop.f32.mrf.mxu0
        %7773 = vmatprep.mubr.bf16.mxu0 0
        %7774 = vmatmul.mubr.bf16.gmra.mxu0 %v5054
        %v7775 = vpop.f32.mrf.mxu0
        %v7776 = vadd.f32 0.0, %v7775
        %v7777 = vpop.f32.mrf.mxu0
        %v7778 = vpop.f32.mrf.mxu0
        %v7779 = vadd.f32 0.0, %v7778
        %v7780 = vpop.f32.mrf.mxu0
        %7781 = vmatprep.mubr.bf16.mxu0 0
        %7782 = vmatmul.mubr.bf16.gmra.mxu0 %v5055
        %v7783 = vpop.f32.mrf.mxu0
        %v7784 = vadd.f32 0.0, %v7783
        %v7785 = vpop.f32.mrf.mxu0
        %v7786 = vpop.f32.mrf.mxu0
        %v7787 = vadd.f32 0.0, %v7786
        %v7788 = vpop.f32.mrf.mxu0
        %7789 = vmatprep.mubr.bf16.mxu0 0
        %7790 = vmatmul.mubr.bf16.gmra.mxu0 %v5056
        %v7791 = vpop.f32.mrf.mxu0
        %v7792 = vadd.f32 0.0, %v7791
        %v7793 = vpop.f32.mrf.mxu0
        %v7794 = vpop.f32.mrf.mxu0
        %v7795 = vadd.f32 0.0, %v7794
        %v7796 = vpop.f32.mrf.mxu0
        %7797 = vmatprep.mubr.bf16.mxu0 0
        %7798 = vmatmul.mubr.bf16.gmra.mxu0 %v5057
        %v7799 = vpop.f32.mrf.mxu0
        %v7800 = vadd.f32 0.0, %v7799
        %v7801 = vpop.f32.mrf.mxu0
        %v7802 = vpop.f32.mrf.mxu0
        %v7803 = vadd.f32 0.0, %v7802
        %v7804 = vpop.f32.mrf.mxu0
        %7805 = vmatprep.mubr.bf16.mxu0 0
        %7806 = vmatmul.mubr.bf16.gmra.mxu0 %v5058
        %v7807 = vpop.f32.mrf.mxu0
        %v7808 = vadd.f32 0.0, %v7807
        %v7809 = vpop.f32.mrf.mxu0
        %v7810 = vpop.f32.mrf.mxu0
        %v7811 = vadd.f32 0.0, %v7810
        %v7812 = vpop.f32.mrf.mxu0
        %7813 = vmatprep.mubr.bf16.mxu0 0
        %7814 = vmatmul.mubr.bf16.gmra.mxu0 %v5059
        %v7815 = vpop.f32.mrf.mxu0
        %v7816 = vadd.f32 0.0, %v7815
        %v7817 = vpop.f32.mrf.mxu0
        %v7818 = vpop.f32.mrf.mxu0
        %v7819 = vadd.f32 0.0, %v7818
        %v7820 = vpop.f32.mrf.mxu0
        %7821 = vmatprep.mubr.bf16.mxu0 0
        %7822 = vmatmul.mubr.bf16.gmra.mxu0 %v6701
        %v7823 = vpop.f32.mrf.mxu0
        %v7824 = vadd.f32 0.0, %v7823
        %v7825 = vpop.f32.mrf.mxu0
        %v7826 = vpop.f32.mrf.mxu0
        %v7827 = vadd.f32 0.0, %v7826
        %v7828 = vpop.f32.mrf.mxu0
        %7829 = vmatprep.mubr.bf16.mxu0 0
        %7830 = vmatmul.mubr.bf16.gmra.mxu0 %v7611
        %v7831 = vpop.f32.mrf.mxu0
        %v7832 = vadd.f32 0.0, %v7831
        %v7833 = vpop.f32.mrf.mxu0
        %v7834 = vpop.f32.mrf.mxu0
        %v7835 = vadd.f32 0.0, %v7834
        %v7836 = vpop.f32.mrf.mxu0
        %7837 = vdwg.mxu0
        %v7838 = vadd.f32 %v7518, %v7712
        %v7839 = vadd.f32 %v7519, %v7715
        %v7840 = vadd.f32 %v7520, %v7720
        %v7841 = vadd.f32 %v7521, %v7723
        %v7842 = vadd.f32 %v7522, %v7728
        %v7843 = vadd.f32 %v7523, %v7731
        %v7844 = vadd.f32 %v7524, %v7736
        %v7845 = vadd.f32 %v7525, %v7739
        %v7846 = vadd.f32 %v7526, %v7744
        %v7847 = vadd.f32 %v7527, %v7747
        %v7848 = vadd.f32 %v7528, %v7752
        %v7849 = vadd.f32 %v7529, %v7755
        %v7850 = vadd.f32 %v7530, %v7760
        %v7851 = vadd.f32 %v7531, %v7763
        %v7852 = vadd.f32 %v7532, %v7768
        %v7853 = vadd.f32 %v7533, %v7771
        %v7854 = vadd.f32 %v7534, %v7776
        %v7855 = vadd.f32 %v7535, %v7779
        %v7856 = vadd.f32 %v7536, %v7784
        %v7857 = vadd.f32 %v7537, %v7787
        %v7858 = vadd.f32 %v7538, %v7792
        %v7859 = vadd.f32 %v7539, %v7795
        %v7860 = vadd.f32 %v7540, %v7800
        %v7861 = vadd.f32 %v7541, %v7803
        %v7862 = vadd.f32 %v7542, %v7808
        %v7863 = vadd.f32 %v7543, %v7811
        %v7864 = vadd.f32 %v7544, %v7816
        %v7865 = vadd.f32 %v7545, %v7819
        %v7866 = vadd.f32 %v7546, %v7824
        %v7867 = vadd.f32 %v7547, %v7827
        %v7868 = vadd.f32 %v7548, %v7832
        %v7869 = vadd.f32 %v7549, %v7835
        %v7870 = vcombine.low %v3425, %v3427
        %v7871 = vcombine.low %v3435, %v3443
        %v7873 = vunpack.c.l.s4 1983009808
        %v7874 = vunpack.c.0.s8 %v7873
        %v7875 = vlaneseq
        %v7876 = vshrl.u32 %v7875, 7
        %v7877 = vsub.s32 %v7874, %v7876
        %v7878 = vrot.slane %v7870, %v7877
        %v7880 = vunpack.c.l.s4 1983009808
        %v7881 = vunpack.c.0.s8 %v7880
        %v7882 = vlaneseq
        %v7883 = vshrl.u32 %v7882, 7
        %v7884 = vsub.s32 %v7881, %v7883
        %v7885 = vrot.slane %v7871, %v7884
        %v7886 = vcombine.low %v7878, %v7885
        %v7887 = vcombine.low %v3442, %v3444
        %v7888 = vcombine.low %v3451, %v3452
        %v7890 = vunpack.c.l.s4 1983009808
        %v7891 = vunpack.c.0.s8 %v7890
        %v7892 = vlaneseq
        %v7893 = vshrl.u32 %v7892, 7
        %v7894 = vsub.s32 %v7891, %v7893
        %v7895 = vrot.slane %v7887, %v7894
        %v7897 = vunpack.c.l.s4 1983009808
        %v7898 = vunpack.c.0.s8 %v7897
        %v7899 = vlaneseq
        %v7900 = vshrl.u32 %v7899, 7
        %v7901 = vsub.s32 %v7898, %v7900
        %v7902 = vrot.slane %v7888, %v7901
        %v7903 = vcombine.low %v7895, %v7902
        %v7906 = vpack.c.bf16 %v7903, %v7886
        %s7907 = scalar_lea.vmem %s5, 512
        %v7908 = vld [vmem:[%s7907] sm:$0xf]
        %v7909 = vld [vmem:[%s7907 + $0x4] sm:$0xf]
        %v7910 = vld [vmem:[%s7907 + $0x8] sm:$0xf]
        %v7911 = vld [vmem:[%s7907 + $0xc] sm:$0xf]
        %v7912 = vld [vmem:[%s7907 + $0x10] sm:$0xf]
        %v7913 = vld [vmem:[%s7907 + $0x14] sm:$0xf]
        %v7914 = vld [vmem:[%s7907 + $0x18] sm:$0xf]
        %v7915 = vld [vmem:[%s7907 + $0x1c] sm:$0xf]
        %v7916 = vld [vmem:[%s7907 + $0x20] sm:$0xf]
        %v7917 = vld [vmem:[%s7907 + $0x24] sm:$0xf]
        %v7918 = vld [vmem:[%s7907 + $0x28] sm:$0xf]
        %v7919 = vld [vmem:[%s7907 + $0x2c] sm:$0xf]
        %v7920 = vld [vmem:[%s7907 + $0x30] sm:$0xf]
        %v7921 = vld [vmem:[%s7907 + $0x34] sm:$0xf]
        %v7922 = vld [vmem:[%s7907 + $0x38] sm:$0xf]
        %v7923 = vld [vmem:[%s7907 + $0x3c] sm:$0xf]
        %v7940 = vunpack.c.l.b16 %v7908
        %v7941 = vunpack.c.l.b16 %v7909
        %v7942 = vunpack.c.l.b16 %v7910
        %v7943 = vunpack.c.l.b16 %v7911
        %v7944 = vunpack.c.l.b16 %v7912
        %v7945 = vunpack.c.l.b16 %v7913
        %v7946 = vunpack.c.l.b16 %v7914
        %v7947 = vunpack.c.l.b16 %v7915
        %v7948 = vunpack.c.l.b16 %v7916
        %v7949 = vunpack.c.l.b16 %v7917
        %v7950 = vunpack.c.l.b16 %v7918
        %v7951 = vunpack.c.l.b16 %v7919
        %v7952 = vunpack.c.l.b16 %v7920
        %v7953 = vunpack.c.l.b16 %v7921
        %v7954 = vunpack.c.l.b16 %v7922
        %v7955 = vunpack.c.l.b16 %v7923
        %v7956 = vpack.c.b16 %v7941, %v7940
        %v7957 = vpack.c.b16 %v7943, %v7942
        %v7958 = vpack.c.b16 %v7945, %v7944
        %v7959 = vpack.c.b16 %v7947, %v7946
        %v7960 = vpack.c.b16 %v7949, %v7948
        %v7961 = vpack.c.b16 %v7951, %v7950
        %v7962 = vpack.c.b16 %v7953, %v7952
        %v7963 = vpack.c.b16 %v7955, %v7954
        %7972 = vmatprep.subr.bf16.mxu0 0
        %7973 = vmatpush1.bf16.msra.mxu0 %v7963
        %7974 = vmatprep.subr.bf16.mxu0 0
        %7975 = vmatpush1.bf16.msra.mxu0 %v7962
        %7976 = vmatprep.subr.bf16.mxu0 0
        %7977 = vmatpush1.bf16.msra.mxu0 %v7961
        %7978 = vmatprep.subr.bf16.mxu0 0
        %7979 = vmatpush1.bf16.msra.mxu0 %v7960
        %7980 = vmatprep.subr.bf16.mxu0 0
        %7981 = vmatpush1.bf16.msra.mxu0 %v7959
        %7982 = vmatprep.subr.bf16.mxu0 0
        %7983 = vmatpush1.bf16.msra.mxu0 %v7958
        %7984 = vmatprep.subr.bf16.mxu0 0
        %7985 = vmatpush1.bf16.msra.mxu0 %v7957
        %7986 = vmatprep.subr.bf16.mxu0 0
        %7987 = vmatpush1.bf16.msra.mxu0 %v7956
        %7988 = vmatprep.subr.bf16.mxu0 0
        %7989 = vmatpush2.bf16.msra.mxu0 0
        %7990 = vmatprep.subr.bf16.mxu0 0
        %7991 = vmatpush2.bf16.msra.mxu0 0
        %7992 = vmatprep.subr.bf16.mxu0 0
        %7993 = vmatpush2.bf16.msra.mxu0 0
        %7994 = vmatprep.subr.bf16.mxu0 0
        %7995 = vmatpush2.bf16.msra.mxu0 0
        %7996 = vmatprep.subr.bf16.mxu0 0
        %7997 = vmatpush2.bf16.msra.mxu0 0
        %7998 = vmatprep.subr.bf16.mxu0 0
        %7999 = vmatpush2.bf16.msra.mxu0 0
        %8000 = vmatprep.subr.bf16.mxu0 0
        %8001 = vmatpush2.bf16.msra.mxu0 0
        %8002 = vmatprep.subr.bf16.mxu0 0
        %8003 = vmatpush2.bf16.msra.mxu0 0
        %8004 = vmatprep.mubr.bf16.mxu0 0
        %8005 = vmatmul.mubr.bf16.gmra.mxu0 %v6073
        %v8006 = vpop.f32.mrf.mxu0
        %v8007 = vadd.f32 0.0, %v8006
        %v8008 = vpop.f32.mrf.mxu0
        %v8009 = vpop.f32.mrf.mxu0
        %v8010 = vadd.f32 0.0, %v8009
        %v8011 = vpop.f32.mrf.mxu0
        %8012 = vmatprep.mubr.bf16.mxu0 0
        %8013 = vmatmul.mubr.bf16.gmra.mxu0 %v6074
        %v8014 = vpop.f32.mrf.mxu0
        %v8015 = vadd.f32 0.0, %v8014
        %v8016 = vpop.f32.mrf.mxu0
        %v8017 = vpop.f32.mrf.mxu0
        %v8018 = vadd.f32 0.0, %v8017
        %v8019 = vpop.f32.mrf.mxu0
        %8020 = vmatprep.mubr.bf16.mxu0 0
        %8021 = vmatmul.mubr.bf16.gmra.mxu0 %v6075
        %v8022 = vpop.f32.mrf.mxu0
        %v8023 = vadd.f32 0.0, %v8022
        %v8024 = vpop.f32.mrf.mxu0
        %v8025 = vpop.f32.mrf.mxu0
        %v8026 = vadd.f32 0.0, %v8025
        %v8027 = vpop.f32.mrf.mxu0
        %8028 = vmatprep.mubr.bf16.mxu0 0
        %8029 = vmatmul.mubr.bf16.gmra.mxu0 %v6076
        %v8030 = vpop.f32.mrf.mxu0
        %v8031 = vadd.f32 0.0, %v8030
        %v8032 = vpop.f32.mrf.mxu0
        %v8033 = vpop.f32.mrf.mxu0
        %v8034 = vadd.f32 0.0, %v8033
        %v8035 = vpop.f32.mrf.mxu0
        %8036 = vmatprep.mubr.bf16.mxu0 0
        %8037 = vmatmul.mubr.bf16.gmra.mxu0 %v6077
        %v8038 = vpop.f32.mrf.mxu0
        %v8039 = vadd.f32 0.0, %v8038
        %v8040 = vpop.f32.mrf.mxu0
        %v8041 = vpop.f32.mrf.mxu0
        %v8042 = vadd.f32 0.0, %v8041
        %v8043 = vpop.f32.mrf.mxu0
        %8044 = vmatprep.mubr.bf16.mxu0 0
        %8045 = vmatmul.mubr.bf16.gmra.mxu0 %v6078
        %v8046 = vpop.f32.mrf.mxu0
        %v8047 = vadd.f32 0.0, %v8046
        %v8048 = vpop.f32.mrf.mxu0
        %v8049 = vpop.f32.mrf.mxu0
        %v8050 = vadd.f32 0.0, %v8049
        %v8051 = vpop.f32.mrf.mxu0
        %8052 = vmatprep.mubr.bf16.mxu0 0
        %8053 = vmatmul.mubr.bf16.gmra.mxu0 %v6079
        %v8054 = vpop.f32.mrf.mxu0
        %v8055 = vadd.f32 0.0, %v8054
        %v8056 = vpop.f32.mrf.mxu0
        %v8057 = vpop.f32.mrf.mxu0
        %v8058 = vadd.f32 0.0, %v8057
        %v8059 = vpop.f32.mrf.mxu0
        %8060 = vmatprep.mubr.bf16.mxu0 0
        %8061 = vmatmul.mubr.bf16.gmra.mxu0 %v6080
        %v8062 = vpop.f32.mrf.mxu0
        %v8063 = vadd.f32 0.0, %v8062
        %v8064 = vpop.f32.mrf.mxu0
        %v8065 = vpop.f32.mrf.mxu0
        %v8066 = vadd.f32 0.0, %v8065
        %v8067 = vpop.f32.mrf.mxu0
        %8068 = vmatprep.mubr.bf16.mxu0 0
        %8069 = vmatmul.mubr.bf16.gmra.mxu0 %v6081
        %v8070 = vpop.f32.mrf.mxu0
        %v8071 = vadd.f32 0.0, %v8070
        %v8072 = vpop.f32.mrf.mxu0
        %v8073 = vpop.f32.mrf.mxu0
        %v8074 = vadd.f32 0.0, %v8073
        %v8075 = vpop.f32.mrf.mxu0
        %8076 = vmatprep.mubr.bf16.mxu0 0
        %8077 = vmatmul.mubr.bf16.gmra.mxu0 %v6082
        %v8078 = vpop.f32.mrf.mxu0
        %v8079 = vadd.f32 0.0, %v8078
        %v8080 = vpop.f32.mrf.mxu0
        %v8081 = vpop.f32.mrf.mxu0
        %v8082 = vadd.f32 0.0, %v8081
        %v8083 = vpop.f32.mrf.mxu0
        %8084 = vmatprep.mubr.bf16.mxu0 0
        %8085 = vmatmul.mubr.bf16.gmra.mxu0 %v6083
        %v8086 = vpop.f32.mrf.mxu0
        %v8087 = vadd.f32 0.0, %v8086
        %v8088 = vpop.f32.mrf.mxu0
        %v8089 = vpop.f32.mrf.mxu0
        %v8090 = vadd.f32 0.0, %v8089
        %v8091 = vpop.f32.mrf.mxu0
        %8092 = vmatprep.mubr.bf16.mxu0 0
        %8093 = vmatmul.mubr.bf16.gmra.mxu0 %v6084
        %v8094 = vpop.f32.mrf.mxu0
        %v8095 = vadd.f32 0.0, %v8094
        %v8096 = vpop.f32.mrf.mxu0
        %v8097 = vpop.f32.mrf.mxu0
        %v8098 = vadd.f32 0.0, %v8097
        %v8099 = vpop.f32.mrf.mxu0
        %8100 = vmatprep.mubr.bf16.mxu0 0
        %8101 = vmatmul.mubr.bf16.gmra.mxu0 %v6085
        %v8102 = vpop.f32.mrf.mxu0
        %v8103 = vadd.f32 0.0, %v8102
        %v8104 = vpop.f32.mrf.mxu0
        %v8105 = vpop.f32.mrf.mxu0
        %v8106 = vadd.f32 0.0, %v8105
        %v8107 = vpop.f32.mrf.mxu0
        %8108 = vmatprep.mubr.bf16.mxu0 0
        %8109 = vmatmul.mubr.bf16.gmra.mxu0 %v6086
        %v8110 = vpop.f32.mrf.mxu0
        %v8111 = vadd.f32 0.0, %v8110
        %v8112 = vpop.f32.mrf.mxu0
        %v8113 = vpop.f32.mrf.mxu0
        %v8114 = vadd.f32 0.0, %v8113
        %v8115 = vpop.f32.mrf.mxu0
        %8116 = vmatprep.mubr.bf16.mxu0 0
        %8117 = vmatmul.mubr.bf16.gmra.mxu0 %v6996
        %v8118 = vpop.f32.mrf.mxu0
        %v8119 = vadd.f32 0.0, %v8118
        %v8120 = vpop.f32.mrf.mxu0
        %v8121 = vpop.f32.mrf.mxu0
        %v8122 = vadd.f32 0.0, %v8121
        %v8123 = vpop.f32.mrf.mxu0
        %8124 = vmatprep.mubr.bf16.mxu0 0
        %8125 = vmatmul.mubr.bf16.gmra.mxu0 %v7906
        %v8126 = vpop.f32.mrf.mxu0
        %v8127 = vadd.f32 0.0, %v8126
        %v8128 = vpop.f32.mrf.mxu0
        %v8129 = vpop.f32.mrf.mxu0
        %v8130 = vadd.f32 0.0, %v8129
        %v8131 = vpop.f32.mrf.mxu0
        %8132 = vdwg.mxu0
        %v8133 = vadd.f32 %v7838, %v8007
        %v8134 = vadd.f32 %v7839, %v8010
        %v8135 = vadd.f32 %v7840, %v8015
        %v8136 = vadd.f32 %v7841, %v8018
        %v8137 = vadd.f32 %v7842, %v8023
        %v8138 = vadd.f32 %v7843, %v8026
        %v8139 = vadd.f32 %v7844, %v8031
        %v8140 = vadd.f32 %v7845, %v8034
        %v8141 = vadd.f32 %v7846, %v8039
        %v8142 = vadd.f32 %v7847, %v8042
        %v8143 = vadd.f32 %v7848, %v8047
        %v8144 = vadd.f32 %v7849, %v8050
        %v8145 = vadd.f32 %v7850, %v8055
        %v8146 = vadd.f32 %v7851, %v8058
        %v8147 = vadd.f32 %v7852, %v8063
        %v8148 = vadd.f32 %v7853, %v8066
        %v8149 = vadd.f32 %v7854, %v8071
        %v8150 = vadd.f32 %v7855, %v8074
        %v8151 = vadd.f32 %v7856, %v8079
        %v8152 = vadd.f32 %v7857, %v8082
        %v8153 = vadd.f32 %v7858, %v8087
        %v8154 = vadd.f32 %v7859, %v8090
        %v8155 = vadd.f32 %v7860, %v8095
        %v8156 = vadd.f32 %v7861, %v8098
        %v8157 = vadd.f32 %v7862, %v8103
        %v8158 = vadd.f32 %v7863, %v8106
        %v8159 = vadd.f32 %v7864, %v8111
        %v8160 = vadd.f32 %v7865, %v8114
        %v8161 = vadd.f32 %v7866, %v8119
        %v8162 = vadd.f32 %v7867, %v8122
        %v8163 = vadd.f32 %v7868, %v8127
        %v8164 = vadd.f32 %v7869, %v8130
        %v8165 = vld [vmem:[%s6] sm:$0x1]
        %v8167 = vlaneseq
        %v8168 = vshrl.u32 %v8167, 7
        %v8169 = vsub.s32 0, %v8168
        %v8170 = vrot.slane %v8165, %v8169
        %v8172 = vmul.f32 %v8133, %v8170
        %v8173 = vmul.f32 %v8134, %v8170
        %v8174 = vmul.f32 %v8135, %v8170
        %v8175 = vmul.f32 %v8136, %v8170
        %v8176 = vmul.f32 %v8137, %v8170
        %v8177 = vmul.f32 %v8138, %v8170
        %v8178 = vmul.f32 %v8139, %v8170
        %v8179 = vmul.f32 %v8140, %v8170
        %v8180 = vmul.f32 %v8141, %v8170
        %v8181 = vmul.f32 %v8142, %v8170
        %v8182 = vmul.f32 %v8143, %v8170
        %v8183 = vmul.f32 %v8144, %v8170
        %v8184 = vmul.f32 %v8145, %v8170
        %v8185 = vmul.f32 %v8146, %v8170
        %v8186 = vmul.f32 %v8147, %v8170
        %v8187 = vmul.f32 %v8148, %v8170
        %v8188 = vmul.f32 %v8149, %v8170
        %v8189 = vmul.f32 %v8150, %v8170
        %v8190 = vmul.f32 %v8151, %v8170
        %v8191 = vmul.f32 %v8152, %v8170
        %v8192 = vmul.f32 %v8153, %v8170
        %v8193 = vmul.f32 %v8154, %v8170
        %v8194 = vmul.f32 %v8155, %v8170
        %v8195 = vmul.f32 %v8156, %v8170
        %v8196 = vmul.f32 %v8157, %v8170
        %v8197 = vmul.f32 %v8158, %v8170
        %v8198 = vmul.f32 %v8159, %v8170
        %v8199 = vmul.f32 %v8160, %v8170
        %v8200 = vmul.f32 %v8161, %v8170
        %v8201 = vmul.f32 %v8162, %v8170
        %v8202 = vmul.f32 %v8163, %v8170
        %v8203 = vmul.f32 %v8164, %v8170
        %v8204 = vld [vmem:[%s7] sm:$0x1]
        %v8206 = vlaneseq
        %v8207 = vshrl.u32 %v8206, 7
        %v8208 = vsub.s32 0, %v8207
        %v8209 = vrot.slane %v8204, %v8208
        %v8211 = vadd.f32 %v8172, %v8209
        %v8212 = vadd.f32 %v8173, %v8209
        %v8213 = vadd.f32 %v8174, %v8209
        %v8214 = vadd.f32 %v8175, %v8209
        %v8215 = vadd.f32 %v8176, %v8209
        %v8216 = vadd.f32 %v8177, %v8209
        %v8217 = vadd.f32 %v8178, %v8209
        %v8218 = vadd.f32 %v8179, %v8209
        %v8219 = vadd.f32 %v8180, %v8209
        %v8220 = vadd.f32 %v8181, %v8209
        %v8221 = vadd.f32 %v8182, %v8209
        %v8222 = vadd.f32 %v8183, %v8209
        %v8223 = vadd.f32 %v8184, %v8209
        %v8224 = vadd.f32 %v8185, %v8209
        %v8225 = vadd.f32 %v8186, %v8209
        %v8226 = vadd.f32 %v8187, %v8209
        %v8227 = vadd.f32 %v8188, %v8209
        %v8228 = vadd.f32 %v8189, %v8209
        %v8229 = vadd.f32 %v8190, %v8209
        %v8230 = vadd.f32 %v8191, %v8209
        %v8231 = vadd.f32 %v8192, %v8209
        %v8232 = vadd.f32 %v8193, %v8209
        %v8233 = vadd.f32 %v8194, %v8209
        %v8234 = vadd.f32 %v8195, %v8209
        %v8235 = vadd.f32 %v8196, %v8209
        %v8236 = vadd.f32 %v8197, %v8209
        %v8237 = vadd.f32 %v8198, %v8209
        %v8238 = vadd.f32 %v8199, %v8209
        %v8239 = vadd.f32 %v8200, %v8209
        %v8240 = vadd.f32 %v8201, %v8209
        %v8241 = vadd.f32 %v8202, %v8209
        %v8242 = vadd.f32 %v8203, %v8209
        %v8243 = vmax.f32 %v8211, 0.0
        %v8244 = vmax.f32 %v8212, 0.0
        %v8245 = vmax.f32 %v8213, 0.0
        %v8246 = vmax.f32 %v8214, 0.0
        %v8247 = vmax.f32 %v8215, 0.0
        %v8248 = vmax.f32 %v8216, 0.0
        %v8249 = vmax.f32 %v8217, 0.0
        %v8250 = vmax.f32 %v8218, 0.0
        %v8251 = vmax.f32 %v8219, 0.0
        %v8252 = vmax.f32 %v8220, 0.0
        %v8253 = vmax.f32 %v8221, 0.0
        %v8254 = vmax.f32 %v8222, 0.0
        %v8255 = vmax.f32 %v8223, 0.0
        %v8256 = vmax.f32 %v8224, 0.0
        %v8257 = vmax.f32 %v8225, 0.0
        %v8258 = vmax.f32 %v8226, 0.0
        %v8259 = vmax.f32 %v8227, 0.0
        %v8260 = vmax.f32 %v8228, 0.0
        %v8261 = vmax.f32 %v8229, 0.0
        %v8262 = vmax.f32 %v8230, 0.0
        %v8263 = vmax.f32 %v8231, 0.0
        %v8264 = vmax.f32 %v8232, 0.0
        %v8265 = vmax.f32 %v8233, 0.0
        %v8266 = vmax.f32 %v8234, 0.0
        %v8267 = vmax.f32 %v8235, 0.0
        %v8268 = vmax.f32 %v8236, 0.0
        %v8269 = vmax.f32 %v8237, 0.0
        %v8270 = vmax.f32 %v8238, 0.0
        %v8271 = vmax.f32 %v8239, 0.0
        %v8272 = vmax.f32 %v8240, 0.0
        %v8273 = vmax.f32 %v8241, 0.0
        %v8274 = vmax.f32 %v8242, 0.0
        %v8275 = vpack.c.bf16 %v8244, %v8243
        %v8276 = vpack.c.bf16 %v8246, %v8245
        %v8277 = vpack.c.bf16 %v8248, %v8247
        %v8278 = vpack.c.bf16 %v8250, %v8249
        %v8279 = vpack.c.bf16 %v8252, %v8251
        %v8280 = vpack.c.bf16 %v8254, %v8253
        %v8281 = vpack.c.bf16 %v8256, %v8255
        %v8282 = vpack.c.bf16 %v8258, %v8257
        %v8283 = vpack.c.bf16 %v8260, %v8259
        %v8284 = vpack.c.bf16 %v8262, %v8261
        %v8285 = vpack.c.bf16 %v8264, %v8263
        %v8286 = vpack.c.bf16 %v8266, %v8265
        %v8287 = vpack.c.bf16 %v8268, %v8267
        %v8288 = vpack.c.bf16 %v8270, %v8269
        %v8289 = vpack.c.bf16 %v8272, %v8271
        %v8290 = vpack.c.bf16 %v8274, %v8273
        %v8291 = vld [vmem:[%s8] sm:$0xf]
        %v8292 = vld [vmem:[%s8 + $0x4] sm:$0xf]
        %v8293 = vld [vmem:[%s8 + $0x8] sm:$0xf]
        %v8294 = vld [vmem:[%s8 + $0xc] sm:$0xf]
        %v8295 = vld [vmem:[%s8 + $0x10] sm:$0xf]
        %v8296 = vld [vmem:[%s8 + $0x14] sm:$0xf]
        %v8297 = vld [vmem:[%s8 + $0x18] sm:$0xf]
        %v8298 = vld [vmem:[%s8 + $0x1c] sm:$0xf]
        %v8299 = vld [vmem:[%s8 + $0x20] sm:$0xf]
        %v8300 = vld [vmem:[%s8 + $0x24] sm:$0xf]
        %v8301 = vld [vmem:[%s8 + $0x28] sm:$0xf]
        %v8302 = vld [vmem:[%s8 + $0x2c] sm:$0xf]
        %v8303 = vld [vmem:[%s8 + $0x30] sm:$0xf]
        %v8304 = vld [vmem:[%s8 + $0x34] sm:$0xf]
        %v8305 = vld [vmem:[%s8 + $0x38] sm:$0xf]
        %v8306 = vld [vmem:[%s8 + $0x3c] sm:$0xf]
        %v8323 = vunpack.c.l.b16 %v8291
        %v8324 = vunpack.c.l.b16 %v8292
        %v8325 = vunpack.c.l.b16 %v8293
        %v8326 = vunpack.c.l.b16 %v8294
        %v8327 = vunpack.c.l.b16 %v8295
        %v8328 = vunpack.c.l.b16 %v8296
        %v8329 = vunpack.c.l.b16 %v8297
        %v8330 = vunpack.c.l.b16 %v8298
        %v8331 = vunpack.c.l.b16 %v8299
        %v8332 = vunpack.c.l.b16 %v8300
        %v8333 = vunpack.c.l.b16 %v8301
        %v8334 = vunpack.c.l.b16 %v8302
        %v8335 = vunpack.c.l.b16 %v8303
        %v8336 = vunpack.c.l.b16 %v8304
        %v8337 = vunpack.c.l.b16 %v8305
        %v8338 = vunpack.c.l.b16 %v8306
        %v8339 = vpack.c.b16 %v8324, %v8323
        %v8340 = vpack.c.b16 %v8326, %v8325
        %v8341 = vpack.c.b16 %v8328, %v8327
        %v8342 = vpack.c.b16 %v8330, %v8329
        %v8343 = vpack.c.b16 %v8332, %v8331
        %v8344 = vpack.c.b16 %v8334, %v8333
        %v8345 = vpack.c.b16 %v8336, %v8335
        %v8346 = vpack.c.b16 %v8338, %v8337
        %8355 = vmatprep.subr.bf16.mxu0 0
        %8356 = vmatpush1.bf16.msra.mxu0 %v8346
        %8357 = vmatprep.subr.bf16.mxu0 0
        %8358 = vmatpush1.bf16.msra.mxu0 %v8345
        %8359 = vmatprep.subr.bf16.mxu0 0
        %8360 = vmatpush1.bf16.msra.mxu0 %v8344
        %8361 = vmatprep.subr.bf16.mxu0 0
        %8362 = vmatpush1.bf16.msra.mxu0 %v8343
        %8363 = vmatprep.subr.bf16.mxu0 0
        %8364 = vmatpush1.bf16.msra.mxu0 %v8342
        %8365 = vmatprep.subr.bf16.mxu0 0
        %8366 = vmatpush1.bf16.msra.mxu0 %v8341
        %8367 = vmatprep.subr.bf16.mxu0 0
        %8368 = vmatpush1.bf16.msra.mxu0 %v8340
        %8369 = vmatprep.subr.bf16.mxu0 0
        %8370 = vmatpush1.bf16.msra.mxu0 %v8339
        %8371 = vmatprep.subr.bf16.mxu0 0
        %8372 = vmatpush2.bf16.msra.mxu0 0
        %8373 = vmatprep.subr.bf16.mxu0 0
        %8374 = vmatpush2.bf16.msra.mxu0 0
        %8375 = vmatprep.subr.bf16.mxu0 0
        %8376 = vmatpush2.bf16.msra.mxu0 0
        %8377 = vmatprep.subr.bf16.mxu0 0
        %8378 = vmatpush2.bf16.msra.mxu0 0
        %8379 = vmatprep.subr.bf16.mxu0 0
        %8380 = vmatpush2.bf16.msra.mxu0 0
        %8381 = vmatprep.subr.bf16.mxu0 0
        %8382 = vmatpush2.bf16.msra.mxu0 0
        %8383 = vmatprep.subr.bf16.mxu0 0
        %8384 = vmatpush2.bf16.msra.mxu0 0
        %8385 = vmatprep.subr.bf16.mxu0 0
        %8386 = vmatpush2.bf16.msra.mxu0 0
        %8387 = vmatprep.mubr.bf16.mxu0 0
        %8388 = vmatmul.mubr.bf16.gmra.mxu0 %v8275
        %v8389 = vpop.f32.mrf.mxu0
        %v8390 = vadd.f32 0.0, %v8389
        %v8391 = vpop.f32.mrf.mxu0
        %v8392 = vpop.f32.mrf.mxu0
        %v8393 = vadd.f32 0.0, %v8392
        %v8394 = vpop.f32.mrf.mxu0
        %8395 = vmatprep.mubr.bf16.mxu0 0
        %8396 = vmatmul.mubr.bf16.gmra.mxu0 %v8276
        %v8397 = vpop.f32.mrf.mxu0
        %v8398 = vadd.f32 0.0, %v8397
        %v8399 = vpop.f32.mrf.mxu0
        %v8400 = vpop.f32.mrf.mxu0
        %v8401 = vadd.f32 0.0, %v8400
        %v8402 = vpop.f32.mrf.mxu0
        %8403 = vmatprep.mubr.bf16.mxu0 0
        %8404 = vmatmul.mubr.bf16.gmra.mxu0 %v8277
        %v8405 = vpop.f32.mrf.mxu0
        %v8406 = vadd.f32 0.0, %v8405
        %v8407 = vpop.f32.mrf.mxu0
        %v8408 = vpop.f32.mrf.mxu0
        %v8409 = vadd.f32 0.0, %v8408
        %v8410 = vpop.f32.mrf.mxu0
        %8411 = vmatprep.mubr.bf16.mxu0 0
        %8412 = vmatmul.mubr.bf16.gmra.mxu0 %v8278
        %v8413 = vpop.f32.mrf.mxu0
        %v8414 = vadd.f32 0.0, %v8413
        %v8415 = vpop.f32.mrf.mxu0
        %v8416 = vpop.f32.mrf.mxu0
        %v8417 = vadd.f32 0.0, %v8416
        %v8418 = vpop.f32.mrf.mxu0
        %8419 = vmatprep.mubr.bf16.mxu0 0
        %8420 = vmatmul.mubr.bf16.gmra.mxu0 %v8279
        %v8421 = vpop.f32.mrf.mxu0
        %v8422 = vadd.f32 0.0, %v8421
        %v8423 = vpop.f32.mrf.mxu0
        %v8424 = vpop.f32.mrf.mxu0
        %v8425 = vadd.f32 0.0, %v8424
        %v8426 = vpop.f32.mrf.mxu0
        %8427 = vmatprep.mubr.bf16.mxu0 0
        %8428 = vmatmul.mubr.bf16.gmra.mxu0 %v8280
        %v8429 = vpop.f32.mrf.mxu0
        %v8430 = vadd.f32 0.0, %v8429
        %v8431 = vpop.f32.mrf.mxu0
        %v8432 = vpop.f32.mrf.mxu0
        %v8433 = vadd.f32 0.0, %v8432
        %v8434 = vpop.f32.mrf.mxu0
        %8435 = vmatprep.mubr.bf16.mxu0 0
        %8436 = vmatmul.mubr.bf16.gmra.mxu0 %v8281
        %v8437 = vpop.f32.mrf.mxu0
        %v8438 = vadd.f32 0.0, %v8437
        %v8439 = vpop.f32.mrf.mxu0
        %v8440 = vpop.f32.mrf.mxu0
        %v8441 = vadd.f32 0.0, %v8440
        %v8442 = vpop.f32.mrf.mxu0
        %8443 = vmatprep.mubr.bf16.mxu0 0
        %8444 = vmatmul.mubr.bf16.gmra.mxu0 %v8282
        %v8445 = vpop.f32.mrf.mxu0
        %v8446 = vadd.f32 0.0, %v8445
        %v8447 = vpop.f32.mrf.mxu0
        %v8448 = vpop.f32.mrf.mxu0
        %v8449 = vadd.f32 0.0, %v8448
        %v8450 = vpop.f32.mrf.mxu0
        %8451 = vmatprep.mubr.bf16.mxu0 0
        %8452 = vmatmul.mubr.bf16.gmra.mxu0 %v8283
        %v8453 = vpop.f32.mrf.mxu0
        %v8454 = vadd.f32 0.0, %v8453
        %v8455 = vpop.f32.mrf.mxu0
        %v8456 = vpop.f32.mrf.mxu0
        %v8457 = vadd.f32 0.0, %v8456
        %v8458 = vpop.f32.mrf.mxu0
        %8459 = vmatprep.mubr.bf16.mxu0 0
        %8460 = vmatmul.mubr.bf16.gmra.mxu0 %v8284
        %v8461 = vpop.f32.mrf.mxu0
        %v8462 = vadd.f32 0.0, %v8461
        %v8463 = vpop.f32.mrf.mxu0
        %v8464 = vpop.f32.mrf.mxu0
        %v8465 = vadd.f32 0.0, %v8464
        %v8466 = vpop.f32.mrf.mxu0
        %8467 = vmatprep.mubr.bf16.mxu0 0
        %8468 = vmatmul.mubr.bf16.gmra.mxu0 %v8285
        %v8469 = vpop.f32.mrf.mxu0
        %v8470 = vadd.f32 0.0, %v8469
        %v8471 = vpop.f32.mrf.mxu0
        %v8472 = vpop.f32.mrf.mxu0
        %v8473 = vadd.f32 0.0, %v8472
        %v8474 = vpop.f32.mrf.mxu0
        %8475 = vmatprep.mubr.bf16.mxu0 0
        %8476 = vmatmul.mubr.bf16.gmra.mxu0 %v8286
        %v8477 = vpop.f32.mrf.mxu0
        %v8478 = vadd.f32 0.0, %v8477
        %v8479 = vpop.f32.mrf.mxu0
        %v8480 = vpop.f32.mrf.mxu0
        %v8481 = vadd.f32 0.0, %v8480
        %v8482 = vpop.f32.mrf.mxu0
        %8483 = vmatprep.mubr.bf16.mxu0 0
        %8484 = vmatmul.mubr.bf16.gmra.mxu0 %v8287
        %v8485 = vpop.f32.mrf.mxu0
        %v8486 = vadd.f32 0.0, %v8485
        %v8487 = vpop.f32.mrf.mxu0
        %v8488 = vpop.f32.mrf.mxu0
        %v8489 = vadd.f32 0.0, %v8488
        %v8490 = vpop.f32.mrf.mxu0
        %8491 = vmatprep.mubr.bf16.mxu0 0
        %8492 = vmatmul.mubr.bf16.gmra.mxu0 %v8288
        %v8493 = vpop.f32.mrf.mxu0
        %v8494 = vadd.f32 0.0, %v8493
        %v8495 = vpop.f32.mrf.mxu0
        %v8496 = vpop.f32.mrf.mxu0
        %v8497 = vadd.f32 0.0, %v8496
        %v8498 = vpop.f32.mrf.mxu0
        %8499 = vmatprep.mubr.bf16.mxu0 0
        %8500 = vmatmul.mubr.bf16.gmra.mxu0 %v8289
        %v8501 = vpop.f32.mrf.mxu0
        %v8502 = vadd.f32 0.0, %v8501
        %v8503 = vpop.f32.mrf.mxu0
        %v8504 = vpop.f32.mrf.mxu0
        %v8505 = vadd.f32 0.0, %v8504
        %v8506 = vpop.f32.mrf.mxu0
        %8507 = vmatprep.mubr.bf16.mxu0 0
        %8508 = vmatmul.mubr.bf16.gmra.mxu0 %v8290
        %v8509 = vpop.f32.mrf.mxu0
        %v8510 = vadd.f32 0.0, %v8509
        %v8511 = vpop.f32.mrf.mxu0
        %v8512 = vpop.f32.mrf.mxu0
        %v8513 = vadd.f32 0.0, %v8512
        %v8514 = vpop.f32.mrf.mxu0
        %8515 = vdwg.mxu0
        %v8516 = vld [vmem:[%s9] sm:$0x1]
        %v8518 = vlaneseq
        %v8519 = vshrl.u32 %v8518, 7
        %v8520 = vsub.s32 0, %v8519
        %v8521 = vrot.slane %v8516, %v8520
        %v8523 = vmul.f32 %v8390, %v8521
        %v8524 = vmul.f32 %v8393, %v8521
        %v8525 = vmul.f32 %v8398, %v8521
        %v8526 = vmul.f32 %v8401, %v8521
        %v8527 = vmul.f32 %v8406, %v8521
        %v8528 = vmul.f32 %v8409, %v8521
        %v8529 = vmul.f32 %v8414, %v8521
        %v8530 = vmul.f32 %v8417, %v8521
        %v8531 = vmul.f32 %v8422, %v8521
        %v8532 = vmul.f32 %v8425, %v8521
        %v8533 = vmul.f32 %v8430, %v8521
        %v8534 = vmul.f32 %v8433, %v8521
        %v8535 = vmul.f32 %v8438, %v8521
        %v8536 = vmul.f32 %v8441, %v8521
        %v8537 = vmul.f32 %v8446, %v8521
        %v8538 = vmul.f32 %v8449, %v8521
        %v8539 = vmul.f32 %v8454, %v8521
        %v8540 = vmul.f32 %v8457, %v8521
        %v8541 = vmul.f32 %v8462, %v8521
        %v8542 = vmul.f32 %v8465, %v8521
        %v8543 = vmul.f32 %v8470, %v8521
        %v8544 = vmul.f32 %v8473, %v8521
        %v8545 = vmul.f32 %v8478, %v8521
        %v8546 = vmul.f32 %v8481, %v8521
        %v8547 = vmul.f32 %v8486, %v8521
        %v8548 = vmul.f32 %v8489, %v8521
        %v8549 = vmul.f32 %v8494, %v8521
        %v8550 = vmul.f32 %v8497, %v8521
        %v8551 = vmul.f32 %v8502, %v8521
        %v8552 = vmul.f32 %v8505, %v8521
        %v8553 = vmul.f32 %v8510, %v8521
        %v8554 = vmul.f32 %v8513, %v8521
        %v8555 = vld [vmem:[%s10] sm:$0x1]
        %v8557 = vlaneseq
        %v8558 = vshrl.u32 %v8557, 7
        %v8559 = vsub.s32 0, %v8558
        %v8560 = vrot.slane %v8555, %v8559
        %v8562 = vadd.f32 %v8523, %v8560
        %v8563 = vadd.f32 %v8524, %v8560
        %v8564 = vadd.f32 %v8525, %v8560
        %v8565 = vadd.f32 %v8526, %v8560
        %v8566 = vadd.f32 %v8527, %v8560
        %v8567 = vadd.f32 %v8528, %v8560
        %v8568 = vadd.f32 %v8529, %v8560
        %v8569 = vadd.f32 %v8530, %v8560
        %v8570 = vadd.f32 %v8531, %v8560
        %v8571 = vadd.f32 %v8532, %v8560
        %v8572 = vadd.f32 %v8533, %v8560
        %v8573 = vadd.f32 %v8534, %v8560
        %v8574 = vadd.f32 %v8535, %v8560
        %v8575 = vadd.f32 %v8536, %v8560
        %v8576 = vadd.f32 %v8537, %v8560
        %v8577 = vadd.f32 %v8538, %v8560
        %v8578 = vadd.f32 %v8539, %v8560
        %v8579 = vadd.f32 %v8540, %v8560
        %v8580 = vadd.f32 %v8541, %v8560
        %v8581 = vadd.f32 %v8542, %v8560
        %v8582 = vadd.f32 %v8543, %v8560
        %v8583 = vadd.f32 %v8544, %v8560
        %v8584 = vadd.f32 %v8545, %v8560
        %v8585 = vadd.f32 %v8546, %v8560
        %v8586 = vadd.f32 %v8547, %v8560
        %v8587 = vadd.f32 %v8548, %v8560
        %v8588 = vadd.f32 %v8549, %v8560
        %v8589 = vadd.f32 %v8550, %v8560
        %v8590 = vadd.f32 %v8551, %v8560
        %v8591 = vadd.f32 %v8552, %v8560
        %v8592 = vadd.f32 %v8553, %v8560
        %v8593 = vadd.f32 %v8554, %v8560
        %v8594 = vadd.f32 %v8562, %v8563
        %v8595 = vadd.f32 %v8594, %v8564
        %v8596 = vadd.f32 %v8595, %v8565
        %v8597 = vadd.f32 %v8596, %v8566
        %v8598 = vadd.f32 %v8597, %v8567
        %v8599 = vadd.f32 %v8598, %v8568
        %v8600 = vadd.f32 %v8599, %v8569
        %v8601 = vadd.f32 %v8600, %v8570
        %v8602 = vadd.f32 %v8601, %v8571
        %v8603 = vadd.f32 %v8602, %v8572
        %v8604 = vadd.f32 %v8603, %v8573
        %v8605 = vadd.f32 %v8604, %v8574
        %v8606 = vadd.f32 %v8605, %v8575
        %v8607 = vadd.f32 %v8606, %v8576
        %v8608 = vadd.f32 %v8607, %v8577
        %v8609 = vadd.f32 %v8608, %v8578
        %v8610 = vadd.f32 %v8609, %v8579
        %v8611 = vadd.f32 %v8610, %v8580
        %v8612 = vadd.f32 %v8611, %v8581
        %v8613 = vadd.f32 %v8612, %v8582
        %v8614 = vadd.f32 %v8613, %v8583
        %v8615 = vadd.f32 %v8614, %v8584
        %v8616 = vadd.f32 %v8615, %v8585
        %v8617 = vadd.f32 %v8616, %v8586
        %v8618 = vadd.f32 %v8617, %v8587
        %v8619 = vadd.f32 %v8618, %v8588
        %v8620 = vadd.f32 %v8619, %v8589
        %v8621 = vadd.f32 %v8620, %v8590
        %v8622 = vadd.f32 %v8621, %v8591
        %v8623 = vadd.f32 %v8622, %v8592
        %v8624 = vadd.f32 %v8623, %v8593
        %v8625 = vrot.slane %v8624, 4
        %v8626 = vadd.f32 %v8624, %v8625
        %v8627 = vrot.slane %v8626, 2
        %v8628 = vadd.f32 %v8626, %v8627
        %v8629 = vrot.slane %v8628, 1
        %v8630 = vadd.f32 %v8628, %v8629
        %v8631 = vmul.f32 %v8630, 0.00390625
        %v8632 = vpack.c.bf16 %v8631, %v8631
        %v8633 = vld [vmem:[%s11] sm:$0xf]
        %v8634 = vld [vmem:[%s11 + $0x4] sm:$0xf]
        %v8635 = vld [vmem:[%s11 + $0x8] sm:$0xf]
        %v8636 = vld [vmem:[%s11 + $0xc] sm:$0xf]
        %v8637 = vld [vmem:[%s11 + $0x10] sm:$0xf]
        %v8638 = vld [vmem:[%s11 + $0x14] sm:$0xf]
        %v8639 = vld [vmem:[%s11 + $0x18] sm:$0xf]
        %v8640 = vld [vmem:[%s11 + $0x1c] sm:$0xf]
        %v8641 = vld [vmem:[%s11 + $0x20] sm:$0xf]
        %v8642 = vld [vmem:[%s11 + $0x24] sm:$0xf]
        %v8643 = vld [vmem:[%s11 + $0x28] sm:$0xf]
        %v8644 = vld [vmem:[%s11 + $0x2c] sm:$0xf]
        %v8645 = vld [vmem:[%s11 + $0x30] sm:$0xf]
        %v8646 = vld [vmem:[%s11 + $0x34] sm:$0xf]
        %v8647 = vld [vmem:[%s11 + $0x38] sm:$0xf]
        %v8648 = vld [vmem:[%s11 + $0x3c] sm:$0xf]
        %v8665 = vunpack.c.l.b16 %v8633
        %v8666 = vunpack.c.l.b16 %v8634
        %v8667 = vunpack.c.l.b16 %v8635
        %v8668 = vunpack.c.l.b16 %v8636
        %v8669 = vunpack.c.l.b16 %v8637
        %v8670 = vunpack.c.l.b16 %v8638
        %v8671 = vunpack.c.l.b16 %v8639
        %v8672 = vunpack.c.l.b16 %v8640
        %v8673 = vunpack.c.l.b16 %v8641
        %v8674 = vunpack.c.l.b16 %v8642
        %v8675 = vunpack.c.l.b16 %v8643
        %v8676 = vunpack.c.l.b16 %v8644
        %v8677 = vunpack.c.l.b16 %v8645
        %v8678 = vunpack.c.l.b16 %v8646
        %v8679 = vunpack.c.l.b16 %v8647
        %v8680 = vunpack.c.l.b16 %v8648
        %v8681 = vpack.c.b16 %v8666, %v8665
        %v8682 = vpack.c.b16 %v8668, %v8667
        %v8683 = vpack.c.b16 %v8670, %v8669
        %v8684 = vpack.c.b16 %v8672, %v8671
        %v8685 = vpack.c.b16 %v8674, %v8673
        %v8686 = vpack.c.b16 %v8676, %v8675
        %v8687 = vpack.c.b16 %v8678, %v8677
        %v8688 = vpack.c.b16 %v8680, %v8679
        %8697 = vmatprep.subr.bf16.mxu0 0
        %8698 = vmatpush1.bf16.msra.mxu0 %v8688
        %8699 = vmatprep.subr.bf16.mxu0 0
        %8700 = vmatpush1.bf16.msra.mxu0 %v8687
        %8701 = vmatprep.subr.bf16.mxu0 0
        %8702 = vmatpush1.bf16.msra.mxu0 %v8686
        %8703 = vmatprep.subr.bf16.mxu0 0
        %8704 = vmatpush1.bf16.msra.mxu0 %v8685
        %8705 = vmatprep.subr.bf16.mxu0 0
        %8706 = vmatpush1.bf16.msra.mxu0 %v8684
        %8707 = vmatprep.subr.bf16.mxu0 0
        %8708 = vmatpush1.bf16.msra.mxu0 %v8683
        %8709 = vmatprep.subr.bf16.mxu0 0
        %8710 = vmatpush1.bf16.msra.mxu0 %v8682
        %8711 = vmatprep.subr.bf16.mxu0 0
        %8712 = vmatpush1.bf16.msra.mxu0 %v8681
        %8713 = vmatprep.subr.bf16.mxu0 0
        %8714 = vmatpush2.bf16.msra.mxu0 0
        %8715 = vmatprep.subr.bf16.mxu0 0
        %8716 = vmatpush2.bf16.msra.mxu0 0
        %8717 = vmatprep.subr.bf16.mxu0 0
        %8718 = vmatpush2.bf16.msra.mxu0 0
        %8719 = vmatprep.subr.bf16.mxu0 0
        %8720 = vmatpush2.bf16.msra.mxu0 0
        %8721 = vmatprep.subr.bf16.mxu0 0
        %8722 = vmatpush2.bf16.msra.mxu0 0
        %8723 = vmatprep.subr.bf16.mxu0 0
        %8724 = vmatpush2.bf16.msra.mxu0 0
        %8725 = vmatprep.subr.bf16.mxu0 0
        %8726 = vmatpush2.bf16.msra.mxu0 0
        %8727 = vmatprep.subr.bf16.mxu0 0
        %8728 = vmatpush2.bf16.msra.mxu0 0
        %8729 = vmatprep.mubr.bf16.mxu0 0
        %8730 = vmatmul.mubr.bf16.gmra.mxu0 %v8632
        %v8731 = vpop.f32.mrf.mxu0
        %v8732 = vadd.f32 0.0, %v8731
        %v8733 = vpop.f32.mrf.mxu0
        %v8734 = vpop.f32.mrf.mxu0
        %v8735 = vpop.f32.mrf.mxu0
        %8736 = vdwg.mxu0
        %v8737 = vmax.f32 %v8732, 0.0
        %v8738 = vpack.c.bf16 %v8737, %v8737
        %v8739 = vld [vmem:[%s12] sm:$0xf]
        %v8740 = vld [vmem:[%s12 + $0x4] sm:$0xf]
        %v8741 = vld [vmem:[%s12 + $0x8] sm:$0xf]
        %v8742 = vld [vmem:[%s12 + $0xc] sm:$0xf]
        %v8743 = vld [vmem:[%s12 + $0x10] sm:$0xf]
        %v8744 = vld [vmem:[%s12 + $0x14] sm:$0xf]
        %v8745 = vld [vmem:[%s12 + $0x18] sm:$0xf]
        %v8746 = vld [vmem:[%s12 + $0x1c] sm:$0xf]
        %v8747 = vld [vmem:[%s12 + $0x20] sm:$0xf]
        %v8748 = vld [vmem:[%s12 + $0x24] sm:$0xf]
        %v8749 = vld [vmem:[%s12 + $0x28] sm:$0xf]
        %v8750 = vld [vmem:[%s12 + $0x2c] sm:$0xf]
        %v8751 = vld [vmem:[%s12 + $0x30] sm:$0xf]
        %v8752 = vld [vmem:[%s12 + $0x34] sm:$0xf]
        %v8753 = vld [vmem:[%s12 + $0x38] sm:$0xf]
        %v8754 = vld [vmem:[%s12 + $0x3c] sm:$0xf]
        %v8771 = vunpack.c.l.b16 %v8739
        %v8772 = vunpack.c.l.b16 %v8740
        %v8773 = vunpack.c.l.b16 %v8741
        %v8774 = vunpack.c.l.b16 %v8742
        %v8775 = vunpack.c.l.b16 %v8743
        %v8776 = vunpack.c.l.b16 %v8744
        %v8777 = vunpack.c.l.b16 %v8745
        %v8778 = vunpack.c.l.b16 %v8746
        %v8779 = vunpack.c.l.b16 %v8747
        %v8780 = vunpack.c.l.b16 %v8748
        %v8781 = vunpack.c.l.b16 %v8749
        %v8782 = vunpack.c.l.b16 %v8750
        %v8783 = vunpack.c.l.b16 %v8751
        %v8784 = vunpack.c.l.b16 %v8752
        %v8785 = vunpack.c.l.b16 %v8753
        %v8786 = vunpack.c.l.b16 %v8754
        %v8787 = vpack.c.b16 %v8772, %v8771
        %v8788 = vpack.c.b16 %v8774, %v8773
        %v8789 = vpack.c.b16 %v8776, %v8775
        %v8790 = vpack.c.b16 %v8778, %v8777
        %v8791 = vpack.c.b16 %v8780, %v8779
        %v8792 = vpack.c.b16 %v8782, %v8781
        %v8793 = vpack.c.b16 %v8784, %v8783
        %v8794 = vpack.c.b16 %v8786, %v8785
        %8803 = vmatprep.subr.bf16.mxu0 0
        %8804 = vmatpush1.bf16.msra.mxu0 %v8794
        %8805 = vmatprep.subr.bf16.mxu0 0
        %8806 = vmatpush1.bf16.msra.mxu0 %v8793
        %8807 = vmatprep.subr.bf16.mxu0 0
        %8808 = vmatpush1.bf16.msra.mxu0 %v8792
        %8809 = vmatprep.subr.bf16.mxu0 0
        %8810 = vmatpush1.bf16.msra.mxu0 %v8791
        %8811 = vmatprep.subr.bf16.mxu0 0
        %8812 = vmatpush1.bf16.msra.mxu0 %v8790
        %8813 = vmatprep.subr.bf16.mxu0 0
        %8814 = vmatpush1.bf16.msra.mxu0 %v8789
        %8815 = vmatprep.subr.bf16.mxu0 0
        %8816 = vmatpush1.bf16.msra.mxu0 %v8788
        %8817 = vmatprep.subr.bf16.mxu0 0
        %8818 = vmatpush1.bf16.msra.mxu0 %v8787
        %8819 = vmatprep.subr.bf16.mxu0 0
        %8820 = vmatpush2.bf16.msra.mxu0 0
        %8821 = vmatprep.subr.bf16.mxu0 0
        %8822 = vmatpush2.bf16.msra.mxu0 0
        %8823 = vmatprep.subr.bf16.mxu0 0
        %8824 = vmatpush2.bf16.msra.mxu0 0
        %8825 = vmatprep.subr.bf16.mxu0 0
        %8826 = vmatpush2.bf16.msra.mxu0 0
        %8827 = vmatprep.subr.bf16.mxu0 0
        %8828 = vmatpush2.bf16.msra.mxu0 0
        %8829 = vmatprep.subr.bf16.mxu0 0
        %8830 = vmatpush2.bf16.msra.mxu0 0
        %8831 = vmatprep.subr.bf16.mxu0 0
        %8832 = vmatpush2.bf16.msra.mxu0 0
        %8833 = vmatprep.subr.bf16.mxu0 0
        %8834 = vmatpush2.bf16.msra.mxu0 0
        %8835 = vmatprep.mubr.bf16.mxu0 0
        %8836 = vmatmul.mubr.bf16.gmra.mxu0 %v8738
        %v8837 = vpop.f32.mrf.mxu0
        %v8838 = vadd.f32 0.0, %v8837
        %v8839 = vpop.f32.mrf.mxu0
        %v8840 = vpop.f32.mrf.mxu0
        %v8841 = vpop.f32.mrf.mxu0
        %8842 = vdwg.mxu0
        %v8843 = vsub.f32 0.0, %v8838
        %v8844 = vmul.f32 %v8843, 1.442695
        %v8845 = vpow.pop %v8844
        %v8846 = vadd.f32 %v8845, 1.0
        %v8847 = vrcp.pop %v8846
        %v8848 = vmul.f32 1.0, %v8847
        %vm8849 = vcmask 1046528
        %v8850 = vrot.slane %v443, 1
        %v8851 = vrot.slane %v444, 1
        %v8852 = vsel %vm8849, %v8850, %v8851
        %v8853 = vrot.slane %v445, 1
        %v8854 = vsel %vm8849, %v8851, %v8853
        %v8855 = vrot.slane %v446, 1
        %v8856 = vrot.slane %v447, 1
        %v8857 = vsel %vm8849, %v8855, %v8856
        %v8858 = vrot.slane %v448, 1
        %v8859 = vsel %vm8849, %v8856, %v8858
        %v8860 = vrot.slane %v449, 1
        %v8861 = vrot.slane %v450, 1
        %v8862 = vsel %vm8849, %v8860, %v8861
        %v8863 = vrot.slane %v451, 1
        %v8864 = vsel %vm8849, %v8861, %v8863
        %v8865 = vrot.slane %v452, 1
        %v8866 = vrot.slane %v453, 1
        %v8867 = vsel %vm8849, %v8865, %v8866
        %v8868 = vrot.slane %v454, 1
        %v8869 = vsel %vm8849, %v8866, %v8868
        %v8870 = vrot.slane %v455, 1
        %v8871 = vrot.slane %v456, 1
        %v8872 = vsel %vm8849, %v8870, %v8871
        %v8873 = vrot.slane %v457, 1
        %v8874 = vsel %vm8849, %v8871, %v8873
        %v8875 = vrot.slane %v458, 1
        %v8876 = vrot.slane %v459, 1
        %v8877 = vsel %vm8849, %v8875, %v8876
        %v8878 = vrot.slane %v460, 1
        %v8879 = vsel %vm8849, %v8876, %v8878
        %v8880 = vrot.slane %v461, 1
        %v8881 = vrot.slane %v462, 1
        %v8882 = vsel %vm8849, %v8880, %v8881
        %v8883 = vrot.slane %v463, 1
        %v8884 = vsel %vm8849, %v8881, %v8883
        %v8885 = vrot.slane %v464, 1
        %v8886 = vrot.slane %v465, 1
        %v8887 = vsel %vm8849, %v8885, %v8886
        %v8888 = vrot.slane %v466, 1
        %v8889 = vsel %vm8849, %v8886, %v8888
        %v8890 = vrot.slane %v467, 1
        %v8891 = vrot.slane %v468, 1
        %v8892 = vsel %vm8849, %v8890, %v8891
        %v8893 = vrot.slane %v469, 1
        %v8894 = vsel %vm8849, %v8891, %v8893
        %v8895 = vrot.slane %v470, 1
        %v8896 = vrot.slane %v471, 1
        %v8897 = vsel %vm8849, %v8895, %v8896
        %v8898 = vrot.slane %v472, 1
        %v8899 = vsel %vm8849, %v8896, %v8898
        %v8900 = vrot.slane %v473, 1
        %v8901 = vrot.slane %v474, 1
        %v8902 = vsel %vm8849, %v8900, %v8901
        %v8903 = vrot.slane %v475, 1
        %v8904 = vsel %vm8849, %v8901, %v8903
        %v8905 = vrot.slane %v476, 1
        %v8906 = vrot.slane %v477, 1
        %v8907 = vsel %vm8849, %v8905, %v8906
        %v8908 = vrot.slane %v478, 1
        %v8909 = vsel %vm8849, %v8906, %v8908
        %v8910 = vrot.slane %v479, 1
        %v8911 = vrot.slane %v480, 1
        %v8912 = vsel %vm8849, %v8910, %v8911
        %v8913 = vrot.slane %v481, 1
        %v8914 = vsel %vm8849, %v8911, %v8913
        %v8915 = vrot.slane %v482, 1
        %v8916 = vrot.slane %v483, 1
        %v8917 = vsel %vm8849, %v8915, %v8916
        %v8918 = vrot.slane %v484, 1
        %v8919 = vsel %vm8849, %v8916, %v8918
        %v8920 = vrot.slane %v485, 1
        %v8921 = vrot.slane %v486, 1
        %v8922 = vsel %vm8849, %v8920, %v8921
        %v8923 = vrot.slane %v487, 1
        %v8924 = vsel %vm8849, %v8921, %v8923
        %v8925 = vrot.slane %v488, 1
        %v8926 = vrot.slane %v489, 1
        %v8927 = vsel %vm8849, %v8925, %v8926
        %v8928 = vrot.slane %v490, 1
        %v8929 = vsel %vm8849, %v8926, %v8928
        %v8962 = vlaneseq
        %v8963 = vshrl.u32 %v8962, 7
        %v8964 = vsub.s32 0, %v8963
        %v8965 = vrot.slane %v8848, %v8964
        %v8966 = vmul.f32 %v8562, %v8965
        %v8967 = vmul.f32 %v8563, %v8965
        %v8968 = vmul.f32 %v8564, %v8965
        %v8969 = vmul.f32 %v8565, %v8965
        %v8970 = vmul.f32 %v8566, %v8965
        %v8971 = vmul.f32 %v8567, %v8965
        %v8972 = vmul.f32 %v8568, %v8965
        %v8973 = vmul.f32 %v8569, %v8965
        %v8974 = vmul.f32 %v8570, %v8965
        %v8975 = vmul.f32 %v8571, %v8965
        %v8976 = vmul.f32 %v8572, %v8965
        %v8977 = vmul.f32 %v8573, %v8965
        %v8978 = vmul.f32 %v8574, %v8965
        %v8979 = vmul.f32 %v8575, %v8965
        %v8980 = vmul.f32 %v8576, %v8965
        %v8981 = vmul.f32 %v8577, %v8965
        %v8982 = vmul.f32 %v8578, %v8965
        %v8983 = vmul.f32 %v8579, %v8965
        %v8984 = vmul.f32 %v8580, %v8965
        %v8985 = vmul.f32 %v8581, %v8965
        %v8986 = vmul.f32 %v8582, %v8965
        %v8987 = vmul.f32 %v8583, %v8965
        %v8988 = vmul.f32 %v8584, %v8965
        %v8989 = vmul.f32 %v8585, %v8965
        %v8990 = vmul.f32 %v8586, %v8965
        %v8991 = vmul.f32 %v8587, %v8965
        %v8992 = vmul.f32 %v8588, %v8965
        %v8993 = vmul.f32 %v8589, %v8965
        %v8994 = vmul.f32 %v8590, %v8965
        %v8995 = vmul.f32 %v8591, %v8965
        %v8996 = vmul.f32 %v8592, %v8965
        %v8997 = vmul.f32 %v8593, %v8965
        %v8998 = vadd.f32 %v8966, %v8852
        %v8999 = vadd.f32 %v8967, %v8854
        %v9000 = vadd.f32 %v8968, %v8857
        %v9001 = vadd.f32 %v8969, %v8859
        %v9002 = vadd.f32 %v8970, %v8862
        %v9003 = vadd.f32 %v8971, %v8864
        %v9004 = vadd.f32 %v8972, %v8867
        %v9005 = vadd.f32 %v8973, %v8869
        %v9006 = vadd.f32 %v8974, %v8872
        %v9007 = vadd.f32 %v8975, %v8874
        %v9008 = vadd.f32 %v8976, %v8877
        %v9009 = vadd.f32 %v8977, %v8879
        %v9010 = vadd.f32 %v8978, %v8882
        %v9011 = vadd.f32 %v8979, %v8884
        %v9012 = vadd.f32 %v8980, %v8887
        %v9013 = vadd.f32 %v8981, %v8889
        %v9014 = vadd.f32 %v8982, %v8892
        %v9015 = vadd.f32 %v8983, %v8894
        %v9016 = vadd.f32 %v8984, %v8897
        %v9017 = vadd.f32 %v8985, %v8899
        %v9018 = vadd.f32 %v8986, %v8902
        %v9019 = vadd.f32 %v8987, %v8904
        %v9020 = vadd.f32 %v8988, %v8907
        %v9021 = vadd.f32 %v8989, %v8909
        %v9022 = vadd.f32 %v8990, %v8912
        %v9023 = vadd.f32 %v8991, %v8914
        %v9024 = vadd.f32 %v8992, %v8917
        %v9025 = vadd.f32 %v8993, %v8919
        %v9026 = vadd.f32 %v8994, %v8922
        %v9027 = vadd.f32 %v8995, %v8924
        %v9028 = vadd.f32 %v8996, %v8927
        %v9029 = vadd.f32 %v8997, %v8929
        %v9030 = vmax.f32 %v8998, 0.0
        %v9031 = vmax.f32 %v8999, 0.0
        %v9032 = vmax.f32 %v9000, 0.0
        %v9033 = vmax.f32 %v9001, 0.0
        %v9034 = vmax.f32 %v9002, 0.0
        %v9035 = vmax.f32 %v9003, 0.0
        %v9036 = vmax.f32 %v9004, 0.0
        %v9037 = vmax.f32 %v9005, 0.0
        %v9038 = vmax.f32 %v9006, 0.0
        %v9039 = vmax.f32 %v9007, 0.0
        %v9040 = vmax.f32 %v9008, 0.0
        %v9041 = vmax.f32 %v9009, 0.0
        %v9042 = vmax.f32 %v9010, 0.0
        %v9043 = vmax.f32 %v9011, 0.0
        %v9044 = vmax.f32 %v9012, 0.0
        %v9045 = vmax.f32 %v9013, 0.0
        %v9046 = vmax.f32 %v9014, 0.0
        %v9047 = vmax.f32 %v9015, 0.0
        %v9048 = vmax.f32 %v9016, 0.0
        %v9049 = vmax.f32 %v9017, 0.0
        %v9050 = vmax.f32 %v9018, 0.0
        %v9051 = vmax.f32 %v9019, 0.0
        %v9052 = vmax.f32 %v9020, 0.0
        %v9053 = vmax.f32 %v9021, 0.0
        %v9054 = vmax.f32 %v9022, 0.0
        %v9055 = vmax.f32 %v9023, 0.0
        %v9056 = vmax.f32 %v9024, 0.0
        %v9057 = vmax.f32 %v9025, 0.0
        %v9058 = vmax.f32 %v9026, 0.0
        %v9059 = vmax.f32 %v9027, 0.0
        %v9060 = vmax.f32 %v9028, 0.0
        %v9061 = vmax.f32 %v9029, 0.0
        %9062 = vst [vmem:[%s433] sm:$0xff] %v9030
        %9063 = vst [vmem:[%s433 + $0x8] sm:$0xff] %v9031
        %9064 = vst [vmem:[%s433 + $0x10] sm:$0xff] %v9032
        %9065 = vst [vmem:[%s433 + $0x18] sm:$0xff] %v9033
        %9066 = vst [vmem:[%s433 + $0x20] sm:$0xff] %v9034
        %9067 = vst [vmem:[%s433 + $0x28] sm:$0xff] %v9035
        %9068 = vst [vmem:[%s433 + $0x30] sm:$0xff] %v9036
        %9069 = vst [vmem:[%s433 + $0x38] sm:$0xff] %v9037
        %9070 = vst [vmem:[%s433 + $0x40] sm:$0xff] %v9038
        %9071 = vst [vmem:[%s433 + $0x48] sm:$0xff] %v9039
        %9072 = vst [vmem:[%s433 + $0x50] sm:$0xff] %v9040
        %9073 = vst [vmem:[%s433 + $0x58] sm:$0xff] %v9041
        %9074 = vst [vmem:[%s433 + $0x60] sm:$0xff] %v9042
        %9075 = vst [vmem:[%s433 + $0x68] sm:$0xff] %v9043
        %9076 = vst [vmem:[%s433 + $0x70] sm:$0xff] %v9044
        %9077 = vst [vmem:[%s433 + $0x78] sm:$0xff] %v9045
        %9078 = vst [vmem:[%s433 + $0x80] sm:$0xff] %v9046
        %9079 = vst [vmem:[%s433 + $0x88] sm:$0xff] %v9047
        %9080 = vst [vmem:[%s433 + $0x90] sm:$0xff] %v9048
        %9081 = vst [vmem:[%s433 + $0x98] sm:$0xff] %v9049
        %9082 = vst [vmem:[%s433 + $0xa0] sm:$0xff] %v9050
        %9083 = vst [vmem:[%s433 + $0xa8] sm:$0xff] %v9051
        %9084 = vst [vmem:[%s433 + $0xb0] sm:$0xff] %v9052
        %9085 = vst [vmem:[%s433 + $0xb8] sm:$0xff] %v9053
        %9086 = vst [vmem:[%s433 + $0xc0] sm:$0xff] %v9054
        %9087 = vst [vmem:[%s433 + $0xc8] sm:$0xff] %v9055
        %9088 = vst [vmem:[%s433 + $0xd0] sm:$0xff] %v9056
        %9089 = vst [vmem:[%s433 + $0xd8] sm:$0xff] %v9057
        %9090 = vst [vmem:[%s433 + $0xe0] sm:$0xff] %v9058
        %9091 = vst [vmem:[%s433 + $0xe8] sm:$0xff] %v9059
        %9092 = vst [vmem:[%s433 + $0xf0] sm:$0xff] %v9060
        %9093 = vst [vmem:[%s433 + $0xf8] sm:$0xff] %v9061
        %s9094 = sand.u32 %s313, 1
        %s9095 = scalar_lea.sflag [#allocation3], %s9094
        %s9096 = sand.u32 %s313, 1
        %s9097 = smul.addr %s9096, 256
        %s9098 = scalar_lea.vmem [#allocation2], %s9097
        // Predicated region
        $region73: #{tpu_custom_call.1} parent=71 // pred_check
          %p9099 = pneg %p323
        $region74: #{tpu_custom_call.1} parent=71 // pred_check_branch
          %9101 = sbr.rel (%p9099) target = $region76
        $region75: #{tpu_custom_call.1} parent=71 // pred_region
          %s9103 = ssub.s32 4096, 4096
          %9104 = vsyncadd %s9095, %s9103
          %s9105 = smul.addr %s27, 32
          %s9106 = smul.addr %s9105, 128
          %s9107 = scalar_lea.hbm %s13, %s9106
          %s9108 = sshll.u32 %s9098, 4
          %s9109 = int_to_ptr.vmem [resolvable:$true] %s9108
          %9114 = dma.vmem_to_hbm [thread:$0]  %s9109, 4096, %s9107, %s9095, 128, 128, 8
        $region76: #{tpu_custom_call.1} parent=71 // pred_fallthru
          _
      $region72: #{tpu_custom_call.1} parent=5 // pred_fallthru
        _
      %p9115 = scmp.le.s32.totalorder 2, %s22
      // Predicated region
      $region77: #{tpu_custom_call.1} parent=5 // pred_check
        %p9116 = pneg %p9115
      $region78: #{tpu_custom_call.1} parent=5 // pred_check_branch
        %9118 = sbr.rel (%p9116) target = $region80
      $region79: #{tpu_custom_call.1} parent=5 // pred_region
        %s9119 = ssub.s32 %s22, 2
        // Predicated region
        $region81: #{tpu_custom_call.1} parent=79 // pred_check
          %p9120 = pneg %p329
        $region82: #{tpu_custom_call.1} parent=79 // pred_check_branch
          %9122 = sbr.rel (%p9120) target = $region84
        $region83: #{tpu_custom_call.1} parent=79 // pred_region
          %s9123 = sand.u32 %s314, 1
          %s9124 = scalar_lea.sflag [#allocation3], %s9123
          %s9125 = sand.u32 %s314, 1
          %s9126 = smul.addr %s9125, 256
          %s9127 = scalar_lea.vmem [#allocation2], %s9126
          %9128 = dma.done %s9124, 4096
        $region84: #{tpu_custom_call.1} parent=79 // pred_fallthru
          _
      $region80: #{tpu_custom_call.1} parent=5 // pred_fallthru
        _
    $region6: #{tpu_custom_call.1} parent=1 // loop_footer
      %s26 = sadd.s32 1, %s22
    $region7: #{tpu_custom_call.1} parent=1 // loop_footer_branch
      %21 = sbr.rel target = $region3
    $region8: #{tpu_custom_call.1} parent=1 // loop_exit
      _
    %9129 = vsyncpa [#allocation3], 1
    %s9130 = scalar_lea.sflag [#allocation3], 1
    %9131 = vsyncpa %s9130, 1

</llo_original>
